<compile_context>
chip_gen: v7x
topology: tpu7x:2x2x1
jax: 0.10.0
libtpu: 0.0.40
codegen_flags: <defaults>
</compile_context>

<pallas_src>
import functools
import math

import jax
import jax.numpy as jnp
from jax.experimental import pallas as pl
from jax.experimental.pallas import tpu as pltpu


def _round8(n):
    return ((n + 7) // 8) * 8


def _slab_offsets(E):
    """Row offsets of the packed constant slab (every section 8-row aligned)."""
    o_wa = 0
    o_ba = o_wa + _round8(E)
    o_wb = o_ba + 8
    o_bb = o_wb + _round8(E)
    o_wc = o_bb + 8
    o_bc = o_wc + _round8(E)
    rows = o_bc + 8
    return o_wa, o_ba, o_wb, o_bb, o_wc, o_bc, rows


# --------------------------- single fused kernel ---------------------------- #
def _fused_kernel(x_ref, w_ref, o_ref, *, B, S, E, O, nhead):
    f32 = jnp.float32
    hd = E // nhead
    scale = 1.0 / math.sqrt(hd)
    o_wa, o_ba, o_wb, o_bb, o_wc, o_bc, _ = _slab_offsets(E)

    # Static (free) views into the packed constant slab.
    w_a = w_ref[o_wa:o_wa + E, :]            # (E, 3E)  x -> attn2 head-projected [q|k|v]
    b_a = w_ref[o_ba:o_ba + 1, :]            # (1, 3E)
    w_b = w_ref[o_wb:o_wb + E, :]            # (E, 3E)  attn2 heads -> attn1 [q|k|v]
    b_b = w_ref[o_bb:o_bb + 1, :]            # (1, 3E)
    w_c = w_ref[o_wc:o_wc + E, 0:O]          # (E, O)   mean(attn1 heads) -> output
    b_c = w_ref[o_bc:o_bc + 1, 0:O]          # (1, O)

    def mha(qkv, n, l):
        # qkv: (n*l, 3E), rows in (n, l) order, columns already head-projected [q|k|v].
        # All heads at once: a single batched score/PV einsum pair, batch = nhead*n.
        def heads(c0):
            return jnp.concatenate(
                [qkv[:, c0 + h * hd:c0 + (h + 1) * hd].reshape(n, l, hd)
                 for h in range(nhead)], axis=0)                       # (nhead*n, l, hd)

        q, k, v = heads(0), heads(E), heads(2 * E)
        s = jnp.einsum('bqd,bkd->bqk', q, k, preferred_element_type=f32) * scale
        s = s - jnp.max(s, axis=-1, keepdims=True)
        p = jnp.exp(s)
        p = p / jnp.sum(p, axis=-1, keepdims=True)        # exact (matches torch softmax)
        o = jnp.einsum('bqk,bkd->bqd', p, v, preferred_element_type=f32)
        return o.reshape(nhead, n, l, hd)

    x = x_ref[...]                                                    # (B*S, E), (b,s) rows

    # linear_query1/key1/value1 + attention2 in-projection (host-folded into w_a).
    qkv_a2 = jnp.dot(x, w_a, preferred_element_type=f32) + b_a        # (B*S, 3E)
    # attention2(q1.T, k1.T, v1.T): PyTorch sees (L=S, N=B) -> batch = B, seq = S.
    o2 = mha(qkv_a2, B, S)                                            # (nhead, B, S, hd)
    attn2 = jnp.concatenate(
        [o2[h].reshape(B * S, hd) for h in range(nhead)], axis=-1)    # (B*S, E), (b,s) rows

    # attention2 out-proj + linear_query2/key2/value2 + attention1 in-proj -> w_b.
    qkv_a1 = jnp.dot(attn2, w_b, preferred_element_type=f32) + b_b    # (B*S, 3E), (b,s) rows
    # attention1(q2, k2, v2) has NO transpose in the reference: PyTorch sees
    # (L=B, N=S) -> batch = S, seq = B.  Reorder rows (b,s)->(s,b) with a cheap
    # leading-dim transpose (no MXU push, no extra constant input).
    qkv_a1 = qkv_a1.reshape(B, S, 3 * E).transpose(1, 0, 2).reshape(B * S, 3 * E)
    o1 = mha(qkv_a1, S, B)                                            # (nhead, S, B, hd)

    # torch.mean(x2, dim=1) is a mean over the attention-batch (s) axis; it commutes
    # with attention1's out-proj and fc (both affine), which are host-folded into w_c.
    o1m = jnp.mean(o1, axis=1)                                        # (nhead, B, hd)
    xm = jnp.concatenate([o1m[h] for h in range(nhead)], axis=-1)     # (B, E)
    o_ref[...] = jnp.dot(xm, w_c, preferred_element_type=f32) + b_c   # (B, O)


# ------------------------------ Model wrapper ------------------------------- #
def test_model_forward(x, slab, *, nhead, out_features):
    B, S, E = x.shape
    O = out_features
    assert E % nhead == 0 and slab.shape[1] == 3 * E and O <= 3 * E
    M = B * S
    hd = E // nhead
    x_flat = x.reshape(M, E)

    kernel = functools.partial(_fused_kernel, B=B, S=S, E=E, O=O, nhead=nhead)
    flops = (2 * M * E * 3 * E                     # x @ w_a
             + 2 * M * E * 3 * E                   # attn2 @ w_b
             + 2 * 2 * nhead * B * S * S * hd      # attn2 scores + PV
             + 2 * 2 * nhead * S * B * B * hd      # attn1 scores + PV
             + 2 * B * E * O)                      # xm @ w_c
    cost = pl.CostEstimate(
        flops=flops,
        transcendentals=nhead * B * S * S + nhead * S * B * B,
        bytes_accessed=(x_flat.size + slab.size + B * O) * 4)

    vmem = pl.BlockSpec(memory_space=pltpu.MemorySpace.VMEM)
    return pl.pallas_call(
        kernel,
        out_shape=jax.ShapeDtypeStruct((B, O), jnp.float32),
        in_specs=[vmem, vmem],
        out_specs=vmem,
        cost_estimate=cost,
    )(x_flat, slab)
    # TODO(synk): kept single-TensorCore on v7x — cross-core exchange + barriers would
    # exceed this tiny kernel's runtime (attention2 needs all s per b, attention1 all
    # b per s, so a 2-way split would require a mid-kernel core-to-core shuffle).


# ----------------------- Param init (PyTorch layout) ------------------------ #
def init_params(key, input_size, output_size):
    E, O = input_size, output_size
    specs = {
        "wq1": (O, E), "bq1": (O,), "wk1": (O, E), "bk1": (O,),
        "wv1": (O, E), "bv1": (O,),
        "a2_wq": (E, E), "a2_wk": (E, E), "a2_wv": (E, E),
        "a2_bq": (E,), "a2_bk": (E,), "a2_bv": (E,),
        "a2_wo": (E, E), "a2_bo": (E,),
        "wq2": (O, E), "bq2": (O,), "wk2": (O, E), "bk2": (O,),
        "wv2": (O, E), "bv2": (O,),
        "a1_wq": (E, E), "a1_wk": (E, E), "a1_wv": (E, E),
        "a1_bq": (E,), "a1_bk": (E,), "a1_bv": (E,),
        "a1_wo": (E, E), "a1_bo": (E,),
        "wfc": (O, E), "bfc": (O,),
    }
    names = sorted(specs.keys())
    keys = jax.random.split(key, len(names))
    return {n: 0.05 * jax.random.normal(k_, specs[n], jnp.float32)
            for n, k_ in zip(names, keys)}


# --- One-time host-side weight prep: fold constant matmul chains + pack slab -- #
def prepare_params(p):
    f32 = jnp.float32
    E = p["a2_wq"].shape[0]
    O = p["wfc"].shape[0]

    def T(w):  # PyTorch (out, in) -> (in, out) so the kernel computes x @ W
        return jnp.asarray(w, f32).T

    def fold2(w0, b0, w1, b1):
        # (x @ w0 + b0) @ w1 + b1  ==  x @ (w0 @ w1) + (b0 @ w1 + b1)
        return w0 @ w1, b0 @ w1 + b1

    # w_a / b_a: linear_{q,k,v}1 followed by attention2's per-q/k/v in-projection.
    blocks_a = [fold2(T(p["w%s1" % n]), jnp.asarray(p["b%s1" % n], f32),
                      T(p["a2_w%s" % n]), jnp.asarray(p["a2_b%s" % n], f32))
                for n in ("q", "k", "v")]
    w_a = jnp.concatenate([w for w, _ in blocks_a], axis=1)           # (E, 3E)
    b_a = jnp.concatenate([b for _, b in blocks_a])                   # (3E,)

    # w_b / b_b: attention2 out-proj -> linear_{q,k,v}2 -> attention1 in-projection.
    wo2, bo2 = T(p["a2_wo"]), jnp.asarray(p["a2_bo"], f32)
    blocks_b = []
    for n in ("q", "k", "v"):
        w1, b1 = fold2(wo2, bo2, T(p["w%s2" % n]), jnp.asarray(p["b%s2" % n], f32))
        blocks_b.append(fold2(w1, b1, T(p["a1_w%s" % n]), jnp.asarray(p["a1_b%s" % n], f32)))
    w_b = jnp.concatenate([w for w, _ in blocks_b], axis=1)           # (E, 3E)
    b_b = jnp.concatenate([b for _, b in blocks_b])                   # (3E,)

    # w_c / b_c: attention1 out-proj followed by fc.
    w_c, b_c = fold2(T(p["a1_wo"]), jnp.asarray(p["a1_bo"], f32),
                     T(p["wfc"]), jnp.asarray(p["bfc"], f32))         # (E, O), (O,)

    # Pack everything into one lane-padded slab => a single constant DMA.
    o_wa, o_ba, o_wb, o_bb, o_wc, o_bc, rows = _slab_offsets(E)
    slab = jnp.zeros((rows, 3 * E), f32)
    slab = slab.at[o_wa:o_wa + E, :].set(w_a)
    slab = slab.at[o_ba, :].set(b_a)
    slab = slab.at[o_wb:o_wb + E, :].set(w_b)
    slab = slab.at[o_bb, :].set(b_b)
    slab = slab.at[o_wc:o_wc + E, 0:O].set(w_c)
    slab = slab.at[o_bc, 0:O].set(b_c)
    return slab


# ----------------- Pure-JAX reference (op-for-op PyTorch mirror) ------------- #
def reference_forward(x, p, nhead):
    f32 = jnp.float32

    def lin(z, w, b):
        return z @ jnp.asarray(w, f32).T + jnp.asarray(b, f32)

    def mha(q, k, v, wq, wk, wv, bq, bk, bv, wo, bo):
        L, N, E = q.shape
        hd = E // nhead

        def split(t):  # (L, N, E) -> (N*nhead, L, hd), head-major within E
            return t.reshape(L, N * nhead, hd).transpose(1, 0, 2)

        qh = split(lin(q, wq, bq)) / math.sqrt(hd)
        kh = split(lin(k, wk, bk))
        vh = split(lin(v, wv, bv))
        a = jax.nn.softmax(jnp.einsum('bld,bmd->blm', qh, kh), axis=-1)
        o = jnp.einsum('blm,bmd->bld', a, vh).transpose(1, 0, 2).reshape(L, N, E)
        return lin(o, wo, bo)

    q1, k1, v1 = (lin(x, p["w%s1" % n], p["b%s1" % n]) for n in ("q", "k", "v"))
    x1 = mha(q1.transpose(1, 0, 2), k1.transpose(1, 0, 2), v1.transpose(1, 0, 2),
             p["a2_wq"], p["a2_wk"], p["a2_wv"],
             p["a2_bq"], p["a2_bk"], p["a2_bv"], p["a2_wo"], p["a2_bo"])
    x1 = x1.transpose(1, 0, 2)
    q2, k2, v2 = (lin(x1, p["w%s2" % n], p["b%s2" % n]) for n in ("q", "k", "v"))
    x2 = mha(q2, k2, v2,
             p["a1_wq"], p["a1_wk"], p["a1_wv"],
             p["a1_bq"], p["a1_bk"], p["a1_bv"], p["a1_wo"], p["a1_bo"])
    return lin(jnp.mean(x2, axis=1), p["wfc"], p["bfc"])


if __name__ == "__main__":
    B, S = 2, 8
    input_size = output_size = 32   # MultiheadAttention(embed_dim=input_size) forces equality
    nhead = 4                        # head_dim = 8

    key = jax.random.PRNGKey(0)
    kx, kp = jax.random.split(key)
    x = jax.random.normal(kx, (B, S, input_size), jnp.float32)
    params = init_params(kp, input_size, output_size)
    slab = prepare_params(params)    # one-time host-side folding + packing

    fwd = jax.jit(functools.partial(test_model_forward, nhead=nhead,
                                    out_features=output_size))
    out = fwd(x, slab)
    jax.block_until_ready(out)
    assert out.shape == (B, output_size), out.shape

    ref = reference_forward(x, params, nhead)
    assert jnp.allclose(out, ref, atol=1e-4, rtol=1e-4), \
        float(jnp.max(jnp.abs(out - ref)))
    print("KERNEL_OK")
</pallas_src>

<mosaic_0001>
module attributes {stable_mosaic.version = 11 : i64} {
  func.func @_fused_kernel(%arg0: memref<16x32xf32, #tpu.memory_space<vmem>>, %arg1: memref<120x96xf32, #tpu.memory_space<vmem>>, %arg2: memref<2x32xf32, #tpu.memory_space<vmem>>) attributes {dimension_semantics = [], scalar_prefetch = 0 : i64, scratch_operands = 0 : i64, tpu.core_type = #tpu.core_type<tc>} {
    %c0 = arith.constant 0 : index
    %c0_0 = arith.constant 0 : index
    %0 = vector.load %arg1[%c0, %c0_0] : memref<120x96xf32, #tpu.memory_space<vmem>>, vector<32x96xf32>
    %c32 = arith.constant 32 : index
    %c0_1 = arith.constant 0 : index
    %1 = vector.load %arg1[%c32, %c0_1] : memref<120x96xf32, #tpu.memory_space<vmem>>, vector<1x96xf32>
    %c40 = arith.constant 40 : index
    %c0_2 = arith.constant 0 : index
    %2 = vector.load %arg1[%c40, %c0_2] : memref<120x96xf32, #tpu.memory_space<vmem>>, vector<32x96xf32>
    %c72 = arith.constant 72 : index
    %c0_3 = arith.constant 0 : index
    %3 = vector.load %arg1[%c72, %c0_3] : memref<120x96xf32, #tpu.memory_space<vmem>>, vector<1x96xf32>
    %c80 = arith.constant 80 : index
    %c0_4 = arith.constant 0 : index
    %4 = vector.load %arg1[%c80, %c0_4] : memref<120x96xf32, #tpu.memory_space<vmem>>, vector<32x32xf32>
    %c112 = arith.constant 112 : index
    %c0_5 = arith.constant 0 : index
    %5 = vector.load %arg1[%c112, %c0_5] : memref<120x96xf32, #tpu.memory_space<vmem>>, vector<1x32xf32>
    %c0_6 = arith.constant 0 : index
    %c0_7 = arith.constant 0 : index
    %6 = vector.load %arg0[%c0_6, %c0_7] : memref<16x32xf32, #tpu.memory_space<vmem>>, vector<16x32xf32>
    %cst = arith.constant dense<0.000000e+00> : vector<16x96xf32>
    %7 = tpu.matmul %6, %0, %cst {dimension_numbers = #tpu.dot_dimension_numbers<[1], [0], [0], [1], [0, 0, 1, 1], [], []>} : vector<16x32xf32>, vector<32x96xf32>, vector<16x96xf32> -> vector<16x96xf32>
    %8 = vector.broadcast %1 : vector<1x96xf32> to vector<16x96xf32>
    %9 = arith.addf %7, %8 : vector<16x96xf32>
    %10 = vector.extract_strided_slice %9 {offsets = [0, 0], sizes = [16, 8], strides = [1, 1]} : vector<16x96xf32> to vector<16x8xf32>
    %11 = vector.shape_cast %10 : vector<16x8xf32> to vector<2x8x8xf32>
    %12 = vector.extract_strided_slice %9 {offsets = [0, 8], sizes = [16, 8], strides = [1, 1]} : vector<16x96xf32> to vector<16x8xf32>
    %13 = vector.shape_cast %12 : vector<16x8xf32> to vector<2x8x8xf32>
    %14 = vector.extract_strided_slice %9 {offsets = [0, 16], sizes = [16, 8], strides = [1, 1]} : vector<16x96xf32> to vector<16x8xf32>
    %15 = vector.shape_cast %14 : vector<16x8xf32> to vector<2x8x8xf32>
    %16 = vector.extract_strided_slice %9 {offsets = [0, 24], sizes = [16, 8], strides = [1, 1]} : vector<16x96xf32> to vector<16x8xf32>
    %17 = vector.shape_cast %16 : vector<16x8xf32> to vector<2x8x8xf32>
    %18 = tpu.concatenate %11, %13, %15, %17 in 0 : vector<2x8x8xf32>, vector<2x8x8xf32>, vector<2x8x8xf32>, vector<2x8x8xf32> -> vector<8x8x8xf32>
    %19 = vector.extract_strided_slice %9 {offsets = [0, 32], sizes = [16, 8], strides = [1, 1]} : vector<16x96xf32> to vector<16x8xf32>
    %20 = vector.shape_cast %19 : vector<16x8xf32> to vector<2x8x8xf32>
    %21 = vector.extract_strided_slice %9 {offsets = [0, 40], sizes = [16, 8], strides = [1, 1]} : vector<16x96xf32> to vector<16x8xf32>
    %22 = vector.shape_cast %21 : vector<16x8xf32> to vector<2x8x8xf32>
    %23 = vector.extract_strided_slice %9 {offsets = [0, 48], sizes = [16, 8], strides = [1, 1]} : vector<16x96xf32> to vector<16x8xf32>
    %24 = vector.shape_cast %23 : vector<16x8xf32> to vector<2x8x8xf32>
    %25 = vector.extract_strided_slice %9 {offsets = [0, 56], sizes = [16, 8], strides = [1, 1]} : vector<16x96xf32> to vector<16x8xf32>
    %26 = vector.shape_cast %25 : vector<16x8xf32> to vector<2x8x8xf32>
    %27 = tpu.concatenate %20, %22, %24, %26 in 0 : vector<2x8x8xf32>, vector<2x8x8xf32>, vector<2x8x8xf32>, vector<2x8x8xf32> -> vector<8x8x8xf32>
    %28 = vector.extract_strided_slice %9 {offsets = [0, 64], sizes = [16, 8], strides = [1, 1]} : vector<16x96xf32> to vector<16x8xf32>
    %29 = vector.shape_cast %28 : vector<16x8xf32> to vector<2x8x8xf32>
    %30 = vector.extract_strided_slice %9 {offsets = [0, 72], sizes = [16, 8], strides = [1, 1]} : vector<16x96xf32> to vector<16x8xf32>
    %31 = vector.shape_cast %30 : vector<16x8xf32> to vector<2x8x8xf32>
    %32 = vector.extract_strided_slice %9 {offsets = [0, 80], sizes = [16, 8], strides = [1, 1]} : vector<16x96xf32> to vector<16x8xf32>
    %33 = vector.shape_cast %32 : vector<16x8xf32> to vector<2x8x8xf32>
    %34 = vector.extract_strided_slice %9 {offsets = [0, 88], sizes = [16, 8], strides = [1, 1]} : vector<16x96xf32> to vector<16x8xf32>
    %35 = vector.shape_cast %34 : vector<16x8xf32> to vector<2x8x8xf32>
    %36 = tpu.concatenate %29, %31, %33, %35 in 0 : vector<2x8x8xf32>, vector<2x8x8xf32>, vector<2x8x8xf32>, vector<2x8x8xf32> -> vector<8x8x8xf32>
    "tpu.trace_start"() <{level = 10 : i32, message = "bqd,bkd->bqk"}> : () -> ()
    %cst_8 = arith.constant dense<0.000000e+00> : vector<8x8x8xf32>
    %37 = tpu.matmul %18, %27, %cst_8 {dimension_numbers = #tpu.dot_dimension_numbers<[2], [2], [1], [1], [0, 0, 0, 1, 1, 1], [0], [0]>} : vector<8x8x8xf32>, vector<8x8x8xf32>, vector<8x8x8xf32> -> vector<8x8x8xf32>
    "tpu.trace_stop"() : () -> ()
    %cst_9 = arith.constant 0.353553385 : f32
    %38 = vector.broadcast %cst_9 : f32 to vector<8x8x8xf32>
    %39 = arith.mulf %37, %38 : vector<8x8x8xf32>
    %cst_10 = arith.constant dense<0xFF800000> : vector<8x8xf32>
    %40 = vector.multi_reduction <maximumf>, %39, %cst_10 [2] : vector<8x8x8xf32> to vector<8x8xf32>
    %41 = vector.shape_cast %40 : vector<8x8xf32> to vector<8x8x1xf32>
    %42 = vector.broadcast %41 : vector<8x8x1xf32> to vector<8x8x8xf32>
    %43 = arith.subf %39, %42 : vector<8x8x8xf32>
    %44 = math.exp %43 : vector<8x8x8xf32>
    %cst_11 = arith.constant dense<0.000000e+00> : vector<8x8xf32>
    %45 = vector.multi_reduction <add>, %44, %cst_11 [2] : vector<8x8x8xf32> to vector<8x8xf32>
    %46 = vector.shape_cast %45 : vector<8x8xf32> to vector<8x8x1xf32>
    %47 = vector.broadcast %46 : vector<8x8x1xf32> to vector<8x8x8xf32>
    %48 = arith.divf %44, %47 : vector<8x8x8xf32>
    "tpu.trace_start"() <{level = 10 : i32, message = "bqk,bkd->bqd"}> : () -> ()
    %cst_12 = arith.constant dense<0.000000e+00> : vector<8x8x8xf32>
    %49 = tpu.matmul %48, %36, %cst_12 {dimension_numbers = #tpu.dot_dimension_numbers<[2], [1], [1], [2], [0, 0, 0, 1, 1, 2], [0], [0]>} : vector<8x8x8xf32>, vector<8x8x8xf32>, vector<8x8x8xf32> -> vector<8x8x8xf32>
    "tpu.trace_stop"() : () -> ()
    %50 = vector.shape_cast %49 : vector<8x8x8xf32> to vector<4x2x8x8xf32>
    %51 = vector.extract_strided_slice %50 {offsets = [0, 0, 0, 0], sizes = [1, 2, 8, 8], strides = [1, 1, 1, 1]} : vector<4x2x8x8xf32> to vector<1x2x8x8xf32>
    %52 = vector.shape_cast %51 : vector<1x2x8x8xf32> to vector<2x8x8xf32>
    %53 = vector.shape_cast %52 : vector<2x8x8xf32> to vector<16x8xf32>
    %54 = vector.extract_strided_slice %50 {offsets = [1, 0, 0, 0], sizes = [1, 2, 8, 8], strides = [1, 1, 1, 1]} : vector<4x2x8x8xf32> to vector<1x2x8x8xf32>
    %55 = vector.shape_cast %54 : vector<1x2x8x8xf32> to vector<2x8x8xf32>
    %56 = vector.shape_cast %55 : vector<2x8x8xf32> to vector<16x8xf32>
    %57 = vector.extract_strided_slice %50 {offsets = [2, 0, 0, 0], sizes = [1, 2, 8, 8], strides = [1, 1, 1, 1]} : vector<4x2x8x8xf32> to vector<1x2x8x8xf32>
    %58 = vector.shape_cast %57 : vector<1x2x8x8xf32> to vector<2x8x8xf32>
    %59 = vector.shape_cast %58 : vector<2x8x8xf32> to vector<16x8xf32>
    %60 = vector.extract_strided_slice %50 {offsets = [3, 0, 0, 0], sizes = [1, 2, 8, 8], strides = [1, 1, 1, 1]} : vector<4x2x8x8xf32> to vector<1x2x8x8xf32>
    %61 = vector.shape_cast %60 : vector<1x2x8x8xf32> to vector<2x8x8xf32>
    %62 = vector.shape_cast %61 : vector<2x8x8xf32> to vector<16x8xf32>
    %63 = tpu.concatenate %53, %56, %59, %62 in 1 : vector<16x8xf32>, vector<16x8xf32>, vector<16x8xf32>, vector<16x8xf32> -> vector<16x32xf32>
    %cst_13 = arith.constant dense<0.000000e+00> : vector<16x96xf32>
    %64 = tpu.matmul %63, %2, %cst_13 {dimension_numbers = #tpu.dot_dimension_numbers<[1], [0], [0], [1], [0, 0, 1, 1], [], []>} : vector<16x32xf32>, vector<32x96xf32>, vector<16x96xf32> -> vector<16x96xf32>
    %65 = vector.broadcast %3 : vector<1x96xf32> to vector<16x96xf32>
    %66 = arith.addf %64, %65 : vector<16x96xf32>
    %67 = vector.shape_cast %66 : vector<16x96xf32> to vector<2x8x96xf32>
    %68 = tpu.transpose %67, [1, 0, 2] : vector<2x8x96xf32> -> vector<8x2x96xf32>
    %69 = vector.shape_cast %68 : vector<8x2x96xf32> to vector<16x96xf32>
    %70 = vector.extract_strided_slice %69 {offsets = [0, 0], sizes = [16, 8], strides = [1, 1]} : vector<16x96xf32> to vector<16x8xf32>
    %71 = vector.shape_cast %70 : vector<16x8xf32> to vector<8x2x8xf32>
    %72 = vector.extract_strided_slice %69 {offsets = [0, 8], sizes = [16, 8], strides = [1, 1]} : vector<16x96xf32> to vector<16x8xf32>
    %73 = vector.shape_cast %72 : vector<16x8xf32> to vector<8x2x8xf32>
    %74 = vector.extract_strided_slice %69 {offsets = [0, 16], sizes = [16, 8], strides = [1, 1]} : vector<16x96xf32> to vector<16x8xf32>
    %75 = vector.shape_cast %74 : vector<16x8xf32> to vector<8x2x8xf32>
    %76 = vector.extract_strided_slice %69 {offsets = [0, 24], sizes = [16, 8], strides = [1, 1]} : vector<16x96xf32> to vector<16x8xf32>
    %77 = vector.shape_cast %76 : vector<16x8xf32> to vector<8x2x8xf32>
    %78 = tpu.concatenate %71, %73, %75, %77 in 0 : vector<8x2x8xf32>, vector<8x2x8xf32>, vector<8x2x8xf32>, vector<8x2x8xf32> -> vector<32x2x8xf32>
    %79 = vector.extract_strided_slice %69 {offsets = [0, 32], sizes = [16, 8], strides = [1, 1]} : vector<16x96xf32> to vector<16x8xf32>
    %80 = vector.shape_cast %79 : vector<16x8xf32> to vector<8x2x8xf32>
    %81 = vector.extract_strided_slice %69 {offsets = [0, 40], sizes = [16, 8], strides = [1, 1]} : vector<16x96xf32> to vector<16x8xf32>
    %82 = vector.shape_cast %81 : vector<16x8xf32> to vector<8x2x8xf32>
    %83 = vector.extract_strided_slice %69 {offsets = [0, 48], sizes = [16, 8], strides = [1, 1]} : vector<16x96xf32> to vector<16x8xf32>
    %84 = vector.shape_cast %83 : vector<16x8xf32> to vector<8x2x8xf32>
    %85 = vector.extract_strided_slice %69 {offsets = [0, 56], sizes = [16, 8], strides = [1, 1]} : vector<16x96xf32> to vector<16x8xf32>
    %86 = vector.shape_cast %85 : vector<16x8xf32> to vector<8x2x8xf32>
    %87 = tpu.concatenate %80, %82, %84, %86 in 0 : vector<8x2x8xf32>, vector<8x2x8xf32>, vector<8x2x8xf32>, vector<8x2x8xf32> -> vector<32x2x8xf32>
    %88 = vector.extract_strided_slice %69 {offsets = [0, 64], sizes = [16, 8], strides = [1, 1]} : vector<16x96xf32> to vector<16x8xf32>
    %89 = vector.shape_cast %88 : vector<16x8xf32> to vector<8x2x8xf32>
    %90 = vector.extract_strided_slice %69 {offsets = [0, 72], sizes = [16, 8], strides = [1, 1]} : vector<16x96xf32> to vector<16x8xf32>
    %91 = vector.shape_cast %90 : vector<16x8xf32> to vector<8x2x8xf32>
    %92 = vector.extract_strided_slice %69 {offsets = [0, 80], sizes = [16, 8], strides = [1, 1]} : vector<16x96xf32> to vector<16x8xf32>
    %93 = vector.shape_cast %92 : vector<16x8xf32> to vector<8x2x8xf32>
    %94 = vector.extract_strided_slice %69 {offsets = [0, 88], sizes = [16, 8], strides = [1, 1]} : vector<16x96xf32> to vector<16x8xf32>
    %95 = vector.shape_cast %94 : vector<16x8xf32> to vector<8x2x8xf32>
    %96 = tpu.concatenate %89, %91, %93, %95 in 0 : vector<8x2x8xf32>, vector<8x2x8xf32>, vector<8x2x8xf32>, vector<8x2x8xf32> -> vector<32x2x8xf32>
    "tpu.trace_start"() <{level = 10 : i32, message = "bqd,bkd->bqk"}> : () -> ()
    %cst_14 = arith.constant dense<0.000000e+00> : vector<32x2x2xf32>
    %97 = tpu.matmul %78, %87, %cst_14 {dimension_numbers = #tpu.dot_dimension_numbers<[2], [2], [1], [1], [0, 0, 0, 1, 1, 1], [0], [0]>} : vector<32x2x8xf32>, vector<32x2x8xf32>, vector<32x2x2xf32> -> vector<32x2x2xf32>
    "tpu.trace_stop"() : () -> ()
    %cst_15 = arith.constant 0.353553385 : f32
    %98 = vector.broadcast %cst_15 : f32 to vector<32x2x2xf32>
    %99 = arith.mulf %97, %98 : vector<32x2x2xf32>
    %cst_16 = arith.constant dense<0xFF800000> : vector<32x2xf32>
    %100 = vector.multi_reduction <maximumf>, %99, %cst_16 [2] : vector<32x2x2xf32> to vector<32x2xf32>
    %101 = vector.shape_cast %100 : vector<32x2xf32> to vector<32x2x1xf32>
    %102 = vector.broadcast %101 : vector<32x2x1xf32> to vector<32x2x2xf32>
    %103 = arith.subf %99, %102 : vector<32x2x2xf32>
    %104 = math.exp %103 : vector<32x2x2xf32>
    %cst_17 = arith.constant dense<0.000000e+00> : vector<32x2xf32>
    %105 = vector.multi_reduction <add>, %104, %cst_17 [2] : vector<32x2x2xf32> to vector<32x2xf32>
    %106 = vector.shape_cast %105 : vector<32x2xf32> to vector<32x2x1xf32>
    %107 = vector.broadcast %106 : vector<32x2x1xf32> to vector<32x2x2xf32>
    %108 = arith.divf %104, %107 : vector<32x2x2xf32>
    "tpu.trace_start"() <{level = 10 : i32, message = "bqk,bkd->bqd"}> : () -> ()
    %cst_18 = arith.constant dense<0.000000e+00> : vector<32x2x8xf32>
    %109 = tpu.matmul %108, %96, %cst_18 {dimension_numbers = #tpu.dot_dimension_numbers<[2], [1], [1], [2], [0, 0, 0, 1, 1, 2], [0], [0]>} : vector<32x2x2xf32>, vector<32x2x8xf32>, vector<32x2x8xf32> -> vector<32x2x8xf32>
    "tpu.trace_stop"() : () -> ()
    %110 = vector.shape_cast %109 : vector<32x2x8xf32> to vector<4x8x2x8xf32>
    %cst_19 = arith.constant dense<0.000000e+00> : vector<4x2x8xf32>
    %111 = vector.multi_reduction <add>, %110, %cst_19 [1] : vector<4x8x2x8xf32> to vector<4x2x8xf32>
    %cst_20 = arith.constant 8.000000e+00 : f32
    %112 = vector.broadcast %cst_20 : f32 to vector<4x2x8xf32>
    %113 = arith.divf %111, %112 : vector<4x2x8xf32>
    %114 = vector.extract_strided_slice %113 {offsets = [0, 0, 0], sizes = [1, 2, 8], strides = [1, 1, 1]} : vector<4x2x8xf32> to vector<1x2x8xf32>
    %115 = vector.shape_cast %114 : vector<1x2x8xf32> to vector<2x8xf32>
    %116 = vector.extract_strided_slice %113 {offsets = [1, 0, 0], sizes = [1, 2, 8], strides = [1, 1, 1]} : vector<4x2x8xf32> to vector<1x2x8xf32>
    %117 = vector.shape_cast %116 : vector<1x2x8xf32> to vector<2x8xf32>
    %118 = vector.extract_strided_slice %113 {offsets = [2, 0, 0], sizes = [1, 2, 8], strides = [1, 1, 1]} : vector<4x2x8xf32> to vector<1x2x8xf32>
    %119 = vector.shape_cast %118 : vector<1x2x8xf32> to vector<2x8xf32>
    %120 = vector.extract_strided_slice %113 {offsets = [3, 0, 0], sizes = [1, 2, 8], strides = [1, 1, 1]} : vector<4x2x8xf32> to vector<1x2x8xf32>
    %121 = vector.shape_cast %120 : vector<1x2x8xf32> to vector<2x8xf32>
    %122 = tpu.concatenate %115, %117, %119, %121 in 1 : vector<2x8xf32>, vector<2x8xf32>, vector<2x8xf32>, vector<2x8xf32> -> vector<2x32xf32>
    %cst_21 = arith.constant dense<0.000000e+00> : vector<2x32xf32>
    %123 = tpu.matmul %122, %4, %cst_21 {dimension_numbers = #tpu.dot_dimension_numbers<[1], [0], [0], [1], [0, 0, 1, 1], [], []>} : vector<2x32xf32>, vector<32x32xf32>, vector<2x32xf32> -> vector<2x32xf32>
    %124 = vector.broadcast %5 : vector<1x32xf32> to vector<2x32xf32>
    %125 = arith.addf %123, %124 : vector<2x32xf32>
    %c0_22 = arith.constant 0 : index
    %c0_23 = arith.constant 0 : index
    %126 = vector.load %arg2[%c0_22, %c0_23] : memref<2x32xf32, #tpu.memory_space<vmem>>, vector<2x32xf32>
    tpu.vector_store %arg2[%c0_22, %c0_23], %125 {strides = array<i32>} : memref<2x32xf32, #tpu.memory_space<vmem>>, vector<2x32xf32>,
    return
  }
}

</mosaic_0001>

<llo_original>
// kernel: test_model_forward.1
$region0: #{test_model_forward.1}
  #allocation0 [shape = 'u32[]', space=smem, size = 0x4, offset = 0x4, fixed_abs, tag = 'smem constant byte address 0x4 - core index']
  #allocation1 [shape = 'u32[144,128]{1,0:T(1,128)}', space=vmem, size = 0x12000, scoped, tag = 'internal scratch']
  %s0 = inlined_call_operand.vmem [shape: f32[16,32], index: 0, kind: input, shape index: {}]
  %s1 = inlined_call_operand.vmem [shape: f32[120,96], index: 1, kind: input, shape index: {}]
  %s2 = inlined_call_operand.hbm [shape: f32[2,32], index: 2, kind: output, shape index: {}]
  %s3 = sld [smem:[#allocation0]]
  $region18: #{test_model_forward.1} parent=0
    _
  %s5 = ssub.s32 1, %s3
  %s6 = scalar_select 0, %s5, %s3
  $region1: #{test_model_forward.1} parent=0
    #allocation2 [shape = 'u8[1024]{0}', space=vmem, size = 0x400, scoped, tag = 'output window, operand 0, single buffered']
    #allocation3 [shape = 's32[1]{0}', space=sflag, size = 0x4, scoped, tag = 'scoped memory for test_model_forward.1']
    %7 = vsyncpa [#allocation3], 0
    // Predicated region
    $region2: #{test_model_forward.1} parent=1 // pred_check
      _
    $region3: #{test_model_forward.1} parent=1 // pred_check_branch
      %9 = sbr.rel (0) target = $region5
    $region4: #{test_model_forward.1} parent=1 // pred_region
      _
    $region5: #{test_model_forward.1} parent=1 // pred_fallthru
      _
    // Predicated region
    $region6: #{test_model_forward.1} parent=1 // pred_check
      _
    $region7: #{test_model_forward.1} parent=1 // pred_check_branch
      %11 = sbr.rel (0) target = $region9
    $region8: #{test_model_forward.1} parent=1 // pred_region
      _
    $region9: #{test_model_forward.1} parent=1 // pred_fallthru
      _
    %v12 = vld [vmem:[%s1] sm:$0xff]
    %v13 = vld [vmem:[%s1 + $0x8] sm:$0xff]
    %v14 = vld [vmem:[%s1 + $0x10] sm:$0xff]
    %v15 = vld [vmem:[%s1 + $0x18] sm:$0xff]
    %v16 = vld [vmem:[%s1 + $0x20] sm:$0x1]
    %v17 = vld [vmem:[%s1 + $0x28] sm:$0xff]
    %v18 = vld [vmem:[%s1 + $0x30] sm:$0xff]
    %v19 = vld [vmem:[%s1 + $0x38] sm:$0xff]
    %v20 = vld [vmem:[%s1 + $0x40] sm:$0xff]
    %v21 = vld [vmem:[%s1 + $0x48] sm:$0x1]
    %v22 = vld [vmem:[%s1 + $0x50] sm:$0xff]
    %v23 = vld [vmem:[%s1 + $0x58] sm:$0xff]
    %v24 = vld [vmem:[%s1 + $0x60] sm:$0xff]
    %v25 = vld [vmem:[%s1 + $0x68] sm:$0xff]
    %v26 = vld [vmem:[%s1 + $0x70] sm:$0x1]
    %v27 = vld [vmem:[%s0] sm:$0xff]
    %v28 = vld [vmem:[%s0 + $0x8] sm:$0xff]
    %v29 = vlaneseq
    %v30 = vshrl.u32 %v29, 7
    %v31 = vsub.s32 0, %v30
    %v32 = vrot.slane %v16, %v31
    %vm33 = vcmask 261120
    %v35 = vsel %vm33, %v27, 0
    %v38 = vsel %vm33, %v28, 0
    %40 = vmatprep.subr.mxu0 0.0
    %41 = vmatpush1.msra.mxu0 %v12
    %42 = vmatprep.subr.mxu0 0.0
    %43 = vmatpush1.msra.mxu0 %v13
    %44 = vmatprep.subr.mxu0 0.0
    %45 = vmatpush1.msra.mxu0 %v14
    %46 = vmatprep.subr.mxu0 0.0
    %47 = vmatpush1.msra.mxu0 %v15
    %48 = vmatprep.subr.mxu0 0.0
    %49 = vmatpush1.msra.mxu0 0.0
    %50 = vmatprep.subr.mxu0 0.0
    %51 = vmatpush1.msra.mxu0 0.0
    %52 = vmatprep.subr.mxu0 0.0
    %53 = vmatpush1.msra.mxu0 0.0
    %54 = vmatprep.subr.mxu0 0.0
    %55 = vmatpush1.msra.mxu0 0.0
    %56 = vmatprep.subr.mxu0 0.0
    %57 = vmatpush1.msra.mxu0 0.0
    %58 = vmatprep.subr.mxu0 0.0
    %59 = vmatpush1.msra.mxu0 0.0
    %60 = vmatprep.subr.mxu0 0.0
    %61 = vmatpush1.msra.mxu0 0.0
    %62 = vmatprep.subr.mxu0 0.0
    %63 = vmatpush1.msra.mxu0 0.0
    %64 = vmatprep.subr.mxu0 0.0
    %65 = vmatpush1.msra.mxu0 0.0
    %66 = vmatprep.subr.mxu0 0.0
    %67 = vmatpush1.msra.mxu0 0.0
    %68 = vmatprep.subr.mxu0 0.0
    %69 = vmatpush1.msra.mxu0 0.0
    %70 = vmatprep.subr.mxu0 0.0
    %71 = vmatpush1.msra.mxu0 0.0
    %72 = vmatprep.subr.mxu0 0.0
    %73 = vmatpush1.msra.mxu0 0.0
    %74 = vmatprep.subr.mxu0 0.0
    %75 = vmatpush1.msra.mxu0 0.0
    %76 = vmatprep.subr.mxu0 0.0
    %77 = vmatpush1.msra.mxu0 0.0
    %78 = vmatprep.subr.mxu0 0.0
    %79 = vmatpush1.msra.mxu0 0.0
    %80 = vmatprep.subr.mxu0 0.0
    %81 = vmatpush1.msra.mxu0 0.0
    %82 = vmatprep.subr.mxu0 0.0
    %83 = vmatpush1.msra.mxu0 0.0
    %84 = vmatprep.subr.mxu0 0.0
    %85 = vmatpush1.msra.mxu0 0.0
    %86 = vmatprep.subr.mxu0 0.0
    %87 = vmatpush1.msra.mxu0 0.0
    %88 = vmatprep.subr.mxu0 0.0
    %89 = vmatpush1.msra.mxu0 0.0
    %90 = vmatprep.subr.mxu0 0.0
    %91 = vmatpush1.msra.mxu0 0.0
    %92 = vmatprep.subr.mxu0 0.0
    %93 = vmatpush1.msra.mxu0 0.0
    %94 = vmatprep.subr.mxu0 0.0
    %95 = vmatpush1.msra.mxu0 0.0
    %96 = vmatprep.subr.mxu0 0.0
    %97 = vmatpush1.msra.mxu0 0.0
    %98 = vmatprep.subr.mxu0 0.0
    %99 = vmatpush1.msra.mxu0 0.0
    %100 = vmatprep.subr.mxu0 0.0
    %101 = vmatpush1.msra.mxu0 0.0
    %102 = vmatprep.subr.mxu0 0.0
    %103 = vmatpush1.msra.mxu0 0.0
    %104 = vmatprep.mubr.f32.mxu0 0.0
    %105 = vmatmul.mubr.f32.gmra.mrb[0].mxu0 %v35
    %v106 = vpop.f32.mrb[0].mxu0
    %v107 = vadd.f32 %v32, %v106
    %v108 = vpop.f32.mrb[0].mxu0
    %109 = vmatprep.mubr.f32.mxu0 0.0
    %110 = vmatmul.mubr.f32.gmra.mrb[0].mxu0 %v38
    %v111 = vpop.f32.mrb[0].mxu0
    %v112 = vadd.f32 %v32, %v111
    %v113 = vpop.f32.mrb[0].mxu0
    %114 = vdwg.mxu0
    %117 = vrot.lane.b32.xlu0 %v107, 120
    %v118 = vpop.permute.xlu0 %117
    %119 = vrot.lane.b32.xlu0 %v112, 120
    %v120 = vpop.permute.xlu0 %119
    %121 = vrot.lane.b32.xlu0 %v107, 112
    %v122 = vpop.permute.xlu0 %121
    %123 = vrot.lane.b32.xlu0 %v112, 112
    %v124 = vpop.permute.xlu0 %123
    %125 = vrot.lane.b32.xlu0 %v107, 104
    %v126 = vpop.permute.xlu0 %125
    %127 = vrot.lane.b32.xlu0 %v112, 104
    %v128 = vpop.permute.xlu0 %127
    %129 = vrot.lane.b32.xlu0 %v107, 96
    %v130 = vpop.permute.xlu0 %129
    %vm131 = vcmask 64512
    %v132 = vsel %vm131, %v107, 0
    %v134 = vsel %vm131, %v130, 0
    %136 = vmatprep.subr.mxu0 0.0
    %137 = vmatpush1.xpose.msra.mxu0 %v134
    %138 = vmatprep.subr.mxu0 0.0
    %139 = vmatpush1.xpose.msra.mxu0 0.0
    %140 = vmatprep.subr.mxu0 0.0
    %141 = vmatpush1.xpose.msra.mxu0 0.0
    %142 = vmatprep.subr.mxu0 0.0
    %143 = vmatpush1.xpose.msra.mxu0 0.0
    %144 = vmatprep.subr.mxu0 0.0
    %145 = vmatpush1.xpose.msra.mxu0 0.0
    %146 = vmatprep.subr.mxu0 0.0
    %147 = vmatpush1.xpose.msra.mxu0 0.0
    %148 = vmatprep.subr.mxu0 0.0
    %149 = vmatpush1.xpose.msra.mxu0 0.0
    %150 = vmatprep.subr.mxu0 0.0
    %151 = vmatpush1.xpose.msra.mxu0 0.0
    %152 = vmatprep.subr.mxu0 0.0
    %153 = vmatpush1.xpose.msra.mxu0 0.0
    %154 = vmatprep.subr.mxu0 0.0
    %155 = vmatpush1.xpose.msra.mxu0 0.0
    %156 = vmatprep.subr.mxu0 0.0
    %157 = vmatpush1.xpose.msra.mxu0 0.0
    %158 = vmatprep.subr.mxu0 0.0
    %159 = vmatpush1.xpose.msra.mxu0 0.0
    %160 = vmatprep.subr.mxu0 0.0
    %161 = vmatpush1.xpose.msra.mxu0 0.0
    %162 = vmatprep.subr.mxu0 0.0
    %163 = vmatpush1.xpose.msra.mxu0 0.0
    %164 = vmatprep.subr.mxu0 0.0
    %165 = vmatpush1.xpose.msra.mxu0 0.0
    %166 = vmatprep.subr.mxu0 0.0
    %167 = vmatpush1.xpose.msra.mxu0 0.0
    %168 = vmatprep.subr.mxu0 0.0
    %169 = vmatpush1.xpose.msra.mxu0 0.0
    %170 = vmatprep.subr.mxu0 0.0
    %171 = vmatpush1.xpose.msra.mxu0 0.0
    %172 = vmatprep.subr.mxu0 0.0
    %173 = vmatpush1.xpose.msra.mxu0 0.0
    %174 = vmatprep.subr.mxu0 0.0
    %175 = vmatpush1.xpose.msra.mxu0 0.0
    %176 = vmatprep.subr.mxu0 0.0
    %177 = vmatpush1.xpose.msra.mxu0 0.0
    %178 = vmatprep.subr.mxu0 0.0
    %179 = vmatpush1.xpose.msra.mxu0 0.0
    %180 = vmatprep.subr.mxu0 0.0
    %181 = vmatpush1.xpose.msra.mxu0 0.0
    %182 = vmatprep.subr.mxu0 0.0
    %183 = vmatpush1.xpose.msra.mxu0 0.0
    %184 = vmatprep.subr.mxu0 0.0
    %185 = vmatpush1.xpose.msra.mxu0 0.0
    %186 = vmatprep.subr.mxu0 0.0
    %187 = vmatpush1.xpose.msra.mxu0 0.0
    %188 = vmatprep.subr.mxu0 0.0
    %189 = vmatpush1.xpose.msra.mxu0 0.0
    %190 = vmatprep.subr.mxu0 0.0
    %191 = vmatpush1.xpose.msra.mxu0 0.0
    %192 = vmatprep.subr.mxu0 0.0
    %193 = vmatpush1.xpose.msra.mxu0 0.0
    %194 = vmatprep.subr.mxu0 0.0
    %195 = vmatpush1.xpose.msra.mxu0 0.0
    %196 = vmatprep.subr.mxu0 0.0
    %197 = vmatpush1.xpose.msra.mxu0 0.0
    %198 = vmatprep.subr.mxu0 0.0
    %199 = vmatpush1.xpose.msra.mxu0 0.0
    %200 = vmatprep.mubr.f32.mxu0 0.0
    %201 = vmatmul.mubr.f32.gmra.mrb[0].mxu0 %v132
    %v202 = vpop.f32.mrb[0].mxu0
    %v203 = vadd.f32 0.0, %v202
    %v204 = vpop.f32.mrb[0].mxu0
    %205 = vdwg.mxu0
    %206 = vrot.lane.b32.xlu0 %v112, 96
    %v207 = vpop.permute.xlu0 %206
    %v208 = vsel %vm131, %v112, 0
    %v210 = vsel %vm131, %v207, 0
    %212 = vmatprep.subr.mxu0 0.0
    %213 = vmatpush1.xpose.msra.mxu0 %v210
    %214 = vmatprep.subr.mxu0 0.0
    %215 = vmatpush1.xpose.msra.mxu0 0.0
    %216 = vmatprep.subr.mxu0 0.0
    %217 = vmatpush1.xpose.msra.mxu0 0.0
    %218 = vmatprep.subr.mxu0 0.0
    %219 = vmatpush1.xpose.msra.mxu0 0.0
    %220 = vmatprep.subr.mxu0 0.0
    %221 = vmatpush1.xpose.msra.mxu0 0.0
    %222 = vmatprep.subr.mxu0 0.0
    %223 = vmatpush1.xpose.msra.mxu0 0.0
    %224 = vmatprep.subr.mxu0 0.0
    %225 = vmatpush1.xpose.msra.mxu0 0.0
    %226 = vmatprep.subr.mxu0 0.0
    %227 = vmatpush1.xpose.msra.mxu0 0.0
    %228 = vmatprep.subr.mxu0 0.0
    %229 = vmatpush1.xpose.msra.mxu0 0.0
    %230 = vmatprep.subr.mxu0 0.0
    %231 = vmatpush1.xpose.msra.mxu0 0.0
    %232 = vmatprep.subr.mxu0 0.0
    %233 = vmatpush1.xpose.msra.mxu0 0.0
    %234 = vmatprep.subr.mxu0 0.0
    %235 = vmatpush1.xpose.msra.mxu0 0.0
    %236 = vmatprep.subr.mxu0 0.0
    %237 = vmatpush1.xpose.msra.mxu0 0.0
    %238 = vmatprep.subr.mxu0 0.0
    %239 = vmatpush1.xpose.msra.mxu0 0.0
    %240 = vmatprep.subr.mxu0 0.0
    %241 = vmatpush1.xpose.msra.mxu0 0.0
    %242 = vmatprep.subr.mxu0 0.0
    %243 = vmatpush1.xpose.msra.mxu0 0.0
    %244 = vmatprep.subr.mxu0 0.0
    %245 = vmatpush1.xpose.msra.mxu0 0.0
    %246 = vmatprep.subr.mxu0 0.0
    %247 = vmatpush1.xpose.msra.mxu0 0.0
    %248 = vmatprep.subr.mxu0 0.0
    %249 = vmatpush1.xpose.msra.mxu0 0.0
    %250 = vmatprep.subr.mxu0 0.0
    %251 = vmatpush1.xpose.msra.mxu0 0.0
    %252 = vmatprep.subr.mxu0 0.0
    %253 = vmatpush1.xpose.msra.mxu0 0.0
    %254 = vmatprep.subr.mxu0 0.0
    %255 = vmatpush1.xpose.msra.mxu0 0.0
    %256 = vmatprep.subr.mxu0 0.0
    %257 = vmatpush1.xpose.msra.mxu0 0.0
    %258 = vmatprep.subr.mxu0 0.0
    %259 = vmatpush1.xpose.msra.mxu0 0.0
    %260 = vmatprep.subr.mxu0 0.0
    %261 = vmatpush1.xpose.msra.mxu0 0.0
    %262 = vmatprep.subr.mxu0 0.0
    %263 = vmatpush1.xpose.msra.mxu0 0.0
    %264 = vmatprep.subr.mxu0 0.0
    %265 = vmatpush1.xpose.msra.mxu0 0.0
    %266 = vmatprep.subr.mxu0 0.0
    %267 = vmatpush1.xpose.msra.mxu0 0.0
    %268 = vmatprep.subr.mxu0 0.0
    %269 = vmatpush1.xpose.msra.mxu0 0.0
    %270 = vmatprep.subr.mxu0 0.0
    %271 = vmatpush1.xpose.msra.mxu0 0.0
    %272 = vmatprep.subr.mxu0 0.0
    %273 = vmatpush1.xpose.msra.mxu0 0.0
    %274 = vmatprep.subr.mxu0 0.0
    %275 = vmatpush1.xpose.msra.mxu0 0.0
    %276 = vmatprep.mubr.f32.mxu0 0.0
    %277 = vmatmul.mubr.f32.gmra.mrb[0].mxu0 %v208
    %v278 = vpop.f32.mrb[0].mxu0
    %v279 = vadd.f32 0.0, %v278
    %v280 = vpop.f32.mrb[0].mxu0
    %281 = vdwg.mxu0
    %282 = vrot.lane.b32.xlu0 %v118, 96
    %v283 = vpop.permute.xlu0 %282
    %v284 = vsel %vm131, %v118, 0
    %v286 = vsel %vm131, %v283, 0
    %288 = vmatprep.subr.mxu0 0.0
    %289 = vmatpush1.xpose.msra.mxu0 %v286
    %290 = vmatprep.subr.mxu0 0.0
    %291 = vmatpush1.xpose.msra.mxu0 0.0
    %292 = vmatprep.subr.mxu0 0.0
    %293 = vmatpush1.xpose.msra.mxu0 0.0
    %294 = vmatprep.subr.mxu0 0.0
    %295 = vmatpush1.xpose.msra.mxu0 0.0
    %296 = vmatprep.subr.mxu0 0.0
    %297 = vmatpush1.xpose.msra.mxu0 0.0
    %298 = vmatprep.subr.mxu0 0.0
    %299 = vmatpush1.xpose.msra.mxu0 0.0
    %300 = vmatprep.subr.mxu0 0.0
    %301 = vmatpush1.xpose.msra.mxu0 0.0
    %302 = vmatprep.subr.mxu0 0.0
    %303 = vmatpush1.xpose.msra.mxu0 0.0
    %304 = vmatprep.subr.mxu0 0.0
    %305 = vmatpush1.xpose.msra.mxu0 0.0
    %306 = vmatprep.subr.mxu0 0.0
    %307 = vmatpush1.xpose.msra.mxu0 0.0
    %308 = vmatprep.subr.mxu0 0.0
    %309 = vmatpush1.xpose.msra.mxu0 0.0
    %310 = vmatprep.subr.mxu0 0.0
    %311 = vmatpush1.xpose.msra.mxu0 0.0
    %312 = vmatprep.subr.mxu0 0.0
    %313 = vmatpush1.xpose.msra.mxu0 0.0
    %314 = vmatprep.subr.mxu0 0.0
    %315 = vmatpush1.xpose.msra.mxu0 0.0
    %316 = vmatprep.subr.mxu0 0.0
    %317 = vmatpush1.xpose.msra.mxu0 0.0
    %318 = vmatprep.subr.mxu0 0.0
    %319 = vmatpush1.xpose.msra.mxu0 0.0
    %320 = vmatprep.subr.mxu0 0.0
    %321 = vmatpush1.xpose.msra.mxu0 0.0
    %322 = vmatprep.subr.mxu0 0.0
    %323 = vmatpush1.xpose.msra.mxu0 0.0
    %324 = vmatprep.subr.mxu0 0.0
    %325 = vmatpush1.xpose.msra.mxu0 0.0
    %326 = vmatprep.subr.mxu0 0.0
    %327 = vmatpush1.xpose.msra.mxu0 0.0
    %328 = vmatprep.subr.mxu0 0.0
    %329 = vmatpush1.xpose.msra.mxu0 0.0
    %330 = vmatprep.subr.mxu0 0.0
    %331 = vmatpush1.xpose.msra.mxu0 0.0
    %332 = vmatprep.subr.mxu0 0.0
    %333 = vmatpush1.xpose.msra.mxu0 0.0
    %334 = vmatprep.subr.mxu0 0.0
    %335 = vmatpush1.xpose.msra.mxu0 0.0
    %336 = vmatprep.subr.mxu0 0.0
    %337 = vmatpush1.xpose.msra.mxu0 0.0
    %338 = vmatprep.subr.mxu0 0.0
    %339 = vmatpush1.xpose.msra.mxu0 0.0
    %340 = vmatprep.subr.mxu0 0.0
    %341 = vmatpush1.xpose.msra.mxu0 0.0
    %342 = vmatprep.subr.mxu0 0.0
    %343 = vmatpush1.xpose.msra.mxu0 0.0
    %344 = vmatprep.subr.mxu0 0.0
    %345 = vmatpush1.xpose.msra.mxu0 0.0
    %346 = vmatprep.subr.mxu0 0.0
    %347 = vmatpush1.xpose.msra.mxu0 0.0
    %348 = vmatprep.subr.mxu0 0.0
    %349 = vmatpush1.xpose.msra.mxu0 0.0
    %350 = vmatprep.subr.mxu0 0.0
    %351 = vmatpush1.xpose.msra.mxu0 0.0
    %352 = vmatprep.mubr.f32.mxu0 0.0
    %353 = vmatmul.mubr.f32.gmra.mrb[0].mxu0 %v284
    %v354 = vpop.f32.mrb[0].mxu0
    %v355 = vadd.f32 0.0, %v354
    %v356 = vpop.f32.mrb[0].mxu0
    %357 = vdwg.mxu0
    %358 = vrot.lane.b32.xlu0 %v120, 96
    %v359 = vpop.permute.xlu0 %358
    %v360 = vsel %vm131, %v120, 0
    %v362 = vsel %vm131, %v359, 0
    %364 = vmatprep.subr.mxu0 0.0
    %365 = vmatpush1.xpose.msra.mxu0 %v362
    %366 = vmatprep.subr.mxu0 0.0
    %367 = vmatpush1.xpose.msra.mxu0 0.0
    %368 = vmatprep.subr.mxu0 0.0
    %369 = vmatpush1.xpose.msra.mxu0 0.0
    %370 = vmatprep.subr.mxu0 0.0
    %371 = vmatpush1.xpose.msra.mxu0 0.0
    %372 = vmatprep.subr.mxu0 0.0
    %373 = vmatpush1.xpose.msra.mxu0 0.0
    %374 = vmatprep.subr.mxu0 0.0
    %375 = vmatpush1.xpose.msra.mxu0 0.0
    %376 = vmatprep.subr.mxu0 0.0
    %377 = vmatpush1.xpose.msra.mxu0 0.0
    %378 = vmatprep.subr.mxu0 0.0
    %379 = vmatpush1.xpose.msra.mxu0 0.0
    %380 = vmatprep.subr.mxu0 0.0
    %381 = vmatpush1.xpose.msra.mxu0 0.0
    %382 = vmatprep.subr.mxu0 0.0
    %383 = vmatpush1.xpose.msra.mxu0 0.0
    %384 = vmatprep.subr.mxu0 0.0
    %385 = vmatpush1.xpose.msra.mxu0 0.0
    %386 = vmatprep.subr.mxu0 0.0
    %387 = vmatpush1.xpose.msra.mxu0 0.0
    %388 = vmatprep.subr.mxu0 0.0
    %389 = vmatpush1.xpose.msra.mxu0 0.0
    %390 = vmatprep.subr.mxu0 0.0
    %391 = vmatpush1.xpose.msra.mxu0 0.0
    %392 = vmatprep.subr.mxu0 0.0
    %393 = vmatpush1.xpose.msra.mxu0 0.0
    %394 = vmatprep.subr.mxu0 0.0
    %395 = vmatpush1.xpose.msra.mxu0 0.0
    %396 = vmatprep.subr.mxu0 0.0
    %397 = vmatpush1.xpose.msra.mxu0 0.0
    %398 = vmatprep.subr.mxu0 0.0
    %399 = vmatpush1.xpose.msra.mxu0 0.0
    %400 = vmatprep.subr.mxu0 0.0
    %401 = vmatpush1.xpose.msra.mxu0 0.0
    %402 = vmatprep.subr.mxu0 0.0
    %403 = vmatpush1.xpose.msra.mxu0 0.0
    %404 = vmatprep.subr.mxu0 0.0
    %405 = vmatpush1.xpose.msra.mxu0 0.0
    %406 = vmatprep.subr.mxu0 0.0
    %407 = vmatpush1.xpose.msra.mxu0 0.0
    %408 = vmatprep.subr.mxu0 0.0
    %409 = vmatpush1.xpose.msra.mxu0 0.0
    %410 = vmatprep.subr.mxu0 0.0
    %411 = vmatpush1.xpose.msra.mxu0 0.0
    %412 = vmatprep.subr.mxu0 0.0
    %413 = vmatpush1.xpose.msra.mxu0 0.0
    %414 = vmatprep.subr.mxu0 0.0
    %415 = vmatpush1.xpose.msra.mxu0 0.0
    %416 = vmatprep.subr.mxu0 0.0
    %417 = vmatpush1.xpose.msra.mxu0 0.0
    %418 = vmatprep.subr.mxu0 0.0
    %419 = vmatpush1.xpose.msra.mxu0 0.0
    %420 = vmatprep.subr.mxu0 0.0
    %421 = vmatpush1.xpose.msra.mxu0 0.0
    %422 = vmatprep.subr.mxu0 0.0
    %423 = vmatpush1.xpose.msra.mxu0 0.0
    %424 = vmatprep.subr.mxu0 0.0
    %425 = vmatpush1.xpose.msra.mxu0 0.0
    %426 = vmatprep.subr.mxu0 0.0
    %427 = vmatpush1.xpose.msra.mxu0 0.0
    %428 = vmatprep.mubr.f32.mxu0 0.0
    %429 = vmatmul.mubr.f32.gmra.mrb[0].mxu0 %v360
    %v430 = vpop.f32.mrb[0].mxu0
    %v431 = vadd.f32 0.0, %v430
    %v432 = vpop.f32.mrb[0].mxu0
    %433 = vdwg.mxu0
    %434 = vrot.lane.b32.xlu0 %v122, 96
    %v435 = vpop.permute.xlu0 %434
    %v436 = vsel %vm131, %v122, 0
    %v438 = vsel %vm131, %v435, 0
    %440 = vmatprep.subr.mxu0 0.0
    %441 = vmatpush1.xpose.msra.mxu0 %v438
    %442 = vmatprep.subr.mxu0 0.0
    %443 = vmatpush1.xpose.msra.mxu0 0.0
    %444 = vmatprep.subr.mxu0 0.0
    %445 = vmatpush1.xpose.msra.mxu0 0.0
    %446 = vmatprep.subr.mxu0 0.0
    %447 = vmatpush1.xpose.msra.mxu0 0.0
    %448 = vmatprep.subr.mxu0 0.0
    %449 = vmatpush1.xpose.msra.mxu0 0.0
    %450 = vmatprep.subr.mxu0 0.0
    %451 = vmatpush1.xpose.msra.mxu0 0.0
    %452 = vmatprep.subr.mxu0 0.0
    %453 = vmatpush1.xpose.msra.mxu0 0.0
    %454 = vmatprep.subr.mxu0 0.0
    %455 = vmatpush1.xpose.msra.mxu0 0.0
    %456 = vmatprep.subr.mxu0 0.0
    %457 = vmatpush1.xpose.msra.mxu0 0.0
    %458 = vmatprep.subr.mxu0 0.0
    %459 = vmatpush1.xpose.msra.mxu0 0.0
    %460 = vmatprep.subr.mxu0 0.0
    %461 = vmatpush1.xpose.msra.mxu0 0.0
    %462 = vmatprep.subr.mxu0 0.0
    %463 = vmatpush1.xpose.msra.mxu0 0.0
    %464 = vmatprep.subr.mxu0 0.0
    %465 = vmatpush1.xpose.msra.mxu0 0.0
    %466 = vmatprep.subr.mxu0 0.0
    %467 = vmatpush1.xpose.msra.mxu0 0.0
    %468 = vmatprep.subr.mxu0 0.0
    %469 = vmatpush1.xpose.msra.mxu0 0.0
    %470 = vmatprep.subr.mxu0 0.0
    %471 = vmatpush1.xpose.msra.mxu0 0.0
    %472 = vmatprep.subr.mxu0 0.0
    %473 = vmatpush1.xpose.msra.mxu0 0.0
    %474 = vmatprep.subr.mxu0 0.0
    %475 = vmatpush1.xpose.msra.mxu0 0.0
    %476 = vmatprep.subr.mxu0 0.0
    %477 = vmatpush1.xpose.msra.mxu0 0.0
    %478 = vmatprep.subr.mxu0 0.0
    %479 = vmatpush1.xpose.msra.mxu0 0.0
    %480 = vmatprep.subr.mxu0 0.0
    %481 = vmatpush1.xpose.msra.mxu0 0.0
    %482 = vmatprep.subr.mxu0 0.0
    %483 = vmatpush1.xpose.msra.mxu0 0.0
    %484 = vmatprep.subr.mxu0 0.0
    %485 = vmatpush1.xpose.msra.mxu0 0.0
    %486 = vmatprep.subr.mxu0 0.0
    %487 = vmatpush1.xpose.msra.mxu0 0.0
    %488 = vmatprep.subr.mxu0 0.0
    %489 = vmatpush1.xpose.msra.mxu0 0.0
    %490 = vmatprep.subr.mxu0 0.0
    %491 = vmatpush1.xpose.msra.mxu0 0.0
    %492 = vmatprep.subr.mxu0 0.0
    %493 = vmatpush1.xpose.msra.mxu0 0.0
    %494 = vmatprep.subr.mxu0 0.0
    %495 = vmatpush1.xpose.msra.mxu0 0.0
    %496 = vmatprep.subr.mxu0 0.0
    %497 = vmatpush1.xpose.msra.mxu0 0.0
    %498 = vmatprep.subr.mxu0 0.0
    %499 = vmatpush1.xpose.msra.mxu0 0.0
    %500 = vmatprep.subr.mxu0 0.0
    %501 = vmatpush1.xpose.msra.mxu0 0.0
    %502 = vmatprep.subr.mxu0 0.0
    %503 = vmatpush1.xpose.msra.mxu0 0.0
    %504 = vmatprep.mubr.f32.mxu0 0.0
    %505 = vmatmul.mubr.f32.gmra.mrb[0].mxu0 %v436
    %v506 = vpop.f32.mrb[0].mxu0
    %v507 = vadd.f32 0.0, %v506
    %v508 = vpop.f32.mrb[0].mxu0
    %509 = vdwg.mxu0
    %510 = vrot.lane.b32.xlu0 %v124, 96
    %v511 = vpop.permute.xlu0 %510
    %v512 = vsel %vm131, %v124, 0
    %v514 = vsel %vm131, %v511, 0
    %516 = vmatprep.subr.mxu0 0.0
    %517 = vmatpush1.xpose.msra.mxu0 %v514
    %518 = vmatprep.subr.mxu0 0.0
    %519 = vmatpush1.xpose.msra.mxu0 0.0
    %520 = vmatprep.subr.mxu0 0.0
    %521 = vmatpush1.xpose.msra.mxu0 0.0
    %522 = vmatprep.subr.mxu0 0.0
    %523 = vmatpush1.xpose.msra.mxu0 0.0
    %524 = vmatprep.subr.mxu0 0.0
    %525 = vmatpush1.xpose.msra.mxu0 0.0
    %526 = vmatprep.subr.mxu0 0.0
    %527 = vmatpush1.xpose.msra.mxu0 0.0
    %528 = vmatprep.subr.mxu0 0.0
    %529 = vmatpush1.xpose.msra.mxu0 0.0
    %530 = vmatprep.subr.mxu0 0.0
    %531 = vmatpush1.xpose.msra.mxu0 0.0
    %532 = vmatprep.subr.mxu0 0.0
    %533 = vmatpush1.xpose.msra.mxu0 0.0
    %534 = vmatprep.subr.mxu0 0.0
    %535 = vmatpush1.xpose.msra.mxu0 0.0
    %536 = vmatprep.subr.mxu0 0.0
    %537 = vmatpush1.xpose.msra.mxu0 0.0
    %538 = vmatprep.subr.mxu0 0.0
    %539 = vmatpush1.xpose.msra.mxu0 0.0
    %540 = vmatprep.subr.mxu0 0.0
    %541 = vmatpush1.xpose.msra.mxu0 0.0
    %542 = vmatprep.subr.mxu0 0.0
    %543 = vmatpush1.xpose.msra.mxu0 0.0
    %544 = vmatprep.subr.mxu0 0.0
    %545 = vmatpush1.xpose.msra.mxu0 0.0
    %546 = vmatprep.subr.mxu0 0.0
    %547 = vmatpush1.xpose.msra.mxu0 0.0
    %548 = vmatprep.subr.mxu0 0.0
    %549 = vmatpush1.xpose.msra.mxu0 0.0
    %550 = vmatprep.subr.mxu0 0.0
    %551 = vmatpush1.xpose.msra.mxu0 0.0
    %552 = vmatprep.subr.mxu0 0.0
    %553 = vmatpush1.xpose.msra.mxu0 0.0
    %554 = vmatprep.subr.mxu0 0.0
    %555 = vmatpush1.xpose.msra.mxu0 0.0
    %556 = vmatprep.subr.mxu0 0.0
    %557 = vmatpush1.xpose.msra.mxu0 0.0
    %558 = vmatprep.subr.mxu0 0.0
    %559 = vmatpush1.xpose.msra.mxu0 0.0
    %560 = vmatprep.subr.mxu0 0.0
    %561 = vmatpush1.xpose.msra.mxu0 0.0
    %562 = vmatprep.subr.mxu0 0.0
    %563 = vmatpush1.xpose.msra.mxu0 0.0
    %564 = vmatprep.subr.mxu0 0.0
    %565 = vmatpush1.xpose.msra.mxu0 0.0
    %566 = vmatprep.subr.mxu0 0.0
    %567 = vmatpush1.xpose.msra.mxu0 0.0
    %568 = vmatprep.subr.mxu0 0.0
    %569 = vmatpush1.xpose.msra.mxu0 0.0
    %570 = vmatprep.subr.mxu0 0.0
    %571 = vmatpush1.xpose.msra.mxu0 0.0
    %572 = vmatprep.subr.mxu0 0.0
    %573 = vmatpush1.xpose.msra.mxu0 0.0
    %574 = vmatprep.subr.mxu0 0.0
    %575 = vmatpush1.xpose.msra.mxu0 0.0
    %576 = vmatprep.subr.mxu0 0.0
    %577 = vmatpush1.xpose.msra.mxu0 0.0
    %578 = vmatprep.subr.mxu0 0.0
    %579 = vmatpush1.xpose.msra.mxu0 0.0
    %580 = vmatprep.mubr.f32.mxu0 0.0
    %581 = vmatmul.mubr.f32.gmra.mrb[0].mxu0 %v512
    %v582 = vpop.f32.mrb[0].mxu0
    %v583 = vadd.f32 0.0, %v582
    %v584 = vpop.f32.mrb[0].mxu0
    %585 = vdwg.mxu0
    %586 = vrot.lane.b32.xlu0 %v126, 96
    %v587 = vpop.permute.xlu0 %586
    %v588 = vsel %vm131, %v126, 0
    %v590 = vsel %vm131, %v587, 0
    %592 = vmatprep.subr.mxu0 0.0
    %593 = vmatpush1.xpose.msra.mxu0 %v590
    %594 = vmatprep.subr.mxu0 0.0
    %595 = vmatpush1.xpose.msra.mxu0 0.0
    %596 = vmatprep.subr.mxu0 0.0
    %597 = vmatpush1.xpose.msra.mxu0 0.0
    %598 = vmatprep.subr.mxu0 0.0
    %599 = vmatpush1.xpose.msra.mxu0 0.0
    %600 = vmatprep.subr.mxu0 0.0
    %601 = vmatpush1.xpose.msra.mxu0 0.0
    %602 = vmatprep.subr.mxu0 0.0
    %603 = vmatpush1.xpose.msra.mxu0 0.0
    %604 = vmatprep.subr.mxu0 0.0
    %605 = vmatpush1.xpose.msra.mxu0 0.0
    %606 = vmatprep.subr.mxu0 0.0
    %607 = vmatpush1.xpose.msra.mxu0 0.0
    %608 = vmatprep.subr.mxu0 0.0
    %609 = vmatpush1.xpose.msra.mxu0 0.0
    %610 = vmatprep.subr.mxu0 0.0
    %611 = vmatpush1.xpose.msra.mxu0 0.0
    %612 = vmatprep.subr.mxu0 0.0
    %613 = vmatpush1.xpose.msra.mxu0 0.0
    %614 = vmatprep.subr.mxu0 0.0
    %615 = vmatpush1.xpose.msra.mxu0 0.0
    %616 = vmatprep.subr.mxu0 0.0
    %617 = vmatpush1.xpose.msra.mxu0 0.0
    %618 = vmatprep.subr.mxu0 0.0
    %619 = vmatpush1.xpose.msra.mxu0 0.0
    %620 = vmatprep.subr.mxu0 0.0
    %621 = vmatpush1.xpose.msra.mxu0 0.0
    %622 = vmatprep.subr.mxu0 0.0
    %623 = vmatpush1.xpose.msra.mxu0 0.0
    %624 = vmatprep.subr.mxu0 0.0
    %625 = vmatpush1.xpose.msra.mxu0 0.0
    %626 = vmatprep.subr.mxu0 0.0
    %627 = vmatpush1.xpose.msra.mxu0 0.0
    %628 = vmatprep.subr.mxu0 0.0
    %629 = vmatpush1.xpose.msra.mxu0 0.0
    %630 = vmatprep.subr.mxu0 0.0
    %631 = vmatpush1.xpose.msra.mxu0 0.0
    %632 = vmatprep.subr.mxu0 0.0
    %633 = vmatpush1.xpose.msra.mxu0 0.0
    %634 = vmatprep.subr.mxu0 0.0
    %635 = vmatpush1.xpose.msra.mxu0 0.0
    %636 = vmatprep.subr.mxu0 0.0
    %637 = vmatpush1.xpose.msra.mxu0 0.0
    %638 = vmatprep.subr.mxu0 0.0
    %639 = vmatpush1.xpose.msra.mxu0 0.0
    %640 = vmatprep.subr.mxu0 0.0
    %641 = vmatpush1.xpose.msra.mxu0 0.0
    %642 = vmatprep.subr.mxu0 0.0
    %643 = vmatpush1.xpose.msra.mxu0 0.0
    %644 = vmatprep.subr.mxu0 0.0
    %645 = vmatpush1.xpose.msra.mxu0 0.0
    %646 = vmatprep.subr.mxu0 0.0
    %647 = vmatpush1.xpose.msra.mxu0 0.0
    %648 = vmatprep.subr.mxu0 0.0
    %649 = vmatpush1.xpose.msra.mxu0 0.0
    %650 = vmatprep.subr.mxu0 0.0
    %651 = vmatpush1.xpose.msra.mxu0 0.0
    %652 = vmatprep.subr.mxu0 0.0
    %653 = vmatpush1.xpose.msra.mxu0 0.0
    %654 = vmatprep.subr.mxu0 0.0
    %655 = vmatpush1.xpose.msra.mxu0 0.0
    %656 = vmatprep.mubr.f32.mxu0 0.0
    %657 = vmatmul.mubr.f32.gmra.mrb[0].mxu0 %v588
    %v658 = vpop.f32.mrb[0].mxu0
    %v659 = vadd.f32 0.0, %v658
    %v660 = vpop.f32.mrb[0].mxu0
    %661 = vdwg.mxu0
    %662 = vrot.lane.b32.xlu0 %v128, 96
    %v663 = vpop.permute.xlu0 %662
    %v664 = vsel %vm131, %v128, 0
    %v666 = vsel %vm131, %v663, 0
    %668 = vmatprep.subr.mxu0 0.0
    %669 = vmatpush1.xpose.msra.mxu0 %v666
    %670 = vmatprep.subr.mxu0 0.0
    %671 = vmatpush1.xpose.msra.mxu0 0.0
    %672 = vmatprep.subr.mxu0 0.0
    %673 = vmatpush1.xpose.msra.mxu0 0.0
    %674 = vmatprep.subr.mxu0 0.0
    %675 = vmatpush1.xpose.msra.mxu0 0.0
    %676 = vmatprep.subr.mxu0 0.0
    %677 = vmatpush1.xpose.msra.mxu0 0.0
    %678 = vmatprep.subr.mxu0 0.0
    %679 = vmatpush1.xpose.msra.mxu0 0.0
    %680 = vmatprep.subr.mxu0 0.0
    %681 = vmatpush1.xpose.msra.mxu0 0.0
    %682 = vmatprep.subr.mxu0 0.0
    %683 = vmatpush1.xpose.msra.mxu0 0.0
    %684 = vmatprep.subr.mxu0 0.0
    %685 = vmatpush1.xpose.msra.mxu0 0.0
    %686 = vmatprep.subr.mxu0 0.0
    %687 = vmatpush1.xpose.msra.mxu0 0.0
    %688 = vmatprep.subr.mxu0 0.0
    %689 = vmatpush1.xpose.msra.mxu0 0.0
    %690 = vmatprep.subr.mxu0 0.0
    %691 = vmatpush1.xpose.msra.mxu0 0.0
    %692 = vmatprep.subr.mxu0 0.0
    %693 = vmatpush1.xpose.msra.mxu0 0.0
    %694 = vmatprep.subr.mxu0 0.0
    %695 = vmatpush1.xpose.msra.mxu0 0.0
    %696 = vmatprep.subr.mxu0 0.0
    %697 = vmatpush1.xpose.msra.mxu0 0.0
    %698 = vmatprep.subr.mxu0 0.0
    %699 = vmatpush1.xpose.msra.mxu0 0.0
    %700 = vmatprep.subr.mxu0 0.0
    %701 = vmatpush1.xpose.msra.mxu0 0.0
    %702 = vmatprep.subr.mxu0 0.0
    %703 = vmatpush1.xpose.msra.mxu0 0.0
    %704 = vmatprep.subr.mxu0 0.0
    %705 = vmatpush1.xpose.msra.mxu0 0.0
    %706 = vmatprep.subr.mxu0 0.0
    %707 = vmatpush1.xpose.msra.mxu0 0.0
    %708 = vmatprep.subr.mxu0 0.0
    %709 = vmatpush1.xpose.msra.mxu0 0.0
    %710 = vmatprep.subr.mxu0 0.0
    %711 = vmatpush1.xpose.msra.mxu0 0.0
    %712 = vmatprep.subr.mxu0 0.0
    %713 = vmatpush1.xpose.msra.mxu0 0.0
    %714 = vmatprep.subr.mxu0 0.0
    %715 = vmatpush1.xpose.msra.mxu0 0.0
    %716 = vmatprep.subr.mxu0 0.0
    %717 = vmatpush1.xpose.msra.mxu0 0.0
    %718 = vmatprep.subr.mxu0 0.0
    %719 = vmatpush1.xpose.msra.mxu0 0.0
    %720 = vmatprep.subr.mxu0 0.0
    %721 = vmatpush1.xpose.msra.mxu0 0.0
    %722 = vmatprep.subr.mxu0 0.0
    %723 = vmatpush1.xpose.msra.mxu0 0.0
    %724 = vmatprep.subr.mxu0 0.0
    %725 = vmatpush1.xpose.msra.mxu0 0.0
    %726 = vmatprep.subr.mxu0 0.0
    %727 = vmatpush1.xpose.msra.mxu0 0.0
    %728 = vmatprep.subr.mxu0 0.0
    %729 = vmatpush1.xpose.msra.mxu0 0.0
    %730 = vmatprep.subr.mxu0 0.0
    %731 = vmatpush1.xpose.msra.mxu0 0.0
    %732 = vmatprep.mubr.f32.mxu0 0.0
    %733 = vmatmul.mubr.f32.gmra.mrb[0].mxu0 %v664
    %v734 = vpop.f32.mrb[0].mxu0
    %v735 = vadd.f32 0.0, %v734
    %v736 = vpop.f32.mrb[0].mxu0
    %737 = vdwg.mxu0
    %v738 = vmul.f32 %v203, 0.35355338
    %v739 = vmul.f32 %v279, 0.35355338
    %v740 = vmul.f32 %v355, 0.35355338
    %v741 = vmul.f32 %v431, 0.35355338
    %v742 = vmul.f32 %v507, 0.35355338
    %v743 = vmul.f32 %v583, 0.35355338
    %v744 = vmul.f32 %v659, 0.35355338
    %v745 = vmul.f32 %v735, 0.35355338
    %v746 = vsel %vm131, %v738, -inf
    %747 = vmax.xlane.f32.xlu0 %v746
    %v748 = vpop.xlane.xlu0 %747
    %v749 = vsel %vm131, %v739, -inf
    %750 = vmax.xlane.f32.xlu0 %v749
    %v751 = vpop.xlane.xlu0 %750
    %v752 = vsel %vm131, %v740, -inf
    %753 = vmax.xlane.f32.xlu0 %v752
    %v754 = vpop.xlane.xlu0 %753
    %v755 = vsel %vm131, %v741, -inf
    %756 = vmax.xlane.f32.xlu0 %v755
    %v757 = vpop.xlane.xlu0 %756
    %v758 = vsel %vm131, %v742, -inf
    %759 = vmax.xlane.f32.xlu0 %v758
    %v760 = vpop.xlane.xlu0 %759
    %v761 = vsel %vm131, %v743, -inf
    %762 = vmax.xlane.f32.xlu0 %v761
    %v763 = vpop.xlane.xlu0 %762
    %v764 = vsel %vm131, %v744, -inf
    %765 = vmax.xlane.f32.xlu0 %v764
    %v766 = vpop.xlane.xlu0 %765
    %v767 = vsel %vm131, %v745, -inf
    %768 = vmax.xlane.f32.xlu0 %v767
    %v769 = vpop.xlane.xlu0 %768
    %v770 = vsub.f32 %v738, %v748
    %v771 = vsub.f32 %v739, %v751
    %v772 = vsub.f32 %v740, %v754
    %v773 = vsub.f32 %v741, %v757
    %v774 = vsub.f32 %v742, %v760
    %v775 = vsub.f32 %v743, %v763
    %v776 = vsub.f32 %v744, %v766
    %v777 = vsub.f32 %v745, %v769
    %v778 = vmul.f32 %v770, 1.442695
    %v779 = vpow.pop %v778
    %v780 = vmul.f32 %v771, 1.442695
    %v781 = vpow.pop %v780
    %v782 = vmul.f32 %v772, 1.442695
    %v783 = vpow.pop %v782
    %v784 = vmul.f32 %v773, 1.442695
    %v785 = vpow.pop %v784
    %v786 = vmul.f32 %v774, 1.442695
    %v787 = vpow.pop %v786
    %v788 = vmul.f32 %v775, 1.442695
    %v789 = vpow.pop %v788
    %v790 = vmul.f32 %v776, 1.442695
    %v791 = vpow.pop %v790
    %v792 = vmul.f32 %v777, 1.442695
    %v793 = vpow.pop %v792
    %v794 = vsel %vm131, %v779, 0.0
    %795 = vadd.xlane.f32.xlu0 %v794
    %v796 = vpop.xlane.xlu0 %795
    %v797 = vsel %vm131, %v781, 0.0
    %798 = vadd.xlane.f32.xlu0 %v797
    %v799 = vpop.xlane.xlu0 %798
    %v800 = vsel %vm131, %v783, 0.0
    %801 = vadd.xlane.f32.xlu0 %v800
    %v802 = vpop.xlane.xlu0 %801
    %v803 = vsel %vm131, %v785, 0.0
    %804 = vadd.xlane.f32.xlu0 %v803
    %v805 = vpop.xlane.xlu0 %804
    %v806 = vsel %vm131, %v787, 0.0
    %807 = vadd.xlane.f32.xlu0 %v806
    %v808 = vpop.xlane.xlu0 %807
    %v809 = vsel %vm131, %v789, 0.0
    %810 = vadd.xlane.f32.xlu0 %v809
    %v811 = vpop.xlane.xlu0 %810
    %v812 = vsel %vm131, %v791, 0.0
    %813 = vadd.xlane.f32.xlu0 %v812
    %v814 = vpop.xlane.xlu0 %813
    %v815 = vsel %vm131, %v793, 0.0
    %816 = vadd.xlane.f32.xlu0 %v815
    %v817 = vpop.xlane.xlu0 %816
    %v818 = vrcp.pop %v796
    %v819 = vmul.f32 %v779, %v818
    %v820 = vrcp.pop %v799
    %v821 = vmul.f32 %v781, %v820
    %v822 = vrcp.pop %v802
    %v823 = vmul.f32 %v783, %v822
    %v824 = vrcp.pop %v805
    %v825 = vmul.f32 %v785, %v824
    %v826 = vrcp.pop %v808
    %v827 = vmul.f32 %v787, %v826
    %v828 = vrcp.pop %v811
    %v829 = vmul.f32 %v789, %v828
    %v830 = vrcp.pop %v814
    %v831 = vmul.f32 %v791, %v830
    %v832 = vrcp.pop %v817
    %v833 = vmul.f32 %v793, %v832
    %834 = vrot.lane.b32.xlu0 %v107, 64
    %v835 = vpop.permute.xlu0 %834
    %v838 = vsel %vm131, %v819, 0
    %840 = vmatprep.subr.mxu0 0.0
    %841 = vmatpush1.msra.mxu0 %v835
    %842 = vmatprep.subr.mxu0 0.0
    %843 = vmatpush1.msra.mxu0 0.0
    %844 = vmatprep.subr.mxu0 0.0
    %845 = vmatpush1.msra.mxu0 0.0
    %846 = vmatprep.subr.mxu0 0.0
    %847 = vmatpush1.msra.mxu0 0.0
    %848 = vmatprep.subr.mxu0 0.0
    %849 = vmatpush1.msra.mxu0 0.0
    %850 = vmatprep.subr.mxu0 0.0
    %851 = vmatpush1.msra.mxu0 0.0
    %852 = vmatprep.subr.mxu0 0.0
    %853 = vmatpush1.msra.mxu0 0.0
    %854 = vmatprep.subr.mxu0 0.0
    %855 = vmatpush1.msra.mxu0 0.0
    %856 = vmatprep.subr.mxu0 0.0
    %857 = vmatpush1.msra.mxu0 0.0
    %858 = vmatprep.subr.mxu0 0.0
    %859 = vmatpush1.msra.mxu0 0.0
    %860 = vmatprep.subr.mxu0 0.0
    %861 = vmatpush1.msra.mxu0 0.0
    %862 = vmatprep.subr.mxu0 0.0
    %863 = vmatpush1.msra.mxu0 0.0
    %864 = vmatprep.subr.mxu0 0.0
    %865 = vmatpush1.msra.mxu0 0.0
    %866 = vmatprep.subr.mxu0 0.0
    %867 = vmatpush1.msra.mxu0 0.0
    %868 = vmatprep.subr.mxu0 0.0
    %869 = vmatpush1.msra.mxu0 0.0
    %870 = vmatprep.subr.mxu0 0.0
    %871 = vmatpush1.msra.mxu0 0.0
    %872 = vmatprep.subr.mxu0 0.0
    %873 = vmatpush1.msra.mxu0 0.0
    %874 = vmatprep.subr.mxu0 0.0
    %875 = vmatpush1.msra.mxu0 0.0
    %876 = vmatprep.subr.mxu0 0.0
    %877 = vmatpush1.msra.mxu0 0.0
    %878 = vmatprep.subr.mxu0 0.0
    %879 = vmatpush1.msra.mxu0 0.0
    %880 = vmatprep.subr.mxu0 0.0
    %881 = vmatpush1.msra.mxu0 0.0
    %882 = vmatprep.subr.mxu0 0.0
    %883 = vmatpush1.msra.mxu0 0.0
    %884 = vmatprep.subr.mxu0 0.0
    %885 = vmatpush1.msra.mxu0 0.0
    %886 = vmatprep.subr.mxu0 0.0
    %887 = vmatpush1.msra.mxu0 0.0
    %888 = vmatprep.subr.mxu0 0.0
    %889 = vmatpush1.msra.mxu0 0.0
    %890 = vmatprep.subr.mxu0 0.0
    %891 = vmatpush1.msra.mxu0 0.0
    %892 = vmatprep.subr.mxu0 0.0
    %893 = vmatpush1.msra.mxu0 0.0
    %894 = vmatprep.subr.mxu0 0.0
    %895 = vmatpush1.msra.mxu0 0.0
    %896 = vmatprep.subr.mxu0 0.0
    %897 = vmatpush1.msra.mxu0 0.0
    %898 = vmatprep.subr.mxu0 0.0
    %899 = vmatpush1.msra.mxu0 0.0
    %900 = vmatprep.subr.mxu0 0.0
    %901 = vmatpush1.msra.mxu0 0.0
    %902 = vmatprep.subr.mxu0 0.0
    %903 = vmatpush1.msra.mxu0 0.0
    %904 = vmatprep.mubr.f32.mxu0 0.0
    %905 = vmatmul.mubr.f32.gmra.mrb[0].mxu0 %v838
    %v906 = vpop.f32.mrb[0].mxu0
    %v907 = vadd.f32 0.0, %v906
    %v908 = vpop.f32.mrb[0].mxu0
    %909 = vdwg.mxu0
    %910 = vrot.lane.b32.xlu0 %v112, 64
    %v911 = vpop.permute.xlu0 %910
    %v914 = vsel %vm131, %v821, 0
    %916 = vmatprep.subr.mxu0 0.0
    %917 = vmatpush1.msra.mxu0 %v911
    %918 = vmatprep.subr.mxu0 0.0
    %919 = vmatpush1.msra.mxu0 0.0
    %920 = vmatprep.subr.mxu0 0.0
    %921 = vmatpush1.msra.mxu0 0.0
    %922 = vmatprep.subr.mxu0 0.0
    %923 = vmatpush1.msra.mxu0 0.0
    %924 = vmatprep.subr.mxu0 0.0
    %925 = vmatpush1.msra.mxu0 0.0
    %926 = vmatprep.subr.mxu0 0.0
    %927 = vmatpush1.msra.mxu0 0.0
    %928 = vmatprep.subr.mxu0 0.0
    %929 = vmatpush1.msra.mxu0 0.0
    %930 = vmatprep.subr.mxu0 0.0
    %931 = vmatpush1.msra.mxu0 0.0
    %932 = vmatprep.subr.mxu0 0.0
    %933 = vmatpush1.msra.mxu0 0.0
    %934 = vmatprep.subr.mxu0 0.0
    %935 = vmatpush1.msra.mxu0 0.0
    %936 = vmatprep.subr.mxu0 0.0
    %937 = vmatpush1.msra.mxu0 0.0
    %938 = vmatprep.subr.mxu0 0.0
    %939 = vmatpush1.msra.mxu0 0.0
    %940 = vmatprep.subr.mxu0 0.0
    %941 = vmatpush1.msra.mxu0 0.0
    %942 = vmatprep.subr.mxu0 0.0
    %943 = vmatpush1.msra.mxu0 0.0
    %944 = vmatprep.subr.mxu0 0.0
    %945 = vmatpush1.msra.mxu0 0.0
    %946 = vmatprep.subr.mxu0 0.0
    %947 = vmatpush1.msra.mxu0 0.0
    %948 = vmatprep.subr.mxu0 0.0
    %949 = vmatpush1.msra.mxu0 0.0
    %950 = vmatprep.subr.mxu0 0.0
    %951 = vmatpush1.msra.mxu0 0.0
    %952 = vmatprep.subr.mxu0 0.0
    %953 = vmatpush1.msra.mxu0 0.0
    %954 = vmatprep.subr.mxu0 0.0
    %955 = vmatpush1.msra.mxu0 0.0
    %956 = vmatprep.subr.mxu0 0.0
    %957 = vmatpush1.msra.mxu0 0.0
    %958 = vmatprep.subr.mxu0 0.0
    %959 = vmatpush1.msra.mxu0 0.0
    %960 = vmatprep.subr.mxu0 0.0
    %961 = vmatpush1.msra.mxu0 0.0
    %962 = vmatprep.subr.mxu0 0.0
    %963 = vmatpush1.msra.mxu0 0.0
    %964 = vmatprep.subr.mxu0 0.0
    %965 = vmatpush1.msra.mxu0 0.0
    %966 = vmatprep.subr.mxu0 0.0
    %967 = vmatpush1.msra.mxu0 0.0
    %968 = vmatprep.subr.mxu0 0.0
    %969 = vmatpush1.msra.mxu0 0.0
    %970 = vmatprep.subr.mxu0 0.0
    %971 = vmatpush1.msra.mxu0 0.0
    %972 = vmatprep.subr.mxu0 0.0
    %973 = vmatpush1.msra.mxu0 0.0
    %974 = vmatprep.subr.mxu0 0.0
    %975 = vmatpush1.msra.mxu0 0.0
    %976 = vmatprep.subr.mxu0 0.0
    %977 = vmatpush1.msra.mxu0 0.0
    %978 = vmatprep.subr.mxu0 0.0
    %979 = vmatpush1.msra.mxu0 0.0
    %980 = vmatprep.mubr.f32.mxu0 0.0
    %981 = vmatmul.mubr.f32.gmra.mrb[0].mxu0 %v914
    %v982 = vpop.f32.mrb[0].mxu0
    %v983 = vadd.f32 0.0, %v982
    %v984 = vpop.f32.mrb[0].mxu0
    %985 = vdwg.mxu0
    %986 = vrot.lane.b32.xlu0 %v118, 64
    %v987 = vpop.permute.xlu0 %986
    %v990 = vsel %vm131, %v823, 0
    %992 = vmatprep.subr.mxu0 0.0
    %993 = vmatpush1.msra.mxu0 %v987
    %994 = vmatprep.subr.mxu0 0.0
    %995 = vmatpush1.msra.mxu0 0.0
    %996 = vmatprep.subr.mxu0 0.0
    %997 = vmatpush1.msra.mxu0 0.0
    %998 = vmatprep.subr.mxu0 0.0
    %999 = vmatpush1.msra.mxu0 0.0
    %1000 = vmatprep.subr.mxu0 0.0
    %1001 = vmatpush1.msra.mxu0 0.0
    %1002 = vmatprep.subr.mxu0 0.0
    %1003 = vmatpush1.msra.mxu0 0.0
    %1004 = vmatprep.subr.mxu0 0.0
    %1005 = vmatpush1.msra.mxu0 0.0
    %1006 = vmatprep.subr.mxu0 0.0
    %1007 = vmatpush1.msra.mxu0 0.0
    %1008 = vmatprep.subr.mxu0 0.0
    %1009 = vmatpush1.msra.mxu0 0.0
    %1010 = vmatprep.subr.mxu0 0.0
    %1011 = vmatpush1.msra.mxu0 0.0
    %1012 = vmatprep.subr.mxu0 0.0
    %1013 = vmatpush1.msra.mxu0 0.0
    %1014 = vmatprep.subr.mxu0 0.0
    %1015 = vmatpush1.msra.mxu0 0.0
    %1016 = vmatprep.subr.mxu0 0.0
    %1017 = vmatpush1.msra.mxu0 0.0
    %1018 = vmatprep.subr.mxu0 0.0
    %1019 = vmatpush1.msra.mxu0 0.0
    %1020 = vmatprep.subr.mxu0 0.0
    %1021 = vmatpush1.msra.mxu0 0.0
    %1022 = vmatprep.subr.mxu0 0.0
    %1023 = vmatpush1.msra.mxu0 0.0
    %1024 = vmatprep.subr.mxu0 0.0
    %1025 = vmatpush1.msra.mxu0 0.0
    %1026 = vmatprep.subr.mxu0 0.0
    %1027 = vmatpush1.msra.mxu0 0.0
    %1028 = vmatprep.subr.mxu0 0.0
    %1029 = vmatpush1.msra.mxu0 0.0
    %1030 = vmatprep.subr.mxu0 0.0
    %1031 = vmatpush1.msra.mxu0 0.0
    %1032 = vmatprep.subr.mxu0 0.0
    %1033 = vmatpush1.msra.mxu0 0.0
    %1034 = vmatprep.subr.mxu0 0.0
    %1035 = vmatpush1.msra.mxu0 0.0
    %1036 = vmatprep.subr.mxu0 0.0
    %1037 = vmatpush1.msra.mxu0 0.0
    %1038 = vmatprep.subr.mxu0 0.0
    %1039 = vmatpush1.msra.mxu0 0.0
    %1040 = vmatprep.subr.mxu0 0.0
    %1041 = vmatpush1.msra.mxu0 0.0
    %1042 = vmatprep.subr.mxu0 0.0
    %1043 = vmatpush1.msra.mxu0 0.0
    %1044 = vmatprep.subr.mxu0 0.0
    %1045 = vmatpush1.msra.mxu0 0.0
    %1046 = vmatprep.subr.mxu0 0.0
    %1047 = vmatpush1.msra.mxu0 0.0
    %1048 = vmatprep.subr.mxu0 0.0
    %1049 = vmatpush1.msra.mxu0 0.0
    %1050 = vmatprep.subr.mxu0 0.0
    %1051 = vmatpush1.msra.mxu0 0.0
    %1052 = vmatprep.subr.mxu0 0.0
    %1053 = vmatpush1.msra.mxu0 0.0
    %1054 = vmatprep.subr.mxu0 0.0
    %1055 = vmatpush1.msra.mxu0 0.0
    %1056 = vmatprep.mubr.f32.mxu0 0.0
    %1057 = vmatmul.mubr.f32.gmra.mrb[0].mxu0 %v990
    %v1058 = vpop.f32.mrb[0].mxu0
    %v1059 = vadd.f32 0.0, %v1058
    %v1060 = vpop.f32.mrb[0].mxu0
    %1061 = vdwg.mxu0
    %1062 = vrot.lane.b32.xlu0 %v120, 64
    %v1063 = vpop.permute.xlu0 %1062
    %v1066 = vsel %vm131, %v825, 0
    %1068 = vmatprep.subr.mxu0 0.0
    %1069 = vmatpush1.msra.mxu0 %v1063
    %1070 = vmatprep.subr.mxu0 0.0
    %1071 = vmatpush1.msra.mxu0 0.0
    %1072 = vmatprep.subr.mxu0 0.0
    %1073 = vmatpush1.msra.mxu0 0.0
    %1074 = vmatprep.subr.mxu0 0.0
    %1075 = vmatpush1.msra.mxu0 0.0
    %1076 = vmatprep.subr.mxu0 0.0
    %1077 = vmatpush1.msra.mxu0 0.0
    %1078 = vmatprep.subr.mxu0 0.0
    %1079 = vmatpush1.msra.mxu0 0.0
    %1080 = vmatprep.subr.mxu0 0.0
    %1081 = vmatpush1.msra.mxu0 0.0
    %1082 = vmatprep.subr.mxu0 0.0
    %1083 = vmatpush1.msra.mxu0 0.0
    %1084 = vmatprep.subr.mxu0 0.0
    %1085 = vmatpush1.msra.mxu0 0.0
    %1086 = vmatprep.subr.mxu0 0.0
    %1087 = vmatpush1.msra.mxu0 0.0
    %1088 = vmatprep.subr.mxu0 0.0
    %1089 = vmatpush1.msra.mxu0 0.0
    %1090 = vmatprep.subr.mxu0 0.0
    %1091 = vmatpush1.msra.mxu0 0.0
    %1092 = vmatprep.subr.mxu0 0.0
    %1093 = vmatpush1.msra.mxu0 0.0
    %1094 = vmatprep.subr.mxu0 0.0
    %1095 = vmatpush1.msra.mxu0 0.0
    %1096 = vmatprep.subr.mxu0 0.0
    %1097 = vmatpush1.msra.mxu0 0.0
    %1098 = vmatprep.subr.mxu0 0.0
    %1099 = vmatpush1.msra.mxu0 0.0
    %1100 = vmatprep.subr.mxu0 0.0
    %1101 = vmatpush1.msra.mxu0 0.0
    %1102 = vmatprep.subr.mxu0 0.0
    %1103 = vmatpush1.msra.mxu0 0.0
    %1104 = vmatprep.subr.mxu0 0.0
    %1105 = vmatpush1.msra.mxu0 0.0
    %1106 = vmatprep.subr.mxu0 0.0
    %1107 = vmatpush1.msra.mxu0 0.0
    %1108 = vmatprep.subr.mxu0 0.0
    %1109 = vmatpush1.msra.mxu0 0.0
    %1110 = vmatprep.subr.mxu0 0.0
    %1111 = vmatpush1.msra.mxu0 0.0
    %1112 = vmatprep.subr.mxu0 0.0
    %1113 = vmatpush1.msra.mxu0 0.0
    %1114 = vmatprep.subr.mxu0 0.0
    %1115 = vmatpush1.msra.mxu0 0.0
    %1116 = vmatprep.subr.mxu0 0.0
    %1117 = vmatpush1.msra.mxu0 0.0
    %1118 = vmatprep.subr.mxu0 0.0
    %1119 = vmatpush1.msra.mxu0 0.0
    %1120 = vmatprep.subr.mxu0 0.0
    %1121 = vmatpush1.msra.mxu0 0.0
    %1122 = vmatprep.subr.mxu0 0.0
    %1123 = vmatpush1.msra.mxu0 0.0
    %1124 = vmatprep.subr.mxu0 0.0
    %1125 = vmatpush1.msra.mxu0 0.0
    %1126 = vmatprep.subr.mxu0 0.0
    %1127 = vmatpush1.msra.mxu0 0.0
    %1128 = vmatprep.subr.mxu0 0.0
    %1129 = vmatpush1.msra.mxu0 0.0
    %1130 = vmatprep.subr.mxu0 0.0
    %1131 = vmatpush1.msra.mxu0 0.0
    %1132 = vmatprep.mubr.f32.mxu0 0.0
    %1133 = vmatmul.mubr.f32.gmra.mrb[0].mxu0 %v1066
    %v1134 = vpop.f32.mrb[0].mxu0
    %v1135 = vadd.f32 0.0, %v1134
    %v1136 = vpop.f32.mrb[0].mxu0
    %1137 = vdwg.mxu0
    %1138 = vrot.lane.b32.xlu0 %v122, 64
    %v1139 = vpop.permute.xlu0 %1138
    %v1142 = vsel %vm131, %v827, 0
    %1144 = vmatprep.subr.mxu0 0.0
    %1145 = vmatpush1.msra.mxu0 %v1139
    %1146 = vmatprep.subr.mxu0 0.0
    %1147 = vmatpush1.msra.mxu0 0.0
    %1148 = vmatprep.subr.mxu0 0.0
    %1149 = vmatpush1.msra.mxu0 0.0
    %1150 = vmatprep.subr.mxu0 0.0
    %1151 = vmatpush1.msra.mxu0 0.0
    %1152 = vmatprep.subr.mxu0 0.0
    %1153 = vmatpush1.msra.mxu0 0.0
    %1154 = vmatprep.subr.mxu0 0.0
    %1155 = vmatpush1.msra.mxu0 0.0
    %1156 = vmatprep.subr.mxu0 0.0
    %1157 = vmatpush1.msra.mxu0 0.0
    %1158 = vmatprep.subr.mxu0 0.0
    %1159 = vmatpush1.msra.mxu0 0.0
    %1160 = vmatprep.subr.mxu0 0.0
    %1161 = vmatpush1.msra.mxu0 0.0
    %1162 = vmatprep.subr.mxu0 0.0
    %1163 = vmatpush1.msra.mxu0 0.0
    %1164 = vmatprep.subr.mxu0 0.0
    %1165 = vmatpush1.msra.mxu0 0.0
    %1166 = vmatprep.subr.mxu0 0.0
    %1167 = vmatpush1.msra.mxu0 0.0
    %1168 = vmatprep.subr.mxu0 0.0
    %1169 = vmatpush1.msra.mxu0 0.0
    %1170 = vmatprep.subr.mxu0 0.0
    %1171 = vmatpush1.msra.mxu0 0.0
    %1172 = vmatprep.subr.mxu0 0.0
    %1173 = vmatpush1.msra.mxu0 0.0
    %1174 = vmatprep.subr.mxu0 0.0
    %1175 = vmatpush1.msra.mxu0 0.0
    %1176 = vmatprep.subr.mxu0 0.0
    %1177 = vmatpush1.msra.mxu0 0.0
    %1178 = vmatprep.subr.mxu0 0.0
    %1179 = vmatpush1.msra.mxu0 0.0
    %1180 = vmatprep.subr.mxu0 0.0
    %1181 = vmatpush1.msra.mxu0 0.0
    %1182 = vmatprep.subr.mxu0 0.0
    %1183 = vmatpush1.msra.mxu0 0.0
    %1184 = vmatprep.subr.mxu0 0.0
    %1185 = vmatpush1.msra.mxu0 0.0
    %1186 = vmatprep.subr.mxu0 0.0
    %1187 = vmatpush1.msra.mxu0 0.0
    %1188 = vmatprep.subr.mxu0 0.0
    %1189 = vmatpush1.msra.mxu0 0.0
    %1190 = vmatprep.subr.mxu0 0.0
    %1191 = vmatpush1.msra.mxu0 0.0
    %1192 = vmatprep.subr.mxu0 0.0
    %1193 = vmatpush1.msra.mxu0 0.0
    %1194 = vmatprep.subr.mxu0 0.0
    %1195 = vmatpush1.msra.mxu0 0.0
    %1196 = vmatprep.subr.mxu0 0.0
    %1197 = vmatpush1.msra.mxu0 0.0
    %1198 = vmatprep.subr.mxu0 0.0
    %1199 = vmatpush1.msra.mxu0 0.0
    %1200 = vmatprep.subr.mxu0 0.0
    %1201 = vmatpush1.msra.mxu0 0.0
    %1202 = vmatprep.subr.mxu0 0.0
    %1203 = vmatpush1.msra.mxu0 0.0
    %1204 = vmatprep.subr.mxu0 0.0
    %1205 = vmatpush1.msra.mxu0 0.0
    %1206 = vmatprep.subr.mxu0 0.0
    %1207 = vmatpush1.msra.mxu0 0.0
    %1208 = vmatprep.mubr.f32.mxu0 0.0
    %1209 = vmatmul.mubr.f32.gmra.mrb[0].mxu0 %v1142
    %v1210 = vpop.f32.mrb[0].mxu0
    %v1211 = vadd.f32 0.0, %v1210
    %v1212 = vpop.f32.mrb[0].mxu0
    %1213 = vdwg.mxu0
    %1214 = vrot.lane.b32.xlu0 %v124, 64
    %v1215 = vpop.permute.xlu0 %1214
    %v1218 = vsel %vm131, %v829, 0
    %1220 = vmatprep.subr.mxu0 0.0
    %1221 = vmatpush1.msra.mxu0 %v1215
    %1222 = vmatprep.subr.mxu0 0.0
    %1223 = vmatpush1.msra.mxu0 0.0
    %1224 = vmatprep.subr.mxu0 0.0
    %1225 = vmatpush1.msra.mxu0 0.0
    %1226 = vmatprep.subr.mxu0 0.0
    %1227 = vmatpush1.msra.mxu0 0.0
    %1228 = vmatprep.subr.mxu0 0.0
    %1229 = vmatpush1.msra.mxu0 0.0
    %1230 = vmatprep.subr.mxu0 0.0
    %1231 = vmatpush1.msra.mxu0 0.0
    %1232 = vmatprep.subr.mxu0 0.0
    %1233 = vmatpush1.msra.mxu0 0.0
    %1234 = vmatprep.subr.mxu0 0.0
    %1235 = vmatpush1.msra.mxu0 0.0
    %1236 = vmatprep.subr.mxu0 0.0
    %1237 = vmatpush1.msra.mxu0 0.0
    %1238 = vmatprep.subr.mxu0 0.0
    %1239 = vmatpush1.msra.mxu0 0.0
    %1240 = vmatprep.subr.mxu0 0.0
    %1241 = vmatpush1.msra.mxu0 0.0
    %1242 = vmatprep.subr.mxu0 0.0
    %1243 = vmatpush1.msra.mxu0 0.0
    %1244 = vmatprep.subr.mxu0 0.0
    %1245 = vmatpush1.msra.mxu0 0.0
    %1246 = vmatprep.subr.mxu0 0.0
    %1247 = vmatpush1.msra.mxu0 0.0
    %1248 = vmatprep.subr.mxu0 0.0
    %1249 = vmatpush1.msra.mxu0 0.0
    %1250 = vmatprep.subr.mxu0 0.0
    %1251 = vmatpush1.msra.mxu0 0.0
    %1252 = vmatprep.subr.mxu0 0.0
    %1253 = vmatpush1.msra.mxu0 0.0
    %1254 = vmatprep.subr.mxu0 0.0
    %1255 = vmatpush1.msra.mxu0 0.0
    %1256 = vmatprep.subr.mxu0 0.0
    %1257 = vmatpush1.msra.mxu0 0.0
    %1258 = vmatprep.subr.mxu0 0.0
    %1259 = vmatpush1.msra.mxu0 0.0
    %1260 = vmatprep.subr.mxu0 0.0
    %1261 = vmatpush1.msra.mxu0 0.0
    %1262 = vmatprep.subr.mxu0 0.0
    %1263 = vmatpush1.msra.mxu0 0.0
    %1264 = vmatprep.subr.mxu0 0.0
    %1265 = vmatpush1.msra.mxu0 0.0
    %1266 = vmatprep.subr.mxu0 0.0
    %1267 = vmatpush1.msra.mxu0 0.0
    %1268 = vmatprep.subr.mxu0 0.0
    %1269 = vmatpush1.msra.mxu0 0.0
    %1270 = vmatprep.subr.mxu0 0.0
    %1271 = vmatpush1.msra.mxu0 0.0
    %1272 = vmatprep.subr.mxu0 0.0
    %1273 = vmatpush1.msra.mxu0 0.0
    %1274 = vmatprep.subr.mxu0 0.0
    %1275 = vmatpush1.msra.mxu0 0.0
    %1276 = vmatprep.subr.mxu0 0.0
    %1277 = vmatpush1.msra.mxu0 0.0
    %1278 = vmatprep.subr.mxu0 0.0
    %1279 = vmatpush1.msra.mxu0 0.0
    %1280 = vmatprep.subr.mxu0 0.0
    %1281 = vmatpush1.msra.mxu0 0.0
    %1282 = vmatprep.subr.mxu0 0.0
    %1283 = vmatpush1.msra.mxu0 0.0
    %1284 = vmatprep.mubr.f32.mxu0 0.0
    %1285 = vmatmul.mubr.f32.gmra.mrb[0].mxu0 %v1218
    %v1286 = vpop.f32.mrb[0].mxu0
    %v1287 = vadd.f32 0.0, %v1286
    %v1288 = vpop.f32.mrb[0].mxu0
    %1289 = vdwg.mxu0
    %1290 = vrot.lane.b32.xlu0 %v126, 64
    %v1291 = vpop.permute.xlu0 %1290
    %v1294 = vsel %vm131, %v831, 0
    %1296 = vmatprep.subr.mxu0 0.0
    %1297 = vmatpush1.msra.mxu0 %v1291
    %1298 = vmatprep.subr.mxu0 0.0
    %1299 = vmatpush1.msra.mxu0 0.0
    %1300 = vmatprep.subr.mxu0 0.0
    %1301 = vmatpush1.msra.mxu0 0.0
    %1302 = vmatprep.subr.mxu0 0.0
    %1303 = vmatpush1.msra.mxu0 0.0
    %1304 = vmatprep.subr.mxu0 0.0
    %1305 = vmatpush1.msra.mxu0 0.0
    %1306 = vmatprep.subr.mxu0 0.0
    %1307 = vmatpush1.msra.mxu0 0.0
    %1308 = vmatprep.subr.mxu0 0.0
    %1309 = vmatpush1.msra.mxu0 0.0
    %1310 = vmatprep.subr.mxu0 0.0
    %1311 = vmatpush1.msra.mxu0 0.0
    %1312 = vmatprep.subr.mxu0 0.0
    %1313 = vmatpush1.msra.mxu0 0.0
    %1314 = vmatprep.subr.mxu0 0.0
    %1315 = vmatpush1.msra.mxu0 0.0
    %1316 = vmatprep.subr.mxu0 0.0
    %1317 = vmatpush1.msra.mxu0 0.0
    %1318 = vmatprep.subr.mxu0 0.0
    %1319 = vmatpush1.msra.mxu0 0.0
    %1320 = vmatprep.subr.mxu0 0.0
    %1321 = vmatpush1.msra.mxu0 0.0
    %1322 = vmatprep.subr.mxu0 0.0
    %1323 = vmatpush1.msra.mxu0 0.0
    %1324 = vmatprep.subr.mxu0 0.0
    %1325 = vmatpush1.msra.mxu0 0.0
    %1326 = vmatprep.subr.mxu0 0.0
    %1327 = vmatpush1.msra.mxu0 0.0
    %1328 = vmatprep.subr.mxu0 0.0
    %1329 = vmatpush1.msra.mxu0 0.0
    %1330 = vmatprep.subr.mxu0 0.0
    %1331 = vmatpush1.msra.mxu0 0.0
    %1332 = vmatprep.subr.mxu0 0.0
    %1333 = vmatpush1.msra.mxu0 0.0
    %1334 = vmatprep.subr.mxu0 0.0
    %1335 = vmatpush1.msra.mxu0 0.0
    %1336 = vmatprep.subr.mxu0 0.0
    %1337 = vmatpush1.msra.mxu0 0.0
    %1338 = vmatprep.subr.mxu0 0.0
    %1339 = vmatpush1.msra.mxu0 0.0
    %1340 = vmatprep.subr.mxu0 0.0
    %1341 = vmatpush1.msra.mxu0 0.0
    %1342 = vmatprep.subr.mxu0 0.0
    %1343 = vmatpush1.msra.mxu0 0.0
    %1344 = vmatprep.subr.mxu0 0.0
    %1345 = vmatpush1.msra.mxu0 0.0
    %1346 = vmatprep.subr.mxu0 0.0
    %1347 = vmatpush1.msra.mxu0 0.0
    %1348 = vmatprep.subr.mxu0 0.0
    %1349 = vmatpush1.msra.mxu0 0.0
    %1350 = vmatprep.subr.mxu0 0.0
    %1351 = vmatpush1.msra.mxu0 0.0
    %1352 = vmatprep.subr.mxu0 0.0
    %1353 = vmatpush1.msra.mxu0 0.0
    %1354 = vmatprep.subr.mxu0 0.0
    %1355 = vmatpush1.msra.mxu0 0.0
    %1356 = vmatprep.subr.mxu0 0.0
    %1357 = vmatpush1.msra.mxu0 0.0
    %1358 = vmatprep.subr.mxu0 0.0
    %1359 = vmatpush1.msra.mxu0 0.0
    %1360 = vmatprep.mubr.f32.mxu0 0.0
    %1361 = vmatmul.mubr.f32.gmra.mrb[0].mxu0 %v1294
    %v1362 = vpop.f32.mrb[0].mxu0
    %v1363 = vadd.f32 0.0, %v1362
    %v1364 = vpop.f32.mrb[0].mxu0
    %1365 = vdwg.mxu0
    %1366 = vrot.lane.b32.xlu0 %v128, 64
    %v1367 = vpop.permute.xlu0 %1366
    %v1370 = vsel %vm131, %v833, 0
    %1372 = vmatprep.subr.mxu0 0.0
    %1373 = vmatpush1.msra.mxu0 %v1367
    %1374 = vmatprep.subr.mxu0 0.0
    %1375 = vmatpush1.msra.mxu0 0.0
    %1376 = vmatprep.subr.mxu0 0.0
    %1377 = vmatpush1.msra.mxu0 0.0
    %1378 = vmatprep.subr.mxu0 0.0
    %1379 = vmatpush1.msra.mxu0 0.0
    %1380 = vmatprep.subr.mxu0 0.0
    %1381 = vmatpush1.msra.mxu0 0.0
    %1382 = vmatprep.subr.mxu0 0.0
    %1383 = vmatpush1.msra.mxu0 0.0
    %1384 = vmatprep.subr.mxu0 0.0
    %1385 = vmatpush1.msra.mxu0 0.0
    %1386 = vmatprep.subr.mxu0 0.0
    %1387 = vmatpush1.msra.mxu0 0.0
    %1388 = vmatprep.subr.mxu0 0.0
    %1389 = vmatpush1.msra.mxu0 0.0
    %1390 = vmatprep.subr.mxu0 0.0
    %1391 = vmatpush1.msra.mxu0 0.0
    %1392 = vmatprep.subr.mxu0 0.0
    %1393 = vmatpush1.msra.mxu0 0.0
    %1394 = vmatprep.subr.mxu0 0.0
    %1395 = vmatpush1.msra.mxu0 0.0
    %1396 = vmatprep.subr.mxu0 0.0
    %1397 = vmatpush1.msra.mxu0 0.0
    %1398 = vmatprep.subr.mxu0 0.0
    %1399 = vmatpush1.msra.mxu0 0.0
    %1400 = vmatprep.subr.mxu0 0.0
    %1401 = vmatpush1.msra.mxu0 0.0
    %1402 = vmatprep.subr.mxu0 0.0
    %1403 = vmatpush1.msra.mxu0 0.0
    %1404 = vmatprep.subr.mxu0 0.0
    %1405 = vmatpush1.msra.mxu0 0.0
    %1406 = vmatprep.subr.mxu0 0.0
    %1407 = vmatpush1.msra.mxu0 0.0
    %1408 = vmatprep.subr.mxu0 0.0
    %1409 = vmatpush1.msra.mxu0 0.0
    %1410 = vmatprep.subr.mxu0 0.0
    %1411 = vmatpush1.msra.mxu0 0.0
    %1412 = vmatprep.subr.mxu0 0.0
    %1413 = vmatpush1.msra.mxu0 0.0
    %1414 = vmatprep.subr.mxu0 0.0
    %1415 = vmatpush1.msra.mxu0 0.0
    %1416 = vmatprep.subr.mxu0 0.0
    %1417 = vmatpush1.msra.mxu0 0.0
    %1418 = vmatprep.subr.mxu0 0.0
    %1419 = vmatpush1.msra.mxu0 0.0
    %1420 = vmatprep.subr.mxu0 0.0
    %1421 = vmatpush1.msra.mxu0 0.0
    %1422 = vmatprep.subr.mxu0 0.0
    %1423 = vmatpush1.msra.mxu0 0.0
    %1424 = vmatprep.subr.mxu0 0.0
    %1425 = vmatpush1.msra.mxu0 0.0
    %1426 = vmatprep.subr.mxu0 0.0
    %1427 = vmatpush1.msra.mxu0 0.0
    %1428 = vmatprep.subr.mxu0 0.0
    %1429 = vmatpush1.msra.mxu0 0.0
    %1430 = vmatprep.subr.mxu0 0.0
    %1431 = vmatpush1.msra.mxu0 0.0
    %1432 = vmatprep.subr.mxu0 0.0
    %1433 = vmatpush1.msra.mxu0 0.0
    %1434 = vmatprep.subr.mxu0 0.0
    %1435 = vmatpush1.msra.mxu0 0.0
    %1436 = vmatprep.mubr.f32.mxu0 0.0
    %1437 = vmatmul.mubr.f32.gmra.mrb[0].mxu0 %v1370
    %v1438 = vpop.f32.mrb[0].mxu0
    %v1439 = vadd.f32 0.0, %v1438
    %v1440 = vpop.f32.mrb[0].mxu0
    %1441 = vdwg.mxu0
    %1444 = vrot.lane.b32.xlu0 %v1059, 8
    %v1445 = vpop.permute.xlu0 %1444
    %1446 = vrot.lane.b32.xlu0 %v1135, 8
    %v1447 = vpop.permute.xlu0 %1446
    %1452 = vrot.lane.b32.xlu0 %v1211, 16
    %v1453 = vpop.permute.xlu0 %1452
    %1454 = vrot.lane.b32.xlu0 %v1287, 16
    %v1455 = vpop.permute.xlu0 %1454
    %1460 = vrot.lane.b32.xlu0 %v1363, 24
    %v1461 = vpop.permute.xlu0 %1460
    %1462 = vrot.lane.b32.xlu0 %v1439, 24
    %v1463 = vpop.permute.xlu0 %1462
    %v1466 = vsel %vm131, %v907, %v1445
    %v1467 = vsel %vm131, %v983, %v1447
    %vm1468 = vcmask 130048
    %v1469 = vsel %vm1468, %v1466, %v1453
    %v1470 = vsel %vm1468, %v1467, %v1455
    %vm1471 = vcmask 195584
    %v1472 = vsel %vm1471, %v1469, %v1461
    %v1473 = vsel %vm1471, %v1470, %v1463
    %v1474 = vlaneseq
    %v1475 = vshrl.u32 %v1474, 7
    %v1476 = vsub.s32 0, %v1475
    %v1477 = vrot.slane %v21, %v1476
    %v1479 = vsel %vm33, %v1472, 0
    %v1482 = vsel %vm33, %v1473, 0
    %1484 = vmatprep.subr.mxu0 0.0
    %1485 = vmatpush1.msra.mxu0 %v17
    %1486 = vmatprep.subr.mxu0 0.0
    %1487 = vmatpush1.msra.mxu0 %v18
    %1488 = vmatprep.subr.mxu0 0.0
    %1489 = vmatpush1.msra.mxu0 %v19
    %1490 = vmatprep.subr.mxu0 0.0
    %1491 = vmatpush1.msra.mxu0 %v20
    %1492 = vmatprep.subr.mxu0 0.0
    %1493 = vmatpush1.msra.mxu0 0.0
    %1494 = vmatprep.subr.mxu0 0.0
    %1495 = vmatpush1.msra.mxu0 0.0
    %1496 = vmatprep.subr.mxu0 0.0
    %1497 = vmatpush1.msra.mxu0 0.0
    %1498 = vmatprep.subr.mxu0 0.0
    %1499 = vmatpush1.msra.mxu0 0.0
    %1500 = vmatprep.subr.mxu0 0.0
    %1501 = vmatpush1.msra.mxu0 0.0
    %1502 = vmatprep.subr.mxu0 0.0
    %1503 = vmatpush1.msra.mxu0 0.0
    %1504 = vmatprep.subr.mxu0 0.0
    %1505 = vmatpush1.msra.mxu0 0.0
    %1506 = vmatprep.subr.mxu0 0.0
    %1507 = vmatpush1.msra.mxu0 0.0
    %1508 = vmatprep.subr.mxu0 0.0
    %1509 = vmatpush1.msra.mxu0 0.0
    %1510 = vmatprep.subr.mxu0 0.0
    %1511 = vmatpush1.msra.mxu0 0.0
    %1512 = vmatprep.subr.mxu0 0.0
    %1513 = vmatpush1.msra.mxu0 0.0
    %1514 = vmatprep.subr.mxu0 0.0
    %1515 = vmatpush1.msra.mxu0 0.0
    %1516 = vmatprep.subr.mxu0 0.0
    %1517 = vmatpush1.msra.mxu0 0.0
    %1518 = vmatprep.subr.mxu0 0.0
    %1519 = vmatpush1.msra.mxu0 0.0
    %1520 = vmatprep.subr.mxu0 0.0
    %1521 = vmatpush1.msra.mxu0 0.0
    %1522 = vmatprep.subr.mxu0 0.0
    %1523 = vmatpush1.msra.mxu0 0.0
    %1524 = vmatprep.subr.mxu0 0.0
    %1525 = vmatpush1.msra.mxu0 0.0
    %1526 = vmatprep.subr.mxu0 0.0
    %1527 = vmatpush1.msra.mxu0 0.0
    %1528 = vmatprep.subr.mxu0 0.0
    %1529 = vmatpush1.msra.mxu0 0.0
    %1530 = vmatprep.subr.mxu0 0.0
    %1531 = vmatpush1.msra.mxu0 0.0
    %1532 = vmatprep.subr.mxu0 0.0
    %1533 = vmatpush1.msra.mxu0 0.0
    %1534 = vmatprep.subr.mxu0 0.0
    %1535 = vmatpush1.msra.mxu0 0.0
    %1536 = vmatprep.subr.mxu0 0.0
    %1537 = vmatpush1.msra.mxu0 0.0
    %1538 = vmatprep.subr.mxu0 0.0
    %1539 = vmatpush1.msra.mxu0 0.0
    %1540 = vmatprep.subr.mxu0 0.0
    %1541 = vmatpush1.msra.mxu0 0.0
    %1542 = vmatprep.subr.mxu0 0.0
    %1543 = vmatpush1.msra.mxu0 0.0
    %1544 = vmatprep.subr.mxu0 0.0
    %1545 = vmatpush1.msra.mxu0 0.0
    %1546 = vmatprep.subr.mxu0 0.0
    %1547 = vmatpush1.msra.mxu0 0.0
    %1548 = vmatprep.mubr.f32.mxu0 0.0
    %1549 = vmatmul.mubr.f32.gmra.mrb[0].mxu0 %v1479
    %v1550 = vpop.f32.mrb[0].mxu0
    %v1551 = vadd.f32 %v1477, %v1550
    %v1552 = vpop.f32.mrb[0].mxu0
    %1553 = vmatprep.mubr.f32.mxu0 0.0
    %1554 = vmatmul.mubr.f32.gmra.mrb[0].mxu0 %v1482
    %v1555 = vpop.f32.mrb[0].mxu0
    %v1556 = vadd.f32 %v1477, %v1555
    %v1557 = vpop.f32.mrb[0].mxu0
    %1558 = vdwg.mxu0
    %v1559 = vcombine.high %v1551, 0.0
    %v1561 = vunpack.c.l.s4 1983009808
    %v1562 = vunpack.c.0.s8 %v1561
    %v1563 = vlaneseq
    %v1564 = vshrl.u32 %v1563, 7
    %v1565 = vsub.s32 %v1562, %v1564
    %v1566 = vrot.slane %v1551, %v1565
    %v1568 = vunpack.c.l.s4 1983009808
    %v1569 = vunpack.c.0.s8 %v1568
    %v1570 = vlaneseq
    %v1571 = vshrl.u32 %v1570, 7
    %v1572 = vsub.s32 %v1569, %v1571
    %v1573 = vrot.slane %v1559, %v1572
    %v1574 = vcombine.high %v1556, 0.0
    %v1576 = vunpack.c.l.s4 1983009808
    %v1577 = vunpack.c.0.s8 %v1576
    %v1578 = vlaneseq
    %v1579 = vshrl.u32 %v1578, 7
    %v1580 = vsub.s32 %v1577, %v1579
    %v1581 = vrot.slane %v1556, %v1580
    %v1583 = vunpack.c.l.s4 1983009808
    %v1584 = vunpack.c.0.s8 %v1583
    %v1585 = vlaneseq
    %v1586 = vshrl.u32 %v1585, 7
    %v1587 = vsub.s32 %v1584, %v1586
    %v1588 = vrot.slane %v1574, %v1587
    %v1589 = vcombine.low %v1566, %v1581
    %v1590 = vcombine.high %v1566, %v1581
    %v1592 = vunpack.c.l.s4 1934713408
    %v1593 = vunpack.c.0.s8 %v1592
    %v1594 = vlaneseq
    %v1595 = vshrl.u32 %v1594, 7
    %v1596 = vsub.s32 %v1593, %v1595
    %v1597 = vrot.slane %v1589, %v1596
    %v1599 = vunpack.c.l.s4 1934713408
    %v1600 = vunpack.c.0.s8 %v1599
    %v1601 = vlaneseq
    %v1602 = vshrl.u32 %v1601, 7
    %v1603 = vsub.s32 %v1600, %v1602
    %v1604 = vrot.slane %v1590, %v1603
    %v1605 = vcombine.low %v1573, %v1588
    %v1606 = vcombine.high %v1573, %v1588
    %v1608 = vunpack.c.l.s4 1934713408
    %v1609 = vunpack.c.0.s8 %v1608
    %v1610 = vlaneseq
    %v1611 = vshrl.u32 %v1610, 7
    %v1612 = vsub.s32 %v1609, %v1611
    %v1613 = vrot.slane %v1605, %v1612
    %v1615 = vunpack.c.l.s4 1934713408
    %v1616 = vunpack.c.0.s8 %v1615
    %v1617 = vlaneseq
    %v1618 = vshrl.u32 %v1617, 7
    %v1619 = vsub.s32 %v1616, %v1618
    %v1620 = vrot.slane %v1606, %v1619
    %v1621 = vcombine.high %v1597, 0.0
    %v1622 = vcombine.high %v1604, 0.0
    %v1623 = vcombine.high %v1613, 0.0
    %v1624 = vcombine.high %v1620, 0.0
    %1633 = vrot.lane.b32.xlu0 %v1597, 120
    %v1634 = vpop.permute.xlu0 %1633
    %1635 = vrot.lane.b32.xlu0 %v1621, 120
    %v1636 = vpop.permute.xlu0 %1635
    %1637 = vrot.lane.b32.xlu0 %v1604, 120
    %v1638 = vpop.permute.xlu0 %1637
    %1639 = vrot.lane.b32.xlu0 %v1622, 120
    %v1640 = vpop.permute.xlu0 %1639
    %1641 = vrot.lane.b32.xlu0 %v1613, 120
    %v1642 = vpop.permute.xlu0 %1641
    %1643 = vrot.lane.b32.xlu0 %v1623, 120
    %v1644 = vpop.permute.xlu0 %1643
    %1645 = vrot.lane.b32.xlu0 %v1620, 120
    %v1646 = vpop.permute.xlu0 %1645
    %1647 = vrot.lane.b32.xlu0 %v1624, 120
    %v1648 = vpop.permute.xlu0 %1647
    %1649 = vrot.lane.b32.xlu0 %v1597, 112
    %v1650 = vpop.permute.xlu0 %1649
    %1651 = vrot.lane.b32.xlu0 %v1621, 112
    %v1652 = vpop.permute.xlu0 %1651
    %1653 = vrot.lane.b32.xlu0 %v1604, 112
    %v1654 = vpop.permute.xlu0 %1653
    %1655 = vrot.lane.b32.xlu0 %v1622, 112
    %v1656 = vpop.permute.xlu0 %1655
    %1657 = vrot.lane.b32.xlu0 %v1613, 112
    %v1658 = vpop.permute.xlu0 %1657
    %1659 = vrot.lane.b32.xlu0 %v1623, 112
    %v1660 = vpop.permute.xlu0 %1659
    %1661 = vrot.lane.b32.xlu0 %v1620, 112
    %v1662 = vpop.permute.xlu0 %1661
    %1663 = vrot.lane.b32.xlu0 %v1624, 112
    %v1664 = vpop.permute.xlu0 %1663
    %1665 = vrot.lane.b32.xlu0 %v1597, 104
    %v1666 = vpop.permute.xlu0 %1665
    %1667 = vrot.lane.b32.xlu0 %v1621, 104
    %v1668 = vpop.permute.xlu0 %1667
    %1669 = vrot.lane.b32.xlu0 %v1604, 104
    %v1670 = vpop.permute.xlu0 %1669
    %1671 = vrot.lane.b32.xlu0 %v1622, 104
    %v1672 = vpop.permute.xlu0 %1671
    %1673 = vrot.lane.b32.xlu0 %v1613, 104
    %v1674 = vpop.permute.xlu0 %1673
    %1675 = vrot.lane.b32.xlu0 %v1623, 104
    %v1676 = vpop.permute.xlu0 %1675
    %1677 = vrot.lane.b32.xlu0 %v1620, 104
    %v1678 = vpop.permute.xlu0 %1677
    %1679 = vrot.lane.b32.xlu0 %v1624, 104
    %v1680 = vpop.permute.xlu0 %1679
    %v1682 = vunpack.c.l.s4 1983009808
    %v1683 = vunpack.c.0.s8 %v1682
    %v1684 = vlaneseq
    %v1685 = vshrl.u32 %v1684, 7
    %v1686 = vsub.s32 %v1683, %v1685
    %v1687 = vrot.slane %v1597, %v1686
    %1688 = vrot.lane.b32.xlu0 %v1687, 96
    %v1689 = vpop.permute.xlu0 %1688
    %v1690 = vsel %vm131, %v1597, 0
    %v1692 = vsel %vm131, %v1689, 0
    %1694 = vmatprep.subr.mxu0 0.0
    %1695 = vmatpush1.xpose.msra.mxu0 %v1692
    %1696 = vmatprep.subr.mxu0 0.0
    %1697 = vmatpush1.xpose.msra.mxu0 0.0
    %1698 = vmatprep.subr.mxu0 0.0
    %1699 = vmatpush1.xpose.msra.mxu0 0.0
    %1700 = vmatprep.subr.mxu0 0.0
    %1701 = vmatpush1.xpose.msra.mxu0 0.0
    %1702 = vmatprep.subr.mxu0 0.0
    %1703 = vmatpush1.xpose.msra.mxu0 0.0
    %1704 = vmatprep.subr.mxu0 0.0
    %1705 = vmatpush1.xpose.msra.mxu0 0.0
    %1706 = vmatprep.subr.mxu0 0.0
    %1707 = vmatpush1.xpose.msra.mxu0 0.0
    %1708 = vmatprep.subr.mxu0 0.0
    %1709 = vmatpush1.xpose.msra.mxu0 0.0
    %1710 = vmatprep.subr.mxu0 0.0
    %1711 = vmatpush1.xpose.msra.mxu0 0.0
    %1712 = vmatprep.subr.mxu0 0.0
    %1713 = vmatpush1.xpose.msra.mxu0 0.0
    %1714 = vmatprep.subr.mxu0 0.0
    %1715 = vmatpush1.xpose.msra.mxu0 0.0
    %1716 = vmatprep.subr.mxu0 0.0
    %1717 = vmatpush1.xpose.msra.mxu0 0.0
    %1718 = vmatprep.subr.mxu0 0.0
    %1719 = vmatpush1.xpose.msra.mxu0 0.0
    %1720 = vmatprep.subr.mxu0 0.0
    %1721 = vmatpush1.xpose.msra.mxu0 0.0
    %1722 = vmatprep.subr.mxu0 0.0
    %1723 = vmatpush1.xpose.msra.mxu0 0.0
    %1724 = vmatprep.subr.mxu0 0.0
    %1725 = vmatpush1.xpose.msra.mxu0 0.0
    %1726 = vmatprep.subr.mxu0 0.0
    %1727 = vmatpush1.xpose.msra.mxu0 0.0
    %1728 = vmatprep.subr.mxu0 0.0
    %1729 = vmatpush1.xpose.msra.mxu0 0.0
    %1730 = vmatprep.subr.mxu0 0.0
    %1731 = vmatpush1.xpose.msra.mxu0 0.0
    %1732 = vmatprep.subr.mxu0 0.0
    %1733 = vmatpush1.xpose.msra.mxu0 0.0
    %1734 = vmatprep.subr.mxu0 0.0
    %1735 = vmatpush1.xpose.msra.mxu0 0.0
    %1736 = vmatprep.subr.mxu0 0.0
    %1737 = vmatpush1.xpose.msra.mxu0 0.0
    %1738 = vmatprep.subr.mxu0 0.0
    %1739 = vmatpush1.xpose.msra.mxu0 0.0
    %1740 = vmatprep.subr.mxu0 0.0
    %1741 = vmatpush1.xpose.msra.mxu0 0.0
    %1742 = vmatprep.subr.mxu0 0.0
    %1743 = vmatpush1.xpose.msra.mxu0 0.0
    %1744 = vmatprep.subr.mxu0 0.0
    %1745 = vmatpush1.xpose.msra.mxu0 0.0
    %1746 = vmatprep.subr.mxu0 0.0
    %1747 = vmatpush1.xpose.msra.mxu0 0.0
    %1748 = vmatprep.subr.mxu0 0.0
    %1749 = vmatpush1.xpose.msra.mxu0 0.0
    %1750 = vmatprep.subr.mxu0 0.0
    %1751 = vmatpush1.xpose.msra.mxu0 0.0
    %1752 = vmatprep.subr.mxu0 0.0
    %1753 = vmatpush1.xpose.msra.mxu0 0.0
    %1754 = vmatprep.subr.mxu0 0.0
    %1755 = vmatpush1.xpose.msra.mxu0 0.0
    %1756 = vmatprep.subr.mxu0 0.0
    %1757 = vmatpush1.xpose.msra.mxu0 0.0
    %1758 = vmatprep.mubr.f32.mxu0 0.0
    %1759 = vmatmul.mubr.f32.gmra.mrb[0].mxu0 %v1690
    %v1760 = vpop.f32.mrb[0].mxu0
    %v1761 = vadd.f32 0.0, %v1760
    %v1762 = vpop.f32.mrb[0].mxu0
    %1763 = vdwg.mxu0
    %v1765 = vunpack.c.l.s4 1983009808
    %v1766 = vunpack.c.0.s8 %v1765
    %v1767 = vlaneseq
    %v1768 = vshrl.u32 %v1767, 7
    %v1769 = vsub.s32 %v1766, %v1768
    %v1770 = vrot.slane %v1621, %v1769
    %1771 = vrot.lane.b32.xlu0 %v1770, 96
    %v1772 = vpop.permute.xlu0 %1771
    %v1773 = vsel %vm131, %v1621, 0
    %v1775 = vsel %vm131, %v1772, 0
    %1777 = vmatprep.subr.mxu0 0.0
    %1778 = vmatpush1.xpose.msra.mxu0 %v1775
    %1779 = vmatprep.subr.mxu0 0.0
    %1780 = vmatpush1.xpose.msra.mxu0 0.0
    %1781 = vmatprep.subr.mxu0 0.0
    %1782 = vmatpush1.xpose.msra.mxu0 0.0
    %1783 = vmatprep.subr.mxu0 0.0
    %1784 = vmatpush1.xpose.msra.mxu0 0.0
    %1785 = vmatprep.subr.mxu0 0.0
    %1786 = vmatpush1.xpose.msra.mxu0 0.0
    %1787 = vmatprep.subr.mxu0 0.0
    %1788 = vmatpush1.xpose.msra.mxu0 0.0
    %1789 = vmatprep.subr.mxu0 0.0
    %1790 = vmatpush1.xpose.msra.mxu0 0.0
    %1791 = vmatprep.subr.mxu0 0.0
    %1792 = vmatpush1.xpose.msra.mxu0 0.0
    %1793 = vmatprep.subr.mxu0 0.0
    %1794 = vmatpush1.xpose.msra.mxu0 0.0
    %1795 = vmatprep.subr.mxu0 0.0
    %1796 = vmatpush1.xpose.msra.mxu0 0.0
    %1797 = vmatprep.subr.mxu0 0.0
    %1798 = vmatpush1.xpose.msra.mxu0 0.0
    %1799 = vmatprep.subr.mxu0 0.0
    %1800 = vmatpush1.xpose.msra.mxu0 0.0
    %1801 = vmatprep.subr.mxu0 0.0
    %1802 = vmatpush1.xpose.msra.mxu0 0.0
    %1803 = vmatprep.subr.mxu0 0.0
    %1804 = vmatpush1.xpose.msra.mxu0 0.0
    %1805 = vmatprep.subr.mxu0 0.0
    %1806 = vmatpush1.xpose.msra.mxu0 0.0
    %1807 = vmatprep.subr.mxu0 0.0
    %1808 = vmatpush1.xpose.msra.mxu0 0.0
    %1809 = vmatprep.subr.mxu0 0.0
    %1810 = vmatpush1.xpose.msra.mxu0 0.0
    %1811 = vmatprep.subr.mxu0 0.0
    %1812 = vmatpush1.xpose.msra.mxu0 0.0
    %1813 = vmatprep.subr.mxu0 0.0
    %1814 = vmatpush1.xpose.msra.mxu0 0.0
    %1815 = vmatprep.subr.mxu0 0.0
    %1816 = vmatpush1.xpose.msra.mxu0 0.0
    %1817 = vmatprep.subr.mxu0 0.0
    %1818 = vmatpush1.xpose.msra.mxu0 0.0
    %1819 = vmatprep.subr.mxu0 0.0
    %1820 = vmatpush1.xpose.msra.mxu0 0.0
    %1821 = vmatprep.subr.mxu0 0.0
    %1822 = vmatpush1.xpose.msra.mxu0 0.0
    %1823 = vmatprep.subr.mxu0 0.0
    %1824 = vmatpush1.xpose.msra.mxu0 0.0
    %1825 = vmatprep.subr.mxu0 0.0
    %1826 = vmatpush1.xpose.msra.mxu0 0.0
    %1827 = vmatprep.subr.mxu0 0.0
    %1828 = vmatpush1.xpose.msra.mxu0 0.0
    %1829 = vmatprep.subr.mxu0 0.0
    %1830 = vmatpush1.xpose.msra.mxu0 0.0
    %1831 = vmatprep.subr.mxu0 0.0
    %1832 = vmatpush1.xpose.msra.mxu0 0.0
    %1833 = vmatprep.subr.mxu0 0.0
    %1834 = vmatpush1.xpose.msra.mxu0 0.0
    %1835 = vmatprep.subr.mxu0 0.0
    %1836 = vmatpush1.xpose.msra.mxu0 0.0
    %1837 = vmatprep.subr.mxu0 0.0
    %1838 = vmatpush1.xpose.msra.mxu0 0.0
    %1839 = vmatprep.subr.mxu0 0.0
    %1840 = vmatpush1.xpose.msra.mxu0 0.0
    %1841 = vmatprep.mubr.f32.mxu0 0.0
    %1842 = vmatmul.mubr.f32.gmra.mrb[0].mxu0 %v1773
    %v1843 = vpop.f32.mrb[0].mxu0
    %v1844 = vadd.f32 0.0, %v1843
    %v1845 = vpop.f32.mrb[0].mxu0
    %1846 = vdwg.mxu0
    %v1848 = vunpack.c.l.s4 1983009808
    %v1849 = vunpack.c.0.s8 %v1848
    %v1850 = vlaneseq
    %v1851 = vshrl.u32 %v1850, 7
    %v1852 = vsub.s32 %v1849, %v1851
    %v1853 = vrot.slane %v1604, %v1852
    %1854 = vrot.lane.b32.xlu0 %v1853, 96
    %v1855 = vpop.permute.xlu0 %1854
    %v1856 = vsel %vm131, %v1604, 0
    %v1858 = vsel %vm131, %v1855, 0
    %1860 = vmatprep.subr.mxu0 0.0
    %1861 = vmatpush1.xpose.msra.mxu0 %v1858
    %1862 = vmatprep.subr.mxu0 0.0
    %1863 = vmatpush1.xpose.msra.mxu0 0.0
    %1864 = vmatprep.subr.mxu0 0.0
    %1865 = vmatpush1.xpose.msra.mxu0 0.0
    %1866 = vmatprep.subr.mxu0 0.0
    %1867 = vmatpush1.xpose.msra.mxu0 0.0
    %1868 = vmatprep.subr.mxu0 0.0
    %1869 = vmatpush1.xpose.msra.mxu0 0.0
    %1870 = vmatprep.subr.mxu0 0.0
    %1871 = vmatpush1.xpose.msra.mxu0 0.0
    %1872 = vmatprep.subr.mxu0 0.0
    %1873 = vmatpush1.xpose.msra.mxu0 0.0
    %1874 = vmatprep.subr.mxu0 0.0
    %1875 = vmatpush1.xpose.msra.mxu0 0.0
    %1876 = vmatprep.subr.mxu0 0.0
    %1877 = vmatpush1.xpose.msra.mxu0 0.0
    %1878 = vmatprep.subr.mxu0 0.0
    %1879 = vmatpush1.xpose.msra.mxu0 0.0
    %1880 = vmatprep.subr.mxu0 0.0
    %1881 = vmatpush1.xpose.msra.mxu0 0.0
    %1882 = vmatprep.subr.mxu0 0.0
    %1883 = vmatpush1.xpose.msra.mxu0 0.0
    %1884 = vmatprep.subr.mxu0 0.0
    %1885 = vmatpush1.xpose.msra.mxu0 0.0
    %1886 = vmatprep.subr.mxu0 0.0
    %1887 = vmatpush1.xpose.msra.mxu0 0.0
    %1888 = vmatprep.subr.mxu0 0.0
    %1889 = vmatpush1.xpose.msra.mxu0 0.0
    %1890 = vmatprep.subr.mxu0 0.0
    %1891 = vmatpush1.xpose.msra.mxu0 0.0
    %1892 = vmatprep.subr.mxu0 0.0
    %1893 = vmatpush1.xpose.msra.mxu0 0.0
    %1894 = vmatprep.subr.mxu0 0.0
    %1895 = vmatpush1.xpose.msra.mxu0 0.0
    %1896 = vmatprep.subr.mxu0 0.0
    %1897 = vmatpush1.xpose.msra.mxu0 0.0
    %1898 = vmatprep.subr.mxu0 0.0
    %1899 = vmatpush1.xpose.msra.mxu0 0.0
    %1900 = vmatprep.subr.mxu0 0.0
    %1901 = vmatpush1.xpose.msra.mxu0 0.0
    %1902 = vmatprep.subr.mxu0 0.0
    %1903 = vmatpush1.xpose.msra.mxu0 0.0
    %1904 = vmatprep.subr.mxu0 0.0
    %1905 = vmatpush1.xpose.msra.mxu0 0.0
    %1906 = vmatprep.subr.mxu0 0.0
    %1907 = vmatpush1.xpose.msra.mxu0 0.0
    %1908 = vmatprep.subr.mxu0 0.0
    %1909 = vmatpush1.xpose.msra.mxu0 0.0
    %1910 = vmatprep.subr.mxu0 0.0
    %1911 = vmatpush1.xpose.msra.mxu0 0.0
    %1912 = vmatprep.subr.mxu0 0.0
    %1913 = vmatpush1.xpose.msra.mxu0 0.0
    %1914 = vmatprep.subr.mxu0 0.0
    %1915 = vmatpush1.xpose.msra.mxu0 0.0
    %1916 = vmatprep.subr.mxu0 0.0
    %1917 = vmatpush1.xpose.msra.mxu0 0.0
    %1918 = vmatprep.subr.mxu0 0.0
    %1919 = vmatpush1.xpose.msra.mxu0 0.0
    %1920 = vmatprep.subr.mxu0 0.0
    %1921 = vmatpush1.xpose.msra.mxu0 0.0
    %1922 = vmatprep.subr.mxu0 0.0
    %1923 = vmatpush1.xpose.msra.mxu0 0.0
    %1924 = vmatprep.mubr.f32.mxu0 0.0
    %1925 = vmatmul.mubr.f32.gmra.mrb[0].mxu0 %v1856
    %v1926 = vpop.f32.mrb[0].mxu0
    %v1927 = vadd.f32 0.0, %v1926
    %v1928 = vpop.f32.mrb[0].mxu0
    %1929 = vdwg.mxu0
    %v1931 = vunpack.c.l.s4 1983009808
    %v1932 = vunpack.c.0.s8 %v1931
    %v1933 = vlaneseq
    %v1934 = vshrl.u32 %v1933, 7
    %v1935 = vsub.s32 %v1932, %v1934
    %v1936 = vrot.slane %v1622, %v1935
    %1937 = vrot.lane.b32.xlu0 %v1936, 96
    %v1938 = vpop.permute.xlu0 %1937
    %v1939 = vsel %vm131, %v1622, 0
    %v1941 = vsel %vm131, %v1938, 0
    %1943 = vmatprep.subr.mxu0 0.0
    %1944 = vmatpush1.xpose.msra.mxu0 %v1941
    %1945 = vmatprep.subr.mxu0 0.0
    %1946 = vmatpush1.xpose.msra.mxu0 0.0
    %1947 = vmatprep.subr.mxu0 0.0
    %1948 = vmatpush1.xpose.msra.mxu0 0.0
    %1949 = vmatprep.subr.mxu0 0.0
    %1950 = vmatpush1.xpose.msra.mxu0 0.0
    %1951 = vmatprep.subr.mxu0 0.0
    %1952 = vmatpush1.xpose.msra.mxu0 0.0
    %1953 = vmatprep.subr.mxu0 0.0
    %1954 = vmatpush1.xpose.msra.mxu0 0.0
    %1955 = vmatprep.subr.mxu0 0.0
    %1956 = vmatpush1.xpose.msra.mxu0 0.0
    %1957 = vmatprep.subr.mxu0 0.0
    %1958 = vmatpush1.xpose.msra.mxu0 0.0
    %1959 = vmatprep.subr.mxu0 0.0
    %1960 = vmatpush1.xpose.msra.mxu0 0.0
    %1961 = vmatprep.subr.mxu0 0.0
    %1962 = vmatpush1.xpose.msra.mxu0 0.0
    %1963 = vmatprep.subr.mxu0 0.0
    %1964 = vmatpush1.xpose.msra.mxu0 0.0
    %1965 = vmatprep.subr.mxu0 0.0
    %1966 = vmatpush1.xpose.msra.mxu0 0.0
    %1967 = vmatprep.subr.mxu0 0.0
    %1968 = vmatpush1.xpose.msra.mxu0 0.0
    %1969 = vmatprep.subr.mxu0 0.0
    %1970 = vmatpush1.xpose.msra.mxu0 0.0
    %1971 = vmatprep.subr.mxu0 0.0
    %1972 = vmatpush1.xpose.msra.mxu0 0.0
    %1973 = vmatprep.subr.mxu0 0.0
    %1974 = vmatpush1.xpose.msra.mxu0 0.0
    %1975 = vmatprep.subr.mxu0 0.0
    %1976 = vmatpush1.xpose.msra.mxu0 0.0
    %1977 = vmatprep.subr.mxu0 0.0
    %1978 = vmatpush1.xpose.msra.mxu0 0.0
    %1979 = vmatprep.subr.mxu0 0.0
    %1980 = vmatpush1.xpose.msra.mxu0 0.0
    %1981 = vmatprep.subr.mxu0 0.0
    %1982 = vmatpush1.xpose.msra.mxu0 0.0
    %1983 = vmatprep.subr.mxu0 0.0
    %1984 = vmatpush1.xpose.msra.mxu0 0.0
    %1985 = vmatprep.subr.mxu0 0.0
    %1986 = vmatpush1.xpose.msra.mxu0 0.0
    %1987 = vmatprep.subr.mxu0 0.0
    %1988 = vmatpush1.xpose.msra.mxu0 0.0
    %1989 = vmatprep.subr.mxu0 0.0
    %1990 = vmatpush1.xpose.msra.mxu0 0.0
    %1991 = vmatprep.subr.mxu0 0.0
    %1992 = vmatpush1.xpose.msra.mxu0 0.0
    %1993 = vmatprep.subr.mxu0 0.0
    %1994 = vmatpush1.xpose.msra.mxu0 0.0
    %1995 = vmatprep.subr.mxu0 0.0
    %1996 = vmatpush1.xpose.msra.mxu0 0.0
    %1997 = vmatprep.subr.mxu0 0.0
    %1998 = vmatpush1.xpose.msra.mxu0 0.0
    %1999 = vmatprep.subr.mxu0 0.0
    %2000 = vmatpush1.xpose.msra.mxu0 0.0
    %2001 = vmatprep.subr.mxu0 0.0
    %2002 = vmatpush1.xpose.msra.mxu0 0.0
    %2003 = vmatprep.subr.mxu0 0.0
    %2004 = vmatpush1.xpose.msra.mxu0 0.0
    %2005 = vmatprep.subr.mxu0 0.0
    %2006 = vmatpush1.xpose.msra.mxu0 0.0
    %2007 = vmatprep.mubr.f32.mxu0 0.0
    %2008 = vmatmul.mubr.f32.gmra.mrb[0].mxu0 %v1939
    %v2009 = vpop.f32.mrb[0].mxu0
    %v2010 = vadd.f32 0.0, %v2009
    %v2011 = vpop.f32.mrb[0].mxu0
    %2012 = vdwg.mxu0
    %v2014 = vunpack.c.l.s4 1983009808
    %v2015 = vunpack.c.0.s8 %v2014
    %v2016 = vlaneseq
    %v2017 = vshrl.u32 %v2016, 7
    %v2018 = vsub.s32 %v2015, %v2017
    %v2019 = vrot.slane %v1613, %v2018
    %2020 = vrot.lane.b32.xlu0 %v2019, 96
    %v2021 = vpop.permute.xlu0 %2020
    %v2022 = vsel %vm131, %v1613, 0
    %v2024 = vsel %vm131, %v2021, 0
    %2026 = vmatprep.subr.mxu0 0.0
    %2027 = vmatpush1.xpose.msra.mxu0 %v2024
    %2028 = vmatprep.subr.mxu0 0.0
    %2029 = vmatpush1.xpose.msra.mxu0 0.0
    %2030 = vmatprep.subr.mxu0 0.0
    %2031 = vmatpush1.xpose.msra.mxu0 0.0
    %2032 = vmatprep.subr.mxu0 0.0
    %2033 = vmatpush1.xpose.msra.mxu0 0.0
    %2034 = vmatprep.subr.mxu0 0.0
    %2035 = vmatpush1.xpose.msra.mxu0 0.0
    %2036 = vmatprep.subr.mxu0 0.0
    %2037 = vmatpush1.xpose.msra.mxu0 0.0
    %2038 = vmatprep.subr.mxu0 0.0
    %2039 = vmatpush1.xpose.msra.mxu0 0.0
    %2040 = vmatprep.subr.mxu0 0.0
    %2041 = vmatpush1.xpose.msra.mxu0 0.0
    %2042 = vmatprep.subr.mxu0 0.0
    %2043 = vmatpush1.xpose.msra.mxu0 0.0
    %2044 = vmatprep.subr.mxu0 0.0
    %2045 = vmatpush1.xpose.msra.mxu0 0.0
    %2046 = vmatprep.subr.mxu0 0.0
    %2047 = vmatpush1.xpose.msra.mxu0 0.0
    %2048 = vmatprep.subr.mxu0 0.0
    %2049 = vmatpush1.xpose.msra.mxu0 0.0
    %2050 = vmatprep.subr.mxu0 0.0
    %2051 = vmatpush1.xpose.msra.mxu0 0.0
    %2052 = vmatprep.subr.mxu0 0.0
    %2053 = vmatpush1.xpose.msra.mxu0 0.0
    %2054 = vmatprep.subr.mxu0 0.0
    %2055 = vmatpush1.xpose.msra.mxu0 0.0
    %2056 = vmatprep.subr.mxu0 0.0
    %2057 = vmatpush1.xpose.msra.mxu0 0.0
    %2058 = vmatprep.subr.mxu0 0.0
    %2059 = vmatpush1.xpose.msra.mxu0 0.0
    %2060 = vmatprep.subr.mxu0 0.0
    %2061 = vmatpush1.xpose.msra.mxu0 0.0
    %2062 = vmatprep.subr.mxu0 0.0
    %2063 = vmatpush1.xpose.msra.mxu0 0.0
    %2064 = vmatprep.subr.mxu0 0.0
    %2065 = vmatpush1.xpose.msra.mxu0 0.0
    %2066 = vmatprep.subr.mxu0 0.0
    %2067 = vmatpush1.xpose.msra.mxu0 0.0
    %2068 = vmatprep.subr.mxu0 0.0
    %2069 = vmatpush1.xpose.msra.mxu0 0.0
    %2070 = vmatprep.subr.mxu0 0.0
    %2071 = vmatpush1.xpose.msra.mxu0 0.0
    %2072 = vmatprep.subr.mxu0 0.0
    %2073 = vmatpush1.xpose.msra.mxu0 0.0
    %2074 = vmatprep.subr.mxu0 0.0
    %2075 = vmatpush1.xpose.msra.mxu0 0.0
    %2076 = vmatprep.subr.mxu0 0.0
    %2077 = vmatpush1.xpose.msra.mxu0 0.0
    %2078 = vmatprep.subr.mxu0 0.0
    %2079 = vmatpush1.xpose.msra.mxu0 0.0
    %2080 = vmatprep.subr.mxu0 0.0
    %2081 = vmatpush1.xpose.msra.mxu0 0.0
    %2082 = vmatprep.subr.mxu0 0.0
    %2083 = vmatpush1.xpose.msra.mxu0 0.0
    %2084 = vmatprep.subr.mxu0 0.0
    %2085 = vmatpush1.xpose.msra.mxu0 0.0
    %2086 = vmatprep.subr.mxu0 0.0
    %2087 = vmatpush1.xpose.msra.mxu0 0.0
    %2088 = vmatprep.subr.mxu0 0.0
    %2089 = vmatpush1.xpose.msra.mxu0 0.0
    %2090 = vmatprep.mubr.f32.mxu0 0.0
    %2091 = vmatmul.mubr.f32.gmra.mrb[0].mxu0 %v2022
    %v2092 = vpop.f32.mrb[0].mxu0
    %v2093 = vadd.f32 0.0, %v2092
    %v2094 = vpop.f32.mrb[0].mxu0
    %2095 = vdwg.mxu0
    %v2097 = vunpack.c.l.s4 1983009808
    %v2098 = vunpack.c.0.s8 %v2097
    %v2099 = vlaneseq
    %v2100 = vshrl.u32 %v2099, 7
    %v2101 = vsub.s32 %v2098, %v2100
    %v2102 = vrot.slane %v1623, %v2101
    %2103 = vrot.lane.b32.xlu0 %v2102, 96
    %v2104 = vpop.permute.xlu0 %2103
    %v2105 = vsel %vm131, %v1623, 0
    %v2107 = vsel %vm131, %v2104, 0
    %2109 = vmatprep.subr.mxu0 0.0
    %2110 = vmatpush1.xpose.msra.mxu0 %v2107
    %2111 = vmatprep.subr.mxu0 0.0
    %2112 = vmatpush1.xpose.msra.mxu0 0.0
    %2113 = vmatprep.subr.mxu0 0.0
    %2114 = vmatpush1.xpose.msra.mxu0 0.0
    %2115 = vmatprep.subr.mxu0 0.0
    %2116 = vmatpush1.xpose.msra.mxu0 0.0
    %2117 = vmatprep.subr.mxu0 0.0
    %2118 = vmatpush1.xpose.msra.mxu0 0.0
    %2119 = vmatprep.subr.mxu0 0.0
    %2120 = vmatpush1.xpose.msra.mxu0 0.0
    %2121 = vmatprep.subr.mxu0 0.0
    %2122 = vmatpush1.xpose.msra.mxu0 0.0
    %2123 = vmatprep.subr.mxu0 0.0
    %2124 = vmatpush1.xpose.msra.mxu0 0.0
    %2125 = vmatprep.subr.mxu0 0.0
    %2126 = vmatpush1.xpose.msra.mxu0 0.0
    %2127 = vmatprep.subr.mxu0 0.0
    %2128 = vmatpush1.xpose.msra.mxu0 0.0
    %2129 = vmatprep.subr.mxu0 0.0
    %2130 = vmatpush1.xpose.msra.mxu0 0.0
    %2131 = vmatprep.subr.mxu0 0.0
    %2132 = vmatpush1.xpose.msra.mxu0 0.0
    %2133 = vmatprep.subr.mxu0 0.0
    %2134 = vmatpush1.xpose.msra.mxu0 0.0
    %2135 = vmatprep.subr.mxu0 0.0
    %2136 = vmatpush1.xpose.msra.mxu0 0.0
    %2137 = vmatprep.subr.mxu0 0.0
    %2138 = vmatpush1.xpose.msra.mxu0 0.0
    %2139 = vmatprep.subr.mxu0 0.0
    %2140 = vmatpush1.xpose.msra.mxu0 0.0
    %2141 = vmatprep.subr.mxu0 0.0
    %2142 = vmatpush1.xpose.msra.mxu0 0.0
    %2143 = vmatprep.subr.mxu0 0.0
    %2144 = vmatpush1.xpose.msra.mxu0 0.0
    %2145 = vmatprep.subr.mxu0 0.0
    %2146 = vmatpush1.xpose.msra.mxu0 0.0
    %2147 = vmatprep.subr.mxu0 0.0
    %2148 = vmatpush1.xpose.msra.mxu0 0.0
    %2149 = vmatprep.subr.mxu0 0.0
    %2150 = vmatpush1.xpose.msra.mxu0 0.0
    %2151 = vmatprep.subr.mxu0 0.0
    %2152 = vmatpush1.xpose.msra.mxu0 0.0
    %2153 = vmatprep.subr.mxu0 0.0
    %2154 = vmatpush1.xpose.msra.mxu0 0.0
    %2155 = vmatprep.subr.mxu0 0.0
    %2156 = vmatpush1.xpose.msra.mxu0 0.0
    %2157 = vmatprep.subr.mxu0 0.0
    %2158 = vmatpush1.xpose.msra.mxu0 0.0
    %2159 = vmatprep.subr.mxu0 0.0
    %2160 = vmatpush1.xpose.msra.mxu0 0.0
    %2161 = vmatprep.subr.mxu0 0.0
    %2162 = vmatpush1.xpose.msra.mxu0 0.0
    %2163 = vmatprep.subr.mxu0 0.0
    %2164 = vmatpush1.xpose.msra.mxu0 0.0
    %2165 = vmatprep.subr.mxu0 0.0
    %2166 = vmatpush1.xpose.msra.mxu0 0.0
    %2167 = vmatprep.subr.mxu0 0.0
    %2168 = vmatpush1.xpose.msra.mxu0 0.0
    %2169 = vmatprep.subr.mxu0 0.0
    %2170 = vmatpush1.xpose.msra.mxu0 0.0
    %2171 = vmatprep.subr.mxu0 0.0
    %2172 = vmatpush1.xpose.msra.mxu0 0.0
    %2173 = vmatprep.mubr.f32.mxu0 0.0
    %2174 = vmatmul.mubr.f32.gmra.mrb[0].mxu0 %v2105
    %v2175 = vpop.f32.mrb[0].mxu0
    %v2176 = vadd.f32 0.0, %v2175
    %v2177 = vpop.f32.mrb[0].mxu0
    %2178 = vdwg.mxu0
    %v2180 = vunpack.c.l.s4 1983009808
    %v2181 = vunpack.c.0.s8 %v2180
    %v2182 = vlaneseq
    %v2183 = vshrl.u32 %v2182, 7
    %v2184 = vsub.s32 %v2181, %v2183
    %v2185 = vrot.slane %v1620, %v2184
    %2186 = vrot.lane.b32.xlu0 %v2185, 96
    %v2187 = vpop.permute.xlu0 %2186
    %v2188 = vsel %vm131, %v1620, 0
    %v2190 = vsel %vm131, %v2187, 0
    %2192 = vmatprep.subr.mxu0 0.0
    %2193 = vmatpush1.xpose.msra.mxu0 %v2190
    %2194 = vmatprep.subr.mxu0 0.0
    %2195 = vmatpush1.xpose.msra.mxu0 0.0
    %2196 = vmatprep.subr.mxu0 0.0
    %2197 = vmatpush1.xpose.msra.mxu0 0.0
    %2198 = vmatprep.subr.mxu0 0.0
    %2199 = vmatpush1.xpose.msra.mxu0 0.0
    %2200 = vmatprep.subr.mxu0 0.0
    %2201 = vmatpush1.xpose.msra.mxu0 0.0
    %2202 = vmatprep.subr.mxu0 0.0
    %2203 = vmatpush1.xpose.msra.mxu0 0.0
    %2204 = vmatprep.subr.mxu0 0.0
    %2205 = vmatpush1.xpose.msra.mxu0 0.0
    %2206 = vmatprep.subr.mxu0 0.0
    %2207 = vmatpush1.xpose.msra.mxu0 0.0
    %2208 = vmatprep.subr.mxu0 0.0
    %2209 = vmatpush1.xpose.msra.mxu0 0.0
    %2210 = vmatprep.subr.mxu0 0.0
    %2211 = vmatpush1.xpose.msra.mxu0 0.0
    %2212 = vmatprep.subr.mxu0 0.0
    %2213 = vmatpush1.xpose.msra.mxu0 0.0
    %2214 = vmatprep.subr.mxu0 0.0
    %2215 = vmatpush1.xpose.msra.mxu0 0.0
    %2216 = vmatprep.subr.mxu0 0.0
    %2217 = vmatpush1.xpose.msra.mxu0 0.0
    %2218 = vmatprep.subr.mxu0 0.0
    %2219 = vmatpush1.xpose.msra.mxu0 0.0
    %2220 = vmatprep.subr.mxu0 0.0
    %2221 = vmatpush1.xpose.msra.mxu0 0.0
    %2222 = vmatprep.subr.mxu0 0.0
    %2223 = vmatpush1.xpose.msra.mxu0 0.0
    %2224 = vmatprep.subr.mxu0 0.0
    %2225 = vmatpush1.xpose.msra.mxu0 0.0
    %2226 = vmatprep.subr.mxu0 0.0
    %2227 = vmatpush1.xpose.msra.mxu0 0.0
    %2228 = vmatprep.subr.mxu0 0.0
    %2229 = vmatpush1.xpose.msra.mxu0 0.0
    %2230 = vmatprep.subr.mxu0 0.0
    %2231 = vmatpush1.xpose.msra.mxu0 0.0
    %2232 = vmatprep.subr.mxu0 0.0
    %2233 = vmatpush1.xpose.msra.mxu0 0.0
    %2234 = vmatprep.subr.mxu0 0.0
    %2235 = vmatpush1.xpose.msra.mxu0 0.0
    %2236 = vmatprep.subr.mxu0 0.0
    %2237 = vmatpush1.xpose.msra.mxu0 0.0
    %2238 = vmatprep.subr.mxu0 0.0
    %2239 = vmatpush1.xpose.msra.mxu0 0.0
    %2240 = vmatprep.subr.mxu0 0.0
    %2241 = vmatpush1.xpose.msra.mxu0 0.0
    %2242 = vmatprep.subr.mxu0 0.0
    %2243 = vmatpush1.xpose.msra.mxu0 0.0
    %2244 = vmatprep.subr.mxu0 0.0
    %2245 = vmatpush1.xpose.msra.mxu0 0.0
    %2246 = vmatprep.subr.mxu0 0.0
    %2247 = vmatpush1.xpose.msra.mxu0 0.0
    %2248 = vmatprep.subr.mxu0 0.0
    %2249 = vmatpush1.xpose.msra.mxu0 0.0
    %2250 = vmatprep.subr.mxu0 0.0
    %2251 = vmatpush1.xpose.msra.mxu0 0.0
    %2252 = vmatprep.subr.mxu0 0.0
    %2253 = vmatpush1.xpose.msra.mxu0 0.0
    %2254 = vmatprep.subr.mxu0 0.0
    %2255 = vmatpush1.xpose.msra.mxu0 0.0
    %2256 = vmatprep.mubr.f32.mxu0 0.0
    %2257 = vmatmul.mubr.f32.gmra.mrb[0].mxu0 %v2188
    %v2258 = vpop.f32.mrb[0].mxu0
    %v2259 = vadd.f32 0.0, %v2258
    %v2260 = vpop.f32.mrb[0].mxu0
    %2261 = vdwg.mxu0
    %v2263 = vunpack.c.l.s4 1983009808
    %v2264 = vunpack.c.0.s8 %v2263
    %v2265 = vlaneseq
    %v2266 = vshrl.u32 %v2265, 7
    %v2267 = vsub.s32 %v2264, %v2266
    %v2268 = vrot.slane %v1624, %v2267
    %2269 = vrot.lane.b32.xlu0 %v2268, 96
    %v2270 = vpop.permute.xlu0 %2269
    %v2271 = vsel %vm131, %v1624, 0
    %v2273 = vsel %vm131, %v2270, 0
    %2275 = vmatprep.subr.mxu0 0.0
    %2276 = vmatpush1.xpose.msra.mxu0 %v2273
    %2277 = vmatprep.subr.mxu0 0.0
    %2278 = vmatpush1.xpose.msra.mxu0 0.0
    %2279 = vmatprep.subr.mxu0 0.0
    %2280 = vmatpush1.xpose.msra.mxu0 0.0
    %2281 = vmatprep.subr.mxu0 0.0
    %2282 = vmatpush1.xpose.msra.mxu0 0.0
    %2283 = vmatprep.subr.mxu0 0.0
    %2284 = vmatpush1.xpose.msra.mxu0 0.0
    %2285 = vmatprep.subr.mxu0 0.0
    %2286 = vmatpush1.xpose.msra.mxu0 0.0
    %2287 = vmatprep.subr.mxu0 0.0
    %2288 = vmatpush1.xpose.msra.mxu0 0.0
    %2289 = vmatprep.subr.mxu0 0.0
    %2290 = vmatpush1.xpose.msra.mxu0 0.0
    %2291 = vmatprep.subr.mxu0 0.0
    %2292 = vmatpush1.xpose.msra.mxu0 0.0
    %2293 = vmatprep.subr.mxu0 0.0
    %2294 = vmatpush1.xpose.msra.mxu0 0.0
    %2295 = vmatprep.subr.mxu0 0.0
    %2296 = vmatpush1.xpose.msra.mxu0 0.0
    %2297 = vmatprep.subr.mxu0 0.0
    %2298 = vmatpush1.xpose.msra.mxu0 0.0
    %2299 = vmatprep.subr.mxu0 0.0
    %2300 = vmatpush1.xpose.msra.mxu0 0.0
    %2301 = vmatprep.subr.mxu0 0.0
    %2302 = vmatpush1.xpose.msra.mxu0 0.0
    %2303 = vmatprep.subr.mxu0 0.0
    %2304 = vmatpush1.xpose.msra.mxu0 0.0
    %2305 = vmatprep.subr.mxu0 0.0
    %2306 = vmatpush1.xpose.msra.mxu0 0.0
    %2307 = vmatprep.subr.mxu0 0.0
    %2308 = vmatpush1.xpose.msra.mxu0 0.0
    %2309 = vmatprep.subr.mxu0 0.0
    %2310 = vmatpush1.xpose.msra.mxu0 0.0
    %2311 = vmatprep.subr.mxu0 0.0
    %2312 = vmatpush1.xpose.msra.mxu0 0.0
    %2313 = vmatprep.subr.mxu0 0.0
    %2314 = vmatpush1.xpose.msra.mxu0 0.0
    %2315 = vmatprep.subr.mxu0 0.0
    %2316 = vmatpush1.xpose.msra.mxu0 0.0
    %2317 = vmatprep.subr.mxu0 0.0
    %2318 = vmatpush1.xpose.msra.mxu0 0.0
    %2319 = vmatprep.subr.mxu0 0.0
    %2320 = vmatpush1.xpose.msra.mxu0 0.0
    %2321 = vmatprep.subr.mxu0 0.0
    %2322 = vmatpush1.xpose.msra.mxu0 0.0
    %2323 = vmatprep.subr.mxu0 0.0
    %2324 = vmatpush1.xpose.msra.mxu0 0.0
    %2325 = vmatprep.subr.mxu0 0.0
    %2326 = vmatpush1.xpose.msra.mxu0 0.0
    %2327 = vmatprep.subr.mxu0 0.0
    %2328 = vmatpush1.xpose.msra.mxu0 0.0
    %2329 = vmatprep.subr.mxu0 0.0
    %2330 = vmatpush1.xpose.msra.mxu0 0.0
    %2331 = vmatprep.subr.mxu0 0.0
    %2332 = vmatpush1.xpose.msra.mxu0 0.0
    %2333 = vmatprep.subr.mxu0 0.0
    %2334 = vmatpush1.xpose.msra.mxu0 0.0
    %2335 = vmatprep.subr.mxu0 0.0
    %2336 = vmatpush1.xpose.msra.mxu0 0.0
    %2337 = vmatprep.subr.mxu0 0.0
    %2338 = vmatpush1.xpose.msra.mxu0 0.0
    %2339 = vmatprep.mubr.f32.mxu0 0.0
    %2340 = vmatmul.mubr.f32.gmra.mrb[0].mxu0 %v2271
    %v2341 = vpop.f32.mrb[0].mxu0
    %v2342 = vadd.f32 0.0, %v2341
    %v2343 = vpop.f32.mrb[0].mxu0
    %2344 = vdwg.mxu0
    %v2346 = vunpack.c.l.s4 1983009808
    %v2347 = vunpack.c.0.s8 %v2346
    %v2348 = vlaneseq
    %v2349 = vshrl.u32 %v2348, 7
    %v2350 = vsub.s32 %v2347, %v2349
    %v2351 = vrot.slane %v1634, %v2350
    %2352 = vrot.lane.b32.xlu0 %v2351, 96
    %v2353 = vpop.permute.xlu0 %2352
    %v2354 = vsel %vm131, %v1634, 0
    %v2356 = vsel %vm131, %v2353, 0
    %2358 = vmatprep.subr.mxu0 0.0
    %2359 = vmatpush1.xpose.msra.mxu0 %v2356
    %2360 = vmatprep.subr.mxu0 0.0
    %2361 = vmatpush1.xpose.msra.mxu0 0.0
    %2362 = vmatprep.subr.mxu0 0.0
    %2363 = vmatpush1.xpose.msra.mxu0 0.0
    %2364 = vmatprep.subr.mxu0 0.0
    %2365 = vmatpush1.xpose.msra.mxu0 0.0
    %2366 = vmatprep.subr.mxu0 0.0
    %2367 = vmatpush1.xpose.msra.mxu0 0.0
    %2368 = vmatprep.subr.mxu0 0.0
    %2369 = vmatpush1.xpose.msra.mxu0 0.0
    %2370 = vmatprep.subr.mxu0 0.0
    %2371 = vmatpush1.xpose.msra.mxu0 0.0
    %2372 = vmatprep.subr.mxu0 0.0
    %2373 = vmatpush1.xpose.msra.mxu0 0.0
    %2374 = vmatprep.subr.mxu0 0.0
    %2375 = vmatpush1.xpose.msra.mxu0 0.0
    %2376 = vmatprep.subr.mxu0 0.0
    %2377 = vmatpush1.xpose.msra.mxu0 0.0
    %2378 = vmatprep.subr.mxu0 0.0
    %2379 = vmatpush1.xpose.msra.mxu0 0.0
    %2380 = vmatprep.subr.mxu0 0.0
    %2381 = vmatpush1.xpose.msra.mxu0 0.0
    %2382 = vmatprep.subr.mxu0 0.0
    %2383 = vmatpush1.xpose.msra.mxu0 0.0
    %2384 = vmatprep.subr.mxu0 0.0
    %2385 = vmatpush1.xpose.msra.mxu0 0.0
    %2386 = vmatprep.subr.mxu0 0.0
    %2387 = vmatpush1.xpose.msra.mxu0 0.0
    %2388 = vmatprep.subr.mxu0 0.0
    %2389 = vmatpush1.xpose.msra.mxu0 0.0
    %2390 = vmatprep.subr.mxu0 0.0
    %2391 = vmatpush1.xpose.msra.mxu0 0.0
    %2392 = vmatprep.subr.mxu0 0.0
    %2393 = vmatpush1.xpose.msra.mxu0 0.0
    %2394 = vmatprep.subr.mxu0 0.0
    %2395 = vmatpush1.xpose.msra.mxu0 0.0
    %2396 = vmatprep.subr.mxu0 0.0
    %2397 = vmatpush1.xpose.msra.mxu0 0.0
    %2398 = vmatprep.subr.mxu0 0.0
    %2399 = vmatpush1.xpose.msra.mxu0 0.0
    %2400 = vmatprep.subr.mxu0 0.0
    %2401 = vmatpush1.xpose.msra.mxu0 0.0
    %2402 = vmatprep.subr.mxu0 0.0
    %2403 = vmatpush1.xpose.msra.mxu0 0.0
    %2404 = vmatprep.subr.mxu0 0.0
    %2405 = vmatpush1.xpose.msra.mxu0 0.0
    %2406 = vmatprep.subr.mxu0 0.0
    %2407 = vmatpush1.xpose.msra.mxu0 0.0
    %2408 = vmatprep.subr.mxu0 0.0
    %2409 = vmatpush1.xpose.msra.mxu0 0.0
    %2410 = vmatprep.subr.mxu0 0.0
    %2411 = vmatpush1.xpose.msra.mxu0 0.0
    %2412 = vmatprep.subr.mxu0 0.0
    %2413 = vmatpush1.xpose.msra.mxu0 0.0
    %2414 = vmatprep.subr.mxu0 0.0
    %2415 = vmatpush1.xpose.msra.mxu0 0.0
    %2416 = vmatprep.subr.mxu0 0.0
    %2417 = vmatpush1.xpose.msra.mxu0 0.0
    %2418 = vmatprep.subr.mxu0 0.0
    %2419 = vmatpush1.xpose.msra.mxu0 0.0
    %2420 = vmatprep.subr.mxu0 0.0
    %2421 = vmatpush1.xpose.msra.mxu0 0.0
    %2422 = vmatprep.mubr.f32.mxu0 0.0
    %2423 = vmatmul.mubr.f32.gmra.mrb[0].mxu0 %v2354
    %v2424 = vpop.f32.mrb[0].mxu0
    %v2425 = vadd.f32 0.0, %v2424
    %v2426 = vpop.f32.mrb[0].mxu0
    %2427 = vdwg.mxu0
    %v2429 = vunpack.c.l.s4 1983009808
    %v2430 = vunpack.c.0.s8 %v2429
    %v2431 = vlaneseq
    %v2432 = vshrl.u32 %v2431, 7
    %v2433 = vsub.s32 %v2430, %v2432
    %v2434 = vrot.slane %v1636, %v2433
    %2435 = vrot.lane.b32.xlu0 %v2434, 96
    %v2436 = vpop.permute.xlu0 %2435
    %v2437 = vsel %vm131, %v1636, 0
    %v2439 = vsel %vm131, %v2436, 0
    %2441 = vmatprep.subr.mxu0 0.0
    %2442 = vmatpush1.xpose.msra.mxu0 %v2439
    %2443 = vmatprep.subr.mxu0 0.0
    %2444 = vmatpush1.xpose.msra.mxu0 0.0
    %2445 = vmatprep.subr.mxu0 0.0
    %2446 = vmatpush1.xpose.msra.mxu0 0.0
    %2447 = vmatprep.subr.mxu0 0.0
    %2448 = vmatpush1.xpose.msra.mxu0 0.0
    %2449 = vmatprep.subr.mxu0 0.0
    %2450 = vmatpush1.xpose.msra.mxu0 0.0
    %2451 = vmatprep.subr.mxu0 0.0
    %2452 = vmatpush1.xpose.msra.mxu0 0.0
    %2453 = vmatprep.subr.mxu0 0.0
    %2454 = vmatpush1.xpose.msra.mxu0 0.0
    %2455 = vmatprep.subr.mxu0 0.0
    %2456 = vmatpush1.xpose.msra.mxu0 0.0
    %2457 = vmatprep.subr.mxu0 0.0
    %2458 = vmatpush1.xpose.msra.mxu0 0.0
    %2459 = vmatprep.subr.mxu0 0.0
    %2460 = vmatpush1.xpose.msra.mxu0 0.0
    %2461 = vmatprep.subr.mxu0 0.0
    %2462 = vmatpush1.xpose.msra.mxu0 0.0
    %2463 = vmatprep.subr.mxu0 0.0
    %2464 = vmatpush1.xpose.msra.mxu0 0.0
    %2465 = vmatprep.subr.mxu0 0.0
    %2466 = vmatpush1.xpose.msra.mxu0 0.0
    %2467 = vmatprep.subr.mxu0 0.0
    %2468 = vmatpush1.xpose.msra.mxu0 0.0
    %2469 = vmatprep.subr.mxu0 0.0
    %2470 = vmatpush1.xpose.msra.mxu0 0.0
    %2471 = vmatprep.subr.mxu0 0.0
    %2472 = vmatpush1.xpose.msra.mxu0 0.0
    %2473 = vmatprep.subr.mxu0 0.0
    %2474 = vmatpush1.xpose.msra.mxu0 0.0
    %2475 = vmatprep.subr.mxu0 0.0
    %2476 = vmatpush1.xpose.msra.mxu0 0.0
    %2477 = vmatprep.subr.mxu0 0.0
    %2478 = vmatpush1.xpose.msra.mxu0 0.0
    %2479 = vmatprep.subr.mxu0 0.0
    %2480 = vmatpush1.xpose.msra.mxu0 0.0
    %2481 = vmatprep.subr.mxu0 0.0
    %2482 = vmatpush1.xpose.msra.mxu0 0.0
    %2483 = vmatprep.subr.mxu0 0.0
    %2484 = vmatpush1.xpose.msra.mxu0 0.0
    %2485 = vmatprep.subr.mxu0 0.0
    %2486 = vmatpush1.xpose.msra.mxu0 0.0
    %2487 = vmatprep.subr.mxu0 0.0
    %2488 = vmatpush1.xpose.msra.mxu0 0.0
    %2489 = vmatprep.subr.mxu0 0.0
    %2490 = vmatpush1.xpose.msra.mxu0 0.0
    %2491 = vmatprep.subr.mxu0 0.0
    %2492 = vmatpush1.xpose.msra.mxu0 0.0
    %2493 = vmatprep.subr.mxu0 0.0
    %2494 = vmatpush1.xpose.msra.mxu0 0.0
    %2495 = vmatprep.subr.mxu0 0.0
    %2496 = vmatpush1.xpose.msra.mxu0 0.0
    %2497 = vmatprep.subr.mxu0 0.0
    %2498 = vmatpush1.xpose.msra.mxu0 0.0
    %2499 = vmatprep.subr.mxu0 0.0
    %2500 = vmatpush1.xpose.msra.mxu0 0.0
    %2501 = vmatprep.subr.mxu0 0.0
    %2502 = vmatpush1.xpose.msra.mxu0 0.0
    %2503 = vmatprep.subr.mxu0 0.0
    %2504 = vmatpush1.xpose.msra.mxu0 0.0
    %2505 = vmatprep.mubr.f32.mxu0 0.0
    %2506 = vmatmul.mubr.f32.gmra.mrb[0].mxu0 %v2437
    %v2507 = vpop.f32.mrb[0].mxu0
    %v2508 = vadd.f32 0.0, %v2507
    %v2509 = vpop.f32.mrb[0].mxu0
    %2510 = vdwg.mxu0
    %v2512 = vunpack.c.l.s4 1983009808
    %v2513 = vunpack.c.0.s8 %v2512
    %v2514 = vlaneseq
    %v2515 = vshrl.u32 %v2514, 7
    %v2516 = vsub.s32 %v2513, %v2515
    %v2517 = vrot.slane %v1638, %v2516
    %2518 = vrot.lane.b32.xlu0 %v2517, 96
    %v2519 = vpop.permute.xlu0 %2518
    %v2520 = vsel %vm131, %v1638, 0
    %v2522 = vsel %vm131, %v2519, 0
    %2524 = vmatprep.subr.mxu0 0.0
    %2525 = vmatpush1.xpose.msra.mxu0 %v2522
    %2526 = vmatprep.subr.mxu0 0.0
    %2527 = vmatpush1.xpose.msra.mxu0 0.0
    %2528 = vmatprep.subr.mxu0 0.0
    %2529 = vmatpush1.xpose.msra.mxu0 0.0
    %2530 = vmatprep.subr.mxu0 0.0
    %2531 = vmatpush1.xpose.msra.mxu0 0.0
    %2532 = vmatprep.subr.mxu0 0.0
    %2533 = vmatpush1.xpose.msra.mxu0 0.0
    %2534 = vmatprep.subr.mxu0 0.0
    %2535 = vmatpush1.xpose.msra.mxu0 0.0
    %2536 = vmatprep.subr.mxu0 0.0
    %2537 = vmatpush1.xpose.msra.mxu0 0.0
    %2538 = vmatprep.subr.mxu0 0.0
    %2539 = vmatpush1.xpose.msra.mxu0 0.0
    %2540 = vmatprep.subr.mxu0 0.0
    %2541 = vmatpush1.xpose.msra.mxu0 0.0
    %2542 = vmatprep.subr.mxu0 0.0
    %2543 = vmatpush1.xpose.msra.mxu0 0.0
    %2544 = vmatprep.subr.mxu0 0.0
    %2545 = vmatpush1.xpose.msra.mxu0 0.0
    %2546 = vmatprep.subr.mxu0 0.0
    %2547 = vmatpush1.xpose.msra.mxu0 0.0
    %2548 = vmatprep.subr.mxu0 0.0
    %2549 = vmatpush1.xpose.msra.mxu0 0.0
    %2550 = vmatprep.subr.mxu0 0.0
    %2551 = vmatpush1.xpose.msra.mxu0 0.0
    %2552 = vmatprep.subr.mxu0 0.0
    %2553 = vmatpush1.xpose.msra.mxu0 0.0
    %2554 = vmatprep.subr.mxu0 0.0
    %2555 = vmatpush1.xpose.msra.mxu0 0.0
    %2556 = vmatprep.subr.mxu0 0.0
    %2557 = vmatpush1.xpose.msra.mxu0 0.0
    %2558 = vmatprep.subr.mxu0 0.0
    %2559 = vmatpush1.xpose.msra.mxu0 0.0
    %2560 = vmatprep.subr.mxu0 0.0
    %2561 = vmatpush1.xpose.msra.mxu0 0.0
    %2562 = vmatprep.subr.mxu0 0.0
    %2563 = vmatpush1.xpose.msra.mxu0 0.0
    %2564 = vmatprep.subr.mxu0 0.0
    %2565 = vmatpush1.xpose.msra.mxu0 0.0
    %2566 = vmatprep.subr.mxu0 0.0
    %2567 = vmatpush1.xpose.msra.mxu0 0.0
    %2568 = vmatprep.subr.mxu0 0.0
    %2569 = vmatpush1.xpose.msra.mxu0 0.0
    %2570 = vmatprep.subr.mxu0 0.0
    %2571 = vmatpush1.xpose.msra.mxu0 0.0
    %2572 = vmatprep.subr.mxu0 0.0
    %2573 = vmatpush1.xpose.msra.mxu0 0.0
    %2574 = vmatprep.subr.mxu0 0.0
    %2575 = vmatpush1.xpose.msra.mxu0 0.0
    %2576 = vmatprep.subr.mxu0 0.0
    %2577 = vmatpush1.xpose.msra.mxu0 0.0
    %2578 = vmatprep.subr.mxu0 0.0
    %2579 = vmatpush1.xpose.msra.mxu0 0.0
    %2580 = vmatprep.subr.mxu0 0.0
    %2581 = vmatpush1.xpose.msra.mxu0 0.0
    %2582 = vmatprep.subr.mxu0 0.0
    %2583 = vmatpush1.xpose.msra.mxu0 0.0
    %2584 = vmatprep.subr.mxu0 0.0
    %2585 = vmatpush1.xpose.msra.mxu0 0.0
    %2586 = vmatprep.subr.mxu0 0.0
    %2587 = vmatpush1.xpose.msra.mxu0 0.0
    %2588 = vmatprep.mubr.f32.mxu0 0.0
    %2589 = vmatmul.mubr.f32.gmra.mrb[0].mxu0 %v2520
    %v2590 = vpop.f32.mrb[0].mxu0
    %v2591 = vadd.f32 0.0, %v2590
    %v2592 = vpop.f32.mrb[0].mxu0
    %2593 = vdwg.mxu0
    %v2595 = vunpack.c.l.s4 1983009808
    %v2596 = vunpack.c.0.s8 %v2595
    %v2597 = vlaneseq
    %v2598 = vshrl.u32 %v2597, 7
    %v2599 = vsub.s32 %v2596, %v2598
    %v2600 = vrot.slane %v1640, %v2599
    %2601 = vrot.lane.b32.xlu0 %v2600, 96
    %v2602 = vpop.permute.xlu0 %2601
    %v2603 = vsel %vm131, %v1640, 0
    %v2605 = vsel %vm131, %v2602, 0
    %2607 = vmatprep.subr.mxu0 0.0
    %2608 = vmatpush1.xpose.msra.mxu0 %v2605
    %2609 = vmatprep.subr.mxu0 0.0
    %2610 = vmatpush1.xpose.msra.mxu0 0.0
    %2611 = vmatprep.subr.mxu0 0.0
    %2612 = vmatpush1.xpose.msra.mxu0 0.0
    %2613 = vmatprep.subr.mxu0 0.0
    %2614 = vmatpush1.xpose.msra.mxu0 0.0
    %2615 = vmatprep.subr.mxu0 0.0
    %2616 = vmatpush1.xpose.msra.mxu0 0.0
    %2617 = vmatprep.subr.mxu0 0.0
    %2618 = vmatpush1.xpose.msra.mxu0 0.0
    %2619 = vmatprep.subr.mxu0 0.0
    %2620 = vmatpush1.xpose.msra.mxu0 0.0
    %2621 = vmatprep.subr.mxu0 0.0
    %2622 = vmatpush1.xpose.msra.mxu0 0.0
    %2623 = vmatprep.subr.mxu0 0.0
    %2624 = vmatpush1.xpose.msra.mxu0 0.0
    %2625 = vmatprep.subr.mxu0 0.0
    %2626 = vmatpush1.xpose.msra.mxu0 0.0
    %2627 = vmatprep.subr.mxu0 0.0
    %2628 = vmatpush1.xpose.msra.mxu0 0.0
    %2629 = vmatprep.subr.mxu0 0.0
    %2630 = vmatpush1.xpose.msra.mxu0 0.0
    %2631 = vmatprep.subr.mxu0 0.0
    %2632 = vmatpush1.xpose.msra.mxu0 0.0
    %2633 = vmatprep.subr.mxu0 0.0
    %2634 = vmatpush1.xpose.msra.mxu0 0.0
    %2635 = vmatprep.subr.mxu0 0.0
    %2636 = vmatpush1.xpose.msra.mxu0 0.0
    %2637 = vmatprep.subr.mxu0 0.0
    %2638 = vmatpush1.xpose.msra.mxu0 0.0
    %2639 = vmatprep.subr.mxu0 0.0
    %2640 = vmatpush1.xpose.msra.mxu0 0.0
    %2641 = vmatprep.subr.mxu0 0.0
    %2642 = vmatpush1.xpose.msra.mxu0 0.0
    %2643 = vmatprep.subr.mxu0 0.0
    %2644 = vmatpush1.xpose.msra.mxu0 0.0
    %2645 = vmatprep.subr.mxu0 0.0
    %2646 = vmatpush1.xpose.msra.mxu0 0.0
    %2647 = vmatprep.subr.mxu0 0.0
    %2648 = vmatpush1.xpose.msra.mxu0 0.0
    %2649 = vmatprep.subr.mxu0 0.0
    %2650 = vmatpush1.xpose.msra.mxu0 0.0
    %2651 = vmatprep.subr.mxu0 0.0
    %2652 = vmatpush1.xpose.msra.mxu0 0.0
    %2653 = vmatprep.subr.mxu0 0.0
    %2654 = vmatpush1.xpose.msra.mxu0 0.0
    %2655 = vmatprep.subr.mxu0 0.0
    %2656 = vmatpush1.xpose.msra.mxu0 0.0
    %2657 = vmatprep.subr.mxu0 0.0
    %2658 = vmatpush1.xpose.msra.mxu0 0.0
    %2659 = vmatprep.subr.mxu0 0.0
    %2660 = vmatpush1.xpose.msra.mxu0 0.0
    %2661 = vmatprep.subr.mxu0 0.0
    %2662 = vmatpush1.xpose.msra.mxu0 0.0
    %2663 = vmatprep.subr.mxu0 0.0
    %2664 = vmatpush1.xpose.msra.mxu0 0.0
    %2665 = vmatprep.subr.mxu0 0.0
    %2666 = vmatpush1.xpose.msra.mxu0 0.0
    %2667 = vmatprep.subr.mxu0 0.0
    %2668 = vmatpush1.xpose.msra.mxu0 0.0
    %2669 = vmatprep.subr.mxu0 0.0
    %2670 = vmatpush1.xpose.msra.mxu0 0.0
    %2671 = vmatprep.mubr.f32.mxu0 0.0
    %2672 = vmatmul.mubr.f32.gmra.mrb[0].mxu0 %v2603
    %v2673 = vpop.f32.mrb[0].mxu0
    %v2674 = vadd.f32 0.0, %v2673
    %v2675 = vpop.f32.mrb[0].mxu0
    %2676 = vdwg.mxu0
    %v2678 = vunpack.c.l.s4 1983009808
    %v2679 = vunpack.c.0.s8 %v2678
    %v2680 = vlaneseq
    %v2681 = vshrl.u32 %v2680, 7
    %v2682 = vsub.s32 %v2679, %v2681
    %v2683 = vrot.slane %v1642, %v2682
    %2684 = vrot.lane.b32.xlu0 %v2683, 96
    %v2685 = vpop.permute.xlu0 %2684
    %v2686 = vsel %vm131, %v1642, 0
    %v2688 = vsel %vm131, %v2685, 0
    %2690 = vmatprep.subr.mxu0 0.0
    %2691 = vmatpush1.xpose.msra.mxu0 %v2688
    %2692 = vmatprep.subr.mxu0 0.0
    %2693 = vmatpush1.xpose.msra.mxu0 0.0
    %2694 = vmatprep.subr.mxu0 0.0
    %2695 = vmatpush1.xpose.msra.mxu0 0.0
    %2696 = vmatprep.subr.mxu0 0.0
    %2697 = vmatpush1.xpose.msra.mxu0 0.0
    %2698 = vmatprep.subr.mxu0 0.0
    %2699 = vmatpush1.xpose.msra.mxu0 0.0
    %2700 = vmatprep.subr.mxu0 0.0
    %2701 = vmatpush1.xpose.msra.mxu0 0.0
    %2702 = vmatprep.subr.mxu0 0.0
    %2703 = vmatpush1.xpose.msra.mxu0 0.0
    %2704 = vmatprep.subr.mxu0 0.0
    %2705 = vmatpush1.xpose.msra.mxu0 0.0
    %2706 = vmatprep.subr.mxu0 0.0
    %2707 = vmatpush1.xpose.msra.mxu0 0.0
    %2708 = vmatprep.subr.mxu0 0.0
    %2709 = vmatpush1.xpose.msra.mxu0 0.0
    %2710 = vmatprep.subr.mxu0 0.0
    %2711 = vmatpush1.xpose.msra.mxu0 0.0
    %2712 = vmatprep.subr.mxu0 0.0
    %2713 = vmatpush1.xpose.msra.mxu0 0.0
    %2714 = vmatprep.subr.mxu0 0.0
    %2715 = vmatpush1.xpose.msra.mxu0 0.0
    %2716 = vmatprep.subr.mxu0 0.0
    %2717 = vmatpush1.xpose.msra.mxu0 0.0
    %2718 = vmatprep.subr.mxu0 0.0
    %2719 = vmatpush1.xpose.msra.mxu0 0.0
    %2720 = vmatprep.subr.mxu0 0.0
    %2721 = vmatpush1.xpose.msra.mxu0 0.0
    %2722 = vmatprep.subr.mxu0 0.0
    %2723 = vmatpush1.xpose.msra.mxu0 0.0
    %2724 = vmatprep.subr.mxu0 0.0
    %2725 = vmatpush1.xpose.msra.mxu0 0.0
    %2726 = vmatprep.subr.mxu0 0.0
    %2727 = vmatpush1.xpose.msra.mxu0 0.0
    %2728 = vmatprep.subr.mxu0 0.0
    %2729 = vmatpush1.xpose.msra.mxu0 0.0
    %2730 = vmatprep.subr.mxu0 0.0
    %2731 = vmatpush1.xpose.msra.mxu0 0.0
    %2732 = vmatprep.subr.mxu0 0.0
    %2733 = vmatpush1.xpose.msra.mxu0 0.0
    %2734 = vmatprep.subr.mxu0 0.0
    %2735 = vmatpush1.xpose.msra.mxu0 0.0
    %2736 = vmatprep.subr.mxu0 0.0
    %2737 = vmatpush1.xpose.msra.mxu0 0.0
    %2738 = vmatprep.subr.mxu0 0.0
    %2739 = vmatpush1.xpose.msra.mxu0 0.0
    %2740 = vmatprep.subr.mxu0 0.0
    %2741 = vmatpush1.xpose.msra.mxu0 0.0
    %2742 = vmatprep.subr.mxu0 0.0
    %2743 = vmatpush1.xpose.msra.mxu0 0.0
    %2744 = vmatprep.subr.mxu0 0.0
    %2745 = vmatpush1.xpose.msra.mxu0 0.0
    %2746 = vmatprep.subr.mxu0 0.0
    %2747 = vmatpush1.xpose.msra.mxu0 0.0
    %2748 = vmatprep.subr.mxu0 0.0
    %2749 = vmatpush1.xpose.msra.mxu0 0.0
    %2750 = vmatprep.subr.mxu0 0.0
    %2751 = vmatpush1.xpose.msra.mxu0 0.0
    %2752 = vmatprep.subr.mxu0 0.0
    %2753 = vmatpush1.xpose.msra.mxu0 0.0
    %2754 = vmatprep.mubr.f32.mxu0 0.0
    %2755 = vmatmul.mubr.f32.gmra.mrb[0].mxu0 %v2686
    %v2756 = vpop.f32.mrb[0].mxu0
    %v2757 = vadd.f32 0.0, %v2756
    %v2758 = vpop.f32.mrb[0].mxu0
    %2759 = vdwg.mxu0
    %v2761 = vunpack.c.l.s4 1983009808
    %v2762 = vunpack.c.0.s8 %v2761
    %v2763 = vlaneseq
    %v2764 = vshrl.u32 %v2763, 7
    %v2765 = vsub.s32 %v2762, %v2764
    %v2766 = vrot.slane %v1644, %v2765
    %2767 = vrot.lane.b32.xlu0 %v2766, 96
    %v2768 = vpop.permute.xlu0 %2767
    %v2769 = vsel %vm131, %v1644, 0
    %v2771 = vsel %vm131, %v2768, 0
    %2773 = vmatprep.subr.mxu0 0.0
    %2774 = vmatpush1.xpose.msra.mxu0 %v2771
    %2775 = vmatprep.subr.mxu0 0.0
    %2776 = vmatpush1.xpose.msra.mxu0 0.0
    %2777 = vmatprep.subr.mxu0 0.0
    %2778 = vmatpush1.xpose.msra.mxu0 0.0
    %2779 = vmatprep.subr.mxu0 0.0
    %2780 = vmatpush1.xpose.msra.mxu0 0.0
    %2781 = vmatprep.subr.mxu0 0.0
    %2782 = vmatpush1.xpose.msra.mxu0 0.0
    %2783 = vmatprep.subr.mxu0 0.0
    %2784 = vmatpush1.xpose.msra.mxu0 0.0
    %2785 = vmatprep.subr.mxu0 0.0
    %2786 = vmatpush1.xpose.msra.mxu0 0.0
    %2787 = vmatprep.subr.mxu0 0.0
    %2788 = vmatpush1.xpose.msra.mxu0 0.0
    %2789 = vmatprep.subr.mxu0 0.0
    %2790 = vmatpush1.xpose.msra.mxu0 0.0
    %2791 = vmatprep.subr.mxu0 0.0
    %2792 = vmatpush1.xpose.msra.mxu0 0.0
    %2793 = vmatprep.subr.mxu0 0.0
    %2794 = vmatpush1.xpose.msra.mxu0 0.0
    %2795 = vmatprep.subr.mxu0 0.0
    %2796 = vmatpush1.xpose.msra.mxu0 0.0
    %2797 = vmatprep.subr.mxu0 0.0
    %2798 = vmatpush1.xpose.msra.mxu0 0.0
    %2799 = vmatprep.subr.mxu0 0.0
    %2800 = vmatpush1.xpose.msra.mxu0 0.0
    %2801 = vmatprep.subr.mxu0 0.0
    %2802 = vmatpush1.xpose.msra.mxu0 0.0
    %2803 = vmatprep.subr.mxu0 0.0
    %2804 = vmatpush1.xpose.msra.mxu0 0.0
    %2805 = vmatprep.subr.mxu0 0.0
    %2806 = vmatpush1.xpose.msra.mxu0 0.0
    %2807 = vmatprep.subr.mxu0 0.0
    %2808 = vmatpush1.xpose.msra.mxu0 0.0
    %2809 = vmatprep.subr.mxu0 0.0
    %2810 = vmatpush1.xpose.msra.mxu0 0.0
    %2811 = vmatprep.subr.mxu0 0.0
    %2812 = vmatpush1.xpose.msra.mxu0 0.0
    %2813 = vmatprep.subr.mxu0 0.0
    %2814 = vmatpush1.xpose.msra.mxu0 0.0
    %2815 = vmatprep.subr.mxu0 0.0
    %2816 = vmatpush1.xpose.msra.mxu0 0.0
    %2817 = vmatprep.subr.mxu0 0.0
    %2818 = vmatpush1.xpose.msra.mxu0 0.0
    %2819 = vmatprep.subr.mxu0 0.0
    %2820 = vmatpush1.xpose.msra.mxu0 0.0
    %2821 = vmatprep.subr.mxu0 0.0
    %2822 = vmatpush1.xpose.msra.mxu0 0.0
    %2823 = vmatprep.subr.mxu0 0.0
    %2824 = vmatpush1.xpose.msra.mxu0 0.0
    %2825 = vmatprep.subr.mxu0 0.0
    %2826 = vmatpush1.xpose.msra.mxu0 0.0
    %2827 = vmatprep.subr.mxu0 0.0
    %2828 = vmatpush1.xpose.msra.mxu0 0.0
    %2829 = vmatprep.subr.mxu0 0.0
    %2830 = vmatpush1.xpose.msra.mxu0 0.0
    %2831 = vmatprep.subr.mxu0 0.0
    %2832 = vmatpush1.xpose.msra.mxu0 0.0
    %2833 = vmatprep.subr.mxu0 0.0
    %2834 = vmatpush1.xpose.msra.mxu0 0.0
    %2835 = vmatprep.subr.mxu0 0.0
    %2836 = vmatpush1.xpose.msra.mxu0 0.0
    %2837 = vmatprep.mubr.f32.mxu0 0.0
    %2838 = vmatmul.mubr.f32.gmra.mrb[0].mxu0 %v2769
    %v2839 = vpop.f32.mrb[0].mxu0
    %v2840 = vadd.f32 0.0, %v2839
    %v2841 = vpop.f32.mrb[0].mxu0
    %2842 = vdwg.mxu0
    %v2844 = vunpack.c.l.s4 1983009808
    %v2845 = vunpack.c.0.s8 %v2844
    %v2846 = vlaneseq
    %v2847 = vshrl.u32 %v2846, 7
    %v2848 = vsub.s32 %v2845, %v2847
    %v2849 = vrot.slane %v1646, %v2848
    %2850 = vrot.lane.b32.xlu0 %v2849, 96
    %v2851 = vpop.permute.xlu0 %2850
    %v2852 = vsel %vm131, %v1646, 0
    %v2854 = vsel %vm131, %v2851, 0
    %2856 = vmatprep.subr.mxu0 0.0
    %2857 = vmatpush1.xpose.msra.mxu0 %v2854
    %2858 = vmatprep.subr.mxu0 0.0
    %2859 = vmatpush1.xpose.msra.mxu0 0.0
    %2860 = vmatprep.subr.mxu0 0.0
    %2861 = vmatpush1.xpose.msra.mxu0 0.0
    %2862 = vmatprep.subr.mxu0 0.0
    %2863 = vmatpush1.xpose.msra.mxu0 0.0
    %2864 = vmatprep.subr.mxu0 0.0
    %2865 = vmatpush1.xpose.msra.mxu0 0.0
    %2866 = vmatprep.subr.mxu0 0.0
    %2867 = vmatpush1.xpose.msra.mxu0 0.0
    %2868 = vmatprep.subr.mxu0 0.0
    %2869 = vmatpush1.xpose.msra.mxu0 0.0
    %2870 = vmatprep.subr.mxu0 0.0
    %2871 = vmatpush1.xpose.msra.mxu0 0.0
    %2872 = vmatprep.subr.mxu0 0.0
    %2873 = vmatpush1.xpose.msra.mxu0 0.0
    %2874 = vmatprep.subr.mxu0 0.0
    %2875 = vmatpush1.xpose.msra.mxu0 0.0
    %2876 = vmatprep.subr.mxu0 0.0
    %2877 = vmatpush1.xpose.msra.mxu0 0.0
    %2878 = vmatprep.subr.mxu0 0.0
    %2879 = vmatpush1.xpose.msra.mxu0 0.0
    %2880 = vmatprep.subr.mxu0 0.0
    %2881 = vmatpush1.xpose.msra.mxu0 0.0
    %2882 = vmatprep.subr.mxu0 0.0
    %2883 = vmatpush1.xpose.msra.mxu0 0.0
    %2884 = vmatprep.subr.mxu0 0.0
    %2885 = vmatpush1.xpose.msra.mxu0 0.0
    %2886 = vmatprep.subr.mxu0 0.0
    %2887 = vmatpush1.xpose.msra.mxu0 0.0
    %2888 = vmatprep.subr.mxu0 0.0
    %2889 = vmatpush1.xpose.msra.mxu0 0.0
    %2890 = vmatprep.subr.mxu0 0.0
    %2891 = vmatpush1.xpose.msra.mxu0 0.0
    %2892 = vmatprep.subr.mxu0 0.0
    %2893 = vmatpush1.xpose.msra.mxu0 0.0
    %2894 = vmatprep.subr.mxu0 0.0
    %2895 = vmatpush1.xpose.msra.mxu0 0.0
    %2896 = vmatprep.subr.mxu0 0.0
    %2897 = vmatpush1.xpose.msra.mxu0 0.0
    %2898 = vmatprep.subr.mxu0 0.0
    %2899 = vmatpush1.xpose.msra.mxu0 0.0
    %2900 = vmatprep.subr.mxu0 0.0
    %2901 = vmatpush1.xpose.msra.mxu0 0.0
    %2902 = vmatprep.subr.mxu0 0.0
    %2903 = vmatpush1.xpose.msra.mxu0 0.0
    %2904 = vmatprep.subr.mxu0 0.0
    %2905 = vmatpush1.xpose.msra.mxu0 0.0
    %2906 = vmatprep.subr.mxu0 0.0
    %2907 = vmatpush1.xpose.msra.mxu0 0.0
    %2908 = vmatprep.subr.mxu0 0.0
    %2909 = vmatpush1.xpose.msra.mxu0 0.0
    %2910 = vmatprep.subr.mxu0 0.0
    %2911 = vmatpush1.xpose.msra.mxu0 0.0
    %2912 = vmatprep.subr.mxu0 0.0
    %2913 = vmatpush1.xpose.msra.mxu0 0.0
    %2914 = vmatprep.subr.mxu0 0.0
    %2915 = vmatpush1.xpose.msra.mxu0 0.0
    %2916 = vmatprep.subr.mxu0 0.0
    %2917 = vmatpush1.xpose.msra.mxu0 0.0
    %2918 = vmatprep.subr.mxu0 0.0
    %2919 = vmatpush1.xpose.msra.mxu0 0.0
    %2920 = vmatprep.mubr.f32.mxu0 0.0
    %2921 = vmatmul.mubr.f32.gmra.mrb[0].mxu0 %v2852
    %v2922 = vpop.f32.mrb[0].mxu0
    %v2923 = vadd.f32 0.0, %v2922
    %v2924 = vpop.f32.mrb[0].mxu0
    %2925 = vdwg.mxu0
    %v2927 = vunpack.c.l.s4 1983009808
    %v2928 = vunpack.c.0.s8 %v2927
    %v2929 = vlaneseq
    %v2930 = vshrl.u32 %v2929, 7
    %v2931 = vsub.s32 %v2928, %v2930
    %v2932 = vrot.slane %v1648, %v2931
    %2933 = vrot.lane.b32.xlu0 %v2932, 96
    %v2934 = vpop.permute.xlu0 %2933
    %v2935 = vsel %vm131, %v1648, 0
    %v2937 = vsel %vm131, %v2934, 0
    %2939 = vmatprep.subr.mxu0 0.0
    %2940 = vmatpush1.xpose.msra.mxu0 %v2937
    %2941 = vmatprep.subr.mxu0 0.0
    %2942 = vmatpush1.xpose.msra.mxu0 0.0
    %2943 = vmatprep.subr.mxu0 0.0
    %2944 = vmatpush1.xpose.msra.mxu0 0.0
    %2945 = vmatprep.subr.mxu0 0.0
    %2946 = vmatpush1.xpose.msra.mxu0 0.0
    %2947 = vmatprep.subr.mxu0 0.0
    %2948 = vmatpush1.xpose.msra.mxu0 0.0
    %2949 = vmatprep.subr.mxu0 0.0
    %2950 = vmatpush1.xpose.msra.mxu0 0.0
    %2951 = vmatprep.subr.mxu0 0.0
    %2952 = vmatpush1.xpose.msra.mxu0 0.0
    %2953 = vmatprep.subr.mxu0 0.0
    %2954 = vmatpush1.xpose.msra.mxu0 0.0
    %2955 = vmatprep.subr.mxu0 0.0
    %2956 = vmatpush1.xpose.msra.mxu0 0.0
    %2957 = vmatprep.subr.mxu0 0.0
    %2958 = vmatpush1.xpose.msra.mxu0 0.0
    %2959 = vmatprep.subr.mxu0 0.0
    %2960 = vmatpush1.xpose.msra.mxu0 0.0
    %2961 = vmatprep.subr.mxu0 0.0
    %2962 = vmatpush1.xpose.msra.mxu0 0.0
    %2963 = vmatprep.subr.mxu0 0.0
    %2964 = vmatpush1.xpose.msra.mxu0 0.0
    %2965 = vmatprep.subr.mxu0 0.0
    %2966 = vmatpush1.xpose.msra.mxu0 0.0
    %2967 = vmatprep.subr.mxu0 0.0
    %2968 = vmatpush1.xpose.msra.mxu0 0.0
    %2969 = vmatprep.subr.mxu0 0.0
    %2970 = vmatpush1.xpose.msra.mxu0 0.0
    %2971 = vmatprep.subr.mxu0 0.0
    %2972 = vmatpush1.xpose.msra.mxu0 0.0
    %2973 = vmatprep.subr.mxu0 0.0
    %2974 = vmatpush1.xpose.msra.mxu0 0.0
    %2975 = vmatprep.subr.mxu0 0.0
    %2976 = vmatpush1.xpose.msra.mxu0 0.0
    %2977 = vmatprep.subr.mxu0 0.0
    %2978 = vmatpush1.xpose.msra.mxu0 0.0
    %2979 = vmatprep.subr.mxu0 0.0
    %2980 = vmatpush1.xpose.msra.mxu0 0.0
    %2981 = vmatprep.subr.mxu0 0.0
    %2982 = vmatpush1.xpose.msra.mxu0 0.0
    %2983 = vmatprep.subr.mxu0 0.0
    %2984 = vmatpush1.xpose.msra.mxu0 0.0
    %2985 = vmatprep.subr.mxu0 0.0
    %2986 = vmatpush1.xpose.msra.mxu0 0.0
    %2987 = vmatprep.subr.mxu0 0.0
    %2988 = vmatpush1.xpose.msra.mxu0 0.0
    %2989 = vmatprep.subr.mxu0 0.0
    %2990 = vmatpush1.xpose.msra.mxu0 0.0
    %2991 = vmatprep.subr.mxu0 0.0
    %2992 = vmatpush1.xpose.msra.mxu0 0.0
    %2993 = vmatprep.subr.mxu0 0.0
    %2994 = vmatpush1.xpose.msra.mxu0 0.0
    %2995 = vmatprep.subr.mxu0 0.0
    %2996 = vmatpush1.xpose.msra.mxu0 0.0
    %2997 = vmatprep.subr.mxu0 0.0
    %2998 = vmatpush1.xpose.msra.mxu0 0.0
    %2999 = vmatprep.subr.mxu0 0.0
    %3000 = vmatpush1.xpose.msra.mxu0 0.0
    %3001 = vmatprep.subr.mxu0 0.0
    %3002 = vmatpush1.xpose.msra.mxu0 0.0
    %3003 = vmatprep.mubr.f32.mxu0 0.0
    %3004 = vmatmul.mubr.f32.gmra.mrb[0].mxu0 %v2935
    %v3005 = vpop.f32.mrb[0].mxu0
    %v3006 = vadd.f32 0.0, %v3005
    %v3007 = vpop.f32.mrb[0].mxu0
    %3008 = vdwg.mxu0
    %v3010 = vunpack.c.l.s4 1983009808
    %v3011 = vunpack.c.0.s8 %v3010
    %v3012 = vlaneseq
    %v3013 = vshrl.u32 %v3012, 7
    %v3014 = vsub.s32 %v3011, %v3013
    %v3015 = vrot.slane %v1650, %v3014
    %3016 = vrot.lane.b32.xlu0 %v3015, 96
    %v3017 = vpop.permute.xlu0 %3016
    %v3018 = vsel %vm131, %v1650, 0
    %v3020 = vsel %vm131, %v3017, 0
    %3022 = vmatprep.subr.mxu0 0.0
    %3023 = vmatpush1.xpose.msra.mxu0 %v3020
    %3024 = vmatprep.subr.mxu0 0.0
    %3025 = vmatpush1.xpose.msra.mxu0 0.0
    %3026 = vmatprep.subr.mxu0 0.0
    %3027 = vmatpush1.xpose.msra.mxu0 0.0
    %3028 = vmatprep.subr.mxu0 0.0
    %3029 = vmatpush1.xpose.msra.mxu0 0.0
    %3030 = vmatprep.subr.mxu0 0.0
    %3031 = vmatpush1.xpose.msra.mxu0 0.0
    %3032 = vmatprep.subr.mxu0 0.0
    %3033 = vmatpush1.xpose.msra.mxu0 0.0
    %3034 = vmatprep.subr.mxu0 0.0
    %3035 = vmatpush1.xpose.msra.mxu0 0.0
    %3036 = vmatprep.subr.mxu0 0.0
    %3037 = vmatpush1.xpose.msra.mxu0 0.0
    %3038 = vmatprep.subr.mxu0 0.0
    %3039 = vmatpush1.xpose.msra.mxu0 0.0
    %3040 = vmatprep.subr.mxu0 0.0
    %3041 = vmatpush1.xpose.msra.mxu0 0.0
    %3042 = vmatprep.subr.mxu0 0.0
    %3043 = vmatpush1.xpose.msra.mxu0 0.0
    %3044 = vmatprep.subr.mxu0 0.0
    %3045 = vmatpush1.xpose.msra.mxu0 0.0
    %3046 = vmatprep.subr.mxu0 0.0
    %3047 = vmatpush1.xpose.msra.mxu0 0.0
    %3048 = vmatprep.subr.mxu0 0.0
    %3049 = vmatpush1.xpose.msra.mxu0 0.0
    %3050 = vmatprep.subr.mxu0 0.0
    %3051 = vmatpush1.xpose.msra.mxu0 0.0
    %3052 = vmatprep.subr.mxu0 0.0
    %3053 = vmatpush1.xpose.msra.mxu0 0.0
    %3054 = vmatprep.subr.mxu0 0.0
    %3055 = vmatpush1.xpose.msra.mxu0 0.0
    %3056 = vmatprep.subr.mxu0 0.0
    %3057 = vmatpush1.xpose.msra.mxu0 0.0
    %3058 = vmatprep.subr.mxu0 0.0
    %3059 = vmatpush1.xpose.msra.mxu0 0.0
    %3060 = vmatprep.subr.mxu0 0.0
    %3061 = vmatpush1.xpose.msra.mxu0 0.0
    %3062 = vmatprep.subr.mxu0 0.0
    %3063 = vmatpush1.xpose.msra.mxu0 0.0
    %3064 = vmatprep.subr.mxu0 0.0
    %3065 = vmatpush1.xpose.msra.mxu0 0.0
    %3066 = vmatprep.subr.mxu0 0.0
    %3067 = vmatpush1.xpose.msra.mxu0 0.0
    %3068 = vmatprep.subr.mxu0 0.0
    %3069 = vmatpush1.xpose.msra.mxu0 0.0
    %3070 = vmatprep.subr.mxu0 0.0
    %3071 = vmatpush1.xpose.msra.mxu0 0.0
    %3072 = vmatprep.subr.mxu0 0.0
    %3073 = vmatpush1.xpose.msra.mxu0 0.0
    %3074 = vmatprep.subr.mxu0 0.0
    %3075 = vmatpush1.xpose.msra.mxu0 0.0
    %3076 = vmatprep.subr.mxu0 0.0
    %3077 = vmatpush1.xpose.msra.mxu0 0.0
    %3078 = vmatprep.subr.mxu0 0.0
    %3079 = vmatpush1.xpose.msra.mxu0 0.0
    %3080 = vmatprep.subr.mxu0 0.0
    %3081 = vmatpush1.xpose.msra.mxu0 0.0
    %3082 = vmatprep.subr.mxu0 0.0
    %3083 = vmatpush1.xpose.msra.mxu0 0.0
    %3084 = vmatprep.subr.mxu0 0.0
    %3085 = vmatpush1.xpose.msra.mxu0 0.0
    %3086 = vmatprep.mubr.f32.mxu0 0.0
    %3087 = vmatmul.mubr.f32.gmra.mrb[0].mxu0 %v3018
    %v3088 = vpop.f32.mrb[0].mxu0
    %v3089 = vadd.f32 0.0, %v3088
    %v3090 = vpop.f32.mrb[0].mxu0
    %3091 = vdwg.mxu0
    %v3093 = vunpack.c.l.s4 1983009808
    %v3094 = vunpack.c.0.s8 %v3093
    %v3095 = vlaneseq
    %v3096 = vshrl.u32 %v3095, 7
    %v3097 = vsub.s32 %v3094, %v3096
    %v3098 = vrot.slane %v1652, %v3097
    %3099 = vrot.lane.b32.xlu0 %v3098, 96
    %v3100 = vpop.permute.xlu0 %3099
    %v3101 = vsel %vm131, %v1652, 0
    %v3103 = vsel %vm131, %v3100, 0
    %3105 = vmatprep.subr.mxu0 0.0
    %3106 = vmatpush1.xpose.msra.mxu0 %v3103
    %3107 = vmatprep.subr.mxu0 0.0
    %3108 = vmatpush1.xpose.msra.mxu0 0.0
    %3109 = vmatprep.subr.mxu0 0.0
    %3110 = vmatpush1.xpose.msra.mxu0 0.0
    %3111 = vmatprep.subr.mxu0 0.0
    %3112 = vmatpush1.xpose.msra.mxu0 0.0
    %3113 = vmatprep.subr.mxu0 0.0
    %3114 = vmatpush1.xpose.msra.mxu0 0.0
    %3115 = vmatprep.subr.mxu0 0.0
    %3116 = vmatpush1.xpose.msra.mxu0 0.0
    %3117 = vmatprep.subr.mxu0 0.0
    %3118 = vmatpush1.xpose.msra.mxu0 0.0
    %3119 = vmatprep.subr.mxu0 0.0
    %3120 = vmatpush1.xpose.msra.mxu0 0.0
    %3121 = vmatprep.subr.mxu0 0.0
    %3122 = vmatpush1.xpose.msra.mxu0 0.0
    %3123 = vmatprep.subr.mxu0 0.0
    %3124 = vmatpush1.xpose.msra.mxu0 0.0
    %3125 = vmatprep.subr.mxu0 0.0
    %3126 = vmatpush1.xpose.msra.mxu0 0.0
    %3127 = vmatprep.subr.mxu0 0.0
    %3128 = vmatpush1.xpose.msra.mxu0 0.0
    %3129 = vmatprep.subr.mxu0 0.0
    %3130 = vmatpush1.xpose.msra.mxu0 0.0
    %3131 = vmatprep.subr.mxu0 0.0
    %3132 = vmatpush1.xpose.msra.mxu0 0.0
    %3133 = vmatprep.subr.mxu0 0.0
    %3134 = vmatpush1.xpose.msra.mxu0 0.0
    %3135 = vmatprep.subr.mxu0 0.0
    %3136 = vmatpush1.xpose.msra.mxu0 0.0
    %3137 = vmatprep.subr.mxu0 0.0
    %3138 = vmatpush1.xpose.msra.mxu0 0.0
    %3139 = vmatprep.subr.mxu0 0.0
    %3140 = vmatpush1.xpose.msra.mxu0 0.0
    %3141 = vmatprep.subr.mxu0 0.0
    %3142 = vmatpush1.xpose.msra.mxu0 0.0
    %3143 = vmatprep.subr.mxu0 0.0
    %3144 = vmatpush1.xpose.msra.mxu0 0.0
    %3145 = vmatprep.subr.mxu0 0.0
    %3146 = vmatpush1.xpose.msra.mxu0 0.0
    %3147 = vmatprep.subr.mxu0 0.0
    %3148 = vmatpush1.xpose.msra.mxu0 0.0
    %3149 = vmatprep.subr.mxu0 0.0
    %3150 = vmatpush1.xpose.msra.mxu0 0.0
    %3151 = vmatprep.subr.mxu0 0.0
    %3152 = vmatpush1.xpose.msra.mxu0 0.0
    %3153 = vmatprep.subr.mxu0 0.0
    %3154 = vmatpush1.xpose.msra.mxu0 0.0
    %3155 = vmatprep.subr.mxu0 0.0
    %3156 = vmatpush1.xpose.msra.mxu0 0.0
    %3157 = vmatprep.subr.mxu0 0.0
    %3158 = vmatpush1.xpose.msra.mxu0 0.0
    %3159 = vmatprep.subr.mxu0 0.0
    %3160 = vmatpush1.xpose.msra.mxu0 0.0
    %3161 = vmatprep.subr.mxu0 0.0
    %3162 = vmatpush1.xpose.msra.mxu0 0.0
    %3163 = vmatprep.subr.mxu0 0.0
    %3164 = vmatpush1.xpose.msra.mxu0 0.0
    %3165 = vmatprep.subr.mxu0 0.0
    %3166 = vmatpush1.xpose.msra.mxu0 0.0
    %3167 = vmatprep.subr.mxu0 0.0
    %3168 = vmatpush1.xpose.msra.mxu0 0.0
    %3169 = vmatprep.mubr.f32.mxu0 0.0
    %3170 = vmatmul.mubr.f32.gmra.mrb[0].mxu0 %v3101
    %v3171 = vpop.f32.mrb[0].mxu0
    %v3172 = vadd.f32 0.0, %v3171
    %v3173 = vpop.f32.mrb[0].mxu0
    %3174 = vdwg.mxu0
    %v3176 = vunpack.c.l.s4 1983009808
    %v3177 = vunpack.c.0.s8 %v3176
    %v3178 = vlaneseq
    %v3179 = vshrl.u32 %v3178, 7
    %v3180 = vsub.s32 %v3177, %v3179
    %v3181 = vrot.slane %v1654, %v3180
    %3182 = vrot.lane.b32.xlu0 %v3181, 96
    %v3183 = vpop.permute.xlu0 %3182
    %v3184 = vsel %vm131, %v1654, 0
    %v3186 = vsel %vm131, %v3183, 0
    %3188 = vmatprep.subr.mxu0 0.0
    %3189 = vmatpush1.xpose.msra.mxu0 %v3186
    %3190 = vmatprep.subr.mxu0 0.0
    %3191 = vmatpush1.xpose.msra.mxu0 0.0
    %3192 = vmatprep.subr.mxu0 0.0
    %3193 = vmatpush1.xpose.msra.mxu0 0.0
    %3194 = vmatprep.subr.mxu0 0.0
    %3195 = vmatpush1.xpose.msra.mxu0 0.0
    %3196 = vmatprep.subr.mxu0 0.0
    %3197 = vmatpush1.xpose.msra.mxu0 0.0
    %3198 = vmatprep.subr.mxu0 0.0
    %3199 = vmatpush1.xpose.msra.mxu0 0.0
    %3200 = vmatprep.subr.mxu0 0.0
    %3201 = vmatpush1.xpose.msra.mxu0 0.0
    %3202 = vmatprep.subr.mxu0 0.0
    %3203 = vmatpush1.xpose.msra.mxu0 0.0
    %3204 = vmatprep.subr.mxu0 0.0
    %3205 = vmatpush1.xpose.msra.mxu0 0.0
    %3206 = vmatprep.subr.mxu0 0.0
    %3207 = vmatpush1.xpose.msra.mxu0 0.0
    %3208 = vmatprep.subr.mxu0 0.0
    %3209 = vmatpush1.xpose.msra.mxu0 0.0
    %3210 = vmatprep.subr.mxu0 0.0
    %3211 = vmatpush1.xpose.msra.mxu0 0.0
    %3212 = vmatprep.subr.mxu0 0.0
    %3213 = vmatpush1.xpose.msra.mxu0 0.0
    %3214 = vmatprep.subr.mxu0 0.0
    %3215 = vmatpush1.xpose.msra.mxu0 0.0
    %3216 = vmatprep.subr.mxu0 0.0
    %3217 = vmatpush1.xpose.msra.mxu0 0.0
    %3218 = vmatprep.subr.mxu0 0.0
    %3219 = vmatpush1.xpose.msra.mxu0 0.0
    %3220 = vmatprep.subr.mxu0 0.0
    %3221 = vmatpush1.xpose.msra.mxu0 0.0
    %3222 = vmatprep.subr.mxu0 0.0
    %3223 = vmatpush1.xpose.msra.mxu0 0.0
    %3224 = vmatprep.subr.mxu0 0.0
    %3225 = vmatpush1.xpose.msra.mxu0 0.0
    %3226 = vmatprep.subr.mxu0 0.0
    %3227 = vmatpush1.xpose.msra.mxu0 0.0
    %3228 = vmatprep.subr.mxu0 0.0
    %3229 = vmatpush1.xpose.msra.mxu0 0.0
    %3230 = vmatprep.subr.mxu0 0.0
    %3231 = vmatpush1.xpose.msra.mxu0 0.0
    %3232 = vmatprep.subr.mxu0 0.0
    %3233 = vmatpush1.xpose.msra.mxu0 0.0
    %3234 = vmatprep.subr.mxu0 0.0
    %3235 = vmatpush1.xpose.msra.mxu0 0.0
    %3236 = vmatprep.subr.mxu0 0.0
    %3237 = vmatpush1.xpose.msra.mxu0 0.0
    %3238 = vmatprep.subr.mxu0 0.0
    %3239 = vmatpush1.xpose.msra.mxu0 0.0
    %3240 = vmatprep.subr.mxu0 0.0
    %3241 = vmatpush1.xpose.msra.mxu0 0.0
    %3242 = vmatprep.subr.mxu0 0.0
    %3243 = vmatpush1.xpose.msra.mxu0 0.0
    %3244 = vmatprep.subr.mxu0 0.0
    %3245 = vmatpush1.xpose.msra.mxu0 0.0
    %3246 = vmatprep.subr.mxu0 0.0
    %3247 = vmatpush1.xpose.msra.mxu0 0.0
    %3248 = vmatprep.subr.mxu0 0.0
    %3249 = vmatpush1.xpose.msra.mxu0 0.0
    %3250 = vmatprep.subr.mxu0 0.0
    %3251 = vmatpush1.xpose.msra.mxu0 0.0
    %3252 = vmatprep.mubr.f32.mxu0 0.0
    %3253 = vmatmul.mubr.f32.gmra.mrb[0].mxu0 %v3184
    %v3254 = vpop.f32.mrb[0].mxu0
    %v3255 = vadd.f32 0.0, %v3254
    %v3256 = vpop.f32.mrb[0].mxu0
    %3257 = vdwg.mxu0
    %v3259 = vunpack.c.l.s4 1983009808
    %v3260 = vunpack.c.0.s8 %v3259
    %v3261 = vlaneseq
    %v3262 = vshrl.u32 %v3261, 7
    %v3263 = vsub.s32 %v3260, %v3262
    %v3264 = vrot.slane %v1656, %v3263
    %3265 = vrot.lane.b32.xlu0 %v3264, 96
    %v3266 = vpop.permute.xlu0 %3265
    %v3267 = vsel %vm131, %v1656, 0
    %v3269 = vsel %vm131, %v3266, 0
    %3271 = vmatprep.subr.mxu0 0.0
    %3272 = vmatpush1.xpose.msra.mxu0 %v3269
    %3273 = vmatprep.subr.mxu0 0.0
    %3274 = vmatpush1.xpose.msra.mxu0 0.0
    %3275 = vmatprep.subr.mxu0 0.0
    %3276 = vmatpush1.xpose.msra.mxu0 0.0
    %3277 = vmatprep.subr.mxu0 0.0
    %3278 = vmatpush1.xpose.msra.mxu0 0.0
    %3279 = vmatprep.subr.mxu0 0.0
    %3280 = vmatpush1.xpose.msra.mxu0 0.0
    %3281 = vmatprep.subr.mxu0 0.0
    %3282 = vmatpush1.xpose.msra.mxu0 0.0
    %3283 = vmatprep.subr.mxu0 0.0
    %3284 = vmatpush1.xpose.msra.mxu0 0.0
    %3285 = vmatprep.subr.mxu0 0.0
    %3286 = vmatpush1.xpose.msra.mxu0 0.0
    %3287 = vmatprep.subr.mxu0 0.0
    %3288 = vmatpush1.xpose.msra.mxu0 0.0
    %3289 = vmatprep.subr.mxu0 0.0
    %3290 = vmatpush1.xpose.msra.mxu0 0.0
    %3291 = vmatprep.subr.mxu0 0.0
    %3292 = vmatpush1.xpose.msra.mxu0 0.0
    %3293 = vmatprep.subr.mxu0 0.0
    %3294 = vmatpush1.xpose.msra.mxu0 0.0
    %3295 = vmatprep.subr.mxu0 0.0
    %3296 = vmatpush1.xpose.msra.mxu0 0.0
    %3297 = vmatprep.subr.mxu0 0.0
    %3298 = vmatpush1.xpose.msra.mxu0 0.0
    %3299 = vmatprep.subr.mxu0 0.0
    %3300 = vmatpush1.xpose.msra.mxu0 0.0
    %3301 = vmatprep.subr.mxu0 0.0
    %3302 = vmatpush1.xpose.msra.mxu0 0.0
    %3303 = vmatprep.subr.mxu0 0.0
    %3304 = vmatpush1.xpose.msra.mxu0 0.0
    %3305 = vmatprep.subr.mxu0 0.0
    %3306 = vmatpush1.xpose.msra.mxu0 0.0
    %3307 = vmatprep.subr.mxu0 0.0
    %3308 = vmatpush1.xpose.msra.mxu0 0.0
    %3309 = vmatprep.subr.mxu0 0.0
    %3310 = vmatpush1.xpose.msra.mxu0 0.0
    %3311 = vmatprep.subr.mxu0 0.0
    %3312 = vmatpush1.xpose.msra.mxu0 0.0
    %3313 = vmatprep.subr.mxu0 0.0
    %3314 = vmatpush1.xpose.msra.mxu0 0.0
    %3315 = vmatprep.subr.mxu0 0.0
    %3316 = vmatpush1.xpose.msra.mxu0 0.0
    %3317 = vmatprep.subr.mxu0 0.0
    %3318 = vmatpush1.xpose.msra.mxu0 0.0
    %3319 = vmatprep.subr.mxu0 0.0
    %3320 = vmatpush1.xpose.msra.mxu0 0.0
    %3321 = vmatprep.subr.mxu0 0.0
    %3322 = vmatpush1.xpose.msra.mxu0 0.0
    %3323 = vmatprep.subr.mxu0 0.0
    %3324 = vmatpush1.xpose.msra.mxu0 0.0
    %3325 = vmatprep.subr.mxu0 0.0
    %3326 = vmatpush1.xpose.msra.mxu0 0.0
    %3327 = vmatprep.subr.mxu0 0.0
    %3328 = vmatpush1.xpose.msra.mxu0 0.0
    %3329 = vmatprep.subr.mxu0 0.0
    %3330 = vmatpush1.xpose.msra.mxu0 0.0
    %3331 = vmatprep.subr.mxu0 0.0
    %3332 = vmatpush1.xpose.msra.mxu0 0.0
    %3333 = vmatprep.subr.mxu0 0.0
    %3334 = vmatpush1.xpose.msra.mxu0 0.0
    %3335 = vmatprep.mubr.f32.mxu0 0.0
    %3336 = vmatmul.mubr.f32.gmra.mrb[0].mxu0 %v3267
    %v3337 = vpop.f32.mrb[0].mxu0
    %v3338 = vadd.f32 0.0, %v3337
    %v3339 = vpop.f32.mrb[0].mxu0
    %3340 = vdwg.mxu0
    %v3342 = vunpack.c.l.s4 1983009808
    %v3343 = vunpack.c.0.s8 %v3342
    %v3344 = vlaneseq
    %v3345 = vshrl.u32 %v3344, 7
    %v3346 = vsub.s32 %v3343, %v3345
    %v3347 = vrot.slane %v1658, %v3346
    %3348 = vrot.lane.b32.xlu0 %v3347, 96
    %v3349 = vpop.permute.xlu0 %3348
    %v3350 = vsel %vm131, %v1658, 0
    %v3352 = vsel %vm131, %v3349, 0
    %3354 = vmatprep.subr.mxu0 0.0
    %3355 = vmatpush1.xpose.msra.mxu0 %v3352
    %3356 = vmatprep.subr.mxu0 0.0
    %3357 = vmatpush1.xpose.msra.mxu0 0.0
    %3358 = vmatprep.subr.mxu0 0.0
    %3359 = vmatpush1.xpose.msra.mxu0 0.0
    %3360 = vmatprep.subr.mxu0 0.0
    %3361 = vmatpush1.xpose.msra.mxu0 0.0
    %3362 = vmatprep.subr.mxu0 0.0
    %3363 = vmatpush1.xpose.msra.mxu0 0.0
    %3364 = vmatprep.subr.mxu0 0.0
    %3365 = vmatpush1.xpose.msra.mxu0 0.0
    %3366 = vmatprep.subr.mxu0 0.0
    %3367 = vmatpush1.xpose.msra.mxu0 0.0
    %3368 = vmatprep.subr.mxu0 0.0
    %3369 = vmatpush1.xpose.msra.mxu0 0.0
    %3370 = vmatprep.subr.mxu0 0.0
    %3371 = vmatpush1.xpose.msra.mxu0 0.0
    %3372 = vmatprep.subr.mxu0 0.0
    %3373 = vmatpush1.xpose.msra.mxu0 0.0
    %3374 = vmatprep.subr.mxu0 0.0
    %3375 = vmatpush1.xpose.msra.mxu0 0.0
    %3376 = vmatprep.subr.mxu0 0.0
    %3377 = vmatpush1.xpose.msra.mxu0 0.0
    %3378 = vmatprep.subr.mxu0 0.0
    %3379 = vmatpush1.xpose.msra.mxu0 0.0
    %3380 = vmatprep.subr.mxu0 0.0
    %3381 = vmatpush1.xpose.msra.mxu0 0.0
    %3382 = vmatprep.subr.mxu0 0.0
    %3383 = vmatpush1.xpose.msra.mxu0 0.0
    %3384 = vmatprep.subr.mxu0 0.0
    %3385 = vmatpush1.xpose.msra.mxu0 0.0
    %3386 = vmatprep.subr.mxu0 0.0
    %3387 = vmatpush1.xpose.msra.mxu0 0.0
    %3388 = vmatprep.subr.mxu0 0.0
    %3389 = vmatpush1.xpose.msra.mxu0 0.0
    %3390 = vmatprep.subr.mxu0 0.0
    %3391 = vmatpush1.xpose.msra.mxu0 0.0
    %3392 = vmatprep.subr.mxu0 0.0
    %3393 = vmatpush1.xpose.msra.mxu0 0.0
    %3394 = vmatprep.subr.mxu0 0.0
    %3395 = vmatpush1.xpose.msra.mxu0 0.0
    %3396 = vmatprep.subr.mxu0 0.0
    %3397 = vmatpush1.xpose.msra.mxu0 0.0
    %3398 = vmatprep.subr.mxu0 0.0
    %3399 = vmatpush1.xpose.msra.mxu0 0.0
    %3400 = vmatprep.subr.mxu0 0.0
    %3401 = vmatpush1.xpose.msra.mxu0 0.0
    %3402 = vmatprep.subr.mxu0 0.0
    %3403 = vmatpush1.xpose.msra.mxu0 0.0
    %3404 = vmatprep.subr.mxu0 0.0
    %3405 = vmatpush1.xpose.msra.mxu0 0.0
    %3406 = vmatprep.subr.mxu0 0.0
    %3407 = vmatpush1.xpose.msra.mxu0 0.0
    %3408 = vmatprep.subr.mxu0 0.0
    %3409 = vmatpush1.xpose.msra.mxu0 0.0
    %3410 = vmatprep.subr.mxu0 0.0
    %3411 = vmatpush1.xpose.msra.mxu0 0.0
    %3412 = vmatprep.subr.mxu0 0.0
    %3413 = vmatpush1.xpose.msra.mxu0 0.0
    %3414 = vmatprep.subr.mxu0 0.0
    %3415 = vmatpush1.xpose.msra.mxu0 0.0
    %3416 = vmatprep.subr.mxu0 0.0
    %3417 = vmatpush1.xpose.msra.mxu0 0.0
    %3418 = vmatprep.mubr.f32.mxu0 0.0
    %3419 = vmatmul.mubr.f32.gmra.mrb[0].mxu0 %v3350
    %v3420 = vpop.f32.mrb[0].mxu0
    %v3421 = vadd.f32 0.0, %v3420
    %v3422 = vpop.f32.mrb[0].mxu0
    %3423 = vdwg.mxu0
    %v3425 = vunpack.c.l.s4 1983009808
    %v3426 = vunpack.c.0.s8 %v3425
    %v3427 = vlaneseq
    %v3428 = vshrl.u32 %v3427, 7
    %v3429 = vsub.s32 %v3426, %v3428
    %v3430 = vrot.slane %v1660, %v3429
    %3431 = vrot.lane.b32.xlu0 %v3430, 96
    %v3432 = vpop.permute.xlu0 %3431
    %v3433 = vsel %vm131, %v1660, 0
    %v3435 = vsel %vm131, %v3432, 0
    %3437 = vmatprep.subr.mxu0 0.0
    %3438 = vmatpush1.xpose.msra.mxu0 %v3435
    %3439 = vmatprep.subr.mxu0 0.0
    %3440 = vmatpush1.xpose.msra.mxu0 0.0
    %3441 = vmatprep.subr.mxu0 0.0
    %3442 = vmatpush1.xpose.msra.mxu0 0.0
    %3443 = vmatprep.subr.mxu0 0.0
    %3444 = vmatpush1.xpose.msra.mxu0 0.0
    %3445 = vmatprep.subr.mxu0 0.0
    %3446 = vmatpush1.xpose.msra.mxu0 0.0
    %3447 = vmatprep.subr.mxu0 0.0
    %3448 = vmatpush1.xpose.msra.mxu0 0.0
    %3449 = vmatprep.subr.mxu0 0.0
    %3450 = vmatpush1.xpose.msra.mxu0 0.0
    %3451 = vmatprep.subr.mxu0 0.0
    %3452 = vmatpush1.xpose.msra.mxu0 0.0
    %3453 = vmatprep.subr.mxu0 0.0
    %3454 = vmatpush1.xpose.msra.mxu0 0.0
    %3455 = vmatprep.subr.mxu0 0.0
    %3456 = vmatpush1.xpose.msra.mxu0 0.0
    %3457 = vmatprep.subr.mxu0 0.0
    %3458 = vmatpush1.xpose.msra.mxu0 0.0
    %3459 = vmatprep.subr.mxu0 0.0
    %3460 = vmatpush1.xpose.msra.mxu0 0.0
    %3461 = vmatprep.subr.mxu0 0.0
    %3462 = vmatpush1.xpose.msra.mxu0 0.0
    %3463 = vmatprep.subr.mxu0 0.0
    %3464 = vmatpush1.xpose.msra.mxu0 0.0
    %3465 = vmatprep.subr.mxu0 0.0
    %3466 = vmatpush1.xpose.msra.mxu0 0.0
    %3467 = vmatprep.subr.mxu0 0.0
    %3468 = vmatpush1.xpose.msra.mxu0 0.0
    %3469 = vmatprep.subr.mxu0 0.0
    %3470 = vmatpush1.xpose.msra.mxu0 0.0
    %3471 = vmatprep.subr.mxu0 0.0
    %3472 = vmatpush1.xpose.msra.mxu0 0.0
    %3473 = vmatprep.subr.mxu0 0.0
    %3474 = vmatpush1.xpose.msra.mxu0 0.0
    %3475 = vmatprep.subr.mxu0 0.0
    %3476 = vmatpush1.xpose.msra.mxu0 0.0
    %3477 = vmatprep.subr.mxu0 0.0
    %3478 = vmatpush1.xpose.msra.mxu0 0.0
    %3479 = vmatprep.subr.mxu0 0.0
    %3480 = vmatpush1.xpose.msra.mxu0 0.0
    %3481 = vmatprep.subr.mxu0 0.0
    %3482 = vmatpush1.xpose.msra.mxu0 0.0
    %3483 = vmatprep.subr.mxu0 0.0
    %3484 = vmatpush1.xpose.msra.mxu0 0.0
    %3485 = vmatprep.subr.mxu0 0.0
    %3486 = vmatpush1.xpose.msra.mxu0 0.0
    %3487 = vmatprep.subr.mxu0 0.0
    %3488 = vmatpush1.xpose.msra.mxu0 0.0
    %3489 = vmatprep.subr.mxu0 0.0
    %3490 = vmatpush1.xpose.msra.mxu0 0.0
    %3491 = vmatprep.subr.mxu0 0.0
    %3492 = vmatpush1.xpose.msra.mxu0 0.0
    %3493 = vmatprep.subr.mxu0 0.0
    %3494 = vmatpush1.xpose.msra.mxu0 0.0
    %3495 = vmatprep.subr.mxu0 0.0
    %3496 = vmatpush1.xpose.msra.mxu0 0.0
    %3497 = vmatprep.subr.mxu0 0.0
    %3498 = vmatpush1.xpose.msra.mxu0 0.0
    %3499 = vmatprep.subr.mxu0 0.0
    %3500 = vmatpush1.xpose.msra.mxu0 0.0
    %3501 = vmatprep.mubr.f32.mxu0 0.0
    %3502 = vmatmul.mubr.f32.gmra.mrb[0].mxu0 %v3433
    %v3503 = vpop.f32.mrb[0].mxu0
    %v3504 = vadd.f32 0.0, %v3503
    %v3505 = vpop.f32.mrb[0].mxu0
    %3506 = vdwg.mxu0
    %v3508 = vunpack.c.l.s4 1983009808
    %v3509 = vunpack.c.0.s8 %v3508
    %v3510 = vlaneseq
    %v3511 = vshrl.u32 %v3510, 7
    %v3512 = vsub.s32 %v3509, %v3511
    %v3513 = vrot.slane %v1662, %v3512
    %3514 = vrot.lane.b32.xlu0 %v3513, 96
    %v3515 = vpop.permute.xlu0 %3514
    %v3516 = vsel %vm131, %v1662, 0
    %v3518 = vsel %vm131, %v3515, 0
    %3520 = vmatprep.subr.mxu0 0.0
    %3521 = vmatpush1.xpose.msra.mxu0 %v3518
    %3522 = vmatprep.subr.mxu0 0.0
    %3523 = vmatpush1.xpose.msra.mxu0 0.0
    %3524 = vmatprep.subr.mxu0 0.0
    %3525 = vmatpush1.xpose.msra.mxu0 0.0
    %3526 = vmatprep.subr.mxu0 0.0
    %3527 = vmatpush1.xpose.msra.mxu0 0.0
    %3528 = vmatprep.subr.mxu0 0.0
    %3529 = vmatpush1.xpose.msra.mxu0 0.0
    %3530 = vmatprep.subr.mxu0 0.0
    %3531 = vmatpush1.xpose.msra.mxu0 0.0
    %3532 = vmatprep.subr.mxu0 0.0
    %3533 = vmatpush1.xpose.msra.mxu0 0.0
    %3534 = vmatprep.subr.mxu0 0.0
    %3535 = vmatpush1.xpose.msra.mxu0 0.0
    %3536 = vmatprep.subr.mxu0 0.0
    %3537 = vmatpush1.xpose.msra.mxu0 0.0
    %3538 = vmatprep.subr.mxu0 0.0
    %3539 = vmatpush1.xpose.msra.mxu0 0.0
    %3540 = vmatprep.subr.mxu0 0.0
    %3541 = vmatpush1.xpose.msra.mxu0 0.0
    %3542 = vmatprep.subr.mxu0 0.0
    %3543 = vmatpush1.xpose.msra.mxu0 0.0
    %3544 = vmatprep.subr.mxu0 0.0
    %3545 = vmatpush1.xpose.msra.mxu0 0.0
    %3546 = vmatprep.subr.mxu0 0.0
    %3547 = vmatpush1.xpose.msra.mxu0 0.0
    %3548 = vmatprep.subr.mxu0 0.0
    %3549 = vmatpush1.xpose.msra.mxu0 0.0
    %3550 = vmatprep.subr.mxu0 0.0
    %3551 = vmatpush1.xpose.msra.mxu0 0.0
    %3552 = vmatprep.subr.mxu0 0.0
    %3553 = vmatpush1.xpose.msra.mxu0 0.0
    %3554 = vmatprep.subr.mxu0 0.0
    %3555 = vmatpush1.xpose.msra.mxu0 0.0
    %3556 = vmatprep.subr.mxu0 0.0
    %3557 = vmatpush1.xpose.msra.mxu0 0.0
    %3558 = vmatprep.subr.mxu0 0.0
    %3559 = vmatpush1.xpose.msra.mxu0 0.0
    %3560 = vmatprep.subr.mxu0 0.0
    %3561 = vmatpush1.xpose.msra.mxu0 0.0
    %3562 = vmatprep.subr.mxu0 0.0
    %3563 = vmatpush1.xpose.msra.mxu0 0.0
    %3564 = vmatprep.subr.mxu0 0.0
    %3565 = vmatpush1.xpose.msra.mxu0 0.0
    %3566 = vmatprep.subr.mxu0 0.0
    %3567 = vmatpush1.xpose.msra.mxu0 0.0
    %3568 = vmatprep.subr.mxu0 0.0
    %3569 = vmatpush1.xpose.msra.mxu0 0.0
    %3570 = vmatprep.subr.mxu0 0.0
    %3571 = vmatpush1.xpose.msra.mxu0 0.0
    %3572 = vmatprep.subr.mxu0 0.0
    %3573 = vmatpush1.xpose.msra.mxu0 0.0
    %3574 = vmatprep.subr.mxu0 0.0
    %3575 = vmatpush1.xpose.msra.mxu0 0.0
    %3576 = vmatprep.subr.mxu0 0.0
    %3577 = vmatpush1.xpose.msra.mxu0 0.0
    %3578 = vmatprep.subr.mxu0 0.0
    %3579 = vmatpush1.xpose.msra.mxu0 0.0
    %3580 = vmatprep.subr.mxu0 0.0
    %3581 = vmatpush1.xpose.msra.mxu0 0.0
    %3582 = vmatprep.subr.mxu0 0.0
    %3583 = vmatpush1.xpose.msra.mxu0 0.0
    %3584 = vmatprep.mubr.f32.mxu0 0.0
    %3585 = vmatmul.mubr.f32.gmra.mrb[0].mxu0 %v3516
    %v3586 = vpop.f32.mrb[0].mxu0
    %v3587 = vadd.f32 0.0, %v3586
    %v3588 = vpop.f32.mrb[0].mxu0
    %3589 = vdwg.mxu0
    %v3591 = vunpack.c.l.s4 1983009808
    %v3592 = vunpack.c.0.s8 %v3591
    %v3593 = vlaneseq
    %v3594 = vshrl.u32 %v3593, 7
    %v3595 = vsub.s32 %v3592, %v3594
    %v3596 = vrot.slane %v1664, %v3595
    %3597 = vrot.lane.b32.xlu0 %v3596, 96
    %v3598 = vpop.permute.xlu0 %3597
    %v3599 = vsel %vm131, %v1664, 0
    %v3601 = vsel %vm131, %v3598, 0
    %3603 = vmatprep.subr.mxu0 0.0
    %3604 = vmatpush1.xpose.msra.mxu0 %v3601
    %3605 = vmatprep.subr.mxu0 0.0
    %3606 = vmatpush1.xpose.msra.mxu0 0.0
    %3607 = vmatprep.subr.mxu0 0.0
    %3608 = vmatpush1.xpose.msra.mxu0 0.0
    %3609 = vmatprep.subr.mxu0 0.0
    %3610 = vmatpush1.xpose.msra.mxu0 0.0
    %3611 = vmatprep.subr.mxu0 0.0
    %3612 = vmatpush1.xpose.msra.mxu0 0.0
    %3613 = vmatprep.subr.mxu0 0.0
    %3614 = vmatpush1.xpose.msra.mxu0 0.0
    %3615 = vmatprep.subr.mxu0 0.0
    %3616 = vmatpush1.xpose.msra.mxu0 0.0
    %3617 = vmatprep.subr.mxu0 0.0
    %3618 = vmatpush1.xpose.msra.mxu0 0.0
    %3619 = vmatprep.subr.mxu0 0.0
    %3620 = vmatpush1.xpose.msra.mxu0 0.0
    %3621 = vmatprep.subr.mxu0 0.0
    %3622 = vmatpush1.xpose.msra.mxu0 0.0
    %3623 = vmatprep.subr.mxu0 0.0
    %3624 = vmatpush1.xpose.msra.mxu0 0.0
    %3625 = vmatprep.subr.mxu0 0.0
    %3626 = vmatpush1.xpose.msra.mxu0 0.0
    %3627 = vmatprep.subr.mxu0 0.0
    %3628 = vmatpush1.xpose.msra.mxu0 0.0
    %3629 = vmatprep.subr.mxu0 0.0
    %3630 = vmatpush1.xpose.msra.mxu0 0.0
    %3631 = vmatprep.subr.mxu0 0.0
    %3632 = vmatpush1.xpose.msra.mxu0 0.0
    %3633 = vmatprep.subr.mxu0 0.0
    %3634 = vmatpush1.xpose.msra.mxu0 0.0
    %3635 = vmatprep.subr.mxu0 0.0
    %3636 = vmatpush1.xpose.msra.mxu0 0.0
    %3637 = vmatprep.subr.mxu0 0.0
    %3638 = vmatpush1.xpose.msra.mxu0 0.0
    %3639 = vmatprep.subr.mxu0 0.0
    %3640 = vmatpush1.xpose.msra.mxu0 0.0
    %3641 = vmatprep.subr.mxu0 0.0
    %3642 = vmatpush1.xpose.msra.mxu0 0.0
    %3643 = vmatprep.subr.mxu0 0.0
    %3644 = vmatpush1.xpose.msra.mxu0 0.0
    %3645 = vmatprep.subr.mxu0 0.0
    %3646 = vmatpush1.xpose.msra.mxu0 0.0
    %3647 = vmatprep.subr.mxu0 0.0
    %3648 = vmatpush1.xpose.msra.mxu0 0.0
    %3649 = vmatprep.subr.mxu0 0.0
    %3650 = vmatpush1.xpose.msra.mxu0 0.0
    %3651 = vmatprep.subr.mxu0 0.0
    %3652 = vmatpush1.xpose.msra.mxu0 0.0
    %3653 = vmatprep.subr.mxu0 0.0
    %3654 = vmatpush1.xpose.msra.mxu0 0.0
    %3655 = vmatprep.subr.mxu0 0.0
    %3656 = vmatpush1.xpose.msra.mxu0 0.0
    %3657 = vmatprep.subr.mxu0 0.0
    %3658 = vmatpush1.xpose.msra.mxu0 0.0
    %3659 = vmatprep.subr.mxu0 0.0
    %3660 = vmatpush1.xpose.msra.mxu0 0.0
    %3661 = vmatprep.subr.mxu0 0.0
    %3662 = vmatpush1.xpose.msra.mxu0 0.0
    %3663 = vmatprep.subr.mxu0 0.0
    %3664 = vmatpush1.xpose.msra.mxu0 0.0
    %3665 = vmatprep.subr.mxu0 0.0
    %3666 = vmatpush1.xpose.msra.mxu0 0.0
    %3667 = vmatprep.mubr.f32.mxu0 0.0
    %3668 = vmatmul.mubr.f32.gmra.mrb[0].mxu0 %v3599
    %v3669 = vpop.f32.mrb[0].mxu0
    %v3670 = vadd.f32 0.0, %v3669
    %v3671 = vpop.f32.mrb[0].mxu0
    %3672 = vdwg.mxu0
    %v3674 = vunpack.c.l.s4 1983009808
    %v3675 = vunpack.c.0.s8 %v3674
    %v3676 = vlaneseq
    %v3677 = vshrl.u32 %v3676, 7
    %v3678 = vsub.s32 %v3675, %v3677
    %v3679 = vrot.slane %v1666, %v3678
    %3680 = vrot.lane.b32.xlu0 %v3679, 96
    %v3681 = vpop.permute.xlu0 %3680
    %v3682 = vsel %vm131, %v1666, 0
    %v3684 = vsel %vm131, %v3681, 0
    %3686 = vmatprep.subr.mxu0 0.0
    %3687 = vmatpush1.xpose.msra.mxu0 %v3684
    %3688 = vmatprep.subr.mxu0 0.0
    %3689 = vmatpush1.xpose.msra.mxu0 0.0
    %3690 = vmatprep.subr.mxu0 0.0
    %3691 = vmatpush1.xpose.msra.mxu0 0.0
    %3692 = vmatprep.subr.mxu0 0.0
    %3693 = vmatpush1.xpose.msra.mxu0 0.0
    %3694 = vmatprep.subr.mxu0 0.0
    %3695 = vmatpush1.xpose.msra.mxu0 0.0
    %3696 = vmatprep.subr.mxu0 0.0
    %3697 = vmatpush1.xpose.msra.mxu0 0.0
    %3698 = vmatprep.subr.mxu0 0.0
    %3699 = vmatpush1.xpose.msra.mxu0 0.0
    %3700 = vmatprep.subr.mxu0 0.0
    %3701 = vmatpush1.xpose.msra.mxu0 0.0
    %3702 = vmatprep.subr.mxu0 0.0
    %3703 = vmatpush1.xpose.msra.mxu0 0.0
    %3704 = vmatprep.subr.mxu0 0.0
    %3705 = vmatpush1.xpose.msra.mxu0 0.0
    %3706 = vmatprep.subr.mxu0 0.0
    %3707 = vmatpush1.xpose.msra.mxu0 0.0
    %3708 = vmatprep.subr.mxu0 0.0
    %3709 = vmatpush1.xpose.msra.mxu0 0.0
    %3710 = vmatprep.subr.mxu0 0.0
    %3711 = vmatpush1.xpose.msra.mxu0 0.0
    %3712 = vmatprep.subr.mxu0 0.0
    %3713 = vmatpush1.xpose.msra.mxu0 0.0
    %3714 = vmatprep.subr.mxu0 0.0
    %3715 = vmatpush1.xpose.msra.mxu0 0.0
    %3716 = vmatprep.subr.mxu0 0.0
    %3717 = vmatpush1.xpose.msra.mxu0 0.0
    %3718 = vmatprep.subr.mxu0 0.0
    %3719 = vmatpush1.xpose.msra.mxu0 0.0
    %3720 = vmatprep.subr.mxu0 0.0
    %3721 = vmatpush1.xpose.msra.mxu0 0.0
    %3722 = vmatprep.subr.mxu0 0.0
    %3723 = vmatpush1.xpose.msra.mxu0 0.0
    %3724 = vmatprep.subr.mxu0 0.0
    %3725 = vmatpush1.xpose.msra.mxu0 0.0
    %3726 = vmatprep.subr.mxu0 0.0
    %3727 = vmatpush1.xpose.msra.mxu0 0.0
    %3728 = vmatprep.subr.mxu0 0.0
    %3729 = vmatpush1.xpose.msra.mxu0 0.0
    %3730 = vmatprep.subr.mxu0 0.0
    %3731 = vmatpush1.xpose.msra.mxu0 0.0
    %3732 = vmatprep.subr.mxu0 0.0
    %3733 = vmatpush1.xpose.msra.mxu0 0.0
    %3734 = vmatprep.subr.mxu0 0.0
    %3735 = vmatpush1.xpose.msra.mxu0 0.0
    %3736 = vmatprep.subr.mxu0 0.0
    %3737 = vmatpush1.xpose.msra.mxu0 0.0
    %3738 = vmatprep.subr.mxu0 0.0
    %3739 = vmatpush1.xpose.msra.mxu0 0.0
    %3740 = vmatprep.subr.mxu0 0.0
    %3741 = vmatpush1.xpose.msra.mxu0 0.0
    %3742 = vmatprep.subr.mxu0 0.0
    %3743 = vmatpush1.xpose.msra.mxu0 0.0
    %3744 = vmatprep.subr.mxu0 0.0
    %3745 = vmatpush1.xpose.msra.mxu0 0.0
    %3746 = vmatprep.subr.mxu0 0.0
    %3747 = vmatpush1.xpose.msra.mxu0 0.0
    %3748 = vmatprep.subr.mxu0 0.0
    %3749 = vmatpush1.xpose.msra.mxu0 0.0
    %3750 = vmatprep.mubr.f32.mxu0 0.0
    %3751 = vmatmul.mubr.f32.gmra.mrb[0].mxu0 %v3682
    %v3752 = vpop.f32.mrb[0].mxu0
    %v3753 = vadd.f32 0.0, %v3752
    %v3754 = vpop.f32.mrb[0].mxu0
    %3755 = vdwg.mxu0
    %v3757 = vunpack.c.l.s4 1983009808
    %v3758 = vunpack.c.0.s8 %v3757
    %v3759 = vlaneseq
    %v3760 = vshrl.u32 %v3759, 7
    %v3761 = vsub.s32 %v3758, %v3760
    %v3762 = vrot.slane %v1668, %v3761
    %3763 = vrot.lane.b32.xlu0 %v3762, 96
    %v3764 = vpop.permute.xlu0 %3763
    %v3765 = vsel %vm131, %v1668, 0
    %v3767 = vsel %vm131, %v3764, 0
    %3769 = vmatprep.subr.mxu0 0.0
    %3770 = vmatpush1.xpose.msra.mxu0 %v3767
    %3771 = vmatprep.subr.mxu0 0.0
    %3772 = vmatpush1.xpose.msra.mxu0 0.0
    %3773 = vmatprep.subr.mxu0 0.0
    %3774 = vmatpush1.xpose.msra.mxu0 0.0
    %3775 = vmatprep.subr.mxu0 0.0
    %3776 = vmatpush1.xpose.msra.mxu0 0.0
    %3777 = vmatprep.subr.mxu0 0.0
    %3778 = vmatpush1.xpose.msra.mxu0 0.0
    %3779 = vmatprep.subr.mxu0 0.0
    %3780 = vmatpush1.xpose.msra.mxu0 0.0
    %3781 = vmatprep.subr.mxu0 0.0
    %3782 = vmatpush1.xpose.msra.mxu0 0.0
    %3783 = vmatprep.subr.mxu0 0.0
    %3784 = vmatpush1.xpose.msra.mxu0 0.0
    %3785 = vmatprep.subr.mxu0 0.0
    %3786 = vmatpush1.xpose.msra.mxu0 0.0
    %3787 = vmatprep.subr.mxu0 0.0
    %3788 = vmatpush1.xpose.msra.mxu0 0.0
    %3789 = vmatprep.subr.mxu0 0.0
    %3790 = vmatpush1.xpose.msra.mxu0 0.0
    %3791 = vmatprep.subr.mxu0 0.0
    %3792 = vmatpush1.xpose.msra.mxu0 0.0
    %3793 = vmatprep.subr.mxu0 0.0
    %3794 = vmatpush1.xpose.msra.mxu0 0.0
    %3795 = vmatprep.subr.mxu0 0.0
    %3796 = vmatpush1.xpose.msra.mxu0 0.0
    %3797 = vmatprep.subr.mxu0 0.0
    %3798 = vmatpush1.xpose.msra.mxu0 0.0
    %3799 = vmatprep.subr.mxu0 0.0
    %3800 = vmatpush1.xpose.msra.mxu0 0.0
    %3801 = vmatprep.subr.mxu0 0.0
    %3802 = vmatpush1.xpose.msra.mxu0 0.0
    %3803 = vmatprep.subr.mxu0 0.0
    %3804 = vmatpush1.xpose.msra.mxu0 0.0
    %3805 = vmatprep.subr.mxu0 0.0
    %3806 = vmatpush1.xpose.msra.mxu0 0.0
    %3807 = vmatprep.subr.mxu0 0.0
    %3808 = vmatpush1.xpose.msra.mxu0 0.0
    %3809 = vmatprep.subr.mxu0 0.0
    %3810 = vmatpush1.xpose.msra.mxu0 0.0
    %3811 = vmatprep.subr.mxu0 0.0
    %3812 = vmatpush1.xpose.msra.mxu0 0.0
    %3813 = vmatprep.subr.mxu0 0.0
    %3814 = vmatpush1.xpose.msra.mxu0 0.0
    %3815 = vmatprep.subr.mxu0 0.0
    %3816 = vmatpush1.xpose.msra.mxu0 0.0
    %3817 = vmatprep.subr.mxu0 0.0
    %3818 = vmatpush1.xpose.msra.mxu0 0.0
    %3819 = vmatprep.subr.mxu0 0.0
    %3820 = vmatpush1.xpose.msra.mxu0 0.0
    %3821 = vmatprep.subr.mxu0 0.0
    %3822 = vmatpush1.xpose.msra.mxu0 0.0
    %3823 = vmatprep.subr.mxu0 0.0
    %3824 = vmatpush1.xpose.msra.mxu0 0.0
    %3825 = vmatprep.subr.mxu0 0.0
    %3826 = vmatpush1.xpose.msra.mxu0 0.0
    %3827 = vmatprep.subr.mxu0 0.0
    %3828 = vmatpush1.xpose.msra.mxu0 0.0
    %3829 = vmatprep.subr.mxu0 0.0
    %3830 = vmatpush1.xpose.msra.mxu0 0.0
    %3831 = vmatprep.subr.mxu0 0.0
    %3832 = vmatpush1.xpose.msra.mxu0 0.0
    %3833 = vmatprep.mubr.f32.mxu0 0.0
    %3834 = vmatmul.mubr.f32.gmra.mrb[0].mxu0 %v3765
    %v3835 = vpop.f32.mrb[0].mxu0
    %v3836 = vadd.f32 0.0, %v3835
    %v3837 = vpop.f32.mrb[0].mxu0
    %3838 = vdwg.mxu0
    %v3840 = vunpack.c.l.s4 1983009808
    %v3841 = vunpack.c.0.s8 %v3840
    %v3842 = vlaneseq
    %v3843 = vshrl.u32 %v3842, 7
    %v3844 = vsub.s32 %v3841, %v3843
    %v3845 = vrot.slane %v1670, %v3844
    %3846 = vrot.lane.b32.xlu0 %v3845, 96
    %v3847 = vpop.permute.xlu0 %3846
    %v3848 = vsel %vm131, %v1670, 0
    %v3850 = vsel %vm131, %v3847, 0
    %3852 = vmatprep.subr.mxu0 0.0
    %3853 = vmatpush1.xpose.msra.mxu0 %v3850
    %3854 = vmatprep.subr.mxu0 0.0
    %3855 = vmatpush1.xpose.msra.mxu0 0.0
    %3856 = vmatprep.subr.mxu0 0.0
    %3857 = vmatpush1.xpose.msra.mxu0 0.0
    %3858 = vmatprep.subr.mxu0 0.0
    %3859 = vmatpush1.xpose.msra.mxu0 0.0
    %3860 = vmatprep.subr.mxu0 0.0
    %3861 = vmatpush1.xpose.msra.mxu0 0.0
    %3862 = vmatprep.subr.mxu0 0.0
    %3863 = vmatpush1.xpose.msra.mxu0 0.0
    %3864 = vmatprep.subr.mxu0 0.0
    %3865 = vmatpush1.xpose.msra.mxu0 0.0
    %3866 = vmatprep.subr.mxu0 0.0
    %3867 = vmatpush1.xpose.msra.mxu0 0.0
    %3868 = vmatprep.subr.mxu0 0.0
    %3869 = vmatpush1.xpose.msra.mxu0 0.0
    %3870 = vmatprep.subr.mxu0 0.0
    %3871 = vmatpush1.xpose.msra.mxu0 0.0
    %3872 = vmatprep.subr.mxu0 0.0
    %3873 = vmatpush1.xpose.msra.mxu0 0.0
    %3874 = vmatprep.subr.mxu0 0.0
    %3875 = vmatpush1.xpose.msra.mxu0 0.0
    %3876 = vmatprep.subr.mxu0 0.0
    %3877 = vmatpush1.xpose.msra.mxu0 0.0
    %3878 = vmatprep.subr.mxu0 0.0
    %3879 = vmatpush1.xpose.msra.mxu0 0.0
    %3880 = vmatprep.subr.mxu0 0.0
    %3881 = vmatpush1.xpose.msra.mxu0 0.0
    %3882 = vmatprep.subr.mxu0 0.0
    %3883 = vmatpush1.xpose.msra.mxu0 0.0
    %3884 = vmatprep.subr.mxu0 0.0
    %3885 = vmatpush1.xpose.msra.mxu0 0.0
    %3886 = vmatprep.subr.mxu0 0.0
    %3887 = vmatpush1.xpose.msra.mxu0 0.0
    %3888 = vmatprep.subr.mxu0 0.0
    %3889 = vmatpush1.xpose.msra.mxu0 0.0
    %3890 = vmatprep.subr.mxu0 0.0
    %3891 = vmatpush1.xpose.msra.mxu0 0.0
    %3892 = vmatprep.subr.mxu0 0.0
    %3893 = vmatpush1.xpose.msra.mxu0 0.0
    %3894 = vmatprep.subr.mxu0 0.0
    %3895 = vmatpush1.xpose.msra.mxu0 0.0
    %3896 = vmatprep.subr.mxu0 0.0
    %3897 = vmatpush1.xpose.msra.mxu0 0.0
    %3898 = vmatprep.subr.mxu0 0.0
    %3899 = vmatpush1.xpose.msra.mxu0 0.0
    %3900 = vmatprep.subr.mxu0 0.0
    %3901 = vmatpush1.xpose.msra.mxu0 0.0
    %3902 = vmatprep.subr.mxu0 0.0
    %3903 = vmatpush1.xpose.msra.mxu0 0.0
    %3904 = vmatprep.subr.mxu0 0.0
    %3905 = vmatpush1.xpose.msra.mxu0 0.0
    %3906 = vmatprep.subr.mxu0 0.0
    %3907 = vmatpush1.xpose.msra.mxu0 0.0
    %3908 = vmatprep.subr.mxu0 0.0
    %3909 = vmatpush1.xpose.msra.mxu0 0.0
    %3910 = vmatprep.subr.mxu0 0.0
    %3911 = vmatpush1.xpose.msra.mxu0 0.0
    %3912 = vmatprep.subr.mxu0 0.0
    %3913 = vmatpush1.xpose.msra.mxu0 0.0
    %3914 = vmatprep.subr.mxu0 0.0
    %3915 = vmatpush1.xpose.msra.mxu0 0.0
    %3916 = vmatprep.mubr.f32.mxu0 0.0
    %3917 = vmatmul.mubr.f32.gmra.mrb[0].mxu0 %v3848
    %v3918 = vpop.f32.mrb[0].mxu0
    %v3919 = vadd.f32 0.0, %v3918
    %v3920 = vpop.f32.mrb[0].mxu0
    %3921 = vdwg.mxu0
    %v3923 = vunpack.c.l.s4 1983009808
    %v3924 = vunpack.c.0.s8 %v3923
    %v3925 = vlaneseq
    %v3926 = vshrl.u32 %v3925, 7
    %v3927 = vsub.s32 %v3924, %v3926
    %v3928 = vrot.slane %v1672, %v3927
    %3929 = vrot.lane.b32.xlu0 %v3928, 96
    %v3930 = vpop.permute.xlu0 %3929
    %v3931 = vsel %vm131, %v1672, 0
    %v3933 = vsel %vm131, %v3930, 0
    %3935 = vmatprep.subr.mxu0 0.0
    %3936 = vmatpush1.xpose.msra.mxu0 %v3933
    %3937 = vmatprep.subr.mxu0 0.0
    %3938 = vmatpush1.xpose.msra.mxu0 0.0
    %3939 = vmatprep.subr.mxu0 0.0
    %3940 = vmatpush1.xpose.msra.mxu0 0.0
    %3941 = vmatprep.subr.mxu0 0.0
    %3942 = vmatpush1.xpose.msra.mxu0 0.0
    %3943 = vmatprep.subr.mxu0 0.0
    %3944 = vmatpush1.xpose.msra.mxu0 0.0
    %3945 = vmatprep.subr.mxu0 0.0
    %3946 = vmatpush1.xpose.msra.mxu0 0.0
    %3947 = vmatprep.subr.mxu0 0.0
    %3948 = vmatpush1.xpose.msra.mxu0 0.0
    %3949 = vmatprep.subr.mxu0 0.0
    %3950 = vmatpush1.xpose.msra.mxu0 0.0
    %3951 = vmatprep.subr.mxu0 0.0
    %3952 = vmatpush1.xpose.msra.mxu0 0.0
    %3953 = vmatprep.subr.mxu0 0.0
    %3954 = vmatpush1.xpose.msra.mxu0 0.0
    %3955 = vmatprep.subr.mxu0 0.0
    %3956 = vmatpush1.xpose.msra.mxu0 0.0
    %3957 = vmatprep.subr.mxu0 0.0
    %3958 = vmatpush1.xpose.msra.mxu0 0.0
    %3959 = vmatprep.subr.mxu0 0.0
    %3960 = vmatpush1.xpose.msra.mxu0 0.0
    %3961 = vmatprep.subr.mxu0 0.0
    %3962 = vmatpush1.xpose.msra.mxu0 0.0
    %3963 = vmatprep.subr.mxu0 0.0
    %3964 = vmatpush1.xpose.msra.mxu0 0.0
    %3965 = vmatprep.subr.mxu0 0.0
    %3966 = vmatpush1.xpose.msra.mxu0 0.0
    %3967 = vmatprep.subr.mxu0 0.0
    %3968 = vmatpush1.xpose.msra.mxu0 0.0
    %3969 = vmatprep.subr.mxu0 0.0
    %3970 = vmatpush1.xpose.msra.mxu0 0.0
    %3971 = vmatprep.subr.mxu0 0.0
    %3972 = vmatpush1.xpose.msra.mxu0 0.0
    %3973 = vmatprep.subr.mxu0 0.0
    %3974 = vmatpush1.xpose.msra.mxu0 0.0
    %3975 = vmatprep.subr.mxu0 0.0
    %3976 = vmatpush1.xpose.msra.mxu0 0.0
    %3977 = vmatprep.subr.mxu0 0.0
    %3978 = vmatpush1.xpose.msra.mxu0 0.0
    %3979 = vmatprep.subr.mxu0 0.0
    %3980 = vmatpush1.xpose.msra.mxu0 0.0
    %3981 = vmatprep.subr.mxu0 0.0
    %3982 = vmatpush1.xpose.msra.mxu0 0.0
    %3983 = vmatprep.subr.mxu0 0.0
    %3984 = vmatpush1.xpose.msra.mxu0 0.0
    %3985 = vmatprep.subr.mxu0 0.0
    %3986 = vmatpush1.xpose.msra.mxu0 0.0
    %3987 = vmatprep.subr.mxu0 0.0
    %3988 = vmatpush1.xpose.msra.mxu0 0.0
    %3989 = vmatprep.subr.mxu0 0.0
    %3990 = vmatpush1.xpose.msra.mxu0 0.0
    %3991 = vmatprep.subr.mxu0 0.0
    %3992 = vmatpush1.xpose.msra.mxu0 0.0
    %3993 = vmatprep.subr.mxu0 0.0
    %3994 = vmatpush1.xpose.msra.mxu0 0.0
    %3995 = vmatprep.subr.mxu0 0.0
    %3996 = vmatpush1.xpose.msra.mxu0 0.0
    %3997 = vmatprep.subr.mxu0 0.0
    %3998 = vmatpush1.xpose.msra.mxu0 0.0
    %3999 = vmatprep.mubr.f32.mxu0 0.0
    %4000 = vmatmul.mubr.f32.gmra.mrb[0].mxu0 %v3931
    %v4001 = vpop.f32.mrb[0].mxu0
    %v4002 = vadd.f32 0.0, %v4001
    %v4003 = vpop.f32.mrb[0].mxu0
    %4004 = vdwg.mxu0
    %v4006 = vunpack.c.l.s4 1983009808
    %v4007 = vunpack.c.0.s8 %v4006
    %v4008 = vlaneseq
    %v4009 = vshrl.u32 %v4008, 7
    %v4010 = vsub.s32 %v4007, %v4009
    %v4011 = vrot.slane %v1674, %v4010
    %4012 = vrot.lane.b32.xlu0 %v4011, 96
    %v4013 = vpop.permute.xlu0 %4012
    %v4014 = vsel %vm131, %v1674, 0
    %v4016 = vsel %vm131, %v4013, 0
    %4018 = vmatprep.subr.mxu0 0.0
    %4019 = vmatpush1.xpose.msra.mxu0 %v4016
    %4020 = vmatprep.subr.mxu0 0.0
    %4021 = vmatpush1.xpose.msra.mxu0 0.0
    %4022 = vmatprep.subr.mxu0 0.0
    %4023 = vmatpush1.xpose.msra.mxu0 0.0
    %4024 = vmatprep.subr.mxu0 0.0
    %4025 = vmatpush1.xpose.msra.mxu0 0.0
    %4026 = vmatprep.subr.mxu0 0.0
    %4027 = vmatpush1.xpose.msra.mxu0 0.0
    %4028 = vmatprep.subr.mxu0 0.0
    %4029 = vmatpush1.xpose.msra.mxu0 0.0
    %4030 = vmatprep.subr.mxu0 0.0
    %4031 = vmatpush1.xpose.msra.mxu0 0.0
    %4032 = vmatprep.subr.mxu0 0.0
    %4033 = vmatpush1.xpose.msra.mxu0 0.0
    %4034 = vmatprep.subr.mxu0 0.0
    %4035 = vmatpush1.xpose.msra.mxu0 0.0
    %4036 = vmatprep.subr.mxu0 0.0
    %4037 = vmatpush1.xpose.msra.mxu0 0.0
    %4038 = vmatprep.subr.mxu0 0.0
    %4039 = vmatpush1.xpose.msra.mxu0 0.0
    %4040 = vmatprep.subr.mxu0 0.0
    %4041 = vmatpush1.xpose.msra.mxu0 0.0
    %4042 = vmatprep.subr.mxu0 0.0
    %4043 = vmatpush1.xpose.msra.mxu0 0.0
    %4044 = vmatprep.subr.mxu0 0.0
    %4045 = vmatpush1.xpose.msra.mxu0 0.0
    %4046 = vmatprep.subr.mxu0 0.0
    %4047 = vmatpush1.xpose.msra.mxu0 0.0
    %4048 = vmatprep.subr.mxu0 0.0
    %4049 = vmatpush1.xpose.msra.mxu0 0.0
    %4050 = vmatprep.subr.mxu0 0.0
    %4051 = vmatpush1.xpose.msra.mxu0 0.0
    %4052 = vmatprep.subr.mxu0 0.0
    %4053 = vmatpush1.xpose.msra.mxu0 0.0
    %4054 = vmatprep.subr.mxu0 0.0
    %4055 = vmatpush1.xpose.msra.mxu0 0.0
    %4056 = vmatprep.subr.mxu0 0.0
    %4057 = vmatpush1.xpose.msra.mxu0 0.0
    %4058 = vmatprep.subr.mxu0 0.0
    %4059 = vmatpush1.xpose.msra.mxu0 0.0
    %4060 = vmatprep.subr.mxu0 0.0
    %4061 = vmatpush1.xpose.msra.mxu0 0.0
    %4062 = vmatprep.subr.mxu0 0.0
    %4063 = vmatpush1.xpose.msra.mxu0 0.0
    %4064 = vmatprep.subr.mxu0 0.0
    %4065 = vmatpush1.xpose.msra.mxu0 0.0
    %4066 = vmatprep.subr.mxu0 0.0
    %4067 = vmatpush1.xpose.msra.mxu0 0.0
    %4068 = vmatprep.subr.mxu0 0.0
    %4069 = vmatpush1.xpose.msra.mxu0 0.0
    %4070 = vmatprep.subr.mxu0 0.0
    %4071 = vmatpush1.xpose.msra.mxu0 0.0
    %4072 = vmatprep.subr.mxu0 0.0
    %4073 = vmatpush1.xpose.msra.mxu0 0.0
    %4074 = vmatprep.subr.mxu0 0.0
    %4075 = vmatpush1.xpose.msra.mxu0 0.0
    %4076 = vmatprep.subr.mxu0 0.0
    %4077 = vmatpush1.xpose.msra.mxu0 0.0
    %4078 = vmatprep.subr.mxu0 0.0
    %4079 = vmatpush1.xpose.msra.mxu0 0.0
    %4080 = vmatprep.subr.mxu0 0.0
    %4081 = vmatpush1.xpose.msra.mxu0 0.0
    %4082 = vmatprep.mubr.f32.mxu0 0.0
    %4083 = vmatmul.mubr.f32.gmra.mrb[0].mxu0 %v4014
    %v4084 = vpop.f32.mrb[0].mxu0
    %v4085 = vadd.f32 0.0, %v4084
    %v4086 = vpop.f32.mrb[0].mxu0
    %4087 = vdwg.mxu0
    %v4089 = vunpack.c.l.s4 1983009808
    %v4090 = vunpack.c.0.s8 %v4089
    %v4091 = vlaneseq
    %v4092 = vshrl.u32 %v4091, 7
    %v4093 = vsub.s32 %v4090, %v4092
    %v4094 = vrot.slane %v1676, %v4093
    %4095 = vrot.lane.b32.xlu0 %v4094, 96
    %v4096 = vpop.permute.xlu0 %4095
    %v4097 = vsel %vm131, %v1676, 0
    %v4099 = vsel %vm131, %v4096, 0
    %4101 = vmatprep.subr.mxu0 0.0
    %4102 = vmatpush1.xpose.msra.mxu0 %v4099
    %4103 = vmatprep.subr.mxu0 0.0
    %4104 = vmatpush1.xpose.msra.mxu0 0.0
    %4105 = vmatprep.subr.mxu0 0.0
    %4106 = vmatpush1.xpose.msra.mxu0 0.0
    %4107 = vmatprep.subr.mxu0 0.0
    %4108 = vmatpush1.xpose.msra.mxu0 0.0
    %4109 = vmatprep.subr.mxu0 0.0
    %4110 = vmatpush1.xpose.msra.mxu0 0.0
    %4111 = vmatprep.subr.mxu0 0.0
    %4112 = vmatpush1.xpose.msra.mxu0 0.0
    %4113 = vmatprep.subr.mxu0 0.0
    %4114 = vmatpush1.xpose.msra.mxu0 0.0
    %4115 = vmatprep.subr.mxu0 0.0
    %4116 = vmatpush1.xpose.msra.mxu0 0.0
    %4117 = vmatprep.subr.mxu0 0.0
    %4118 = vmatpush1.xpose.msra.mxu0 0.0
    %4119 = vmatprep.subr.mxu0 0.0
    %4120 = vmatpush1.xpose.msra.mxu0 0.0
    %4121 = vmatprep.subr.mxu0 0.0
    %4122 = vmatpush1.xpose.msra.mxu0 0.0
    %4123 = vmatprep.subr.mxu0 0.0
    %4124 = vmatpush1.xpose.msra.mxu0 0.0
    %4125 = vmatprep.subr.mxu0 0.0
    %4126 = vmatpush1.xpose.msra.mxu0 0.0
    %4127 = vmatprep.subr.mxu0 0.0
    %4128 = vmatpush1.xpose.msra.mxu0 0.0
    %4129 = vmatprep.subr.mxu0 0.0
    %4130 = vmatpush1.xpose.msra.mxu0 0.0
    %4131 = vmatprep.subr.mxu0 0.0
    %4132 = vmatpush1.xpose.msra.mxu0 0.0
    %4133 = vmatprep.subr.mxu0 0.0
    %4134 = vmatpush1.xpose.msra.mxu0 0.0
    %4135 = vmatprep.subr.mxu0 0.0
    %4136 = vmatpush1.xpose.msra.mxu0 0.0
    %4137 = vmatprep.subr.mxu0 0.0
    %4138 = vmatpush1.xpose.msra.mxu0 0.0
    %4139 = vmatprep.subr.mxu0 0.0
    %4140 = vmatpush1.xpose.msra.mxu0 0.0
    %4141 = vmatprep.subr.mxu0 0.0
    %4142 = vmatpush1.xpose.msra.mxu0 0.0
    %4143 = vmatprep.subr.mxu0 0.0
    %4144 = vmatpush1.xpose.msra.mxu0 0.0
    %4145 = vmatprep.subr.mxu0 0.0
    %4146 = vmatpush1.xpose.msra.mxu0 0.0
    %4147 = vmatprep.subr.mxu0 0.0
    %4148 = vmatpush1.xpose.msra.mxu0 0.0
    %4149 = vmatprep.subr.mxu0 0.0
    %4150 = vmatpush1.xpose.msra.mxu0 0.0
    %4151 = vmatprep.subr.mxu0 0.0
    %4152 = vmatpush1.xpose.msra.mxu0 0.0
    %4153 = vmatprep.subr.mxu0 0.0
    %4154 = vmatpush1.xpose.msra.mxu0 0.0
    %4155 = vmatprep.subr.mxu0 0.0
    %4156 = vmatpush1.xpose.msra.mxu0 0.0
    %4157 = vmatprep.subr.mxu0 0.0
    %4158 = vmatpush1.xpose.msra.mxu0 0.0
    %4159 = vmatprep.subr.mxu0 0.0
    %4160 = vmatpush1.xpose.msra.mxu0 0.0
    %4161 = vmatprep.subr.mxu0 0.0
    %4162 = vmatpush1.xpose.msra.mxu0 0.0
    %4163 = vmatprep.subr.mxu0 0.0
    %4164 = vmatpush1.xpose.msra.mxu0 0.0
    %4165 = vmatprep.mubr.f32.mxu0 0.0
    %4166 = vmatmul.mubr.f32.gmra.mrb[0].mxu0 %v4097
    %v4167 = vpop.f32.mrb[0].mxu0
    %v4168 = vadd.f32 0.0, %v4167
    %v4169 = vpop.f32.mrb[0].mxu0
    %4170 = vdwg.mxu0
    %v4172 = vunpack.c.l.s4 1983009808
    %v4173 = vunpack.c.0.s8 %v4172
    %v4174 = vlaneseq
    %v4175 = vshrl.u32 %v4174, 7
    %v4176 = vsub.s32 %v4173, %v4175
    %v4177 = vrot.slane %v1678, %v4176
    %4178 = vrot.lane.b32.xlu0 %v4177, 96
    %v4179 = vpop.permute.xlu0 %4178
    %v4180 = vsel %vm131, %v1678, 0
    %v4182 = vsel %vm131, %v4179, 0
    %4184 = vmatprep.subr.mxu0 0.0
    %4185 = vmatpush1.xpose.msra.mxu0 %v4182
    %4186 = vmatprep.subr.mxu0 0.0
    %4187 = vmatpush1.xpose.msra.mxu0 0.0
    %4188 = vmatprep.subr.mxu0 0.0
    %4189 = vmatpush1.xpose.msra.mxu0 0.0
    %4190 = vmatprep.subr.mxu0 0.0
    %4191 = vmatpush1.xpose.msra.mxu0 0.0
    %4192 = vmatprep.subr.mxu0 0.0
    %4193 = vmatpush1.xpose.msra.mxu0 0.0
    %4194 = vmatprep.subr.mxu0 0.0
    %4195 = vmatpush1.xpose.msra.mxu0 0.0
    %4196 = vmatprep.subr.mxu0 0.0
    %4197 = vmatpush1.xpose.msra.mxu0 0.0
    %4198 = vmatprep.subr.mxu0 0.0
    %4199 = vmatpush1.xpose.msra.mxu0 0.0
    %4200 = vmatprep.subr.mxu0 0.0
    %4201 = vmatpush1.xpose.msra.mxu0 0.0
    %4202 = vmatprep.subr.mxu0 0.0
    %4203 = vmatpush1.xpose.msra.mxu0 0.0
    %4204 = vmatprep.subr.mxu0 0.0
    %4205 = vmatpush1.xpose.msra.mxu0 0.0
    %4206 = vmatprep.subr.mxu0 0.0
    %4207 = vmatpush1.xpose.msra.mxu0 0.0
    %4208 = vmatprep.subr.mxu0 0.0
    %4209 = vmatpush1.xpose.msra.mxu0 0.0
    %4210 = vmatprep.subr.mxu0 0.0
    %4211 = vmatpush1.xpose.msra.mxu0 0.0
    %4212 = vmatprep.subr.mxu0 0.0
    %4213 = vmatpush1.xpose.msra.mxu0 0.0
    %4214 = vmatprep.subr.mxu0 0.0
    %4215 = vmatpush1.xpose.msra.mxu0 0.0
    %4216 = vmatprep.subr.mxu0 0.0
    %4217 = vmatpush1.xpose.msra.mxu0 0.0
    %4218 = vmatprep.subr.mxu0 0.0
    %4219 = vmatpush1.xpose.msra.mxu0 0.0
    %4220 = vmatprep.subr.mxu0 0.0
    %4221 = vmatpush1.xpose.msra.mxu0 0.0
    %4222 = vmatprep.subr.mxu0 0.0
    %4223 = vmatpush1.xpose.msra.mxu0 0.0
    %4224 = vmatprep.subr.mxu0 0.0
    %4225 = vmatpush1.xpose.msra.mxu0 0.0
    %4226 = vmatprep.subr.mxu0 0.0
    %4227 = vmatpush1.xpose.msra.mxu0 0.0
    %4228 = vmatprep.subr.mxu0 0.0
    %4229 = vmatpush1.xpose.msra.mxu0 0.0
    %4230 = vmatprep.subr.mxu0 0.0
    %4231 = vmatpush1.xpose.msra.mxu0 0.0
    %4232 = vmatprep.subr.mxu0 0.0
    %4233 = vmatpush1.xpose.msra.mxu0 0.0
    %4234 = vmatprep.subr.mxu0 0.0
    %4235 = vmatpush1.xpose.msra.mxu0 0.0
    %4236 = vmatprep.subr.mxu0 0.0
    %4237 = vmatpush1.xpose.msra.mxu0 0.0
    %4238 = vmatprep.subr.mxu0 0.0
    %4239 = vmatpush1.xpose.msra.mxu0 0.0
    %4240 = vmatprep.subr.mxu0 0.0
    %4241 = vmatpush1.xpose.msra.mxu0 0.0
    %4242 = vmatprep.subr.mxu0 0.0
    %4243 = vmatpush1.xpose.msra.mxu0 0.0
    %4244 = vmatprep.subr.mxu0 0.0
    %4245 = vmatpush1.xpose.msra.mxu0 0.0
    %4246 = vmatprep.subr.mxu0 0.0
    %4247 = vmatpush1.xpose.msra.mxu0 0.0
    %4248 = vmatprep.mubr.f32.mxu0 0.0
    %4249 = vmatmul.mubr.f32.gmra.mrb[0].mxu0 %v4180
    %v4250 = vpop.f32.mrb[0].mxu0
    %v4251 = vadd.f32 0.0, %v4250
    %v4252 = vpop.f32.mrb[0].mxu0
    %4253 = vdwg.mxu0
    %v4255 = vunpack.c.l.s4 1983009808
    %v4256 = vunpack.c.0.s8 %v4255
    %v4257 = vlaneseq
    %v4258 = vshrl.u32 %v4257, 7
    %v4259 = vsub.s32 %v4256, %v4258
    %v4260 = vrot.slane %v1680, %v4259
    %4261 = vrot.lane.b32.xlu0 %v4260, 96
    %v4262 = vpop.permute.xlu0 %4261
    %v4263 = vsel %vm131, %v1680, 0
    %v4265 = vsel %vm131, %v4262, 0
    %4267 = vmatprep.subr.mxu0 0.0
    %4268 = vmatpush1.xpose.msra.mxu0 %v4265
    %4269 = vmatprep.subr.mxu0 0.0
    %4270 = vmatpush1.xpose.msra.mxu0 0.0
    %4271 = vmatprep.subr.mxu0 0.0
    %4272 = vmatpush1.xpose.msra.mxu0 0.0
    %4273 = vmatprep.subr.mxu0 0.0
    %4274 = vmatpush1.xpose.msra.mxu0 0.0
    %4275 = vmatprep.subr.mxu0 0.0
    %4276 = vmatpush1.xpose.msra.mxu0 0.0
    %4277 = vmatprep.subr.mxu0 0.0
    %4278 = vmatpush1.xpose.msra.mxu0 0.0
    %4279 = vmatprep.subr.mxu0 0.0
    %4280 = vmatpush1.xpose.msra.mxu0 0.0
    %4281 = vmatprep.subr.mxu0 0.0
    %4282 = vmatpush1.xpose.msra.mxu0 0.0
    %4283 = vmatprep.subr.mxu0 0.0
    %4284 = vmatpush1.xpose.msra.mxu0 0.0
    %4285 = vmatprep.subr.mxu0 0.0
    %4286 = vmatpush1.xpose.msra.mxu0 0.0
    %4287 = vmatprep.subr.mxu0 0.0
    %4288 = vmatpush1.xpose.msra.mxu0 0.0
    %4289 = vmatprep.subr.mxu0 0.0
    %4290 = vmatpush1.xpose.msra.mxu0 0.0
    %4291 = vmatprep.subr.mxu0 0.0
    %4292 = vmatpush1.xpose.msra.mxu0 0.0
    %4293 = vmatprep.subr.mxu0 0.0
    %4294 = vmatpush1.xpose.msra.mxu0 0.0
    %4295 = vmatprep.subr.mxu0 0.0
    %4296 = vmatpush1.xpose.msra.mxu0 0.0
    %4297 = vmatprep.subr.mxu0 0.0
    %4298 = vmatpush1.xpose.msra.mxu0 0.0
    %4299 = vmatprep.subr.mxu0 0.0
    %4300 = vmatpush1.xpose.msra.mxu0 0.0
    %4301 = vmatprep.subr.mxu0 0.0
    %4302 = vmatpush1.xpose.msra.mxu0 0.0
    %4303 = vmatprep.subr.mxu0 0.0
    %4304 = vmatpush1.xpose.msra.mxu0 0.0
    %4305 = vmatprep.subr.mxu0 0.0
    %4306 = vmatpush1.xpose.msra.mxu0 0.0
    %4307 = vmatprep.subr.mxu0 0.0
    %4308 = vmatpush1.xpose.msra.mxu0 0.0
    %4309 = vmatprep.subr.mxu0 0.0
    %4310 = vmatpush1.xpose.msra.mxu0 0.0
    %4311 = vmatprep.subr.mxu0 0.0
    %4312 = vmatpush1.xpose.msra.mxu0 0.0
    %4313 = vmatprep.subr.mxu0 0.0
    %4314 = vmatpush1.xpose.msra.mxu0 0.0
    %4315 = vmatprep.subr.mxu0 0.0
    %4316 = vmatpush1.xpose.msra.mxu0 0.0
    %4317 = vmatprep.subr.mxu0 0.0
    %4318 = vmatpush1.xpose.msra.mxu0 0.0
    %4319 = vmatprep.subr.mxu0 0.0
    %4320 = vmatpush1.xpose.msra.mxu0 0.0
    %4321 = vmatprep.subr.mxu0 0.0
    %4322 = vmatpush1.xpose.msra.mxu0 0.0
    %4323 = vmatprep.subr.mxu0 0.0
    %4324 = vmatpush1.xpose.msra.mxu0 0.0
    %4325 = vmatprep.subr.mxu0 0.0
    %4326 = vmatpush1.xpose.msra.mxu0 0.0
    %4327 = vmatprep.subr.mxu0 0.0
    %4328 = vmatpush1.xpose.msra.mxu0 0.0
    %4329 = vmatprep.subr.mxu0 0.0
    %4330 = vmatpush1.xpose.msra.mxu0 0.0
    %4331 = vmatprep.mubr.f32.mxu0 0.0
    %4332 = vmatmul.mubr.f32.gmra.mrb[0].mxu0 %v4263
    %v4333 = vpop.f32.mrb[0].mxu0
    %v4334 = vadd.f32 0.0, %v4333
    %v4335 = vpop.f32.mrb[0].mxu0
    %4336 = vdwg.mxu0
    %v4337 = vmul.f32 %v1761, 0.35355338
    %v4338 = vmul.f32 %v1844, 0.35355338
    %v4339 = vmul.f32 %v1927, 0.35355338
    %v4340 = vmul.f32 %v2010, 0.35355338
    %v4341 = vmul.f32 %v2093, 0.35355338
    %v4342 = vmul.f32 %v2176, 0.35355338
    %v4343 = vmul.f32 %v2259, 0.35355338
    %v4344 = vmul.f32 %v2342, 0.35355338
    %v4345 = vmul.f32 %v2425, 0.35355338
    %v4346 = vmul.f32 %v2508, 0.35355338
    %v4347 = vmul.f32 %v2591, 0.35355338
    %v4348 = vmul.f32 %v2674, 0.35355338
    %v4349 = vmul.f32 %v2757, 0.35355338
    %v4350 = vmul.f32 %v2840, 0.35355338
    %v4351 = vmul.f32 %v2923, 0.35355338
    %v4352 = vmul.f32 %v3006, 0.35355338
    %v4353 = vmul.f32 %v3089, 0.35355338
    %v4354 = vmul.f32 %v3172, 0.35355338
    %v4355 = vmul.f32 %v3255, 0.35355338
    %v4356 = vmul.f32 %v3338, 0.35355338
    %v4357 = vmul.f32 %v3421, 0.35355338
    %v4358 = vmul.f32 %v3504, 0.35355338
    %v4359 = vmul.f32 %v3587, 0.35355338
    %v4360 = vmul.f32 %v3670, 0.35355338
    %v4361 = vmul.f32 %v3753, 0.35355338
    %v4362 = vmul.f32 %v3836, 0.35355338
    %v4363 = vmul.f32 %v3919, 0.35355338
    %v4364 = vmul.f32 %v4002, 0.35355338
    %v4365 = vmul.f32 %v4085, 0.35355338
    %v4366 = vmul.f32 %v4168, 0.35355338
    %v4367 = vmul.f32 %v4251, 0.35355338
    %v4368 = vmul.f32 %v4334, 0.35355338
    %vm4369 = vcmask 9216
    %v4370 = vsel %vm4369, %v4337, -inf
    %4371 = vmax.xlane.f32.xlu0 %v4370
    %v4372 = vpop.xlane.xlu0 %4371
    %v4373 = vsel %vm4369, %v4338, -inf
    %4374 = vmax.xlane.f32.xlu0 %v4373
    %v4375 = vpop.xlane.xlu0 %4374
    %v4376 = vsel %vm4369, %v4339, -inf
    %4377 = vmax.xlane.f32.xlu0 %v4376
    %v4378 = vpop.xlane.xlu0 %4377
    %v4379 = vsel %vm4369, %v4340, -inf
    %4380 = vmax.xlane.f32.xlu0 %v4379
    %v4381 = vpop.xlane.xlu0 %4380
    %v4382 = vsel %vm4369, %v4341, -inf
    %4383 = vmax.xlane.f32.xlu0 %v4382
    %v4384 = vpop.xlane.xlu0 %4383
    %v4385 = vsel %vm4369, %v4342, -inf
    %4386 = vmax.xlane.f32.xlu0 %v4385
    %v4387 = vpop.xlane.xlu0 %4386
    %v4388 = vsel %vm4369, %v4343, -inf
    %4389 = vmax.xlane.f32.xlu0 %v4388
    %v4390 = vpop.xlane.xlu0 %4389
    %v4391 = vsel %vm4369, %v4344, -inf
    %4392 = vmax.xlane.f32.xlu0 %v4391
    %v4393 = vpop.xlane.xlu0 %4392
    %v4394 = vsel %vm4369, %v4345, -inf
    %4395 = vmax.xlane.f32.xlu0 %v4394
    %v4396 = vpop.xlane.xlu0 %4395
    %v4397 = vsel %vm4369, %v4346, -inf
    %4398 = vmax.xlane.f32.xlu0 %v4397
    %v4399 = vpop.xlane.xlu0 %4398
    %v4400 = vsel %vm4369, %v4347, -inf
    %4401 = vmax.xlane.f32.xlu0 %v4400
    %v4402 = vpop.xlane.xlu0 %4401
    %v4403 = vsel %vm4369, %v4348, -inf
    %4404 = vmax.xlane.f32.xlu0 %v4403
    %v4405 = vpop.xlane.xlu0 %4404
    %v4406 = vsel %vm4369, %v4349, -inf
    %4407 = vmax.xlane.f32.xlu0 %v4406
    %v4408 = vpop.xlane.xlu0 %4407
    %v4409 = vsel %vm4369, %v4350, -inf
    %4410 = vmax.xlane.f32.xlu0 %v4409
    %v4411 = vpop.xlane.xlu0 %4410
    %v4412 = vsel %vm4369, %v4351, -inf
    %4413 = vmax.xlane.f32.xlu0 %v4412
    %v4414 = vpop.xlane.xlu0 %4413
    %v4415 = vsel %vm4369, %v4352, -inf
    %4416 = vmax.xlane.f32.xlu0 %v4415
    %v4417 = vpop.xlane.xlu0 %4416
    %v4418 = vsel %vm4369, %v4353, -inf
    %4419 = vmax.xlane.f32.xlu0 %v4418
    %v4420 = vpop.xlane.xlu0 %4419
    %v4421 = vsel %vm4369, %v4354, -inf
    %4422 = vmax.xlane.f32.xlu0 %v4421
    %v4423 = vpop.xlane.xlu0 %4422
    %v4424 = vsel %vm4369, %v4355, -inf
    %4425 = vmax.xlane.f32.xlu0 %v4424
    %v4426 = vpop.xlane.xlu0 %4425
    %v4427 = vsel %vm4369, %v4356, -inf
    %4428 = vmax.xlane.f32.xlu0 %v4427
    %v4429 = vpop.xlane.xlu0 %4428
    %v4430 = vsel %vm4369, %v4357, -inf
    %4431 = vmax.xlane.f32.xlu0 %v4430
    %v4432 = vpop.xlane.xlu0 %4431
    %v4433 = vsel %vm4369, %v4358, -inf
    %4434 = vmax.xlane.f32.xlu0 %v4433
    %v4435 = vpop.xlane.xlu0 %4434
    %v4436 = vsel %vm4369, %v4359, -inf
    %4437 = vmax.xlane.f32.xlu0 %v4436
    %v4438 = vpop.xlane.xlu0 %4437
    %v4439 = vsel %vm4369, %v4360, -inf
    %4440 = vmax.xlane.f32.xlu0 %v4439
    %v4441 = vpop.xlane.xlu0 %4440
    %v4442 = vsel %vm4369, %v4361, -inf
    %4443 = vmax.xlane.f32.xlu0 %v4442
    %v4444 = vpop.xlane.xlu0 %4443
    %v4445 = vsel %vm4369, %v4362, -inf
    %4446 = vmax.xlane.f32.xlu0 %v4445
    %v4447 = vpop.xlane.xlu0 %4446
    %v4448 = vsel %vm4369, %v4363, -inf
    %4449 = vmax.xlane.f32.xlu0 %v4448
    %v4450 = vpop.xlane.xlu0 %4449
    %v4451 = vsel %vm4369, %v4364, -inf
    %4452 = vmax.xlane.f32.xlu0 %v4451
    %v4453 = vpop.xlane.xlu0 %4452
    %v4454 = vsel %vm4369, %v4365, -inf
    %4455 = vmax.xlane.f32.xlu0 %v4454
    %v4456 = vpop.xlane.xlu0 %4455
    %v4457 = vsel %vm4369, %v4366, -inf
    %4458 = vmax.xlane.f32.xlu0 %v4457
    %v4459 = vpop.xlane.xlu0 %4458
    %v4460 = vsel %vm4369, %v4367, -inf
    %4461 = vmax.xlane.f32.xlu0 %v4460
    %v4462 = vpop.xlane.xlu0 %4461
    %v4463 = vsel %vm4369, %v4368, -inf
    %4464 = vmax.xlane.f32.xlu0 %v4463
    %v4465 = vpop.xlane.xlu0 %4464
    %v4466 = vsub.f32 %v4337, %v4372
    %v4467 = vsub.f32 %v4338, %v4375
    %v4468 = vsub.f32 %v4339, %v4378
    %v4469 = vsub.f32 %v4340, %v4381
    %v4470 = vsub.f32 %v4341, %v4384
    %v4471 = vsub.f32 %v4342, %v4387
    %v4472 = vsub.f32 %v4343, %v4390
    %v4473 = vsub.f32 %v4344, %v4393
    %v4474 = vsub.f32 %v4345, %v4396
    %v4475 = vsub.f32 %v4346, %v4399
    %v4476 = vsub.f32 %v4347, %v4402
    %v4477 = vsub.f32 %v4348, %v4405
    %v4478 = vsub.f32 %v4349, %v4408
    %v4479 = vsub.f32 %v4350, %v4411
    %v4480 = vsub.f32 %v4351, %v4414
    %v4481 = vsub.f32 %v4352, %v4417
    %v4482 = vsub.f32 %v4353, %v4420
    %v4483 = vsub.f32 %v4354, %v4423
    %v4484 = vsub.f32 %v4355, %v4426
    %v4485 = vsub.f32 %v4356, %v4429
    %v4486 = vsub.f32 %v4357, %v4432
    %v4487 = vsub.f32 %v4358, %v4435
    %v4488 = vsub.f32 %v4359, %v4438
    %v4489 = vsub.f32 %v4360, %v4441
    %v4490 = vsub.f32 %v4361, %v4444
    %v4491 = vsub.f32 %v4362, %v4447
    %v4492 = vsub.f32 %v4363, %v4450
    %v4493 = vsub.f32 %v4364, %v4453
    %v4494 = vsub.f32 %v4365, %v4456
    %v4495 = vsub.f32 %v4366, %v4459
    %v4496 = vsub.f32 %v4367, %v4462
    %v4497 = vsub.f32 %v4368, %v4465
    %v4498 = vmul.f32 %v4466, 1.442695
    %v4499 = vpow.pop %v4498
    %v4500 = vmul.f32 %v4467, 1.442695
    %v4501 = vpow.pop %v4500
    %v4502 = vmul.f32 %v4468, 1.442695
    %v4503 = vpow.pop %v4502
    %v4504 = vmul.f32 %v4469, 1.442695
    %v4505 = vpow.pop %v4504
    %v4506 = vmul.f32 %v4470, 1.442695
    %v4507 = vpow.pop %v4506
    %v4508 = vmul.f32 %v4471, 1.442695
    %v4509 = vpow.pop %v4508
    %v4510 = vmul.f32 %v4472, 1.442695
    %v4511 = vpow.pop %v4510
    %v4512 = vmul.f32 %v4473, 1.442695
    %v4513 = vpow.pop %v4512
    %v4514 = vmul.f32 %v4474, 1.442695
    %v4515 = vpow.pop %v4514
    %v4516 = vmul.f32 %v4475, 1.442695
    %v4517 = vpow.pop %v4516
    %v4518 = vmul.f32 %v4476, 1.442695
    %v4519 = vpow.pop %v4518
    %v4520 = vmul.f32 %v4477, 1.442695
    %v4521 = vpow.pop %v4520
    %v4522 = vmul.f32 %v4478, 1.442695
    %v4523 = vpow.pop %v4522
    %v4524 = vmul.f32 %v4479, 1.442695
    %v4525 = vpow.pop %v4524
    %v4526 = vmul.f32 %v4480, 1.442695
    %v4527 = vpow.pop %v4526
    %v4528 = vmul.f32 %v4481, 1.442695
    %v4529 = vpow.pop %v4528
    %v4530 = vmul.f32 %v4482, 1.442695
    %v4531 = vpow.pop %v4530
    %v4532 = vmul.f32 %v4483, 1.442695
    %v4533 = vpow.pop %v4532
    %v4534 = vmul.f32 %v4484, 1.442695
    %v4535 = vpow.pop %v4534
    %v4536 = vmul.f32 %v4485, 1.442695
    %v4537 = vpow.pop %v4536
    %v4538 = vmul.f32 %v4486, 1.442695
    %v4539 = vpow.pop %v4538
    %v4540 = vmul.f32 %v4487, 1.442695
    %v4541 = vpow.pop %v4540
    %v4542 = vmul.f32 %v4488, 1.442695
    %v4543 = vpow.pop %v4542
    %v4544 = vmul.f32 %v4489, 1.442695
    %v4545 = vpow.pop %v4544
    %v4546 = vmul.f32 %v4490, 1.442695
    %v4547 = vpow.pop %v4546
    %v4548 = vmul.f32 %v4491, 1.442695
    %v4549 = vpow.pop %v4548
    %v4550 = vmul.f32 %v4492, 1.442695
    %v4551 = vpow.pop %v4550
    %v4552 = vmul.f32 %v4493, 1.442695
    %v4553 = vpow.pop %v4552
    %v4554 = vmul.f32 %v4494, 1.442695
    %v4555 = vpow.pop %v4554
    %v4556 = vmul.f32 %v4495, 1.442695
    %v4557 = vpow.pop %v4556
    %v4558 = vmul.f32 %v4496, 1.442695
    %v4559 = vpow.pop %v4558
    %v4560 = vmul.f32 %v4497, 1.442695
    %v4561 = vpow.pop %v4560
    %v4562 = vsel %vm4369, %v4499, 0.0
    %4563 = vadd.xlane.f32.xlu0 %v4562
    %v4564 = vpop.xlane.xlu0 %4563
    %v4565 = vsel %vm4369, %v4501, 0.0
    %4566 = vadd.xlane.f32.xlu0 %v4565
    %v4567 = vpop.xlane.xlu0 %4566
    %v4568 = vsel %vm4369, %v4503, 0.0
    %4569 = vadd.xlane.f32.xlu0 %v4568
    %v4570 = vpop.xlane.xlu0 %4569
    %v4571 = vsel %vm4369, %v4505, 0.0
    %4572 = vadd.xlane.f32.xlu0 %v4571
    %v4573 = vpop.xlane.xlu0 %4572
    %v4574 = vsel %vm4369, %v4507, 0.0
    %4575 = vadd.xlane.f32.xlu0 %v4574
    %v4576 = vpop.xlane.xlu0 %4575
    %v4577 = vsel %vm4369, %v4509, 0.0
    %4578 = vadd.xlane.f32.xlu0 %v4577
    %v4579 = vpop.xlane.xlu0 %4578
    %v4580 = vsel %vm4369, %v4511, 0.0
    %4581 = vadd.xlane.f32.xlu0 %v4580
    %v4582 = vpop.xlane.xlu0 %4581
    %v4583 = vsel %vm4369, %v4513, 0.0
    %4584 = vadd.xlane.f32.xlu0 %v4583
    %v4585 = vpop.xlane.xlu0 %4584
    %v4586 = vsel %vm4369, %v4515, 0.0
    %4587 = vadd.xlane.f32.xlu0 %v4586
    %v4588 = vpop.xlane.xlu0 %4587
    %v4589 = vsel %vm4369, %v4517, 0.0
    %4590 = vadd.xlane.f32.xlu0 %v4589
    %v4591 = vpop.xlane.xlu0 %4590
    %v4592 = vsel %vm4369, %v4519, 0.0
    %4593 = vadd.xlane.f32.xlu0 %v4592
    %v4594 = vpop.xlane.xlu0 %4593
    %v4595 = vsel %vm4369, %v4521, 0.0
    %4596 = vadd.xlane.f32.xlu0 %v4595
    %v4597 = vpop.xlane.xlu0 %4596
    %v4598 = vsel %vm4369, %v4523, 0.0
    %4599 = vadd.xlane.f32.xlu0 %v4598
    %v4600 = vpop.xlane.xlu0 %4599
    %v4601 = vsel %vm4369, %v4525, 0.0
    %4602 = vadd.xlane.f32.xlu0 %v4601
    %v4603 = vpop.xlane.xlu0 %4602
    %v4604 = vsel %vm4369, %v4527, 0.0
    %4605 = vadd.xlane.f32.xlu0 %v4604
    %v4606 = vpop.xlane.xlu0 %4605
    %v4607 = vsel %vm4369, %v4529, 0.0
    %4608 = vadd.xlane.f32.xlu0 %v4607
    %v4609 = vpop.xlane.xlu0 %4608
    %v4610 = vsel %vm4369, %v4531, 0.0
    %4611 = vadd.xlane.f32.xlu0 %v4610
    %v4612 = vpop.xlane.xlu0 %4611
    %v4613 = vsel %vm4369, %v4533, 0.0
    %4614 = vadd.xlane.f32.xlu0 %v4613
    %v4615 = vpop.xlane.xlu0 %4614
    %v4616 = vsel %vm4369, %v4535, 0.0
    %4617 = vadd.xlane.f32.xlu0 %v4616
    %v4618 = vpop.xlane.xlu0 %4617
    %v4619 = vsel %vm4369, %v4537, 0.0
    %4620 = vadd.xlane.f32.xlu0 %v4619
    %v4621 = vpop.xlane.xlu0 %4620
    %v4622 = vsel %vm4369, %v4539, 0.0
    %4623 = vadd.xlane.f32.xlu0 %v4622
    %v4624 = vpop.xlane.xlu0 %4623
    %v4625 = vsel %vm4369, %v4541, 0.0
    %4626 = vadd.xlane.f32.xlu0 %v4625
    %v4627 = vpop.xlane.xlu0 %4626
    %v4628 = vsel %vm4369, %v4543, 0.0
    %4629 = vadd.xlane.f32.xlu0 %v4628
    %v4630 = vpop.xlane.xlu0 %4629
    %v4631 = vsel %vm4369, %v4545, 0.0
    %4632 = vadd.xlane.f32.xlu0 %v4631
    %v4633 = vpop.xlane.xlu0 %4632
    %v4634 = vsel %vm4369, %v4547, 0.0
    %4635 = vadd.xlane.f32.xlu0 %v4634
    %v4636 = vpop.xlane.xlu0 %4635
    %v4637 = vsel %vm4369, %v4549, 0.0
    %4638 = vadd.xlane.f32.xlu0 %v4637
    %v4639 = vpop.xlane.xlu0 %4638
    %v4640 = vsel %vm4369, %v4551, 0.0
    %4641 = vadd.xlane.f32.xlu0 %v4640
    %v4642 = vpop.xlane.xlu0 %4641
    %v4643 = vsel %vm4369, %v4553, 0.0
    %4644 = vadd.xlane.f32.xlu0 %v4643
    %v4645 = vpop.xlane.xlu0 %4644
    %v4646 = vsel %vm4369, %v4555, 0.0
    %4647 = vadd.xlane.f32.xlu0 %v4646
    %v4648 = vpop.xlane.xlu0 %4647
    %v4649 = vsel %vm4369, %v4557, 0.0
    %4650 = vadd.xlane.f32.xlu0 %v4649
    %v4651 = vpop.xlane.xlu0 %4650
    %v4652 = vsel %vm4369, %v4559, 0.0
    %4653 = vadd.xlane.f32.xlu0 %v4652
    %v4654 = vpop.xlane.xlu0 %4653
    %v4655 = vsel %vm4369, %v4561, 0.0
    %4656 = vadd.xlane.f32.xlu0 %v4655
    %v4657 = vpop.xlane.xlu0 %4656
    %v4658 = vrcp.pop %v4564
    %v4659 = vmul.f32 %v4499, %v4658
    %v4660 = vrcp.pop %v4567
    %v4661 = vmul.f32 %v4501, %v4660
    %v4662 = vrcp.pop %v4570
    %v4663 = vmul.f32 %v4503, %v4662
    %v4664 = vrcp.pop %v4573
    %v4665 = vmul.f32 %v4505, %v4664
    %v4666 = vrcp.pop %v4576
    %v4667 = vmul.f32 %v4507, %v4666
    %v4668 = vrcp.pop %v4579
    %v4669 = vmul.f32 %v4509, %v4668
    %v4670 = vrcp.pop %v4582
    %v4671 = vmul.f32 %v4511, %v4670
    %v4672 = vrcp.pop %v4585
    %v4673 = vmul.f32 %v4513, %v4672
    %v4674 = vrcp.pop %v4588
    %v4675 = vmul.f32 %v4515, %v4674
    %v4676 = vrcp.pop %v4591
    %v4677 = vmul.f32 %v4517, %v4676
    %v4678 = vrcp.pop %v4594
    %v4679 = vmul.f32 %v4519, %v4678
    %v4680 = vrcp.pop %v4597
    %v4681 = vmul.f32 %v4521, %v4680
    %v4682 = vrcp.pop %v4600
    %v4683 = vmul.f32 %v4523, %v4682
    %v4684 = vrcp.pop %v4603
    %v4685 = vmul.f32 %v4525, %v4684
    %v4686 = vrcp.pop %v4606
    %v4687 = vmul.f32 %v4527, %v4686
    %v4688 = vrcp.pop %v4609
    %v4689 = vmul.f32 %v4529, %v4688
    %v4690 = vrcp.pop %v4612
    %v4691 = vmul.f32 %v4531, %v4690
    %v4692 = vrcp.pop %v4615
    %v4693 = vmul.f32 %v4533, %v4692
    %v4694 = vrcp.pop %v4618
    %v4695 = vmul.f32 %v4535, %v4694
    %v4696 = vrcp.pop %v4621
    %v4697 = vmul.f32 %v4537, %v4696
    %v4698 = vrcp.pop %v4624
    %v4699 = vmul.f32 %v4539, %v4698
    %v4700 = vrcp.pop %v4627
    %v4701 = vmul.f32 %v4541, %v4700
    %v4702 = vrcp.pop %v4630
    %v4703 = vmul.f32 %v4543, %v4702
    %v4704 = vrcp.pop %v4633
    %v4705 = vmul.f32 %v4545, %v4704
    %v4706 = vrcp.pop %v4636
    %v4707 = vmul.f32 %v4547, %v4706
    %v4708 = vrcp.pop %v4639
    %v4709 = vmul.f32 %v4549, %v4708
    %v4710 = vrcp.pop %v4642
    %v4711 = vmul.f32 %v4551, %v4710
    %v4712 = vrcp.pop %v4645
    %v4713 = vmul.f32 %v4553, %v4712
    %v4714 = vrcp.pop %v4648
    %v4715 = vmul.f32 %v4555, %v4714
    %v4716 = vrcp.pop %v4651
    %v4717 = vmul.f32 %v4557, %v4716
    %v4718 = vrcp.pop %v4654
    %v4719 = vmul.f32 %v4559, %v4718
    %v4720 = vrcp.pop %v4657
    %v4721 = vmul.f32 %v4561, %v4720
    %4722 = vrot.lane.b32.xlu0 %v1687, 64
    %v4723 = vpop.permute.xlu0 %4722
    %vm4724 = vcmask 15360
    %v4726 = vsel %vm4724, %v4659, 0
    %vm4728 = vcmask 1041408
    %v4729 = vsel %vm4728, %v4723, 0
    %4731 = vmatprep.subr.mxu0 0.0
    %4732 = vmatpush1.msra.mxu0 %v4729
    %4733 = vmatprep.subr.mxu0 0.0
    %4734 = vmatpush1.msra.mxu0 0.0
    %4735 = vmatprep.subr.mxu0 0.0
    %4736 = vmatpush1.msra.mxu0 0.0
    %4737 = vmatprep.subr.mxu0 0.0
    %4738 = vmatpush1.msra.mxu0 0.0
    %4739 = vmatprep.subr.mxu0 0.0
    %4740 = vmatpush1.msra.mxu0 0.0
    %4741 = vmatprep.subr.mxu0 0.0
    %4742 = vmatpush1.msra.mxu0 0.0
    %4743 = vmatprep.subr.mxu0 0.0
    %4744 = vmatpush1.msra.mxu0 0.0
    %4745 = vmatprep.subr.mxu0 0.0
    %4746 = vmatpush1.msra.mxu0 0.0
    %4747 = vmatprep.subr.mxu0 0.0
    %4748 = vmatpush1.msra.mxu0 0.0
    %4749 = vmatprep.subr.mxu0 0.0
    %4750 = vmatpush1.msra.mxu0 0.0
    %4751 = vmatprep.subr.mxu0 0.0
    %4752 = vmatpush1.msra.mxu0 0.0
    %4753 = vmatprep.subr.mxu0 0.0
    %4754 = vmatpush1.msra.mxu0 0.0
    %4755 = vmatprep.subr.mxu0 0.0
    %4756 = vmatpush1.msra.mxu0 0.0
    %4757 = vmatprep.subr.mxu0 0.0
    %4758 = vmatpush1.msra.mxu0 0.0
    %4759 = vmatprep.subr.mxu0 0.0
    %4760 = vmatpush1.msra.mxu0 0.0
    %4761 = vmatprep.subr.mxu0 0.0
    %4762 = vmatpush1.msra.mxu0 0.0
    %4763 = vmatprep.subr.mxu0 0.0
    %4764 = vmatpush1.msra.mxu0 0.0
    %4765 = vmatprep.subr.mxu0 0.0
    %4766 = vmatpush1.msra.mxu0 0.0
    %4767 = vmatprep.subr.mxu0 0.0
    %4768 = vmatpush1.msra.mxu0 0.0
    %4769 = vmatprep.subr.mxu0 0.0
    %4770 = vmatpush1.msra.mxu0 0.0
    %4771 = vmatprep.subr.mxu0 0.0
    %4772 = vmatpush1.msra.mxu0 0.0
    %4773 = vmatprep.subr.mxu0 0.0
    %4774 = vmatpush1.msra.mxu0 0.0
    %4775 = vmatprep.subr.mxu0 0.0
    %4776 = vmatpush1.msra.mxu0 0.0
    %4777 = vmatprep.subr.mxu0 0.0
    %4778 = vmatpush1.msra.mxu0 0.0
    %4779 = vmatprep.subr.mxu0 0.0
    %4780 = vmatpush1.msra.mxu0 0.0
    %4781 = vmatprep.subr.mxu0 0.0
    %4782 = vmatpush1.msra.mxu0 0.0
    %4783 = vmatprep.subr.mxu0 0.0
    %4784 = vmatpush1.msra.mxu0 0.0
    %4785 = vmatprep.subr.mxu0 0.0
    %4786 = vmatpush1.msra.mxu0 0.0
    %4787 = vmatprep.subr.mxu0 0.0
    %4788 = vmatpush1.msra.mxu0 0.0
    %4789 = vmatprep.subr.mxu0 0.0
    %4790 = vmatpush1.msra.mxu0 0.0
    %4791 = vmatprep.subr.mxu0 0.0
    %4792 = vmatpush1.msra.mxu0 0.0
    %4793 = vmatprep.subr.mxu0 0.0
    %4794 = vmatpush1.msra.mxu0 0.0
    %4795 = vmatprep.mubr.f32.mxu0 0.0
    %4796 = vmatmul.mubr.f32.gmra.mrb[0].mxu0 %v4726
    %v4797 = vpop.f32.mrb[0].mxu0
    %v4798 = vadd.f32 0.0, %v4797
    %v4799 = vpop.f32.mrb[0].mxu0
    %4800 = vdwg.mxu0
    %4801 = vrot.lane.b32.xlu0 %v1770, 64
    %v4802 = vpop.permute.xlu0 %4801
    %v4804 = vsel %vm4724, %v4661, 0
    %v4806 = vsel %vm4728, %v4802, 0
    %4808 = vmatprep.subr.mxu0 0.0
    %4809 = vmatpush1.msra.mxu0 %v4806
    %4810 = vmatprep.subr.mxu0 0.0
    %4811 = vmatpush1.msra.mxu0 0.0
    %4812 = vmatprep.subr.mxu0 0.0
    %4813 = vmatpush1.msra.mxu0 0.0
    %4814 = vmatprep.subr.mxu0 0.0
    %4815 = vmatpush1.msra.mxu0 0.0
    %4816 = vmatprep.subr.mxu0 0.0
    %4817 = vmatpush1.msra.mxu0 0.0
    %4818 = vmatprep.subr.mxu0 0.0
    %4819 = vmatpush1.msra.mxu0 0.0
    %4820 = vmatprep.subr.mxu0 0.0
    %4821 = vmatpush1.msra.mxu0 0.0
    %4822 = vmatprep.subr.mxu0 0.0
    %4823 = vmatpush1.msra.mxu0 0.0
    %4824 = vmatprep.subr.mxu0 0.0
    %4825 = vmatpush1.msra.mxu0 0.0
    %4826 = vmatprep.subr.mxu0 0.0
    %4827 = vmatpush1.msra.mxu0 0.0
    %4828 = vmatprep.subr.mxu0 0.0
    %4829 = vmatpush1.msra.mxu0 0.0
    %4830 = vmatprep.subr.mxu0 0.0
    %4831 = vmatpush1.msra.mxu0 0.0
    %4832 = vmatprep.subr.mxu0 0.0
    %4833 = vmatpush1.msra.mxu0 0.0
    %4834 = vmatprep.subr.mxu0 0.0
    %4835 = vmatpush1.msra.mxu0 0.0
    %4836 = vmatprep.subr.mxu0 0.0
    %4837 = vmatpush1.msra.mxu0 0.0
    %4838 = vmatprep.subr.mxu0 0.0
    %4839 = vmatpush1.msra.mxu0 0.0
    %4840 = vmatprep.subr.mxu0 0.0
    %4841 = vmatpush1.msra.mxu0 0.0
    %4842 = vmatprep.subr.mxu0 0.0
    %4843 = vmatpush1.msra.mxu0 0.0
    %4844 = vmatprep.subr.mxu0 0.0
    %4845 = vmatpush1.msra.mxu0 0.0
    %4846 = vmatprep.subr.mxu0 0.0
    %4847 = vmatpush1.msra.mxu0 0.0
    %4848 = vmatprep.subr.mxu0 0.0
    %4849 = vmatpush1.msra.mxu0 0.0
    %4850 = vmatprep.subr.mxu0 0.0
    %4851 = vmatpush1.msra.mxu0 0.0
    %4852 = vmatprep.subr.mxu0 0.0
    %4853 = vmatpush1.msra.mxu0 0.0
    %4854 = vmatprep.subr.mxu0 0.0
    %4855 = vmatpush1.msra.mxu0 0.0
    %4856 = vmatprep.subr.mxu0 0.0
    %4857 = vmatpush1.msra.mxu0 0.0
    %4858 = vmatprep.subr.mxu0 0.0
    %4859 = vmatpush1.msra.mxu0 0.0
    %4860 = vmatprep.subr.mxu0 0.0
    %4861 = vmatpush1.msra.mxu0 0.0
    %4862 = vmatprep.subr.mxu0 0.0
    %4863 = vmatpush1.msra.mxu0 0.0
    %4864 = vmatprep.subr.mxu0 0.0
    %4865 = vmatpush1.msra.mxu0 0.0
    %4866 = vmatprep.subr.mxu0 0.0
    %4867 = vmatpush1.msra.mxu0 0.0
    %4868 = vmatprep.subr.mxu0 0.0
    %4869 = vmatpush1.msra.mxu0 0.0
    %4870 = vmatprep.subr.mxu0 0.0
    %4871 = vmatpush1.msra.mxu0 0.0
    %4872 = vmatprep.mubr.f32.mxu0 0.0
    %4873 = vmatmul.mubr.f32.gmra.mrb[0].mxu0 %v4804
    %v4874 = vpop.f32.mrb[0].mxu0
    %v4875 = vadd.f32 0.0, %v4874
    %v4876 = vpop.f32.mrb[0].mxu0
    %4877 = vdwg.mxu0
    %4878 = vrot.lane.b32.xlu0 %v1853, 64
    %v4879 = vpop.permute.xlu0 %4878
    %v4881 = vsel %vm4724, %v4663, 0
    %v4883 = vsel %vm4728, %v4879, 0
    %4885 = vmatprep.subr.mxu0 0.0
    %4886 = vmatpush1.msra.mxu0 %v4883
    %4887 = vmatprep.subr.mxu0 0.0
    %4888 = vmatpush1.msra.mxu0 0.0
    %4889 = vmatprep.subr.mxu0 0.0
    %4890 = vmatpush1.msra.mxu0 0.0
    %4891 = vmatprep.subr.mxu0 0.0
    %4892 = vmatpush1.msra.mxu0 0.0
    %4893 = vmatprep.subr.mxu0 0.0
    %4894 = vmatpush1.msra.mxu0 0.0
    %4895 = vmatprep.subr.mxu0 0.0
    %4896 = vmatpush1.msra.mxu0 0.0
    %4897 = vmatprep.subr.mxu0 0.0
    %4898 = vmatpush1.msra.mxu0 0.0
    %4899 = vmatprep.subr.mxu0 0.0
    %4900 = vmatpush1.msra.mxu0 0.0
    %4901 = vmatprep.subr.mxu0 0.0
    %4902 = vmatpush1.msra.mxu0 0.0
    %4903 = vmatprep.subr.mxu0 0.0
    %4904 = vmatpush1.msra.mxu0 0.0
    %4905 = vmatprep.subr.mxu0 0.0
    %4906 = vmatpush1.msra.mxu0 0.0
    %4907 = vmatprep.subr.mxu0 0.0
    %4908 = vmatpush1.msra.mxu0 0.0
    %4909 = vmatprep.subr.mxu0 0.0
    %4910 = vmatpush1.msra.mxu0 0.0
    %4911 = vmatprep.subr.mxu0 0.0
    %4912 = vmatpush1.msra.mxu0 0.0
    %4913 = vmatprep.subr.mxu0 0.0
    %4914 = vmatpush1.msra.mxu0 0.0
    %4915 = vmatprep.subr.mxu0 0.0
    %4916 = vmatpush1.msra.mxu0 0.0
    %4917 = vmatprep.subr.mxu0 0.0
    %4918 = vmatpush1.msra.mxu0 0.0
    %4919 = vmatprep.subr.mxu0 0.0
    %4920 = vmatpush1.msra.mxu0 0.0
    %4921 = vmatprep.subr.mxu0 0.0
    %4922 = vmatpush1.msra.mxu0 0.0
    %4923 = vmatprep.subr.mxu0 0.0
    %4924 = vmatpush1.msra.mxu0 0.0
    %4925 = vmatprep.subr.mxu0 0.0
    %4926 = vmatpush1.msra.mxu0 0.0
    %4927 = vmatprep.subr.mxu0 0.0
    %4928 = vmatpush1.msra.mxu0 0.0
    %4929 = vmatprep.subr.mxu0 0.0
    %4930 = vmatpush1.msra.mxu0 0.0
    %4931 = vmatprep.subr.mxu0 0.0
    %4932 = vmatpush1.msra.mxu0 0.0
    %4933 = vmatprep.subr.mxu0 0.0
    %4934 = vmatpush1.msra.mxu0 0.0
    %4935 = vmatprep.subr.mxu0 0.0
    %4936 = vmatpush1.msra.mxu0 0.0
    %4937 = vmatprep.subr.mxu0 0.0
    %4938 = vmatpush1.msra.mxu0 0.0
    %4939 = vmatprep.subr.mxu0 0.0
    %4940 = vmatpush1.msra.mxu0 0.0
    %4941 = vmatprep.subr.mxu0 0.0
    %4942 = vmatpush1.msra.mxu0 0.0
    %4943 = vmatprep.subr.mxu0 0.0
    %4944 = vmatpush1.msra.mxu0 0.0
    %4945 = vmatprep.subr.mxu0 0.0
    %4946 = vmatpush1.msra.mxu0 0.0
    %4947 = vmatprep.subr.mxu0 0.0
    %4948 = vmatpush1.msra.mxu0 0.0
    %4949 = vmatprep.mubr.f32.mxu0 0.0
    %4950 = vmatmul.mubr.f32.gmra.mrb[0].mxu0 %v4881
    %v4951 = vpop.f32.mrb[0].mxu0
    %v4952 = vadd.f32 0.0, %v4951
    %v4953 = vpop.f32.mrb[0].mxu0
    %4954 = vdwg.mxu0
    %4955 = vrot.lane.b32.xlu0 %v1936, 64
    %v4956 = vpop.permute.xlu0 %4955
    %v4958 = vsel %vm4724, %v4665, 0
    %v4960 = vsel %vm4728, %v4956, 0
    %4962 = vmatprep.subr.mxu0 0.0
    %4963 = vmatpush1.msra.mxu0 %v4960
    %4964 = vmatprep.subr.mxu0 0.0
    %4965 = vmatpush1.msra.mxu0 0.0
    %4966 = vmatprep.subr.mxu0 0.0
    %4967 = vmatpush1.msra.mxu0 0.0
    %4968 = vmatprep.subr.mxu0 0.0
    %4969 = vmatpush1.msra.mxu0 0.0
    %4970 = vmatprep.subr.mxu0 0.0
    %4971 = vmatpush1.msra.mxu0 0.0
    %4972 = vmatprep.subr.mxu0 0.0
    %4973 = vmatpush1.msra.mxu0 0.0
    %4974 = vmatprep.subr.mxu0 0.0
    %4975 = vmatpush1.msra.mxu0 0.0
    %4976 = vmatprep.subr.mxu0 0.0
    %4977 = vmatpush1.msra.mxu0 0.0
    %4978 = vmatprep.subr.mxu0 0.0
    %4979 = vmatpush1.msra.mxu0 0.0
    %4980 = vmatprep.subr.mxu0 0.0
    %4981 = vmatpush1.msra.mxu0 0.0
    %4982 = vmatprep.subr.mxu0 0.0
    %4983 = vmatpush1.msra.mxu0 0.0
    %4984 = vmatprep.subr.mxu0 0.0
    %4985 = vmatpush1.msra.mxu0 0.0
    %4986 = vmatprep.subr.mxu0 0.0
    %4987 = vmatpush1.msra.mxu0 0.0
    %4988 = vmatprep.subr.mxu0 0.0
    %4989 = vmatpush1.msra.mxu0 0.0
    %4990 = vmatprep.subr.mxu0 0.0
    %4991 = vmatpush1.msra.mxu0 0.0
    %4992 = vmatprep.subr.mxu0 0.0
    %4993 = vmatpush1.msra.mxu0 0.0
    %4994 = vmatprep.subr.mxu0 0.0
    %4995 = vmatpush1.msra.mxu0 0.0
    %4996 = vmatprep.subr.mxu0 0.0
    %4997 = vmatpush1.msra.mxu0 0.0
    %4998 = vmatprep.subr.mxu0 0.0
    %4999 = vmatpush1.msra.mxu0 0.0
    %5000 = vmatprep.subr.mxu0 0.0
    %5001 = vmatpush1.msra.mxu0 0.0
    %5002 = vmatprep.subr.mxu0 0.0
    %5003 = vmatpush1.msra.mxu0 0.0
    %5004 = vmatprep.subr.mxu0 0.0
    %5005 = vmatpush1.msra.mxu0 0.0
    %5006 = vmatprep.subr.mxu0 0.0
    %5007 = vmatpush1.msra.mxu0 0.0
    %5008 = vmatprep.subr.mxu0 0.0
    %5009 = vmatpush1.msra.mxu0 0.0
    %5010 = vmatprep.subr.mxu0 0.0
    %5011 = vmatpush1.msra.mxu0 0.0
    %5012 = vmatprep.subr.mxu0 0.0
    %5013 = vmatpush1.msra.mxu0 0.0
    %5014 = vmatprep.subr.mxu0 0.0
    %5015 = vmatpush1.msra.mxu0 0.0
    %5016 = vmatprep.subr.mxu0 0.0
    %5017 = vmatpush1.msra.mxu0 0.0
    %5018 = vmatprep.subr.mxu0 0.0
    %5019 = vmatpush1.msra.mxu0 0.0
    %5020 = vmatprep.subr.mxu0 0.0
    %5021 = vmatpush1.msra.mxu0 0.0
    %5022 = vmatprep.subr.mxu0 0.0
    %5023 = vmatpush1.msra.mxu0 0.0
    %5024 = vmatprep.subr.mxu0 0.0
    %5025 = vmatpush1.msra.mxu0 0.0
    %5026 = vmatprep.mubr.f32.mxu0 0.0
    %5027 = vmatmul.mubr.f32.gmra.mrb[0].mxu0 %v4958
    %v5028 = vpop.f32.mrb[0].mxu0
    %v5029 = vadd.f32 0.0, %v5028
    %v5030 = vpop.f32.mrb[0].mxu0
    %5031 = vdwg.mxu0
    %5032 = vrot.lane.b32.xlu0 %v2019, 64
    %v5033 = vpop.permute.xlu0 %5032
    %v5035 = vsel %vm4724, %v4667, 0
    %v5037 = vsel %vm4728, %v5033, 0
    %5039 = vmatprep.subr.mxu0 0.0
    %5040 = vmatpush1.msra.mxu0 %v5037
    %5041 = vmatprep.subr.mxu0 0.0
    %5042 = vmatpush1.msra.mxu0 0.0
    %5043 = vmatprep.subr.mxu0 0.0
    %5044 = vmatpush1.msra.mxu0 0.0
    %5045 = vmatprep.subr.mxu0 0.0
    %5046 = vmatpush1.msra.mxu0 0.0
    %5047 = vmatprep.subr.mxu0 0.0
    %5048 = vmatpush1.msra.mxu0 0.0
    %5049 = vmatprep.subr.mxu0 0.0
    %5050 = vmatpush1.msra.mxu0 0.0
    %5051 = vmatprep.subr.mxu0 0.0
    %5052 = vmatpush1.msra.mxu0 0.0
    %5053 = vmatprep.subr.mxu0 0.0
    %5054 = vmatpush1.msra.mxu0 0.0
    %5055 = vmatprep.subr.mxu0 0.0
    %5056 = vmatpush1.msra.mxu0 0.0
    %5057 = vmatprep.subr.mxu0 0.0
    %5058 = vmatpush1.msra.mxu0 0.0
    %5059 = vmatprep.subr.mxu0 0.0
    %5060 = vmatpush1.msra.mxu0 0.0
    %5061 = vmatprep.subr.mxu0 0.0
    %5062 = vmatpush1.msra.mxu0 0.0
    %5063 = vmatprep.subr.mxu0 0.0
    %5064 = vmatpush1.msra.mxu0 0.0
    %5065 = vmatprep.subr.mxu0 0.0
    %5066 = vmatpush1.msra.mxu0 0.0
    %5067 = vmatprep.subr.mxu0 0.0
    %5068 = vmatpush1.msra.mxu0 0.0
    %5069 = vmatprep.subr.mxu0 0.0
    %5070 = vmatpush1.msra.mxu0 0.0
    %5071 = vmatprep.subr.mxu0 0.0
    %5072 = vmatpush1.msra.mxu0 0.0
    %5073 = vmatprep.subr.mxu0 0.0
    %5074 = vmatpush1.msra.mxu0 0.0
    %5075 = vmatprep.subr.mxu0 0.0
    %5076 = vmatpush1.msra.mxu0 0.0
    %5077 = vmatprep.subr.mxu0 0.0
    %5078 = vmatpush1.msra.mxu0 0.0
    %5079 = vmatprep.subr.mxu0 0.0
    %5080 = vmatpush1.msra.mxu0 0.0
    %5081 = vmatprep.subr.mxu0 0.0
    %5082 = vmatpush1.msra.mxu0 0.0
    %5083 = vmatprep.subr.mxu0 0.0
    %5084 = vmatpush1.msra.mxu0 0.0
    %5085 = vmatprep.subr.mxu0 0.0
    %5086 = vmatpush1.msra.mxu0 0.0
    %5087 = vmatprep.subr.mxu0 0.0
    %5088 = vmatpush1.msra.mxu0 0.0
    %5089 = vmatprep.subr.mxu0 0.0
    %5090 = vmatpush1.msra.mxu0 0.0
    %5091 = vmatprep.subr.mxu0 0.0
    %5092 = vmatpush1.msra.mxu0 0.0
    %5093 = vmatprep.subr.mxu0 0.0
    %5094 = vmatpush1.msra.mxu0 0.0
    %5095 = vmatprep.subr.mxu0 0.0
    %5096 = vmatpush1.msra.mxu0 0.0
    %5097 = vmatprep.subr.mxu0 0.0
    %5098 = vmatpush1.msra.mxu0 0.0
    %5099 = vmatprep.subr.mxu0 0.0
    %5100 = vmatpush1.msra.mxu0 0.0
    %5101 = vmatprep.subr.mxu0 0.0
    %5102 = vmatpush1.msra.mxu0 0.0
    %5103 = vmatprep.mubr.f32.mxu0 0.0
    %5104 = vmatmul.mubr.f32.gmra.mrb[0].mxu0 %v5035
    %v5105 = vpop.f32.mrb[0].mxu0
    %v5106 = vadd.f32 0.0, %v5105
    %v5107 = vpop.f32.mrb[0].mxu0
    %5108 = vdwg.mxu0
    %5109 = vrot.lane.b32.xlu0 %v2102, 64
    %v5110 = vpop.permute.xlu0 %5109
    %v5112 = vsel %vm4724, %v4669, 0
    %v5114 = vsel %vm4728, %v5110, 0
    %5116 = vmatprep.subr.mxu0 0.0
    %5117 = vmatpush1.msra.mxu0 %v5114
    %5118 = vmatprep.subr.mxu0 0.0
    %5119 = vmatpush1.msra.mxu0 0.0
    %5120 = vmatprep.subr.mxu0 0.0
    %5121 = vmatpush1.msra.mxu0 0.0
    %5122 = vmatprep.subr.mxu0 0.0
    %5123 = vmatpush1.msra.mxu0 0.0
    %5124 = vmatprep.subr.mxu0 0.0
    %5125 = vmatpush1.msra.mxu0 0.0
    %5126 = vmatprep.subr.mxu0 0.0
    %5127 = vmatpush1.msra.mxu0 0.0
    %5128 = vmatprep.subr.mxu0 0.0
    %5129 = vmatpush1.msra.mxu0 0.0
    %5130 = vmatprep.subr.mxu0 0.0
    %5131 = vmatpush1.msra.mxu0 0.0
    %5132 = vmatprep.subr.mxu0 0.0
    %5133 = vmatpush1.msra.mxu0 0.0
    %5134 = vmatprep.subr.mxu0 0.0
    %5135 = vmatpush1.msra.mxu0 0.0
    %5136 = vmatprep.subr.mxu0 0.0
    %5137 = vmatpush1.msra.mxu0 0.0
    %5138 = vmatprep.subr.mxu0 0.0
    %5139 = vmatpush1.msra.mxu0 0.0
    %5140 = vmatprep.subr.mxu0 0.0
    %5141 = vmatpush1.msra.mxu0 0.0
    %5142 = vmatprep.subr.mxu0 0.0
    %5143 = vmatpush1.msra.mxu0 0.0
    %5144 = vmatprep.subr.mxu0 0.0
    %5145 = vmatpush1.msra.mxu0 0.0
    %5146 = vmatprep.subr.mxu0 0.0
    %5147 = vmatpush1.msra.mxu0 0.0
    %5148 = vmatprep.subr.mxu0 0.0
    %5149 = vmatpush1.msra.mxu0 0.0
    %5150 = vmatprep.subr.mxu0 0.0
    %5151 = vmatpush1.msra.mxu0 0.0
    %5152 = vmatprep.subr.mxu0 0.0
    %5153 = vmatpush1.msra.mxu0 0.0
    %5154 = vmatprep.subr.mxu0 0.0
    %5155 = vmatpush1.msra.mxu0 0.0
    %5156 = vmatprep.subr.mxu0 0.0
    %5157 = vmatpush1.msra.mxu0 0.0
    %5158 = vmatprep.subr.mxu0 0.0
    %5159 = vmatpush1.msra.mxu0 0.0
    %5160 = vmatprep.subr.mxu0 0.0
    %5161 = vmatpush1.msra.mxu0 0.0
    %5162 = vmatprep.subr.mxu0 0.0
    %5163 = vmatpush1.msra.mxu0 0.0
    %5164 = vmatprep.subr.mxu0 0.0
    %5165 = vmatpush1.msra.mxu0 0.0
    %5166 = vmatprep.subr.mxu0 0.0
    %5167 = vmatpush1.msra.mxu0 0.0
    %5168 = vmatprep.subr.mxu0 0.0
    %5169 = vmatpush1.msra.mxu0 0.0
    %5170 = vmatprep.subr.mxu0 0.0
    %5171 = vmatpush1.msra.mxu0 0.0
    %5172 = vmatprep.subr.mxu0 0.0
    %5173 = vmatpush1.msra.mxu0 0.0
    %5174 = vmatprep.subr.mxu0 0.0
    %5175 = vmatpush1.msra.mxu0 0.0
    %5176 = vmatprep.subr.mxu0 0.0
    %5177 = vmatpush1.msra.mxu0 0.0
    %5178 = vmatprep.subr.mxu0 0.0
    %5179 = vmatpush1.msra.mxu0 0.0
    %5180 = vmatprep.mubr.f32.mxu0 0.0
    %5181 = vmatmul.mubr.f32.gmra.mrb[0].mxu0 %v5112
    %v5182 = vpop.f32.mrb[0].mxu0
    %v5183 = vadd.f32 0.0, %v5182
    %v5184 = vpop.f32.mrb[0].mxu0
    %5185 = vdwg.mxu0
    %5186 = vrot.lane.b32.xlu0 %v2185, 64
    %v5187 = vpop.permute.xlu0 %5186
    %v5189 = vsel %vm4724, %v4671, 0
    %v5191 = vsel %vm4728, %v5187, 0
    %5193 = vmatprep.subr.mxu0 0.0
    %5194 = vmatpush1.msra.mxu0 %v5191
    %5195 = vmatprep.subr.mxu0 0.0
    %5196 = vmatpush1.msra.mxu0 0.0
    %5197 = vmatprep.subr.mxu0 0.0
    %5198 = vmatpush1.msra.mxu0 0.0
    %5199 = vmatprep.subr.mxu0 0.0
    %5200 = vmatpush1.msra.mxu0 0.0
    %5201 = vmatprep.subr.mxu0 0.0
    %5202 = vmatpush1.msra.mxu0 0.0
    %5203 = vmatprep.subr.mxu0 0.0
    %5204 = vmatpush1.msra.mxu0 0.0
    %5205 = vmatprep.subr.mxu0 0.0
    %5206 = vmatpush1.msra.mxu0 0.0
    %5207 = vmatprep.subr.mxu0 0.0
    %5208 = vmatpush1.msra.mxu0 0.0
    %5209 = vmatprep.subr.mxu0 0.0
    %5210 = vmatpush1.msra.mxu0 0.0
    %5211 = vmatprep.subr.mxu0 0.0
    %5212 = vmatpush1.msra.mxu0 0.0
    %5213 = vmatprep.subr.mxu0 0.0
    %5214 = vmatpush1.msra.mxu0 0.0
    %5215 = vmatprep.subr.mxu0 0.0
    %5216 = vmatpush1.msra.mxu0 0.0
    %5217 = vmatprep.subr.mxu0 0.0
    %5218 = vmatpush1.msra.mxu0 0.0
    %5219 = vmatprep.subr.mxu0 0.0
    %5220 = vmatpush1.msra.mxu0 0.0
    %5221 = vmatprep.subr.mxu0 0.0
    %5222 = vmatpush1.msra.mxu0 0.0
    %5223 = vmatprep.subr.mxu0 0.0
    %5224 = vmatpush1.msra.mxu0 0.0
    %5225 = vmatprep.subr.mxu0 0.0
    %5226 = vmatpush1.msra.mxu0 0.0
    %5227 = vmatprep.subr.mxu0 0.0
    %5228 = vmatpush1.msra.mxu0 0.0
    %5229 = vmatprep.subr.mxu0 0.0
    %5230 = vmatpush1.msra.mxu0 0.0
    %5231 = vmatprep.subr.mxu0 0.0
    %5232 = vmatpush1.msra.mxu0 0.0
    %5233 = vmatprep.subr.mxu0 0.0
    %5234 = vmatpush1.msra.mxu0 0.0
    %5235 = vmatprep.subr.mxu0 0.0
    %5236 = vmatpush1.msra.mxu0 0.0
    %5237 = vmatprep.subr.mxu0 0.0
    %5238 = vmatpush1.msra.mxu0 0.0
    %5239 = vmatprep.subr.mxu0 0.0
    %5240 = vmatpush1.msra.mxu0 0.0
    %5241 = vmatprep.subr.mxu0 0.0
    %5242 = vmatpush1.msra.mxu0 0.0
    %5243 = vmatprep.subr.mxu0 0.0
    %5244 = vmatpush1.msra.mxu0 0.0
    %5245 = vmatprep.subr.mxu0 0.0
    %5246 = vmatpush1.msra.mxu0 0.0
    %5247 = vmatprep.subr.mxu0 0.0
    %5248 = vmatpush1.msra.mxu0 0.0
    %5249 = vmatprep.subr.mxu0 0.0
    %5250 = vmatpush1.msra.mxu0 0.0
    %5251 = vmatprep.subr.mxu0 0.0
    %5252 = vmatpush1.msra.mxu0 0.0
    %5253 = vmatprep.subr.mxu0 0.0
    %5254 = vmatpush1.msra.mxu0 0.0
    %5255 = vmatprep.subr.mxu0 0.0
    %5256 = vmatpush1.msra.mxu0 0.0
    %5257 = vmatprep.mubr.f32.mxu0 0.0
    %5258 = vmatmul.mubr.f32.gmra.mrb[0].mxu0 %v5189
    %v5259 = vpop.f32.mrb[0].mxu0
    %v5260 = vadd.f32 0.0, %v5259
    %v5261 = vpop.f32.mrb[0].mxu0
    %5262 = vdwg.mxu0
    %5263 = vrot.lane.b32.xlu0 %v2268, 64
    %v5264 = vpop.permute.xlu0 %5263
    %v5266 = vsel %vm4724, %v4673, 0
    %v5268 = vsel %vm4728, %v5264, 0
    %5270 = vmatprep.subr.mxu0 0.0
    %5271 = vmatpush1.msra.mxu0 %v5268
    %5272 = vmatprep.subr.mxu0 0.0
    %5273 = vmatpush1.msra.mxu0 0.0
    %5274 = vmatprep.subr.mxu0 0.0
    %5275 = vmatpush1.msra.mxu0 0.0
    %5276 = vmatprep.subr.mxu0 0.0
    %5277 = vmatpush1.msra.mxu0 0.0
    %5278 = vmatprep.subr.mxu0 0.0
    %5279 = vmatpush1.msra.mxu0 0.0
    %5280 = vmatprep.subr.mxu0 0.0
    %5281 = vmatpush1.msra.mxu0 0.0
    %5282 = vmatprep.subr.mxu0 0.0
    %5283 = vmatpush1.msra.mxu0 0.0
    %5284 = vmatprep.subr.mxu0 0.0
    %5285 = vmatpush1.msra.mxu0 0.0
    %5286 = vmatprep.subr.mxu0 0.0
    %5287 = vmatpush1.msra.mxu0 0.0
    %5288 = vmatprep.subr.mxu0 0.0
    %5289 = vmatpush1.msra.mxu0 0.0
    %5290 = vmatprep.subr.mxu0 0.0
    %5291 = vmatpush1.msra.mxu0 0.0
    %5292 = vmatprep.subr.mxu0 0.0
    %5293 = vmatpush1.msra.mxu0 0.0
    %5294 = vmatprep.subr.mxu0 0.0
    %5295 = vmatpush1.msra.mxu0 0.0
    %5296 = vmatprep.subr.mxu0 0.0
    %5297 = vmatpush1.msra.mxu0 0.0
    %5298 = vmatprep.subr.mxu0 0.0
    %5299 = vmatpush1.msra.mxu0 0.0
    %5300 = vmatprep.subr.mxu0 0.0
    %5301 = vmatpush1.msra.mxu0 0.0
    %5302 = vmatprep.subr.mxu0 0.0
    %5303 = vmatpush1.msra.mxu0 0.0
    %5304 = vmatprep.subr.mxu0 0.0
    %5305 = vmatpush1.msra.mxu0 0.0
    %5306 = vmatprep.subr.mxu0 0.0
    %5307 = vmatpush1.msra.mxu0 0.0
    %5308 = vmatprep.subr.mxu0 0.0
    %5309 = vmatpush1.msra.mxu0 0.0
    %5310 = vmatprep.subr.mxu0 0.0
    %5311 = vmatpush1.msra.mxu0 0.0
    %5312 = vmatprep.subr.mxu0 0.0
    %5313 = vmatpush1.msra.mxu0 0.0
    %5314 = vmatprep.subr.mxu0 0.0
    %5315 = vmatpush1.msra.mxu0 0.0
    %5316 = vmatprep.subr.mxu0 0.0
    %5317 = vmatpush1.msra.mxu0 0.0
    %5318 = vmatprep.subr.mxu0 0.0
    %5319 = vmatpush1.msra.mxu0 0.0
    %5320 = vmatprep.subr.mxu0 0.0
    %5321 = vmatpush1.msra.mxu0 0.0
    %5322 = vmatprep.subr.mxu0 0.0
    %5323 = vmatpush1.msra.mxu0 0.0
    %5324 = vmatprep.subr.mxu0 0.0
    %5325 = vmatpush1.msra.mxu0 0.0
    %5326 = vmatprep.subr.mxu0 0.0
    %5327 = vmatpush1.msra.mxu0 0.0
    %5328 = vmatprep.subr.mxu0 0.0
    %5329 = vmatpush1.msra.mxu0 0.0
    %5330 = vmatprep.subr.mxu0 0.0
    %5331 = vmatpush1.msra.mxu0 0.0
    %5332 = vmatprep.subr.mxu0 0.0
    %5333 = vmatpush1.msra.mxu0 0.0
    %5334 = vmatprep.mubr.f32.mxu0 0.0
    %5335 = vmatmul.mubr.f32.gmra.mrb[0].mxu0 %v5266
    %v5336 = vpop.f32.mrb[0].mxu0
    %v5337 = vadd.f32 0.0, %v5336
    %v5338 = vpop.f32.mrb[0].mxu0
    %5339 = vdwg.mxu0
    %5340 = vrot.lane.b32.xlu0 %v2351, 64
    %v5341 = vpop.permute.xlu0 %5340
    %v5343 = vsel %vm4724, %v4675, 0
    %v5345 = vsel %vm4728, %v5341, 0
    %5347 = vmatprep.subr.mxu0 0.0
    %5348 = vmatpush1.msra.mxu0 %v5345
    %5349 = vmatprep.subr.mxu0 0.0
    %5350 = vmatpush1.msra.mxu0 0.0
    %5351 = vmatprep.subr.mxu0 0.0
    %5352 = vmatpush1.msra.mxu0 0.0
    %5353 = vmatprep.subr.mxu0 0.0
    %5354 = vmatpush1.msra.mxu0 0.0
    %5355 = vmatprep.subr.mxu0 0.0
    %5356 = vmatpush1.msra.mxu0 0.0
    %5357 = vmatprep.subr.mxu0 0.0
    %5358 = vmatpush1.msra.mxu0 0.0
    %5359 = vmatprep.subr.mxu0 0.0
    %5360 = vmatpush1.msra.mxu0 0.0
    %5361 = vmatprep.subr.mxu0 0.0
    %5362 = vmatpush1.msra.mxu0 0.0
    %5363 = vmatprep.subr.mxu0 0.0
    %5364 = vmatpush1.msra.mxu0 0.0
    %5365 = vmatprep.subr.mxu0 0.0
    %5366 = vmatpush1.msra.mxu0 0.0
    %5367 = vmatprep.subr.mxu0 0.0
    %5368 = vmatpush1.msra.mxu0 0.0
    %5369 = vmatprep.subr.mxu0 0.0
    %5370 = vmatpush1.msra.mxu0 0.0
    %5371 = vmatprep.subr.mxu0 0.0
    %5372 = vmatpush1.msra.mxu0 0.0
    %5373 = vmatprep.subr.mxu0 0.0
    %5374 = vmatpush1.msra.mxu0 0.0
    %5375 = vmatprep.subr.mxu0 0.0
    %5376 = vmatpush1.msra.mxu0 0.0
    %5377 = vmatprep.subr.mxu0 0.0
    %5378 = vmatpush1.msra.mxu0 0.0
    %5379 = vmatprep.subr.mxu0 0.0
    %5380 = vmatpush1.msra.mxu0 0.0
    %5381 = vmatprep.subr.mxu0 0.0
    %5382 = vmatpush1.msra.mxu0 0.0
    %5383 = vmatprep.subr.mxu0 0.0
    %5384 = vmatpush1.msra.mxu0 0.0
    %5385 = vmatprep.subr.mxu0 0.0
    %5386 = vmatpush1.msra.mxu0 0.0
    %5387 = vmatprep.subr.mxu0 0.0
    %5388 = vmatpush1.msra.mxu0 0.0
    %5389 = vmatprep.subr.mxu0 0.0
    %5390 = vmatpush1.msra.mxu0 0.0
    %5391 = vmatprep.subr.mxu0 0.0
    %5392 = vmatpush1.msra.mxu0 0.0
    %5393 = vmatprep.subr.mxu0 0.0
    %5394 = vmatpush1.msra.mxu0 0.0
    %5395 = vmatprep.subr.mxu0 0.0
    %5396 = vmatpush1.msra.mxu0 0.0
    %5397 = vmatprep.subr.mxu0 0.0
    %5398 = vmatpush1.msra.mxu0 0.0
    %5399 = vmatprep.subr.mxu0 0.0
    %5400 = vmatpush1.msra.mxu0 0.0
    %5401 = vmatprep.subr.mxu0 0.0
    %5402 = vmatpush1.msra.mxu0 0.0
    %5403 = vmatprep.subr.mxu0 0.0
    %5404 = vmatpush1.msra.mxu0 0.0
    %5405 = vmatprep.subr.mxu0 0.0
    %5406 = vmatpush1.msra.mxu0 0.0
    %5407 = vmatprep.subr.mxu0 0.0
    %5408 = vmatpush1.msra.mxu0 0.0
    %5409 = vmatprep.subr.mxu0 0.0
    %5410 = vmatpush1.msra.mxu0 0.0
    %5411 = vmatprep.mubr.f32.mxu0 0.0
    %5412 = vmatmul.mubr.f32.gmra.mrb[0].mxu0 %v5343
    %v5413 = vpop.f32.mrb[0].mxu0
    %v5414 = vadd.f32 0.0, %v5413
    %v5415 = vpop.f32.mrb[0].mxu0
    %5416 = vdwg.mxu0
    %5417 = vrot.lane.b32.xlu0 %v2434, 64
    %v5418 = vpop.permute.xlu0 %5417
    %v5420 = vsel %vm4724, %v4677, 0
    %v5422 = vsel %vm4728, %v5418, 0
    %5424 = vmatprep.subr.mxu0 0.0
    %5425 = vmatpush1.msra.mxu0 %v5422
    %5426 = vmatprep.subr.mxu0 0.0
    %5427 = vmatpush1.msra.mxu0 0.0
    %5428 = vmatprep.subr.mxu0 0.0
    %5429 = vmatpush1.msra.mxu0 0.0
    %5430 = vmatprep.subr.mxu0 0.0
    %5431 = vmatpush1.msra.mxu0 0.0
    %5432 = vmatprep.subr.mxu0 0.0
    %5433 = vmatpush1.msra.mxu0 0.0
    %5434 = vmatprep.subr.mxu0 0.0
    %5435 = vmatpush1.msra.mxu0 0.0
    %5436 = vmatprep.subr.mxu0 0.0
    %5437 = vmatpush1.msra.mxu0 0.0
    %5438 = vmatprep.subr.mxu0 0.0
    %5439 = vmatpush1.msra.mxu0 0.0
    %5440 = vmatprep.subr.mxu0 0.0
    %5441 = vmatpush1.msra.mxu0 0.0
    %5442 = vmatprep.subr.mxu0 0.0
    %5443 = vmatpush1.msra.mxu0 0.0
    %5444 = vmatprep.subr.mxu0 0.0
    %5445 = vmatpush1.msra.mxu0 0.0
    %5446 = vmatprep.subr.mxu0 0.0
    %5447 = vmatpush1.msra.mxu0 0.0
    %5448 = vmatprep.subr.mxu0 0.0
    %5449 = vmatpush1.msra.mxu0 0.0
    %5450 = vmatprep.subr.mxu0 0.0
    %5451 = vmatpush1.msra.mxu0 0.0
    %5452 = vmatprep.subr.mxu0 0.0
    %5453 = vmatpush1.msra.mxu0 0.0
    %5454 = vmatprep.subr.mxu0 0.0
    %5455 = vmatpush1.msra.mxu0 0.0
    %5456 = vmatprep.subr.mxu0 0.0
    %5457 = vmatpush1.msra.mxu0 0.0
    %5458 = vmatprep.subr.mxu0 0.0
    %5459 = vmatpush1.msra.mxu0 0.0
    %5460 = vmatprep.subr.mxu0 0.0
    %5461 = vmatpush1.msra.mxu0 0.0
    %5462 = vmatprep.subr.mxu0 0.0
    %5463 = vmatpush1.msra.mxu0 0.0
    %5464 = vmatprep.subr.mxu0 0.0
    %5465 = vmatpush1.msra.mxu0 0.0
    %5466 = vmatprep.subr.mxu0 0.0
    %5467 = vmatpush1.msra.mxu0 0.0
    %5468 = vmatprep.subr.mxu0 0.0
    %5469 = vmatpush1.msra.mxu0 0.0
    %5470 = vmatprep.subr.mxu0 0.0
    %5471 = vmatpush1.msra.mxu0 0.0
    %5472 = vmatprep.subr.mxu0 0.0
    %5473 = vmatpush1.msra.mxu0 0.0
    %5474 = vmatprep.subr.mxu0 0.0
    %5475 = vmatpush1.msra.mxu0 0.0
    %5476 = vmatprep.subr.mxu0 0.0
    %5477 = vmatpush1.msra.mxu0 0.0
    %5478 = vmatprep.subr.mxu0 0.0
    %5479 = vmatpush1.msra.mxu0 0.0
    %5480 = vmatprep.subr.mxu0 0.0
    %5481 = vmatpush1.msra.mxu0 0.0
    %5482 = vmatprep.subr.mxu0 0.0
    %5483 = vmatpush1.msra.mxu0 0.0
    %5484 = vmatprep.subr.mxu0 0.0
    %5485 = vmatpush1.msra.mxu0 0.0
    %5486 = vmatprep.subr.mxu0 0.0
    %5487 = vmatpush1.msra.mxu0 0.0
    %5488 = vmatprep.mubr.f32.mxu0 0.0
    %5489 = vmatmul.mubr.f32.gmra.mrb[0].mxu0 %v5420
    %v5490 = vpop.f32.mrb[0].mxu0
    %v5491 = vadd.f32 0.0, %v5490
    %v5492 = vpop.f32.mrb[0].mxu0
    %5493 = vdwg.mxu0
    %5494 = vrot.lane.b32.xlu0 %v2517, 64
    %v5495 = vpop.permute.xlu0 %5494
    %v5497 = vsel %vm4724, %v4679, 0
    %v5499 = vsel %vm4728, %v5495, 0
    %5501 = vmatprep.subr.mxu0 0.0
    %5502 = vmatpush1.msra.mxu0 %v5499
    %5503 = vmatprep.subr.mxu0 0.0
    %5504 = vmatpush1.msra.mxu0 0.0
    %5505 = vmatprep.subr.mxu0 0.0
    %5506 = vmatpush1.msra.mxu0 0.0
    %5507 = vmatprep.subr.mxu0 0.0
    %5508 = vmatpush1.msra.mxu0 0.0
    %5509 = vmatprep.subr.mxu0 0.0
    %5510 = vmatpush1.msra.mxu0 0.0
    %5511 = vmatprep.subr.mxu0 0.0
    %5512 = vmatpush1.msra.mxu0 0.0
    %5513 = vmatprep.subr.mxu0 0.0
    %5514 = vmatpush1.msra.mxu0 0.0
    %5515 = vmatprep.subr.mxu0 0.0
    %5516 = vmatpush1.msra.mxu0 0.0
    %5517 = vmatprep.subr.mxu0 0.0
    %5518 = vmatpush1.msra.mxu0 0.0
    %5519 = vmatprep.subr.mxu0 0.0
    %5520 = vmatpush1.msra.mxu0 0.0
    %5521 = vmatprep.subr.mxu0 0.0
    %5522 = vmatpush1.msra.mxu0 0.0
    %5523 = vmatprep.subr.mxu0 0.0
    %5524 = vmatpush1.msra.mxu0 0.0
    %5525 = vmatprep.subr.mxu0 0.0
    %5526 = vmatpush1.msra.mxu0 0.0
    %5527 = vmatprep.subr.mxu0 0.0
    %5528 = vmatpush1.msra.mxu0 0.0
    %5529 = vmatprep.subr.mxu0 0.0
    %5530 = vmatpush1.msra.mxu0 0.0
    %5531 = vmatprep.subr.mxu0 0.0
    %5532 = vmatpush1.msra.mxu0 0.0
    %5533 = vmatprep.subr.mxu0 0.0
    %5534 = vmatpush1.msra.mxu0 0.0
    %5535 = vmatprep.subr.mxu0 0.0
    %5536 = vmatpush1.msra.mxu0 0.0
    %5537 = vmatprep.subr.mxu0 0.0
    %5538 = vmatpush1.msra.mxu0 0.0
    %5539 = vmatprep.subr.mxu0 0.0
    %5540 = vmatpush1.msra.mxu0 0.0
    %5541 = vmatprep.subr.mxu0 0.0
    %5542 = vmatpush1.msra.mxu0 0.0
    %5543 = vmatprep.subr.mxu0 0.0
    %5544 = vmatpush1.msra.mxu0 0.0
    %5545 = vmatprep.subr.mxu0 0.0
    %5546 = vmatpush1.msra.mxu0 0.0
    %5547 = vmatprep.subr.mxu0 0.0
    %5548 = vmatpush1.msra.mxu0 0.0
    %5549 = vmatprep.subr.mxu0 0.0
    %5550 = vmatpush1.msra.mxu0 0.0
    %5551 = vmatprep.subr.mxu0 0.0
    %5552 = vmatpush1.msra.mxu0 0.0
    %5553 = vmatprep.subr.mxu0 0.0
    %5554 = vmatpush1.msra.mxu0 0.0
    %5555 = vmatprep.subr.mxu0 0.0
    %5556 = vmatpush1.msra.mxu0 0.0
    %5557 = vmatprep.subr.mxu0 0.0
    %5558 = vmatpush1.msra.mxu0 0.0
    %5559 = vmatprep.subr.mxu0 0.0
    %5560 = vmatpush1.msra.mxu0 0.0
    %5561 = vmatprep.subr.mxu0 0.0
    %5562 = vmatpush1.msra.mxu0 0.0
    %5563 = vmatprep.subr.mxu0 0.0
    %5564 = vmatpush1.msra.mxu0 0.0
    %5565 = vmatprep.mubr.f32.mxu0 0.0
    %5566 = vmatmul.mubr.f32.gmra.mrb[0].mxu0 %v5497
    %v5567 = vpop.f32.mrb[0].mxu0
    %v5568 = vadd.f32 0.0, %v5567
    %v5569 = vpop.f32.mrb[0].mxu0
    %5570 = vdwg.mxu0
    %5571 = vrot.lane.b32.xlu0 %v2600, 64
    %v5572 = vpop.permute.xlu0 %5571
    %v5574 = vsel %vm4724, %v4681, 0
    %v5576 = vsel %vm4728, %v5572, 0
    %5578 = vmatprep.subr.mxu0 0.0
    %5579 = vmatpush1.msra.mxu0 %v5576
    %5580 = vmatprep.subr.mxu0 0.0
    %5581 = vmatpush1.msra.mxu0 0.0
    %5582 = vmatprep.subr.mxu0 0.0
    %5583 = vmatpush1.msra.mxu0 0.0
    %5584 = vmatprep.subr.mxu0 0.0
    %5585 = vmatpush1.msra.mxu0 0.0
    %5586 = vmatprep.subr.mxu0 0.0
    %5587 = vmatpush1.msra.mxu0 0.0
    %5588 = vmatprep.subr.mxu0 0.0
    %5589 = vmatpush1.msra.mxu0 0.0
    %5590 = vmatprep.subr.mxu0 0.0
    %5591 = vmatpush1.msra.mxu0 0.0
    %5592 = vmatprep.subr.mxu0 0.0
    %5593 = vmatpush1.msra.mxu0 0.0
    %5594 = vmatprep.subr.mxu0 0.0
    %5595 = vmatpush1.msra.mxu0 0.0
    %5596 = vmatprep.subr.mxu0 0.0
    %5597 = vmatpush1.msra.mxu0 0.0
    %5598 = vmatprep.subr.mxu0 0.0
    %5599 = vmatpush1.msra.mxu0 0.0
    %5600 = vmatprep.subr.mxu0 0.0
    %5601 = vmatpush1.msra.mxu0 0.0
    %5602 = vmatprep.subr.mxu0 0.0
    %5603 = vmatpush1.msra.mxu0 0.0
    %5604 = vmatprep.subr.mxu0 0.0
    %5605 = vmatpush1.msra.mxu0 0.0
    %5606 = vmatprep.subr.mxu0 0.0
    %5607 = vmatpush1.msra.mxu0 0.0
    %5608 = vmatprep.subr.mxu0 0.0
    %5609 = vmatpush1.msra.mxu0 0.0
    %5610 = vmatprep.subr.mxu0 0.0
    %5611 = vmatpush1.msra.mxu0 0.0
    %5612 = vmatprep.subr.mxu0 0.0
    %5613 = vmatpush1.msra.mxu0 0.0
    %5614 = vmatprep.subr.mxu0 0.0
    %5615 = vmatpush1.msra.mxu0 0.0
    %5616 = vmatprep.subr.mxu0 0.0
    %5617 = vmatpush1.msra.mxu0 0.0
    %5618 = vmatprep.subr.mxu0 0.0
    %5619 = vmatpush1.msra.mxu0 0.0
    %5620 = vmatprep.subr.mxu0 0.0
    %5621 = vmatpush1.msra.mxu0 0.0
    %5622 = vmatprep.subr.mxu0 0.0
    %5623 = vmatpush1.msra.mxu0 0.0
    %5624 = vmatprep.subr.mxu0 0.0
    %5625 = vmatpush1.msra.mxu0 0.0
    %5626 = vmatprep.subr.mxu0 0.0
    %5627 = vmatpush1.msra.mxu0 0.0
    %5628 = vmatprep.subr.mxu0 0.0
    %5629 = vmatpush1.msra.mxu0 0.0
    %5630 = vmatprep.subr.mxu0 0.0
    %5631 = vmatpush1.msra.mxu0 0.0
    %5632 = vmatprep.subr.mxu0 0.0
    %5633 = vmatpush1.msra.mxu0 0.0
    %5634 = vmatprep.subr.mxu0 0.0
    %5635 = vmatpush1.msra.mxu0 0.0
    %5636 = vmatprep.subr.mxu0 0.0
    %5637 = vmatpush1.msra.mxu0 0.0
    %5638 = vmatprep.subr.mxu0 0.0
    %5639 = vmatpush1.msra.mxu0 0.0
    %5640 = vmatprep.subr.mxu0 0.0
    %5641 = vmatpush1.msra.mxu0 0.0
    %5642 = vmatprep.mubr.f32.mxu0 0.0
    %5643 = vmatmul.mubr.f32.gmra.mrb[0].mxu0 %v5574
    %v5644 = vpop.f32.mrb[0].mxu0
    %v5645 = vadd.f32 0.0, %v5644
    %v5646 = vpop.f32.mrb[0].mxu0
    %5647 = vdwg.mxu0
    %5648 = vrot.lane.b32.xlu0 %v2683, 64
    %v5649 = vpop.permute.xlu0 %5648
    %v5651 = vsel %vm4724, %v4683, 0
    %v5653 = vsel %vm4728, %v5649, 0
    %5655 = vmatprep.subr.mxu0 0.0
    %5656 = vmatpush1.msra.mxu0 %v5653
    %5657 = vmatprep.subr.mxu0 0.0
    %5658 = vmatpush1.msra.mxu0 0.0
    %5659 = vmatprep.subr.mxu0 0.0
    %5660 = vmatpush1.msra.mxu0 0.0
    %5661 = vmatprep.subr.mxu0 0.0
    %5662 = vmatpush1.msra.mxu0 0.0
    %5663 = vmatprep.subr.mxu0 0.0
    %5664 = vmatpush1.msra.mxu0 0.0
    %5665 = vmatprep.subr.mxu0 0.0
    %5666 = vmatpush1.msra.mxu0 0.0
    %5667 = vmatprep.subr.mxu0 0.0
    %5668 = vmatpush1.msra.mxu0 0.0
    %5669 = vmatprep.subr.mxu0 0.0
    %5670 = vmatpush1.msra.mxu0 0.0
    %5671 = vmatprep.subr.mxu0 0.0
    %5672 = vmatpush1.msra.mxu0 0.0
    %5673 = vmatprep.subr.mxu0 0.0
    %5674 = vmatpush1.msra.mxu0 0.0
    %5675 = vmatprep.subr.mxu0 0.0
    %5676 = vmatpush1.msra.mxu0 0.0
    %5677 = vmatprep.subr.mxu0 0.0
    %5678 = vmatpush1.msra.mxu0 0.0
    %5679 = vmatprep.subr.mxu0 0.0
    %5680 = vmatpush1.msra.mxu0 0.0
    %5681 = vmatprep.subr.mxu0 0.0
    %5682 = vmatpush1.msra.mxu0 0.0
    %5683 = vmatprep.subr.mxu0 0.0
    %5684 = vmatpush1.msra.mxu0 0.0
    %5685 = vmatprep.subr.mxu0 0.0
    %5686 = vmatpush1.msra.mxu0 0.0
    %5687 = vmatprep.subr.mxu0 0.0
    %5688 = vmatpush1.msra.mxu0 0.0
    %5689 = vmatprep.subr.mxu0 0.0
    %5690 = vmatpush1.msra.mxu0 0.0
    %5691 = vmatprep.subr.mxu0 0.0
    %5692 = vmatpush1.msra.mxu0 0.0
    %5693 = vmatprep.subr.mxu0 0.0
    %5694 = vmatpush1.msra.mxu0 0.0
    %5695 = vmatprep.subr.mxu0 0.0
    %5696 = vmatpush1.msra.mxu0 0.0
    %5697 = vmatprep.subr.mxu0 0.0
    %5698 = vmatpush1.msra.mxu0 0.0
    %5699 = vmatprep.subr.mxu0 0.0
    %5700 = vmatpush1.msra.mxu0 0.0
    %5701 = vmatprep.subr.mxu0 0.0
    %5702 = vmatpush1.msra.mxu0 0.0
    %5703 = vmatprep.subr.mxu0 0.0
    %5704 = vmatpush1.msra.mxu0 0.0
    %5705 = vmatprep.subr.mxu0 0.0
    %5706 = vmatpush1.msra.mxu0 0.0
    %5707 = vmatprep.subr.mxu0 0.0
    %5708 = vmatpush1.msra.mxu0 0.0
    %5709 = vmatprep.subr.mxu0 0.0
    %5710 = vmatpush1.msra.mxu0 0.0
    %5711 = vmatprep.subr.mxu0 0.0
    %5712 = vmatpush1.msra.mxu0 0.0
    %5713 = vmatprep.subr.mxu0 0.0
    %5714 = vmatpush1.msra.mxu0 0.0
    %5715 = vmatprep.subr.mxu0 0.0
    %5716 = vmatpush1.msra.mxu0 0.0
    %5717 = vmatprep.subr.mxu0 0.0
    %5718 = vmatpush1.msra.mxu0 0.0
    %5719 = vmatprep.mubr.f32.mxu0 0.0
    %5720 = vmatmul.mubr.f32.gmra.mrb[0].mxu0 %v5651
    %v5721 = vpop.f32.mrb[0].mxu0
    %v5722 = vadd.f32 0.0, %v5721
    %v5723 = vpop.f32.mrb[0].mxu0
    %5724 = vdwg.mxu0
    %5725 = vrot.lane.b32.xlu0 %v2766, 64
    %v5726 = vpop.permute.xlu0 %5725
    %v5728 = vsel %vm4724, %v4685, 0
    %v5730 = vsel %vm4728, %v5726, 0
    %5732 = vmatprep.subr.mxu0 0.0
    %5733 = vmatpush1.msra.mxu0 %v5730
    %5734 = vmatprep.subr.mxu0 0.0
    %5735 = vmatpush1.msra.mxu0 0.0
    %5736 = vmatprep.subr.mxu0 0.0
    %5737 = vmatpush1.msra.mxu0 0.0
    %5738 = vmatprep.subr.mxu0 0.0
    %5739 = vmatpush1.msra.mxu0 0.0
    %5740 = vmatprep.subr.mxu0 0.0
    %5741 = vmatpush1.msra.mxu0 0.0
    %5742 = vmatprep.subr.mxu0 0.0
    %5743 = vmatpush1.msra.mxu0 0.0
    %5744 = vmatprep.subr.mxu0 0.0
    %5745 = vmatpush1.msra.mxu0 0.0
    %5746 = vmatprep.subr.mxu0 0.0
    %5747 = vmatpush1.msra.mxu0 0.0
    %5748 = vmatprep.subr.mxu0 0.0
    %5749 = vmatpush1.msra.mxu0 0.0
    %5750 = vmatprep.subr.mxu0 0.0
    %5751 = vmatpush1.msra.mxu0 0.0
    %5752 = vmatprep.subr.mxu0 0.0
    %5753 = vmatpush1.msra.mxu0 0.0
    %5754 = vmatprep.subr.mxu0 0.0
    %5755 = vmatpush1.msra.mxu0 0.0
    %5756 = vmatprep.subr.mxu0 0.0
    %5757 = vmatpush1.msra.mxu0 0.0
    %5758 = vmatprep.subr.mxu0 0.0
    %5759 = vmatpush1.msra.mxu0 0.0
    %5760 = vmatprep.subr.mxu0 0.0
    %5761 = vmatpush1.msra.mxu0 0.0
    %5762 = vmatprep.subr.mxu0 0.0
    %5763 = vmatpush1.msra.mxu0 0.0
    %5764 = vmatprep.subr.mxu0 0.0
    %5765 = vmatpush1.msra.mxu0 0.0
    %5766 = vmatprep.subr.mxu0 0.0
    %5767 = vmatpush1.msra.mxu0 0.0
    %5768 = vmatprep.subr.mxu0 0.0
    %5769 = vmatpush1.msra.mxu0 0.0
    %5770 = vmatprep.subr.mxu0 0.0
    %5771 = vmatpush1.msra.mxu0 0.0
    %5772 = vmatprep.subr.mxu0 0.0
    %5773 = vmatpush1.msra.mxu0 0.0
    %5774 = vmatprep.subr.mxu0 0.0
    %5775 = vmatpush1.msra.mxu0 0.0
    %5776 = vmatprep.subr.mxu0 0.0
    %5777 = vmatpush1.msra.mxu0 0.0
    %5778 = vmatprep.subr.mxu0 0.0
    %5779 = vmatpush1.msra.mxu0 0.0
    %5780 = vmatprep.subr.mxu0 0.0
    %5781 = vmatpush1.msra.mxu0 0.0
    %5782 = vmatprep.subr.mxu0 0.0
    %5783 = vmatpush1.msra.mxu0 0.0
    %5784 = vmatprep.subr.mxu0 0.0
    %5785 = vmatpush1.msra.mxu0 0.0
    %5786 = vmatprep.subr.mxu0 0.0
    %5787 = vmatpush1.msra.mxu0 0.0
    %5788 = vmatprep.subr.mxu0 0.0
    %5789 = vmatpush1.msra.mxu0 0.0
    %5790 = vmatprep.subr.mxu0 0.0
    %5791 = vmatpush1.msra.mxu0 0.0
    %5792 = vmatprep.subr.mxu0 0.0
    %5793 = vmatpush1.msra.mxu0 0.0
    %5794 = vmatprep.subr.mxu0 0.0
    %5795 = vmatpush1.msra.mxu0 0.0
    %5796 = vmatprep.mubr.f32.mxu0 0.0
    %5797 = vmatmul.mubr.f32.gmra.mrb[0].mxu0 %v5728
    %v5798 = vpop.f32.mrb[0].mxu0
    %v5799 = vadd.f32 0.0, %v5798
    %v5800 = vpop.f32.mrb[0].mxu0
    %5801 = vdwg.mxu0
    %5802 = vrot.lane.b32.xlu0 %v2849, 64
    %v5803 = vpop.permute.xlu0 %5802
    %v5805 = vsel %vm4724, %v4687, 0
    %v5807 = vsel %vm4728, %v5803, 0
    %5809 = vmatprep.subr.mxu0 0.0
    %5810 = vmatpush1.msra.mxu0 %v5807
    %5811 = vmatprep.subr.mxu0 0.0
    %5812 = vmatpush1.msra.mxu0 0.0
    %5813 = vmatprep.subr.mxu0 0.0
    %5814 = vmatpush1.msra.mxu0 0.0
    %5815 = vmatprep.subr.mxu0 0.0
    %5816 = vmatpush1.msra.mxu0 0.0
    %5817 = vmatprep.subr.mxu0 0.0
    %5818 = vmatpush1.msra.mxu0 0.0
    %5819 = vmatprep.subr.mxu0 0.0
    %5820 = vmatpush1.msra.mxu0 0.0
    %5821 = vmatprep.subr.mxu0 0.0
    %5822 = vmatpush1.msra.mxu0 0.0
    %5823 = vmatprep.subr.mxu0 0.0
    %5824 = vmatpush1.msra.mxu0 0.0
    %5825 = vmatprep.subr.mxu0 0.0
    %5826 = vmatpush1.msra.mxu0 0.0
    %5827 = vmatprep.subr.mxu0 0.0
    %5828 = vmatpush1.msra.mxu0 0.0
    %5829 = vmatprep.subr.mxu0 0.0
    %5830 = vmatpush1.msra.mxu0 0.0
    %5831 = vmatprep.subr.mxu0 0.0
    %5832 = vmatpush1.msra.mxu0 0.0
    %5833 = vmatprep.subr.mxu0 0.0
    %5834 = vmatpush1.msra.mxu0 0.0
    %5835 = vmatprep.subr.mxu0 0.0
    %5836 = vmatpush1.msra.mxu0 0.0
    %5837 = vmatprep.subr.mxu0 0.0
    %5838 = vmatpush1.msra.mxu0 0.0
    %5839 = vmatprep.subr.mxu0 0.0
    %5840 = vmatpush1.msra.mxu0 0.0
    %5841 = vmatprep.subr.mxu0 0.0
    %5842 = vmatpush1.msra.mxu0 0.0
    %5843 = vmatprep.subr.mxu0 0.0
    %5844 = vmatpush1.msra.mxu0 0.0
    %5845 = vmatprep.subr.mxu0 0.0
    %5846 = vmatpush1.msra.mxu0 0.0
    %5847 = vmatprep.subr.mxu0 0.0
    %5848 = vmatpush1.msra.mxu0 0.0
    %5849 = vmatprep.subr.mxu0 0.0
    %5850 = vmatpush1.msra.mxu0 0.0
    %5851 = vmatprep.subr.mxu0 0.0
    %5852 = vmatpush1.msra.mxu0 0.0
    %5853 = vmatprep.subr.mxu0 0.0
    %5854 = vmatpush1.msra.mxu0 0.0
    %5855 = vmatprep.subr.mxu0 0.0
    %5856 = vmatpush1.msra.mxu0 0.0
    %5857 = vmatprep.subr.mxu0 0.0
    %5858 = vmatpush1.msra.mxu0 0.0
    %5859 = vmatprep.subr.mxu0 0.0
    %5860 = vmatpush1.msra.mxu0 0.0
    %5861 = vmatprep.subr.mxu0 0.0
    %5862 = vmatpush1.msra.mxu0 0.0
    %5863 = vmatprep.subr.mxu0 0.0
    %5864 = vmatpush1.msra.mxu0 0.0
    %5865 = vmatprep.subr.mxu0 0.0
    %5866 = vmatpush1.msra.mxu0 0.0
    %5867 = vmatprep.subr.mxu0 0.0
    %5868 = vmatpush1.msra.mxu0 0.0
    %5869 = vmatprep.subr.mxu0 0.0
    %5870 = vmatpush1.msra.mxu0 0.0
    %5871 = vmatprep.subr.mxu0 0.0
    %5872 = vmatpush1.msra.mxu0 0.0
    %5873 = vmatprep.mubr.f32.mxu0 0.0
    %5874 = vmatmul.mubr.f32.gmra.mrb[0].mxu0 %v5805
    %v5875 = vpop.f32.mrb[0].mxu0
    %v5876 = vadd.f32 0.0, %v5875
    %v5877 = vpop.f32.mrb[0].mxu0
    %5878 = vdwg.mxu0
    %5879 = vrot.lane.b32.xlu0 %v2932, 64
    %v5880 = vpop.permute.xlu0 %5879
    %v5882 = vsel %vm4724, %v4689, 0
    %v5884 = vsel %vm4728, %v5880, 0
    %5886 = vmatprep.subr.mxu0 0.0
    %5887 = vmatpush1.msra.mxu0 %v5884
    %5888 = vmatprep.subr.mxu0 0.0
    %5889 = vmatpush1.msra.mxu0 0.0
    %5890 = vmatprep.subr.mxu0 0.0
    %5891 = vmatpush1.msra.mxu0 0.0
    %5892 = vmatprep.subr.mxu0 0.0
    %5893 = vmatpush1.msra.mxu0 0.0
    %5894 = vmatprep.subr.mxu0 0.0
    %5895 = vmatpush1.msra.mxu0 0.0
    %5896 = vmatprep.subr.mxu0 0.0
    %5897 = vmatpush1.msra.mxu0 0.0
    %5898 = vmatprep.subr.mxu0 0.0
    %5899 = vmatpush1.msra.mxu0 0.0
    %5900 = vmatprep.subr.mxu0 0.0
    %5901 = vmatpush1.msra.mxu0 0.0
    %5902 = vmatprep.subr.mxu0 0.0
    %5903 = vmatpush1.msra.mxu0 0.0
    %5904 = vmatprep.subr.mxu0 0.0
    %5905 = vmatpush1.msra.mxu0 0.0
    %5906 = vmatprep.subr.mxu0 0.0
    %5907 = vmatpush1.msra.mxu0 0.0
    %5908 = vmatprep.subr.mxu0 0.0
    %5909 = vmatpush1.msra.mxu0 0.0
    %5910 = vmatprep.subr.mxu0 0.0
    %5911 = vmatpush1.msra.mxu0 0.0
    %5912 = vmatprep.subr.mxu0 0.0
    %5913 = vmatpush1.msra.mxu0 0.0
    %5914 = vmatprep.subr.mxu0 0.0
    %5915 = vmatpush1.msra.mxu0 0.0
    %5916 = vmatprep.subr.mxu0 0.0
    %5917 = vmatpush1.msra.mxu0 0.0
    %5918 = vmatprep.subr.mxu0 0.0
    %5919 = vmatpush1.msra.mxu0 0.0
    %5920 = vmatprep.subr.mxu0 0.0
    %5921 = vmatpush1.msra.mxu0 0.0
    %5922 = vmatprep.subr.mxu0 0.0
    %5923 = vmatpush1.msra.mxu0 0.0
    %5924 = vmatprep.subr.mxu0 0.0
    %5925 = vmatpush1.msra.mxu0 0.0
    %5926 = vmatprep.subr.mxu0 0.0
    %5927 = vmatpush1.msra.mxu0 0.0
    %5928 = vmatprep.subr.mxu0 0.0
    %5929 = vmatpush1.msra.mxu0 0.0
    %5930 = vmatprep.subr.mxu0 0.0
    %5931 = vmatpush1.msra.mxu0 0.0
    %5932 = vmatprep.subr.mxu0 0.0
    %5933 = vmatpush1.msra.mxu0 0.0
    %5934 = vmatprep.subr.mxu0 0.0
    %5935 = vmatpush1.msra.mxu0 0.0
    %5936 = vmatprep.subr.mxu0 0.0
    %5937 = vmatpush1.msra.mxu0 0.0
    %5938 = vmatprep.subr.mxu0 0.0
    %5939 = vmatpush1.msra.mxu0 0.0
    %5940 = vmatprep.subr.mxu0 0.0
    %5941 = vmatpush1.msra.mxu0 0.0
    %5942 = vmatprep.subr.mxu0 0.0
    %5943 = vmatpush1.msra.mxu0 0.0
    %5944 = vmatprep.subr.mxu0 0.0
    %5945 = vmatpush1.msra.mxu0 0.0
    %5946 = vmatprep.subr.mxu0 0.0
    %5947 = vmatpush1.msra.mxu0 0.0
    %5948 = vmatprep.subr.mxu0 0.0
    %5949 = vmatpush1.msra.mxu0 0.0
    %5950 = vmatprep.mubr.f32.mxu0 0.0
    %5951 = vmatmul.mubr.f32.gmra.mrb[0].mxu0 %v5882
    %v5952 = vpop.f32.mrb[0].mxu0
    %v5953 = vadd.f32 0.0, %v5952
    %v5954 = vpop.f32.mrb[0].mxu0
    %5955 = vdwg.mxu0
    %5956 = vrot.lane.b32.xlu0 %v3015, 64
    %v5957 = vpop.permute.xlu0 %5956
    %v5959 = vsel %vm4724, %v4691, 0
    %v5961 = vsel %vm4728, %v5957, 0
    %5963 = vmatprep.subr.mxu0 0.0
    %5964 = vmatpush1.msra.mxu0 %v5961
    %5965 = vmatprep.subr.mxu0 0.0
    %5966 = vmatpush1.msra.mxu0 0.0
    %5967 = vmatprep.subr.mxu0 0.0
    %5968 = vmatpush1.msra.mxu0 0.0
    %5969 = vmatprep.subr.mxu0 0.0
    %5970 = vmatpush1.msra.mxu0 0.0
    %5971 = vmatprep.subr.mxu0 0.0
    %5972 = vmatpush1.msra.mxu0 0.0
    %5973 = vmatprep.subr.mxu0 0.0
    %5974 = vmatpush1.msra.mxu0 0.0
    %5975 = vmatprep.subr.mxu0 0.0
    %5976 = vmatpush1.msra.mxu0 0.0
    %5977 = vmatprep.subr.mxu0 0.0
    %5978 = vmatpush1.msra.mxu0 0.0
    %5979 = vmatprep.subr.mxu0 0.0
    %5980 = vmatpush1.msra.mxu0 0.0
    %5981 = vmatprep.subr.mxu0 0.0
    %5982 = vmatpush1.msra.mxu0 0.0
    %5983 = vmatprep.subr.mxu0 0.0
    %5984 = vmatpush1.msra.mxu0 0.0
    %5985 = vmatprep.subr.mxu0 0.0
    %5986 = vmatpush1.msra.mxu0 0.0
    %5987 = vmatprep.subr.mxu0 0.0
    %5988 = vmatpush1.msra.mxu0 0.0
    %5989 = vmatprep.subr.mxu0 0.0
    %5990 = vmatpush1.msra.mxu0 0.0
    %5991 = vmatprep.subr.mxu0 0.0
    %5992 = vmatpush1.msra.mxu0 0.0
    %5993 = vmatprep.subr.mxu0 0.0
    %5994 = vmatpush1.msra.mxu0 0.0
    %5995 = vmatprep.subr.mxu0 0.0
    %5996 = vmatpush1.msra.mxu0 0.0
    %5997 = vmatprep.subr.mxu0 0.0
    %5998 = vmatpush1.msra.mxu0 0.0
    %5999 = vmatprep.subr.mxu0 0.0
    %6000 = vmatpush1.msra.mxu0 0.0
    %6001 = vmatprep.subr.mxu0 0.0
    %6002 = vmatpush1.msra.mxu0 0.0
    %6003 = vmatprep.subr.mxu0 0.0
    %6004 = vmatpush1.msra.mxu0 0.0
    %6005 = vmatprep.subr.mxu0 0.0
    %6006 = vmatpush1.msra.mxu0 0.0
    %6007 = vmatprep.subr.mxu0 0.0
    %6008 = vmatpush1.msra.mxu0 0.0
    %6009 = vmatprep.subr.mxu0 0.0
    %6010 = vmatpush1.msra.mxu0 0.0
    %6011 = vmatprep.subr.mxu0 0.0
    %6012 = vmatpush1.msra.mxu0 0.0
    %6013 = vmatprep.subr.mxu0 0.0
    %6014 = vmatpush1.msra.mxu0 0.0
    %6015 = vmatprep.subr.mxu0 0.0
    %6016 = vmatpush1.msra.mxu0 0.0
    %6017 = vmatprep.subr.mxu0 0.0
    %6018 = vmatpush1.msra.mxu0 0.0
    %6019 = vmatprep.subr.mxu0 0.0
    %6020 = vmatpush1.msra.mxu0 0.0
    %6021 = vmatprep.subr.mxu0 0.0
    %6022 = vmatpush1.msra.mxu0 0.0
    %6023 = vmatprep.subr.mxu0 0.0
    %6024 = vmatpush1.msra.mxu0 0.0
    %6025 = vmatprep.subr.mxu0 0.0
    %6026 = vmatpush1.msra.mxu0 0.0
    %6027 = vmatprep.mubr.f32.mxu0 0.0
    %6028 = vmatmul.mubr.f32.gmra.mrb[0].mxu0 %v5959
    %v6029 = vpop.f32.mrb[0].mxu0
    %v6030 = vadd.f32 0.0, %v6029
    %v6031 = vpop.f32.mrb[0].mxu0
    %6032 = vdwg.mxu0
    %6033 = vrot.lane.b32.xlu0 %v3098, 64
    %v6034 = vpop.permute.xlu0 %6033
    %v6036 = vsel %vm4724, %v4693, 0
    %v6038 = vsel %vm4728, %v6034, 0
    %6040 = vmatprep.subr.mxu0 0.0
    %6041 = vmatpush1.msra.mxu0 %v6038
    %6042 = vmatprep.subr.mxu0 0.0
    %6043 = vmatpush1.msra.mxu0 0.0
    %6044 = vmatprep.subr.mxu0 0.0
    %6045 = vmatpush1.msra.mxu0 0.0
    %6046 = vmatprep.subr.mxu0 0.0
    %6047 = vmatpush1.msra.mxu0 0.0
    %6048 = vmatprep.subr.mxu0 0.0
    %6049 = vmatpush1.msra.mxu0 0.0
    %6050 = vmatprep.subr.mxu0 0.0
    %6051 = vmatpush1.msra.mxu0 0.0
    %6052 = vmatprep.subr.mxu0 0.0
    %6053 = vmatpush1.msra.mxu0 0.0
    %6054 = vmatprep.subr.mxu0 0.0
    %6055 = vmatpush1.msra.mxu0 0.0
    %6056 = vmatprep.subr.mxu0 0.0
    %6057 = vmatpush1.msra.mxu0 0.0
    %6058 = vmatprep.subr.mxu0 0.0
    %6059 = vmatpush1.msra.mxu0 0.0
    %6060 = vmatprep.subr.mxu0 0.0
    %6061 = vmatpush1.msra.mxu0 0.0
    %6062 = vmatprep.subr.mxu0 0.0
    %6063 = vmatpush1.msra.mxu0 0.0
    %6064 = vmatprep.subr.mxu0 0.0
    %6065 = vmatpush1.msra.mxu0 0.0
    %6066 = vmatprep.subr.mxu0 0.0
    %6067 = vmatpush1.msra.mxu0 0.0
    %6068 = vmatprep.subr.mxu0 0.0
    %6069 = vmatpush1.msra.mxu0 0.0
    %6070 = vmatprep.subr.mxu0 0.0
    %6071 = vmatpush1.msra.mxu0 0.0
    %6072 = vmatprep.subr.mxu0 0.0
    %6073 = vmatpush1.msra.mxu0 0.0
    %6074 = vmatprep.subr.mxu0 0.0
    %6075 = vmatpush1.msra.mxu0 0.0
    %6076 = vmatprep.subr.mxu0 0.0
    %6077 = vmatpush1.msra.mxu0 0.0
    %6078 = vmatprep.subr.mxu0 0.0
    %6079 = vmatpush1.msra.mxu0 0.0
    %6080 = vmatprep.subr.mxu0 0.0
    %6081 = vmatpush1.msra.mxu0 0.0
    %6082 = vmatprep.subr.mxu0 0.0
    %6083 = vmatpush1.msra.mxu0 0.0
    %6084 = vmatprep.subr.mxu0 0.0
    %6085 = vmatpush1.msra.mxu0 0.0
    %6086 = vmatprep.subr.mxu0 0.0
    %6087 = vmatpush1.msra.mxu0 0.0
    %6088 = vmatprep.subr.mxu0 0.0
    %6089 = vmatpush1.msra.mxu0 0.0
    %6090 = vmatprep.subr.mxu0 0.0
    %6091 = vmatpush1.msra.mxu0 0.0
    %6092 = vmatprep.subr.mxu0 0.0
    %6093 = vmatpush1.msra.mxu0 0.0
    %6094 = vmatprep.subr.mxu0 0.0
    %6095 = vmatpush1.msra.mxu0 0.0
    %6096 = vmatprep.subr.mxu0 0.0
    %6097 = vmatpush1.msra.mxu0 0.0
    %6098 = vmatprep.subr.mxu0 0.0
    %6099 = vmatpush1.msra.mxu0 0.0
    %6100 = vmatprep.subr.mxu0 0.0
    %6101 = vmatpush1.msra.mxu0 0.0
    %6102 = vmatprep.subr.mxu0 0.0
    %6103 = vmatpush1.msra.mxu0 0.0
    %6104 = vmatprep.mubr.f32.mxu0 0.0
    %6105 = vmatmul.mubr.f32.gmra.mrb[0].mxu0 %v6036
    %v6106 = vpop.f32.mrb[0].mxu0
    %v6107 = vadd.f32 0.0, %v6106
    %v6108 = vpop.f32.mrb[0].mxu0
    %6109 = vdwg.mxu0
    %6110 = vrot.lane.b32.xlu0 %v3181, 64
    %v6111 = vpop.permute.xlu0 %6110
    %v6113 = vsel %vm4724, %v4695, 0
    %v6115 = vsel %vm4728, %v6111, 0
    %6117 = vmatprep.subr.mxu0 0.0
    %6118 = vmatpush1.msra.mxu0 %v6115
    %6119 = vmatprep.subr.mxu0 0.0
    %6120 = vmatpush1.msra.mxu0 0.0
    %6121 = vmatprep.subr.mxu0 0.0
    %6122 = vmatpush1.msra.mxu0 0.0
    %6123 = vmatprep.subr.mxu0 0.0
    %6124 = vmatpush1.msra.mxu0 0.0
    %6125 = vmatprep.subr.mxu0 0.0
    %6126 = vmatpush1.msra.mxu0 0.0
    %6127 = vmatprep.subr.mxu0 0.0
    %6128 = vmatpush1.msra.mxu0 0.0
    %6129 = vmatprep.subr.mxu0 0.0
    %6130 = vmatpush1.msra.mxu0 0.0
    %6131 = vmatprep.subr.mxu0 0.0
    %6132 = vmatpush1.msra.mxu0 0.0
    %6133 = vmatprep.subr.mxu0 0.0
    %6134 = vmatpush1.msra.mxu0 0.0
    %6135 = vmatprep.subr.mxu0 0.0
    %6136 = vmatpush1.msra.mxu0 0.0
    %6137 = vmatprep.subr.mxu0 0.0
    %6138 = vmatpush1.msra.mxu0 0.0
    %6139 = vmatprep.subr.mxu0 0.0
    %6140 = vmatpush1.msra.mxu0 0.0
    %6141 = vmatprep.subr.mxu0 0.0
    %6142 = vmatpush1.msra.mxu0 0.0
    %6143 = vmatprep.subr.mxu0 0.0
    %6144 = vmatpush1.msra.mxu0 0.0
    %6145 = vmatprep.subr.mxu0 0.0
    %6146 = vmatpush1.msra.mxu0 0.0
    %6147 = vmatprep.subr.mxu0 0.0
    %6148 = vmatpush1.msra.mxu0 0.0
    %6149 = vmatprep.subr.mxu0 0.0
    %6150 = vmatpush1.msra.mxu0 0.0
    %6151 = vmatprep.subr.mxu0 0.0
    %6152 = vmatpush1.msra.mxu0 0.0
    %6153 = vmatprep.subr.mxu0 0.0
    %6154 = vmatpush1.msra.mxu0 0.0
    %6155 = vmatprep.subr.mxu0 0.0
    %6156 = vmatpush1.msra.mxu0 0.0
    %6157 = vmatprep.subr.mxu0 0.0
    %6158 = vmatpush1.msra.mxu0 0.0
    %6159 = vmatprep.subr.mxu0 0.0
    %6160 = vmatpush1.msra.mxu0 0.0
    %6161 = vmatprep.subr.mxu0 0.0
    %6162 = vmatpush1.msra.mxu0 0.0
    %6163 = vmatprep.subr.mxu0 0.0
    %6164 = vmatpush1.msra.mxu0 0.0
    %6165 = vmatprep.subr.mxu0 0.0
    %6166 = vmatpush1.msra.mxu0 0.0
    %6167 = vmatprep.subr.mxu0 0.0
    %6168 = vmatpush1.msra.mxu0 0.0
    %6169 = vmatprep.subr.mxu0 0.0
    %6170 = vmatpush1.msra.mxu0 0.0
    %6171 = vmatprep.subr.mxu0 0.0
    %6172 = vmatpush1.msra.mxu0 0.0
    %6173 = vmatprep.subr.mxu0 0.0
    %6174 = vmatpush1.msra.mxu0 0.0
    %6175 = vmatprep.subr.mxu0 0.0
    %6176 = vmatpush1.msra.mxu0 0.0
    %6177 = vmatprep.subr.mxu0 0.0
    %6178 = vmatpush1.msra.mxu0 0.0
    %6179 = vmatprep.subr.mxu0 0.0
    %6180 = vmatpush1.msra.mxu0 0.0
    %6181 = vmatprep.mubr.f32.mxu0 0.0
    %6182 = vmatmul.mubr.f32.gmra.mrb[0].mxu0 %v6113
    %v6183 = vpop.f32.mrb[0].mxu0
    %v6184 = vadd.f32 0.0, %v6183
    %v6185 = vpop.f32.mrb[0].mxu0
    %6186 = vdwg.mxu0
    %6187 = vrot.lane.b32.xlu0 %v3264, 64
    %v6188 = vpop.permute.xlu0 %6187
    %v6190 = vsel %vm4724, %v4697, 0
    %v6192 = vsel %vm4728, %v6188, 0
    %6194 = vmatprep.subr.mxu0 0.0
    %6195 = vmatpush1.msra.mxu0 %v6192
    %6196 = vmatprep.subr.mxu0 0.0
    %6197 = vmatpush1.msra.mxu0 0.0
    %6198 = vmatprep.subr.mxu0 0.0
    %6199 = vmatpush1.msra.mxu0 0.0
    %6200 = vmatprep.subr.mxu0 0.0
    %6201 = vmatpush1.msra.mxu0 0.0
    %6202 = vmatprep.subr.mxu0 0.0
    %6203 = vmatpush1.msra.mxu0 0.0
    %6204 = vmatprep.subr.mxu0 0.0
    %6205 = vmatpush1.msra.mxu0 0.0
    %6206 = vmatprep.subr.mxu0 0.0
    %6207 = vmatpush1.msra.mxu0 0.0
    %6208 = vmatprep.subr.mxu0 0.0
    %6209 = vmatpush1.msra.mxu0 0.0
    %6210 = vmatprep.subr.mxu0 0.0
    %6211 = vmatpush1.msra.mxu0 0.0
    %6212 = vmatprep.subr.mxu0 0.0
    %6213 = vmatpush1.msra.mxu0 0.0
    %6214 = vmatprep.subr.mxu0 0.0
    %6215 = vmatpush1.msra.mxu0 0.0
    %6216 = vmatprep.subr.mxu0 0.0
    %6217 = vmatpush1.msra.mxu0 0.0
    %6218 = vmatprep.subr.mxu0 0.0
    %6219 = vmatpush1.msra.mxu0 0.0
    %6220 = vmatprep.subr.mxu0 0.0
    %6221 = vmatpush1.msra.mxu0 0.0
    %6222 = vmatprep.subr.mxu0 0.0
    %6223 = vmatpush1.msra.mxu0 0.0
    %6224 = vmatprep.subr.mxu0 0.0
    %6225 = vmatpush1.msra.mxu0 0.0
    %6226 = vmatprep.subr.mxu0 0.0
    %6227 = vmatpush1.msra.mxu0 0.0
    %6228 = vmatprep.subr.mxu0 0.0
    %6229 = vmatpush1.msra.mxu0 0.0
    %6230 = vmatprep.subr.mxu0 0.0
    %6231 = vmatpush1.msra.mxu0 0.0
    %6232 = vmatprep.subr.mxu0 0.0
    %6233 = vmatpush1.msra.mxu0 0.0
    %6234 = vmatprep.subr.mxu0 0.0
    %6235 = vmatpush1.msra.mxu0 0.0
    %6236 = vmatprep.subr.mxu0 0.0
    %6237 = vmatpush1.msra.mxu0 0.0
    %6238 = vmatprep.subr.mxu0 0.0
    %6239 = vmatpush1.msra.mxu0 0.0
    %6240 = vmatprep.subr.mxu0 0.0
    %6241 = vmatpush1.msra.mxu0 0.0
    %6242 = vmatprep.subr.mxu0 0.0
    %6243 = vmatpush1.msra.mxu0 0.0
    %6244 = vmatprep.subr.mxu0 0.0
    %6245 = vmatpush1.msra.mxu0 0.0
    %6246 = vmatprep.subr.mxu0 0.0
    %6247 = vmatpush1.msra.mxu0 0.0
    %6248 = vmatprep.subr.mxu0 0.0
    %6249 = vmatpush1.msra.mxu0 0.0
    %6250 = vmatprep.subr.mxu0 0.0
    %6251 = vmatpush1.msra.mxu0 0.0
    %6252 = vmatprep.subr.mxu0 0.0
    %6253 = vmatpush1.msra.mxu0 0.0
    %6254 = vmatprep.subr.mxu0 0.0
    %6255 = vmatpush1.msra.mxu0 0.0
    %6256 = vmatprep.subr.mxu0 0.0
    %6257 = vmatpush1.msra.mxu0 0.0
    %6258 = vmatprep.mubr.f32.mxu0 0.0
    %6259 = vmatmul.mubr.f32.gmra.mrb[0].mxu0 %v6190
    %v6260 = vpop.f32.mrb[0].mxu0
    %v6261 = vadd.f32 0.0, %v6260
    %v6262 = vpop.f32.mrb[0].mxu0
    %6263 = vdwg.mxu0
    %6264 = vrot.lane.b32.xlu0 %v3347, 64
    %v6265 = vpop.permute.xlu0 %6264
    %v6267 = vsel %vm4724, %v4699, 0
    %v6269 = vsel %vm4728, %v6265, 0
    %6271 = vmatprep.subr.mxu0 0.0
    %6272 = vmatpush1.msra.mxu0 %v6269
    %6273 = vmatprep.subr.mxu0 0.0
    %6274 = vmatpush1.msra.mxu0 0.0
    %6275 = vmatprep.subr.mxu0 0.0
    %6276 = vmatpush1.msra.mxu0 0.0
    %6277 = vmatprep.subr.mxu0 0.0
    %6278 = vmatpush1.msra.mxu0 0.0
    %6279 = vmatprep.subr.mxu0 0.0
    %6280 = vmatpush1.msra.mxu0 0.0
    %6281 = vmatprep.subr.mxu0 0.0
    %6282 = vmatpush1.msra.mxu0 0.0
    %6283 = vmatprep.subr.mxu0 0.0
    %6284 = vmatpush1.msra.mxu0 0.0
    %6285 = vmatprep.subr.mxu0 0.0
    %6286 = vmatpush1.msra.mxu0 0.0
    %6287 = vmatprep.subr.mxu0 0.0
    %6288 = vmatpush1.msra.mxu0 0.0
    %6289 = vmatprep.subr.mxu0 0.0
    %6290 = vmatpush1.msra.mxu0 0.0
    %6291 = vmatprep.subr.mxu0 0.0
    %6292 = vmatpush1.msra.mxu0 0.0
    %6293 = vmatprep.subr.mxu0 0.0
    %6294 = vmatpush1.msra.mxu0 0.0
    %6295 = vmatprep.subr.mxu0 0.0
    %6296 = vmatpush1.msra.mxu0 0.0
    %6297 = vmatprep.subr.mxu0 0.0
    %6298 = vmatpush1.msra.mxu0 0.0
    %6299 = vmatprep.subr.mxu0 0.0
    %6300 = vmatpush1.msra.mxu0 0.0
    %6301 = vmatprep.subr.mxu0 0.0
    %6302 = vmatpush1.msra.mxu0 0.0
    %6303 = vmatprep.subr.mxu0 0.0
    %6304 = vmatpush1.msra.mxu0 0.0
    %6305 = vmatprep.subr.mxu0 0.0
    %6306 = vmatpush1.msra.mxu0 0.0
    %6307 = vmatprep.subr.mxu0 0.0
    %6308 = vmatpush1.msra.mxu0 0.0
    %6309 = vmatprep.subr.mxu0 0.0
    %6310 = vmatpush1.msra.mxu0 0.0
    %6311 = vmatprep.subr.mxu0 0.0
    %6312 = vmatpush1.msra.mxu0 0.0
    %6313 = vmatprep.subr.mxu0 0.0
    %6314 = vmatpush1.msra.mxu0 0.0
    %6315 = vmatprep.subr.mxu0 0.0
    %6316 = vmatpush1.msra.mxu0 0.0
    %6317 = vmatprep.subr.mxu0 0.0
    %6318 = vmatpush1.msra.mxu0 0.0
    %6319 = vmatprep.subr.mxu0 0.0
    %6320 = vmatpush1.msra.mxu0 0.0
    %6321 = vmatprep.subr.mxu0 0.0
    %6322 = vmatpush1.msra.mxu0 0.0
    %6323 = vmatprep.subr.mxu0 0.0
    %6324 = vmatpush1.msra.mxu0 0.0
    %6325 = vmatprep.subr.mxu0 0.0
    %6326 = vmatpush1.msra.mxu0 0.0
    %6327 = vmatprep.subr.mxu0 0.0
    %6328 = vmatpush1.msra.mxu0 0.0
    %6329 = vmatprep.subr.mxu0 0.0
    %6330 = vmatpush1.msra.mxu0 0.0
    %6331 = vmatprep.subr.mxu0 0.0
    %6332 = vmatpush1.msra.mxu0 0.0
    %6333 = vmatprep.subr.mxu0 0.0
    %6334 = vmatpush1.msra.mxu0 0.0
    %6335 = vmatprep.mubr.f32.mxu0 0.0
    %6336 = vmatmul.mubr.f32.gmra.mrb[0].mxu0 %v6267
    %v6337 = vpop.f32.mrb[0].mxu0
    %v6338 = vadd.f32 0.0, %v6337
    %v6339 = vpop.f32.mrb[0].mxu0
    %6340 = vdwg.mxu0
    %6341 = vrot.lane.b32.xlu0 %v3430, 64
    %v6342 = vpop.permute.xlu0 %6341
    %v6344 = vsel %vm4724, %v4701, 0
    %v6346 = vsel %vm4728, %v6342, 0
    %6348 = vmatprep.subr.mxu0 0.0
    %6349 = vmatpush1.msra.mxu0 %v6346
    %6350 = vmatprep.subr.mxu0 0.0
    %6351 = vmatpush1.msra.mxu0 0.0
    %6352 = vmatprep.subr.mxu0 0.0
    %6353 = vmatpush1.msra.mxu0 0.0
    %6354 = vmatprep.subr.mxu0 0.0
    %6355 = vmatpush1.msra.mxu0 0.0
    %6356 = vmatprep.subr.mxu0 0.0
    %6357 = vmatpush1.msra.mxu0 0.0
    %6358 = vmatprep.subr.mxu0 0.0
    %6359 = vmatpush1.msra.mxu0 0.0
    %6360 = vmatprep.subr.mxu0 0.0
    %6361 = vmatpush1.msra.mxu0 0.0
    %6362 = vmatprep.subr.mxu0 0.0
    %6363 = vmatpush1.msra.mxu0 0.0
    %6364 = vmatprep.subr.mxu0 0.0
    %6365 = vmatpush1.msra.mxu0 0.0
    %6366 = vmatprep.subr.mxu0 0.0
    %6367 = vmatpush1.msra.mxu0 0.0
    %6368 = vmatprep.subr.mxu0 0.0
    %6369 = vmatpush1.msra.mxu0 0.0
    %6370 = vmatprep.subr.mxu0 0.0
    %6371 = vmatpush1.msra.mxu0 0.0
    %6372 = vmatprep.subr.mxu0 0.0
    %6373 = vmatpush1.msra.mxu0 0.0
    %6374 = vmatprep.subr.mxu0 0.0
    %6375 = vmatpush1.msra.mxu0 0.0
    %6376 = vmatprep.subr.mxu0 0.0
    %6377 = vmatpush1.msra.mxu0 0.0
    %6378 = vmatprep.subr.mxu0 0.0
    %6379 = vmatpush1.msra.mxu0 0.0
    %6380 = vmatprep.subr.mxu0 0.0
    %6381 = vmatpush1.msra.mxu0 0.0
    %6382 = vmatprep.subr.mxu0 0.0
    %6383 = vmatpush1.msra.mxu0 0.0
    %6384 = vmatprep.subr.mxu0 0.0
    %6385 = vmatpush1.msra.mxu0 0.0
    %6386 = vmatprep.subr.mxu0 0.0
    %6387 = vmatpush1.msra.mxu0 0.0
    %6388 = vmatprep.subr.mxu0 0.0
    %6389 = vmatpush1.msra.mxu0 0.0
    %6390 = vmatprep.subr.mxu0 0.0
    %6391 = vmatpush1.msra.mxu0 0.0
    %6392 = vmatprep.subr.mxu0 0.0
    %6393 = vmatpush1.msra.mxu0 0.0
    %6394 = vmatprep.subr.mxu0 0.0
    %6395 = vmatpush1.msra.mxu0 0.0
    %6396 = vmatprep.subr.mxu0 0.0
    %6397 = vmatpush1.msra.mxu0 0.0
    %6398 = vmatprep.subr.mxu0 0.0
    %6399 = vmatpush1.msra.mxu0 0.0
    %6400 = vmatprep.subr.mxu0 0.0
    %6401 = vmatpush1.msra.mxu0 0.0
    %6402 = vmatprep.subr.mxu0 0.0
    %6403 = vmatpush1.msra.mxu0 0.0
    %6404 = vmatprep.subr.mxu0 0.0
    %6405 = vmatpush1.msra.mxu0 0.0
    %6406 = vmatprep.subr.mxu0 0.0
    %6407 = vmatpush1.msra.mxu0 0.0
    %6408 = vmatprep.subr.mxu0 0.0
    %6409 = vmatpush1.msra.mxu0 0.0
    %6410 = vmatprep.subr.mxu0 0.0
    %6411 = vmatpush1.msra.mxu0 0.0
    %6412 = vmatprep.mubr.f32.mxu0 0.0
    %6413 = vmatmul.mubr.f32.gmra.mrb[0].mxu0 %v6344
    %v6414 = vpop.f32.mrb[0].mxu0
    %v6415 = vadd.f32 0.0, %v6414
    %v6416 = vpop.f32.mrb[0].mxu0
    %6417 = vdwg.mxu0
    %6418 = vrot.lane.b32.xlu0 %v3513, 64
    %v6419 = vpop.permute.xlu0 %6418
    %v6421 = vsel %vm4724, %v4703, 0
    %v6423 = vsel %vm4728, %v6419, 0
    %6425 = vmatprep.subr.mxu0 0.0
    %6426 = vmatpush1.msra.mxu0 %v6423
    %6427 = vmatprep.subr.mxu0 0.0
    %6428 = vmatpush1.msra.mxu0 0.0
    %6429 = vmatprep.subr.mxu0 0.0
    %6430 = vmatpush1.msra.mxu0 0.0
    %6431 = vmatprep.subr.mxu0 0.0
    %6432 = vmatpush1.msra.mxu0 0.0
    %6433 = vmatprep.subr.mxu0 0.0
    %6434 = vmatpush1.msra.mxu0 0.0
    %6435 = vmatprep.subr.mxu0 0.0
    %6436 = vmatpush1.msra.mxu0 0.0
    %6437 = vmatprep.subr.mxu0 0.0
    %6438 = vmatpush1.msra.mxu0 0.0
    %6439 = vmatprep.subr.mxu0 0.0
    %6440 = vmatpush1.msra.mxu0 0.0
    %6441 = vmatprep.subr.mxu0 0.0
    %6442 = vmatpush1.msra.mxu0 0.0
    %6443 = vmatprep.subr.mxu0 0.0
    %6444 = vmatpush1.msra.mxu0 0.0
    %6445 = vmatprep.subr.mxu0 0.0
    %6446 = vmatpush1.msra.mxu0 0.0
    %6447 = vmatprep.subr.mxu0 0.0
    %6448 = vmatpush1.msra.mxu0 0.0
    %6449 = vmatprep.subr.mxu0 0.0
    %6450 = vmatpush1.msra.mxu0 0.0
    %6451 = vmatprep.subr.mxu0 0.0
    %6452 = vmatpush1.msra.mxu0 0.0
    %6453 = vmatprep.subr.mxu0 0.0
    %6454 = vmatpush1.msra.mxu0 0.0
    %6455 = vmatprep.subr.mxu0 0.0
    %6456 = vmatpush1.msra.mxu0 0.0
    %6457 = vmatprep.subr.mxu0 0.0
    %6458 = vmatpush1.msra.mxu0 0.0
    %6459 = vmatprep.subr.mxu0 0.0
    %6460 = vmatpush1.msra.mxu0 0.0
    %6461 = vmatprep.subr.mxu0 0.0
    %6462 = vmatpush1.msra.mxu0 0.0
    %6463 = vmatprep.subr.mxu0 0.0
    %6464 = vmatpush1.msra.mxu0 0.0
    %6465 = vmatprep.subr.mxu0 0.0
    %6466 = vmatpush1.msra.mxu0 0.0
    %6467 = vmatprep.subr.mxu0 0.0
    %6468 = vmatpush1.msra.mxu0 0.0
    %6469 = vmatprep.subr.mxu0 0.0
    %6470 = vmatpush1.msra.mxu0 0.0
    %6471 = vmatprep.subr.mxu0 0.0
    %6472 = vmatpush1.msra.mxu0 0.0
    %6473 = vmatprep.subr.mxu0 0.0
    %6474 = vmatpush1.msra.mxu0 0.0
    %6475 = vmatprep.subr.mxu0 0.0
    %6476 = vmatpush1.msra.mxu0 0.0
    %6477 = vmatprep.subr.mxu0 0.0
    %6478 = vmatpush1.msra.mxu0 0.0
    %6479 = vmatprep.subr.mxu0 0.0
    %6480 = vmatpush1.msra.mxu0 0.0
    %6481 = vmatprep.subr.mxu0 0.0
    %6482 = vmatpush1.msra.mxu0 0.0
    %6483 = vmatprep.subr.mxu0 0.0
    %6484 = vmatpush1.msra.mxu0 0.0
    %6485 = vmatprep.subr.mxu0 0.0
    %6486 = vmatpush1.msra.mxu0 0.0
    %6487 = vmatprep.subr.mxu0 0.0
    %6488 = vmatpush1.msra.mxu0 0.0
    %6489 = vmatprep.mubr.f32.mxu0 0.0
    %6490 = vmatmul.mubr.f32.gmra.mrb[0].mxu0 %v6421
    %v6491 = vpop.f32.mrb[0].mxu0
    %v6492 = vadd.f32 0.0, %v6491
    %v6493 = vpop.f32.mrb[0].mxu0
    %6494 = vdwg.mxu0
    %6495 = vrot.lane.b32.xlu0 %v3596, 64
    %v6496 = vpop.permute.xlu0 %6495
    %v6498 = vsel %vm4724, %v4705, 0
    %v6500 = vsel %vm4728, %v6496, 0
    %6502 = vmatprep.subr.mxu0 0.0
    %6503 = vmatpush1.msra.mxu0 %v6500
    %6504 = vmatprep.subr.mxu0 0.0
    %6505 = vmatpush1.msra.mxu0 0.0
    %6506 = vmatprep.subr.mxu0 0.0
    %6507 = vmatpush1.msra.mxu0 0.0
    %6508 = vmatprep.subr.mxu0 0.0
    %6509 = vmatpush1.msra.mxu0 0.0
    %6510 = vmatprep.subr.mxu0 0.0
    %6511 = vmatpush1.msra.mxu0 0.0
    %6512 = vmatprep.subr.mxu0 0.0
    %6513 = vmatpush1.msra.mxu0 0.0
    %6514 = vmatprep.subr.mxu0 0.0
    %6515 = vmatpush1.msra.mxu0 0.0
    %6516 = vmatprep.subr.mxu0 0.0
    %6517 = vmatpush1.msra.mxu0 0.0
    %6518 = vmatprep.subr.mxu0 0.0
    %6519 = vmatpush1.msra.mxu0 0.0
    %6520 = vmatprep.subr.mxu0 0.0
    %6521 = vmatpush1.msra.mxu0 0.0
    %6522 = vmatprep.subr.mxu0 0.0
    %6523 = vmatpush1.msra.mxu0 0.0
    %6524 = vmatprep.subr.mxu0 0.0
    %6525 = vmatpush1.msra.mxu0 0.0
    %6526 = vmatprep.subr.mxu0 0.0
    %6527 = vmatpush1.msra.mxu0 0.0
    %6528 = vmatprep.subr.mxu0 0.0
    %6529 = vmatpush1.msra.mxu0 0.0
    %6530 = vmatprep.subr.mxu0 0.0
    %6531 = vmatpush1.msra.mxu0 0.0
    %6532 = vmatprep.subr.mxu0 0.0
    %6533 = vmatpush1.msra.mxu0 0.0
    %6534 = vmatprep.subr.mxu0 0.0
    %6535 = vmatpush1.msra.mxu0 0.0
    %6536 = vmatprep.subr.mxu0 0.0
    %6537 = vmatpush1.msra.mxu0 0.0
    %6538 = vmatprep.subr.mxu0 0.0
    %6539 = vmatpush1.msra.mxu0 0.0
    %6540 = vmatprep.subr.mxu0 0.0
    %6541 = vmatpush1.msra.mxu0 0.0
    %6542 = vmatprep.subr.mxu0 0.0
    %6543 = vmatpush1.msra.mxu0 0.0
    %6544 = vmatprep.subr.mxu0 0.0
    %6545 = vmatpush1.msra.mxu0 0.0
    %6546 = vmatprep.subr.mxu0 0.0
    %6547 = vmatpush1.msra.mxu0 0.0
    %6548 = vmatprep.subr.mxu0 0.0
    %6549 = vmatpush1.msra.mxu0 0.0
    %6550 = vmatprep.subr.mxu0 0.0
    %6551 = vmatpush1.msra.mxu0 0.0
    %6552 = vmatprep.subr.mxu0 0.0
    %6553 = vmatpush1.msra.mxu0 0.0
    %6554 = vmatprep.subr.mxu0 0.0
    %6555 = vmatpush1.msra.mxu0 0.0
    %6556 = vmatprep.subr.mxu0 0.0
    %6557 = vmatpush1.msra.mxu0 0.0
    %6558 = vmatprep.subr.mxu0 0.0
    %6559 = vmatpush1.msra.mxu0 0.0
    %6560 = vmatprep.subr.mxu0 0.0
    %6561 = vmatpush1.msra.mxu0 0.0
    %6562 = vmatprep.subr.mxu0 0.0
    %6563 = vmatpush1.msra.mxu0 0.0
    %6564 = vmatprep.subr.mxu0 0.0
    %6565 = vmatpush1.msra.mxu0 0.0
    %6566 = vmatprep.mubr.f32.mxu0 0.0
    %6567 = vmatmul.mubr.f32.gmra.mrb[0].mxu0 %v6498
    %v6568 = vpop.f32.mrb[0].mxu0
    %v6569 = vadd.f32 0.0, %v6568
    %v6570 = vpop.f32.mrb[0].mxu0
    %6571 = vdwg.mxu0
    %6572 = vrot.lane.b32.xlu0 %v3679, 64
    %v6573 = vpop.permute.xlu0 %6572
    %v6575 = vsel %vm4724, %v4707, 0
    %v6577 = vsel %vm4728, %v6573, 0
    %6579 = vmatprep.subr.mxu0 0.0
    %6580 = vmatpush1.msra.mxu0 %v6577
    %6581 = vmatprep.subr.mxu0 0.0
    %6582 = vmatpush1.msra.mxu0 0.0
    %6583 = vmatprep.subr.mxu0 0.0
    %6584 = vmatpush1.msra.mxu0 0.0
    %6585 = vmatprep.subr.mxu0 0.0
    %6586 = vmatpush1.msra.mxu0 0.0
    %6587 = vmatprep.subr.mxu0 0.0
    %6588 = vmatpush1.msra.mxu0 0.0
    %6589 = vmatprep.subr.mxu0 0.0
    %6590 = vmatpush1.msra.mxu0 0.0
    %6591 = vmatprep.subr.mxu0 0.0
    %6592 = vmatpush1.msra.mxu0 0.0
    %6593 = vmatprep.subr.mxu0 0.0
    %6594 = vmatpush1.msra.mxu0 0.0
    %6595 = vmatprep.subr.mxu0 0.0
    %6596 = vmatpush1.msra.mxu0 0.0
    %6597 = vmatprep.subr.mxu0 0.0
    %6598 = vmatpush1.msra.mxu0 0.0
    %6599 = vmatprep.subr.mxu0 0.0
    %6600 = vmatpush1.msra.mxu0 0.0
    %6601 = vmatprep.subr.mxu0 0.0
    %6602 = vmatpush1.msra.mxu0 0.0
    %6603 = vmatprep.subr.mxu0 0.0
    %6604 = vmatpush1.msra.mxu0 0.0
    %6605 = vmatprep.subr.mxu0 0.0
    %6606 = vmatpush1.msra.mxu0 0.0
    %6607 = vmatprep.subr.mxu0 0.0
    %6608 = vmatpush1.msra.mxu0 0.0
    %6609 = vmatprep.subr.mxu0 0.0
    %6610 = vmatpush1.msra.mxu0 0.0
    %6611 = vmatprep.subr.mxu0 0.0
    %6612 = vmatpush1.msra.mxu0 0.0
    %6613 = vmatprep.subr.mxu0 0.0
    %6614 = vmatpush1.msra.mxu0 0.0
    %6615 = vmatprep.subr.mxu0 0.0
    %6616 = vmatpush1.msra.mxu0 0.0
    %6617 = vmatprep.subr.mxu0 0.0
    %6618 = vmatpush1.msra.mxu0 0.0
    %6619 = vmatprep.subr.mxu0 0.0
    %6620 = vmatpush1.msra.mxu0 0.0
    %6621 = vmatprep.subr.mxu0 0.0
    %6622 = vmatpush1.msra.mxu0 0.0
    %6623 = vmatprep.subr.mxu0 0.0
    %6624 = vmatpush1.msra.mxu0 0.0
    %6625 = vmatprep.subr.mxu0 0.0
    %6626 = vmatpush1.msra.mxu0 0.0
    %6627 = vmatprep.subr.mxu0 0.0
    %6628 = vmatpush1.msra.mxu0 0.0
    %6629 = vmatprep.subr.mxu0 0.0
    %6630 = vmatpush1.msra.mxu0 0.0
    %6631 = vmatprep.subr.mxu0 0.0
    %6632 = vmatpush1.msra.mxu0 0.0
    %6633 = vmatprep.subr.mxu0 0.0
    %6634 = vmatpush1.msra.mxu0 0.0
    %6635 = vmatprep.subr.mxu0 0.0
    %6636 = vmatpush1.msra.mxu0 0.0
    %6637 = vmatprep.subr.mxu0 0.0
    %6638 = vmatpush1.msra.mxu0 0.0
    %6639 = vmatprep.subr.mxu0 0.0
    %6640 = vmatpush1.msra.mxu0 0.0
    %6641 = vmatprep.subr.mxu0 0.0
    %6642 = vmatpush1.msra.mxu0 0.0
    %6643 = vmatprep.mubr.f32.mxu0 0.0
    %6644 = vmatmul.mubr.f32.gmra.mrb[0].mxu0 %v6575
    %v6645 = vpop.f32.mrb[0].mxu0
    %v6646 = vadd.f32 0.0, %v6645
    %v6647 = vpop.f32.mrb[0].mxu0
    %6648 = vdwg.mxu0
    %6649 = vrot.lane.b32.xlu0 %v3762, 64
    %v6650 = vpop.permute.xlu0 %6649
    %v6652 = vsel %vm4724, %v4709, 0
    %v6654 = vsel %vm4728, %v6650, 0
    %6656 = vmatprep.subr.mxu0 0.0
    %6657 = vmatpush1.msra.mxu0 %v6654
    %6658 = vmatprep.subr.mxu0 0.0
    %6659 = vmatpush1.msra.mxu0 0.0
    %6660 = vmatprep.subr.mxu0 0.0
    %6661 = vmatpush1.msra.mxu0 0.0
    %6662 = vmatprep.subr.mxu0 0.0
    %6663 = vmatpush1.msra.mxu0 0.0
    %6664 = vmatprep.subr.mxu0 0.0
    %6665 = vmatpush1.msra.mxu0 0.0
    %6666 = vmatprep.subr.mxu0 0.0
    %6667 = vmatpush1.msra.mxu0 0.0
    %6668 = vmatprep.subr.mxu0 0.0
    %6669 = vmatpush1.msra.mxu0 0.0
    %6670 = vmatprep.subr.mxu0 0.0
    %6671 = vmatpush1.msra.mxu0 0.0
    %6672 = vmatprep.subr.mxu0 0.0
    %6673 = vmatpush1.msra.mxu0 0.0
    %6674 = vmatprep.subr.mxu0 0.0
    %6675 = vmatpush1.msra.mxu0 0.0
    %6676 = vmatprep.subr.mxu0 0.0
    %6677 = vmatpush1.msra.mxu0 0.0
    %6678 = vmatprep.subr.mxu0 0.0
    %6679 = vmatpush1.msra.mxu0 0.0
    %6680 = vmatprep.subr.mxu0 0.0
    %6681 = vmatpush1.msra.mxu0 0.0
    %6682 = vmatprep.subr.mxu0 0.0
    %6683 = vmatpush1.msra.mxu0 0.0
    %6684 = vmatprep.subr.mxu0 0.0
    %6685 = vmatpush1.msra.mxu0 0.0
    %6686 = vmatprep.subr.mxu0 0.0
    %6687 = vmatpush1.msra.mxu0 0.0
    %6688 = vmatprep.subr.mxu0 0.0
    %6689 = vmatpush1.msra.mxu0 0.0
    %6690 = vmatprep.subr.mxu0 0.0
    %6691 = vmatpush1.msra.mxu0 0.0
    %6692 = vmatprep.subr.mxu0 0.0
    %6693 = vmatpush1.msra.mxu0 0.0
    %6694 = vmatprep.subr.mxu0 0.0
    %6695 = vmatpush1.msra.mxu0 0.0
    %6696 = vmatprep.subr.mxu0 0.0
    %6697 = vmatpush1.msra.mxu0 0.0
    %6698 = vmatprep.subr.mxu0 0.0
    %6699 = vmatpush1.msra.mxu0 0.0
    %6700 = vmatprep.subr.mxu0 0.0
    %6701 = vmatpush1.msra.mxu0 0.0
    %6702 = vmatprep.subr.mxu0 0.0
    %6703 = vmatpush1.msra.mxu0 0.0
    %6704 = vmatprep.subr.mxu0 0.0
    %6705 = vmatpush1.msra.mxu0 0.0
    %6706 = vmatprep.subr.mxu0 0.0
    %6707 = vmatpush1.msra.mxu0 0.0
    %6708 = vmatprep.subr.mxu0 0.0
    %6709 = vmatpush1.msra.mxu0 0.0
    %6710 = vmatprep.subr.mxu0 0.0
    %6711 = vmatpush1.msra.mxu0 0.0
    %6712 = vmatprep.subr.mxu0 0.0
    %6713 = vmatpush1.msra.mxu0 0.0
    %6714 = vmatprep.subr.mxu0 0.0
    %6715 = vmatpush1.msra.mxu0 0.0
    %6716 = vmatprep.subr.mxu0 0.0
    %6717 = vmatpush1.msra.mxu0 0.0
    %6718 = vmatprep.subr.mxu0 0.0
    %6719 = vmatpush1.msra.mxu0 0.0
    %6720 = vmatprep.mubr.f32.mxu0 0.0
    %6721 = vmatmul.mubr.f32.gmra.mrb[0].mxu0 %v6652
    %v6722 = vpop.f32.mrb[0].mxu0
    %v6723 = vadd.f32 0.0, %v6722
    %v6724 = vpop.f32.mrb[0].mxu0
    %6725 = vdwg.mxu0
    %6726 = vrot.lane.b32.xlu0 %v3845, 64
    %v6727 = vpop.permute.xlu0 %6726
    %v6729 = vsel %vm4724, %v4711, 0
    %v6731 = vsel %vm4728, %v6727, 0
    %6733 = vmatprep.subr.mxu0 0.0
    %6734 = vmatpush1.msra.mxu0 %v6731
    %6735 = vmatprep.subr.mxu0 0.0
    %6736 = vmatpush1.msra.mxu0 0.0
    %6737 = vmatprep.subr.mxu0 0.0
    %6738 = vmatpush1.msra.mxu0 0.0
    %6739 = vmatprep.subr.mxu0 0.0
    %6740 = vmatpush1.msra.mxu0 0.0
    %6741 = vmatprep.subr.mxu0 0.0
    %6742 = vmatpush1.msra.mxu0 0.0
    %6743 = vmatprep.subr.mxu0 0.0
    %6744 = vmatpush1.msra.mxu0 0.0
    %6745 = vmatprep.subr.mxu0 0.0
    %6746 = vmatpush1.msra.mxu0 0.0
    %6747 = vmatprep.subr.mxu0 0.0
    %6748 = vmatpush1.msra.mxu0 0.0
    %6749 = vmatprep.subr.mxu0 0.0
    %6750 = vmatpush1.msra.mxu0 0.0
    %6751 = vmatprep.subr.mxu0 0.0
    %6752 = vmatpush1.msra.mxu0 0.0
    %6753 = vmatprep.subr.mxu0 0.0
    %6754 = vmatpush1.msra.mxu0 0.0
    %6755 = vmatprep.subr.mxu0 0.0
    %6756 = vmatpush1.msra.mxu0 0.0
    %6757 = vmatprep.subr.mxu0 0.0
    %6758 = vmatpush1.msra.mxu0 0.0
    %6759 = vmatprep.subr.mxu0 0.0
    %6760 = vmatpush1.msra.mxu0 0.0
    %6761 = vmatprep.subr.mxu0 0.0
    %6762 = vmatpush1.msra.mxu0 0.0
    %6763 = vmatprep.subr.mxu0 0.0
    %6764 = vmatpush1.msra.mxu0 0.0
    %6765 = vmatprep.subr.mxu0 0.0
    %6766 = vmatpush1.msra.mxu0 0.0
    %6767 = vmatprep.subr.mxu0 0.0
    %6768 = vmatpush1.msra.mxu0 0.0
    %6769 = vmatprep.subr.mxu0 0.0
    %6770 = vmatpush1.msra.mxu0 0.0
    %6771 = vmatprep.subr.mxu0 0.0
    %6772 = vmatpush1.msra.mxu0 0.0
    %6773 = vmatprep.subr.mxu0 0.0
    %6774 = vmatpush1.msra.mxu0 0.0
    %6775 = vmatprep.subr.mxu0 0.0
    %6776 = vmatpush1.msra.mxu0 0.0
    %6777 = vmatprep.subr.mxu0 0.0
    %6778 = vmatpush1.msra.mxu0 0.0
    %6779 = vmatprep.subr.mxu0 0.0
    %6780 = vmatpush1.msra.mxu0 0.0
    %6781 = vmatprep.subr.mxu0 0.0
    %6782 = vmatpush1.msra.mxu0 0.0
    %6783 = vmatprep.subr.mxu0 0.0
    %6784 = vmatpush1.msra.mxu0 0.0
    %6785 = vmatprep.subr.mxu0 0.0
    %6786 = vmatpush1.msra.mxu0 0.0
    %6787 = vmatprep.subr.mxu0 0.0
    %6788 = vmatpush1.msra.mxu0 0.0
    %6789 = vmatprep.subr.mxu0 0.0
    %6790 = vmatpush1.msra.mxu0 0.0
    %6791 = vmatprep.subr.mxu0 0.0
    %6792 = vmatpush1.msra.mxu0 0.0
    %6793 = vmatprep.subr.mxu0 0.0
    %6794 = vmatpush1.msra.mxu0 0.0
    %6795 = vmatprep.subr.mxu0 0.0
    %6796 = vmatpush1.msra.mxu0 0.0
    %6797 = vmatprep.mubr.f32.mxu0 0.0
    %6798 = vmatmul.mubr.f32.gmra.mrb[0].mxu0 %v6729
    %v6799 = vpop.f32.mrb[0].mxu0
    %v6800 = vadd.f32 0.0, %v6799
    %v6801 = vpop.f32.mrb[0].mxu0
    %6802 = vdwg.mxu0
    %6803 = vrot.lane.b32.xlu0 %v3928, 64
    %v6804 = vpop.permute.xlu0 %6803
    %v6806 = vsel %vm4724, %v4713, 0
    %v6808 = vsel %vm4728, %v6804, 0
    %6810 = vmatprep.subr.mxu0 0.0
    %6811 = vmatpush1.msra.mxu0 %v6808
    %6812 = vmatprep.subr.mxu0 0.0
    %6813 = vmatpush1.msra.mxu0 0.0
    %6814 = vmatprep.subr.mxu0 0.0
    %6815 = vmatpush1.msra.mxu0 0.0
    %6816 = vmatprep.subr.mxu0 0.0
    %6817 = vmatpush1.msra.mxu0 0.0
    %6818 = vmatprep.subr.mxu0 0.0
    %6819 = vmatpush1.msra.mxu0 0.0
    %6820 = vmatprep.subr.mxu0 0.0
    %6821 = vmatpush1.msra.mxu0 0.0
    %6822 = vmatprep.subr.mxu0 0.0
    %6823 = vmatpush1.msra.mxu0 0.0
    %6824 = vmatprep.subr.mxu0 0.0
    %6825 = vmatpush1.msra.mxu0 0.0
    %6826 = vmatprep.subr.mxu0 0.0
    %6827 = vmatpush1.msra.mxu0 0.0
    %6828 = vmatprep.subr.mxu0 0.0
    %6829 = vmatpush1.msra.mxu0 0.0
    %6830 = vmatprep.subr.mxu0 0.0
    %6831 = vmatpush1.msra.mxu0 0.0
    %6832 = vmatprep.subr.mxu0 0.0
    %6833 = vmatpush1.msra.mxu0 0.0
    %6834 = vmatprep.subr.mxu0 0.0
    %6835 = vmatpush1.msra.mxu0 0.0
    %6836 = vmatprep.subr.mxu0 0.0
    %6837 = vmatpush1.msra.mxu0 0.0
    %6838 = vmatprep.subr.mxu0 0.0
    %6839 = vmatpush1.msra.mxu0 0.0
    %6840 = vmatprep.subr.mxu0 0.0
    %6841 = vmatpush1.msra.mxu0 0.0
    %6842 = vmatprep.subr.mxu0 0.0
    %6843 = vmatpush1.msra.mxu0 0.0
    %6844 = vmatprep.subr.mxu0 0.0
    %6845 = vmatpush1.msra.mxu0 0.0
    %6846 = vmatprep.subr.mxu0 0.0
    %6847 = vmatpush1.msra.mxu0 0.0
    %6848 = vmatprep.subr.mxu0 0.0
    %6849 = vmatpush1.msra.mxu0 0.0
    %6850 = vmatprep.subr.mxu0 0.0
    %6851 = vmatpush1.msra.mxu0 0.0
    %6852 = vmatprep.subr.mxu0 0.0
    %6853 = vmatpush1.msra.mxu0 0.0
    %6854 = vmatprep.subr.mxu0 0.0
    %6855 = vmatpush1.msra.mxu0 0.0
    %6856 = vmatprep.subr.mxu0 0.0
    %6857 = vmatpush1.msra.mxu0 0.0
    %6858 = vmatprep.subr.mxu0 0.0
    %6859 = vmatpush1.msra.mxu0 0.0
    %6860 = vmatprep.subr.mxu0 0.0
    %6861 = vmatpush1.msra.mxu0 0.0
    %6862 = vmatprep.subr.mxu0 0.0
    %6863 = vmatpush1.msra.mxu0 0.0
    %6864 = vmatprep.subr.mxu0 0.0
    %6865 = vmatpush1.msra.mxu0 0.0
    %6866 = vmatprep.subr.mxu0 0.0
    %6867 = vmatpush1.msra.mxu0 0.0
    %6868 = vmatprep.subr.mxu0 0.0
    %6869 = vmatpush1.msra.mxu0 0.0
    %6870 = vmatprep.subr.mxu0 0.0
    %6871 = vmatpush1.msra.mxu0 0.0
    %6872 = vmatprep.subr.mxu0 0.0
    %6873 = vmatpush1.msra.mxu0 0.0
    %6874 = vmatprep.mubr.f32.mxu0 0.0
    %6875 = vmatmul.mubr.f32.gmra.mrb[0].mxu0 %v6806
    %v6876 = vpop.f32.mrb[0].mxu0
    %v6877 = vadd.f32 0.0, %v6876
    %v6878 = vpop.f32.mrb[0].mxu0
    %6879 = vdwg.mxu0
    %6880 = vrot.lane.b32.xlu0 %v4011, 64
    %v6881 = vpop.permute.xlu0 %6880
    %v6883 = vsel %vm4724, %v4715, 0
    %v6885 = vsel %vm4728, %v6881, 0
    %6887 = vmatprep.subr.mxu0 0.0
    %6888 = vmatpush1.msra.mxu0 %v6885
    %6889 = vmatprep.subr.mxu0 0.0
    %6890 = vmatpush1.msra.mxu0 0.0
    %6891 = vmatprep.subr.mxu0 0.0
    %6892 = vmatpush1.msra.mxu0 0.0
    %6893 = vmatprep.subr.mxu0 0.0
    %6894 = vmatpush1.msra.mxu0 0.0
    %6895 = vmatprep.subr.mxu0 0.0
    %6896 = vmatpush1.msra.mxu0 0.0
    %6897 = vmatprep.subr.mxu0 0.0
    %6898 = vmatpush1.msra.mxu0 0.0
    %6899 = vmatprep.subr.mxu0 0.0
    %6900 = vmatpush1.msra.mxu0 0.0
    %6901 = vmatprep.subr.mxu0 0.0
    %6902 = vmatpush1.msra.mxu0 0.0
    %6903 = vmatprep.subr.mxu0 0.0
    %6904 = vmatpush1.msra.mxu0 0.0
    %6905 = vmatprep.subr.mxu0 0.0
    %6906 = vmatpush1.msra.mxu0 0.0
    %6907 = vmatprep.subr.mxu0 0.0
    %6908 = vmatpush1.msra.mxu0 0.0
    %6909 = vmatprep.subr.mxu0 0.0
    %6910 = vmatpush1.msra.mxu0 0.0
    %6911 = vmatprep.subr.mxu0 0.0
    %6912 = vmatpush1.msra.mxu0 0.0
    %6913 = vmatprep.subr.mxu0 0.0
    %6914 = vmatpush1.msra.mxu0 0.0
    %6915 = vmatprep.subr.mxu0 0.0
    %6916 = vmatpush1.msra.mxu0 0.0
    %6917 = vmatprep.subr.mxu0 0.0
    %6918 = vmatpush1.msra.mxu0 0.0
    %6919 = vmatprep.subr.mxu0 0.0
    %6920 = vmatpush1.msra.mxu0 0.0
    %6921 = vmatprep.subr.mxu0 0.0
    %6922 = vmatpush1.msra.mxu0 0.0
    %6923 = vmatprep.subr.mxu0 0.0
    %6924 = vmatpush1.msra.mxu0 0.0
    %6925 = vmatprep.subr.mxu0 0.0
    %6926 = vmatpush1.msra.mxu0 0.0
    %6927 = vmatprep.subr.mxu0 0.0
    %6928 = vmatpush1.msra.mxu0 0.0
    %6929 = vmatprep.subr.mxu0 0.0
    %6930 = vmatpush1.msra.mxu0 0.0
    %6931 = vmatprep.subr.mxu0 0.0
    %6932 = vmatpush1.msra.mxu0 0.0
    %6933 = vmatprep.subr.mxu0 0.0
    %6934 = vmatpush1.msra.mxu0 0.0
    %6935 = vmatprep.subr.mxu0 0.0
    %6936 = vmatpush1.msra.mxu0 0.0
    %6937 = vmatprep.subr.mxu0 0.0
    %6938 = vmatpush1.msra.mxu0 0.0
    %6939 = vmatprep.subr.mxu0 0.0
    %6940 = vmatpush1.msra.mxu0 0.0
    %6941 = vmatprep.subr.mxu0 0.0
    %6942 = vmatpush1.msra.mxu0 0.0
    %6943 = vmatprep.subr.mxu0 0.0
    %6944 = vmatpush1.msra.mxu0 0.0
    %6945 = vmatprep.subr.mxu0 0.0
    %6946 = vmatpush1.msra.mxu0 0.0
    %6947 = vmatprep.subr.mxu0 0.0
    %6948 = vmatpush1.msra.mxu0 0.0
    %6949 = vmatprep.subr.mxu0 0.0
    %6950 = vmatpush1.msra.mxu0 0.0
    %6951 = vmatprep.mubr.f32.mxu0 0.0
    %6952 = vmatmul.mubr.f32.gmra.mrb[0].mxu0 %v6883
    %v6953 = vpop.f32.mrb[0].mxu0
    %v6954 = vadd.f32 0.0, %v6953
    %v6955 = vpop.f32.mrb[0].mxu0
    %6956 = vdwg.mxu0
    %6957 = vrot.lane.b32.xlu0 %v4094, 64
    %v6958 = vpop.permute.xlu0 %6957
    %v6960 = vsel %vm4724, %v4717, 0
    %v6962 = vsel %vm4728, %v6958, 0
    %6964 = vmatprep.subr.mxu0 0.0
    %6965 = vmatpush1.msra.mxu0 %v6962
    %6966 = vmatprep.subr.mxu0 0.0
    %6967 = vmatpush1.msra.mxu0 0.0
    %6968 = vmatprep.subr.mxu0 0.0
    %6969 = vmatpush1.msra.mxu0 0.0
    %6970 = vmatprep.subr.mxu0 0.0
    %6971 = vmatpush1.msra.mxu0 0.0
    %6972 = vmatprep.subr.mxu0 0.0
    %6973 = vmatpush1.msra.mxu0 0.0
    %6974 = vmatprep.subr.mxu0 0.0
    %6975 = vmatpush1.msra.mxu0 0.0
    %6976 = vmatprep.subr.mxu0 0.0
    %6977 = vmatpush1.msra.mxu0 0.0
    %6978 = vmatprep.subr.mxu0 0.0
    %6979 = vmatpush1.msra.mxu0 0.0
    %6980 = vmatprep.subr.mxu0 0.0
    %6981 = vmatpush1.msra.mxu0 0.0
    %6982 = vmatprep.subr.mxu0 0.0
    %6983 = vmatpush1.msra.mxu0 0.0
    %6984 = vmatprep.subr.mxu0 0.0
    %6985 = vmatpush1.msra.mxu0 0.0
    %6986 = vmatprep.subr.mxu0 0.0
    %6987 = vmatpush1.msra.mxu0 0.0
    %6988 = vmatprep.subr.mxu0 0.0
    %6989 = vmatpush1.msra.mxu0 0.0
    %6990 = vmatprep.subr.mxu0 0.0
    %6991 = vmatpush1.msra.mxu0 0.0
    %6992 = vmatprep.subr.mxu0 0.0
    %6993 = vmatpush1.msra.mxu0 0.0
    %6994 = vmatprep.subr.mxu0 0.0
    %6995 = vmatpush1.msra.mxu0 0.0
    %6996 = vmatprep.subr.mxu0 0.0
    %6997 = vmatpush1.msra.mxu0 0.0
    %6998 = vmatprep.subr.mxu0 0.0
    %6999 = vmatpush1.msra.mxu0 0.0
    %7000 = vmatprep.subr.mxu0 0.0
    %7001 = vmatpush1.msra.mxu0 0.0
    %7002 = vmatprep.subr.mxu0 0.0
    %7003 = vmatpush1.msra.mxu0 0.0
    %7004 = vmatprep.subr.mxu0 0.0
    %7005 = vmatpush1.msra.mxu0 0.0
    %7006 = vmatprep.subr.mxu0 0.0
    %7007 = vmatpush1.msra.mxu0 0.0
    %7008 = vmatprep.subr.mxu0 0.0
    %7009 = vmatpush1.msra.mxu0 0.0
    %7010 = vmatprep.subr.mxu0 0.0
    %7011 = vmatpush1.msra.mxu0 0.0
    %7012 = vmatprep.subr.mxu0 0.0
    %7013 = vmatpush1.msra.mxu0 0.0
    %7014 = vmatprep.subr.mxu0 0.0
    %7015 = vmatpush1.msra.mxu0 0.0
    %7016 = vmatprep.subr.mxu0 0.0
    %7017 = vmatpush1.msra.mxu0 0.0
    %7018 = vmatprep.subr.mxu0 0.0
    %7019 = vmatpush1.msra.mxu0 0.0
    %7020 = vmatprep.subr.mxu0 0.0
    %7021 = vmatpush1.msra.mxu0 0.0
    %7022 = vmatprep.subr.mxu0 0.0
    %7023 = vmatpush1.msra.mxu0 0.0
    %7024 = vmatprep.subr.mxu0 0.0
    %7025 = vmatpush1.msra.mxu0 0.0
    %7026 = vmatprep.subr.mxu0 0.0
    %7027 = vmatpush1.msra.mxu0 0.0
    %7028 = vmatprep.mubr.f32.mxu0 0.0
    %7029 = vmatmul.mubr.f32.gmra.mrb[0].mxu0 %v6960
    %v7030 = vpop.f32.mrb[0].mxu0
    %v7031 = vadd.f32 0.0, %v7030
    %v7032 = vpop.f32.mrb[0].mxu0
    %7033 = vdwg.mxu0
    %7034 = vrot.lane.b32.xlu0 %v4177, 64
    %v7035 = vpop.permute.xlu0 %7034
    %v7037 = vsel %vm4724, %v4719, 0
    %v7039 = vsel %vm4728, %v7035, 0
    %7041 = vmatprep.subr.mxu0 0.0
    %7042 = vmatpush1.msra.mxu0 %v7039
    %7043 = vmatprep.subr.mxu0 0.0
    %7044 = vmatpush1.msra.mxu0 0.0
    %7045 = vmatprep.subr.mxu0 0.0
    %7046 = vmatpush1.msra.mxu0 0.0
    %7047 = vmatprep.subr.mxu0 0.0
    %7048 = vmatpush1.msra.mxu0 0.0
    %7049 = vmatprep.subr.mxu0 0.0
    %7050 = vmatpush1.msra.mxu0 0.0
    %7051 = vmatprep.subr.mxu0 0.0
    %7052 = vmatpush1.msra.mxu0 0.0
    %7053 = vmatprep.subr.mxu0 0.0
    %7054 = vmatpush1.msra.mxu0 0.0
    %7055 = vmatprep.subr.mxu0 0.0
    %7056 = vmatpush1.msra.mxu0 0.0
    %7057 = vmatprep.subr.mxu0 0.0
    %7058 = vmatpush1.msra.mxu0 0.0
    %7059 = vmatprep.subr.mxu0 0.0
    %7060 = vmatpush1.msra.mxu0 0.0
    %7061 = vmatprep.subr.mxu0 0.0
    %7062 = vmatpush1.msra.mxu0 0.0
    %7063 = vmatprep.subr.mxu0 0.0
    %7064 = vmatpush1.msra.mxu0 0.0
    %7065 = vmatprep.subr.mxu0 0.0
    %7066 = vmatpush1.msra.mxu0 0.0
    %7067 = vmatprep.subr.mxu0 0.0
    %7068 = vmatpush1.msra.mxu0 0.0
    %7069 = vmatprep.subr.mxu0 0.0
    %7070 = vmatpush1.msra.mxu0 0.0
    %7071 = vmatprep.subr.mxu0 0.0
    %7072 = vmatpush1.msra.mxu0 0.0
    %7073 = vmatprep.subr.mxu0 0.0
    %7074 = vmatpush1.msra.mxu0 0.0
    %7075 = vmatprep.subr.mxu0 0.0
    %7076 = vmatpush1.msra.mxu0 0.0
    %7077 = vmatprep.subr.mxu0 0.0
    %7078 = vmatpush1.msra.mxu0 0.0
    %7079 = vmatprep.subr.mxu0 0.0
    %7080 = vmatpush1.msra.mxu0 0.0
    %7081 = vmatprep.subr.mxu0 0.0
    %7082 = vmatpush1.msra.mxu0 0.0
    %7083 = vmatprep.subr.mxu0 0.0
    %7084 = vmatpush1.msra.mxu0 0.0
    %7085 = vmatprep.subr.mxu0 0.0
    %7086 = vmatpush1.msra.mxu0 0.0
    %7087 = vmatprep.subr.mxu0 0.0
    %7088 = vmatpush1.msra.mxu0 0.0
    %7089 = vmatprep.subr.mxu0 0.0
    %7090 = vmatpush1.msra.mxu0 0.0
    %7091 = vmatprep.subr.mxu0 0.0
    %7092 = vmatpush1.msra.mxu0 0.0
    %7093 = vmatprep.subr.mxu0 0.0
    %7094 = vmatpush1.msra.mxu0 0.0
    %7095 = vmatprep.subr.mxu0 0.0
    %7096 = vmatpush1.msra.mxu0 0.0
    %7097 = vmatprep.subr.mxu0 0.0
    %7098 = vmatpush1.msra.mxu0 0.0
    %7099 = vmatprep.subr.mxu0 0.0
    %7100 = vmatpush1.msra.mxu0 0.0
    %7101 = vmatprep.subr.mxu0 0.0
    %7102 = vmatpush1.msra.mxu0 0.0
    %7103 = vmatprep.subr.mxu0 0.0
    %7104 = vmatpush1.msra.mxu0 0.0
    %7105 = vmatprep.mubr.f32.mxu0 0.0
    %7106 = vmatmul.mubr.f32.gmra.mrb[0].mxu0 %v7037
    %v7107 = vpop.f32.mrb[0].mxu0
    %v7108 = vadd.f32 0.0, %v7107
    %v7109 = vpop.f32.mrb[0].mxu0
    %7110 = vdwg.mxu0
    %7111 = vrot.lane.b32.xlu0 %v4260, 64
    %v7112 = vpop.permute.xlu0 %7111
    %v7114 = vsel %vm4724, %v4721, 0
    %v7116 = vsel %vm4728, %v7112, 0
    %7118 = vmatprep.subr.mxu0 0.0
    %7119 = vmatpush1.msra.mxu0 %v7116
    %7120 = vmatprep.subr.mxu0 0.0
    %7121 = vmatpush1.msra.mxu0 0.0
    %7122 = vmatprep.subr.mxu0 0.0
    %7123 = vmatpush1.msra.mxu0 0.0
    %7124 = vmatprep.subr.mxu0 0.0
    %7125 = vmatpush1.msra.mxu0 0.0
    %7126 = vmatprep.subr.mxu0 0.0
    %7127 = vmatpush1.msra.mxu0 0.0
    %7128 = vmatprep.subr.mxu0 0.0
    %7129 = vmatpush1.msra.mxu0 0.0
    %7130 = vmatprep.subr.mxu0 0.0
    %7131 = vmatpush1.msra.mxu0 0.0
    %7132 = vmatprep.subr.mxu0 0.0
    %7133 = vmatpush1.msra.mxu0 0.0
    %7134 = vmatprep.subr.mxu0 0.0
    %7135 = vmatpush1.msra.mxu0 0.0
    %7136 = vmatprep.subr.mxu0 0.0
    %7137 = vmatpush1.msra.mxu0 0.0
    %7138 = vmatprep.subr.mxu0 0.0
    %7139 = vmatpush1.msra.mxu0 0.0
    %7140 = vmatprep.subr.mxu0 0.0
    %7141 = vmatpush1.msra.mxu0 0.0
    %7142 = vmatprep.subr.mxu0 0.0
    %7143 = vmatpush1.msra.mxu0 0.0
    %7144 = vmatprep.subr.mxu0 0.0
    %7145 = vmatpush1.msra.mxu0 0.0
    %7146 = vmatprep.subr.mxu0 0.0
    %7147 = vmatpush1.msra.mxu0 0.0
    %7148 = vmatprep.subr.mxu0 0.0
    %7149 = vmatpush1.msra.mxu0 0.0
    %7150 = vmatprep.subr.mxu0 0.0
    %7151 = vmatpush1.msra.mxu0 0.0
    %7152 = vmatprep.subr.mxu0 0.0
    %7153 = vmatpush1.msra.mxu0 0.0
    %7154 = vmatprep.subr.mxu0 0.0
    %7155 = vmatpush1.msra.mxu0 0.0
    %7156 = vmatprep.subr.mxu0 0.0
    %7157 = vmatpush1.msra.mxu0 0.0
    %7158 = vmatprep.subr.mxu0 0.0
    %7159 = vmatpush1.msra.mxu0 0.0
    %7160 = vmatprep.subr.mxu0 0.0
    %7161 = vmatpush1.msra.mxu0 0.0
    %7162 = vmatprep.subr.mxu0 0.0
    %7163 = vmatpush1.msra.mxu0 0.0
    %7164 = vmatprep.subr.mxu0 0.0
    %7165 = vmatpush1.msra.mxu0 0.0
    %7166 = vmatprep.subr.mxu0 0.0
    %7167 = vmatpush1.msra.mxu0 0.0
    %7168 = vmatprep.subr.mxu0 0.0
    %7169 = vmatpush1.msra.mxu0 0.0
    %7170 = vmatprep.subr.mxu0 0.0
    %7171 = vmatpush1.msra.mxu0 0.0
    %7172 = vmatprep.subr.mxu0 0.0
    %7173 = vmatpush1.msra.mxu0 0.0
    %7174 = vmatprep.subr.mxu0 0.0
    %7175 = vmatpush1.msra.mxu0 0.0
    %7176 = vmatprep.subr.mxu0 0.0
    %7177 = vmatpush1.msra.mxu0 0.0
    %7178 = vmatprep.subr.mxu0 0.0
    %7179 = vmatpush1.msra.mxu0 0.0
    %7180 = vmatprep.subr.mxu0 0.0
    %7181 = vmatpush1.msra.mxu0 0.0
    %7182 = vmatprep.mubr.f32.mxu0 0.0
    %7183 = vmatmul.mubr.f32.gmra.mrb[0].mxu0 %v7114
    %v7184 = vpop.f32.mrb[0].mxu0
    %v7185 = vadd.f32 0.0, %v7184
    %v7186 = vpop.f32.mrb[0].mxu0
    %7187 = vdwg.mxu0
    %vm7188 = vcmask 58368
    %v7189 = vsel %vm7188, %v4798, 0.0
    %v7190 = vsel %vm7188, %v4875, 0.0
    %v7191 = vadd.f32 %v7189, %v7190
    %v7192 = vsel %vm7188, %v4952, 0.0
    %v7193 = vadd.f32 %v7191, %v7192
    %v7194 = vsel %vm7188, %v5029, 0.0
    %v7195 = vadd.f32 %v7193, %v7194
    %v7196 = vsel %vm7188, %v5106, 0.0
    %v7197 = vadd.f32 %v7195, %v7196
    %v7198 = vsel %vm7188, %v5183, 0.0
    %v7199 = vadd.f32 %v7197, %v7198
    %v7200 = vsel %vm7188, %v5260, 0.0
    %v7201 = vadd.f32 %v7199, %v7200
    %v7202 = vsel %vm7188, %v5337, 0.0
    %v7203 = vadd.f32 %v7201, %v7202
    %v7204 = vsel %vm7188, %v5414, 0.0
    %v7205 = vsel %vm7188, %v5491, 0.0
    %v7206 = vadd.f32 %v7204, %v7205
    %v7207 = vsel %vm7188, %v5568, 0.0
    %v7208 = vadd.f32 %v7206, %v7207
    %v7209 = vsel %vm7188, %v5645, 0.0
    %v7210 = vadd.f32 %v7208, %v7209
    %v7211 = vsel %vm7188, %v5722, 0.0
    %v7212 = vadd.f32 %v7210, %v7211
    %v7213 = vsel %vm7188, %v5799, 0.0
    %v7214 = vadd.f32 %v7212, %v7213
    %v7215 = vsel %vm7188, %v5876, 0.0
    %v7216 = vadd.f32 %v7214, %v7215
    %v7217 = vsel %vm7188, %v5953, 0.0
    %v7218 = vadd.f32 %v7216, %v7217
    %v7219 = vsel %vm7188, %v6030, 0.0
    %v7220 = vsel %vm7188, %v6107, 0.0
    %v7221 = vadd.f32 %v7219, %v7220
    %v7222 = vsel %vm7188, %v6184, 0.0
    %v7223 = vadd.f32 %v7221, %v7222
    %v7224 = vsel %vm7188, %v6261, 0.0
    %v7225 = vadd.f32 %v7223, %v7224
    %v7226 = vsel %vm7188, %v6338, 0.0
    %v7227 = vadd.f32 %v7225, %v7226
    %v7228 = vsel %vm7188, %v6415, 0.0
    %v7229 = vadd.f32 %v7227, %v7228
    %v7230 = vsel %vm7188, %v6492, 0.0
    %v7231 = vadd.f32 %v7229, %v7230
    %v7232 = vsel %vm7188, %v6569, 0.0
    %v7233 = vadd.f32 %v7231, %v7232
    %v7234 = vsel %vm7188, %v6646, 0.0
    %v7235 = vsel %vm7188, %v6723, 0.0
    %v7236 = vadd.f32 %v7234, %v7235
    %v7237 = vsel %vm7188, %v6800, 0.0
    %v7238 = vadd.f32 %v7236, %v7237
    %v7239 = vsel %vm7188, %v6877, 0.0
    %v7240 = vadd.f32 %v7238, %v7239
    %v7241 = vsel %vm7188, %v6954, 0.0
    %v7242 = vadd.f32 %v7240, %v7241
    %v7243 = vsel %vm7188, %v7031, 0.0
    %v7244 = vadd.f32 %v7242, %v7243
    %v7245 = vsel %vm7188, %v7108, 0.0
    %v7246 = vadd.f32 %v7244, %v7245
    %v7247 = vsel %vm7188, %v7185, 0.0
    %v7248 = vadd.f32 %v7246, %v7247
    %v7249 = vrcp.pop 8.0
    %v7250 = vmul.f32 %v7203, %v7249
    %v7251 = vmul.f32 %v7218, %v7249
    %v7252 = vmul.f32 %v7233, %v7249
    %v7253 = vmul.f32 %v7248, %v7249
    %7255 = vrot.lane.b32.xlu0 %v7251, 8
    %v7256 = vpop.permute.xlu0 %7255
    %7259 = vrot.lane.b32.xlu0 %v7252, 16
    %v7260 = vpop.permute.xlu0 %7259
    %7263 = vrot.lane.b32.xlu0 %v7253, 24
    %v7264 = vpop.permute.xlu0 %7263
    %v7266 = vsel %vm131, %v7250, %v7256
    %v7267 = vsel %vm1468, %v7266, %v7260
    %v7268 = vsel %vm1471, %v7267, %v7264
    %v7269 = vlaneseq
    %v7270 = vshrl.u32 %v7269, 7
    %v7271 = vsub.s32 0, %v7270
    %v7272 = vrot.slane %v26, %v7271
    %v7274 = vsel %vm33, %v7268, 0
    %7276 = vmatprep.subr.mxu0 0.0
    %7277 = vmatpush1.msra.mxu0 %v22
    %7278 = vmatprep.subr.mxu0 0.0
    %7279 = vmatpush1.msra.mxu0 %v23
    %7280 = vmatprep.subr.mxu0 0.0
    %7281 = vmatpush1.msra.mxu0 %v24
    %7282 = vmatprep.subr.mxu0 0.0
    %7283 = vmatpush1.msra.mxu0 %v25
    %7284 = vmatprep.subr.mxu0 0.0
    %7285 = vmatpush1.msra.mxu0 0.0
    %7286 = vmatprep.subr.mxu0 0.0
    %7287 = vmatpush1.msra.mxu0 0.0
    %7288 = vmatprep.subr.mxu0 0.0
    %7289 = vmatpush1.msra.mxu0 0.0
    %7290 = vmatprep.subr.mxu0 0.0
    %7291 = vmatpush1.msra.mxu0 0.0
    %7292 = vmatprep.subr.mxu0 0.0
    %7293 = vmatpush1.msra.mxu0 0.0
    %7294 = vmatprep.subr.mxu0 0.0
    %7295 = vmatpush1.msra.mxu0 0.0
    %7296 = vmatprep.subr.mxu0 0.0
    %7297 = vmatpush1.msra.mxu0 0.0
    %7298 = vmatprep.subr.mxu0 0.0
    %7299 = vmatpush1.msra.mxu0 0.0
    %7300 = vmatprep.subr.mxu0 0.0
    %7301 = vmatpush1.msra.mxu0 0.0
    %7302 = vmatprep.subr.mxu0 0.0
    %7303 = vmatpush1.msra.mxu0 0.0
    %7304 = vmatprep.subr.mxu0 0.0
    %7305 = vmatpush1.msra.mxu0 0.0
    %7306 = vmatprep.subr.mxu0 0.0
    %7307 = vmatpush1.msra.mxu0 0.0
    %7308 = vmatprep.subr.mxu0 0.0
    %7309 = vmatpush1.msra.mxu0 0.0
    %7310 = vmatprep.subr.mxu0 0.0
    %7311 = vmatpush1.msra.mxu0 0.0
    %7312 = vmatprep.subr.mxu0 0.0
    %7313 = vmatpush1.msra.mxu0 0.0
    %7314 = vmatprep.subr.mxu0 0.0
    %7315 = vmatpush1.msra.mxu0 0.0
    %7316 = vmatprep.subr.mxu0 0.0
    %7317 = vmatpush1.msra.mxu0 0.0
    %7318 = vmatprep.subr.mxu0 0.0
    %7319 = vmatpush1.msra.mxu0 0.0
    %7320 = vmatprep.subr.mxu0 0.0
    %7321 = vmatpush1.msra.mxu0 0.0
    %7322 = vmatprep.subr.mxu0 0.0
    %7323 = vmatpush1.msra.mxu0 0.0
    %7324 = vmatprep.subr.mxu0 0.0
    %7325 = vmatpush1.msra.mxu0 0.0
    %7326 = vmatprep.subr.mxu0 0.0
    %7327 = vmatpush1.msra.mxu0 0.0
    %7328 = vmatprep.subr.mxu0 0.0
    %7329 = vmatpush1.msra.mxu0 0.0
    %7330 = vmatprep.subr.mxu0 0.0
    %7331 = vmatpush1.msra.mxu0 0.0
    %7332 = vmatprep.subr.mxu0 0.0
    %7333 = vmatpush1.msra.mxu0 0.0
    %7334 = vmatprep.subr.mxu0 0.0
    %7335 = vmatpush1.msra.mxu0 0.0
    %7336 = vmatprep.subr.mxu0 0.0
    %7337 = vmatpush1.msra.mxu0 0.0
    %7338 = vmatprep.subr.mxu0 0.0
    %7339 = vmatpush1.msra.mxu0 0.0
    %7340 = vmatprep.mubr.f32.mxu0 0.0
    %7341 = vmatmul.mubr.f32.gmra.mrb[0].mxu0 %v7274
    %v7342 = vpop.f32.mrb[0].mxu0
    %v7343 = vadd.f32 %v7272, %v7342
    %v7344 = vpop.f32.mrb[0].mxu0
    %7345 = vdwg.mxu0
    %vm7346 = vcmask 254976
    %7347 = vst.msk [vmem:[#allocation2] sm:$0x3] %vm7346, %v7343
    // Predicated region
    $region10: #{test_model_forward.1} parent=1 // pred_check
      _
    $region11: #{test_model_forward.1} parent=1 // pred_check_branch
      %7349 = sbr.rel (0) target = $region13
    $region12: #{test_model_forward.1} parent=1 // pred_region
      %s7351 = ssub.s32 32, 32
      %7352 = vsyncadd [#allocation3], %s7351
      %s7354 = sshll.u32 [#allocation2], 4
      %s7355 = int_to_ptr.vmem [resolvable:$true] %s7354
      %7357 = dma.vmem_to_hbm [thread:$0]  %s7355, 32, %s2, [#allocation3]
    $region13: #{test_model_forward.1} parent=1 // pred_fallthru
      _
    // Predicated region
    $region14: #{test_model_forward.1} parent=1 // pred_check
      _
    $region15: #{test_model_forward.1} parent=1 // pred_check_branch
      %7359 = sbr.rel (0) target = $region17
    $region16: #{test_model_forward.1} parent=1 // pred_region
      %7360 = dma.done [#allocation3], 32
    $region17: #{test_model_forward.1} parent=1 // pred_fallthru
      _
    %7361 = vsyncpa [#allocation3], 1

</llo_original>
